<compile_context>
chip_gen: v7x
topology: tpu7x:2x2x1
jax: 0.10.0
libtpu: 0.0.40
codegen_flags: <defaults>
</compile_context>

<pallas_src>
import jax
import jax.numpy as jnp
from jax.experimental import pallas as pl
from jax.experimental.pallas import tpu as pltpu

LANE = 128   # pad channels up to a multiple of the 128-lane width
LPAD = 8     # left column border of the padded scratch (sublane-8 aligned interior)


def convblock_kernel(x_ref, w1_ref, w2_ref, s1_ref, b1_ref, s2_ref, b2_ref,
                     out_ref, pad_scr, patch_scr):
    """Fused conv1 -> bn1 -> relu -> conv2 -> bn2 -> (+x) -> relu, one image.

    x_ref     : (1, H, W, Cp) f32    input block (also the residual)
    w*_ref    : (9*Cp, Cp)    bf16   im2col weights, tap-major rows (kh*3+kw)
    s*_ref    : (1, 1, Cp)    f32    folded BN scale
    b*_ref    : (1, 1, Cp)    f32    folded BN bias (includes conv bias)
    out_ref   : (1, H, W, Cp) f32    output block
    pad_scr   : (H+2, WP, Cp) bf16   zero-bordered activation scratch
                                     (interior starts at column LPAD)
    patch_scr : (H*W, 9*Cp)   bf16   im2col patch matrix (reused by both convs)
    """
    _, H, W, Cp = x_ref.shape
    Hp, WP, _ = pad_scr.shape
    bf16 = jnp.bfloat16

    # Re-zero the border strips every grid step (scratch is uninitialized and
    # the "parallel" batch grid may be split across TensorCores).  All strips
    # are sublane-aligned bulk stores.
    pad_scr[:, 0:LPAD, :] = jnp.zeros((Hp, LPAD, Cp), bf16)
    pad_scr[:, LPAD + W:WP, :] = jnp.zeros((Hp, WP - LPAD - W, Cp), bf16)
    pad_scr[0:1, :, :] = jnp.zeros((1, WP, Cp), bf16)
    pad_scr[H + 1:H + 2, :, :] = jnp.zeros((1, WP, Cp), bf16)

    def build_patches():
        # im2col: tap-major (H*W, 9*Cp) patch matrix from the padded scratch.
        for kh in range(3):
            for kw in range(3):
                t = kh * 3 + kw
                c0 = LPAD - 1 + kw
                patch_scr[:, t * Cp:(t + 1) * Cp] = (
                    pad_scr[kh:kh + H, c0:c0 + W, :].reshape(H * W, Cp))

    # --- conv1: interior <- x (single f32->bf16 cast), one big MXU dot.
    pad_scr[1:H + 1, LPAD:LPAD + W, :] = x_ref[0].astype(bf16)
    build_patches()
    acc1 = jnp.dot(patch_scr[...], w1_ref[...],
                   preferred_element_type=jnp.float32)
    # bn1 (folded affine) + ReLU in f32.
    mid = jnp.maximum(acc1.reshape(H, W, Cp) * s1_ref[...] + b1_ref[...], 0.0)

    # --- conv2: reuse the padded scratch / patch matrix (border still zero).
    pad_scr[1:H + 1, LPAD:LPAD + W, :] = mid.astype(bf16)
    build_patches()
    acc2 = jnp.dot(patch_scr[...], w2_ref[...],
                   preferred_element_type=jnp.float32)

    # --- bn2 + residual (f32, from the input block) + ReLU; single store.
    out_ref[...] = jnp.maximum(
        acc2.reshape(1, H, W, Cp) * s2_ref[...] + b2_ref[...] + x_ref[...], 0.0
    ).astype(out_ref.dtype)


def _invariant_spec(shape):
    """BlockSpec for a grid-invariant operand: constant index map and (where
    supported) single-buffered, so it does not burn double-buffer VMEM."""
    n = len(shape)

    def index_map(b):
        return (0,) * n

    try:
        return pl.BlockSpec(shape, index_map, pipeline_mode=pl.Buffered(1))
    except Exception:   # older jax without pipeline_mode / pl.Buffered
        return pl.BlockSpec(shape, index_map)


def conv_block_forward(x_nchw, params, eps=1e-5):
    """ConvBlock forward. x_nchw: (B, C, H, W) f32 -> (B, C, H, W) f32."""
    B, C, H, W = x_nchw.shape
    Cp = ((C + LANE - 1) // LANE) * LANE          # lane-dense channel padding
    WP = ((LPAD + W + 1 + 7) // 8) * 8            # scratch width (>=1 right border)

    # TODO(synk): keep activations NHWC + channel-padded end-to-end upstream.
    x = jnp.transpose(x_nchw, (0, 2, 3, 1)).astype(jnp.float32)       # NHWC
    if Cp != C:
        x = jnp.pad(x, ((0, 0), (0, 0), (0, 0), (0, Cp - C)))

    def fold_bn(gamma, beta, mean, var, conv_bias):
        s = gamma / jnp.sqrt(var + eps)
        b = (conv_bias - mean) * s + beta
        s = jnp.pad(s, (0, Cp - C)).reshape(1, 1, Cp).astype(jnp.float32)
        b = jnp.pad(b, (0, Cp - C)).reshape(1, 1, Cp).astype(jnp.float32)
        return s, b

    s1, b1 = fold_bn(params["bn1_gamma"], params["bn1_beta"],
                     params["bn1_mean"], params["bn1_var"], params["conv1_b"])
    s2, b2 = fold_bn(params["bn2_gamma"], params["bn2_beta"],
                     params["bn2_mean"], params["bn2_var"], params["conv2_b"])

    def prep_w(w):
        # PyTorch (Cout, Cin, 3, 3) -> tap-major im2col matrix (9*Cp, Cp) bf16.
        w = jnp.transpose(w, (2, 3, 1, 0))                    # (3, 3, Cin, Cout)
        w = jnp.pad(w, ((0, 0), (0, 0), (0, Cp - C), (0, Cp - C)))
        return w.reshape(9 * Cp, Cp).astype(jnp.bfloat16)

    w1 = prep_w(params["conv1_w"])
    w2 = prep_w(params["conv2_w"])

    grid_spec = pltpu.PrefetchScalarGridSpec(
        num_scalar_prefetch=0,
        # TODO(synk): add an H-row-tile grid axis for large feature maps.
        grid=(B,),
        in_specs=[
            pl.BlockSpec((1, H, W, Cp), lambda b: (b, 0, 0, 0)),   # x
            _invariant_spec((9 * Cp, Cp)),                         # w1
            _invariant_spec((9 * Cp, Cp)),                         # w2
            _invariant_spec((1, 1, Cp)),                           # s1
            _invariant_spec((1, 1, Cp)),                           # b1
            _invariant_spec((1, 1, Cp)),                           # s2
            _invariant_spec((1, 1, Cp)),                           # b2
        ],
        out_specs=pl.BlockSpec((1, H, W, Cp), lambda b: (b, 0, 0, 0)),
        scratch_shapes=[
            pltpu.VMEM((H + 2, WP, Cp), jnp.bfloat16),     # padded activations
            pltpu.VMEM((H * W, 9 * Cp), jnp.bfloat16),     # im2col patch matrix
        ],
    )

    out_nhwc = pl.pallas_call(
        convblock_kernel,
        out_shape=jax.ShapeDtypeStruct((B, H, W, Cp), jnp.float32),
        grid_spec=grid_spec,
        compiler_params=pltpu.CompilerParams(
            dimension_semantics=("parallel",),        # batch across TCs (v7x)
            vmem_limit_bytes=48 * 1024 * 1024,        # fits v7x 64 MiB physical
        ),
    )(x, w1, w2, s1, b1, s2, b2)

    out_nhwc = out_nhwc[..., :C]                      # drop channel padding
    return jnp.transpose(out_nhwc, (0, 3, 1, 2))                      # NCHW


def reference_forward(x_nchw, params, eps=1e-5, matmul_dtype=jnp.float32):
    """Pure-JAX reference (lax conv). matmul_dtype=bf16 mirrors the kernel's
    MXU precision (bf16 operands, f32 accumulation)."""
    x = jnp.transpose(x_nchw, (0, 2, 3, 1)).astype(jnp.float32)
    dn = ("NHWC", "HWIO", "NHWC")
    w1 = jnp.transpose(params["conv1_w"], (2, 3, 1, 0)).astype(matmul_dtype)
    w2 = jnp.transpose(params["conv2_w"], (2, 3, 1, 0)).astype(matmul_dtype)

    def bn(y, g, b, m, v):
        return (y - m) / jnp.sqrt(v + eps) * g + b

    y = jax.lax.conv_general_dilated(
        x.astype(matmul_dtype), w1, (1, 1), ((1, 1), (1, 1)),
        dimension_numbers=dn, preferred_element_type=jnp.float32)
    y = y + params["conv1_b"]
    y = jnp.maximum(bn(y, params["bn1_gamma"], params["bn1_beta"],
                       params["bn1_mean"], params["bn1_var"]), 0.0)
    y = jax.lax.conv_general_dilated(
        y.astype(matmul_dtype), w2, (1, 1), ((1, 1), (1, 1)),
        dimension_numbers=dn, preferred_element_type=jnp.float32)
    y = y + params["conv2_b"]
    y = bn(y, params["bn2_gamma"], params["bn2_beta"],
           params["bn2_mean"], params["bn2_var"]) + x
    y = jnp.maximum(y, 0.0)
    return jnp.transpose(y, (0, 3, 1, 2))


def init_params(key, channels):
    C = channels
    ks = jax.random.split(key, 12)
    bound = 1.0 / (C * 3 * 3) ** 0.5       # ~ PyTorch default conv init scale
    return {
        "conv1_w": jax.random.uniform(ks[0], (C, C, 3, 3), jnp.float32, -bound, bound),
        "conv1_b": jax.random.uniform(ks[1], (C,), jnp.float32, -bound, bound),
        "conv2_w": jax.random.uniform(ks[2], (C, C, 3, 3), jnp.float32, -bound, bound),
        "conv2_b": jax.random.uniform(ks[3], (C,), jnp.float32, -bound, bound),
        "bn1_gamma": 1.0 + 0.1 * jax.random.normal(ks[4], (C,), jnp.float32),
        "bn1_beta": 0.05 * jax.random.normal(ks[5], (C,), jnp.float32),
        "bn1_mean": 0.1 * jax.random.normal(ks[6], (C,), jnp.float32),
        "bn1_var": jax.random.uniform(ks[7], (C,), jnp.float32, 0.5, 1.5),
        "bn2_gamma": 1.0 + 0.1 * jax.random.normal(ks[8], (C,), jnp.float32),
        "bn2_beta": 0.05 * jax.random.normal(ks[9], (C,), jnp.float32),
        "bn2_mean": 0.1 * jax.random.normal(ks[10], (C,), jnp.float32),
        "bn2_var": jax.random.uniform(ks[11], (C,), jnp.float32, 0.5, 1.5),
    }


if __name__ == "__main__":
    B, C, H, W = 2, 8, 16, 16            # stride=1 basic block => Cin == Cout
    key = jax.random.PRNGKey(0)
    kx, kp = jax.random.split(key)
    x = jax.random.normal(kx, (B, C, H, W), jnp.float32)
    params = init_params(kp, C)

    out = jax.block_until_ready(jax.jit(conv_block_forward)(x, params))
    assert out.shape == (B, C, H, W), out.shape

    # Tight check vs a reference using the same bf16-matmul / f32-accum precision.
    ref_mixed = reference_forward(x, params, matmul_dtype=jnp.bfloat16)
    err_mixed = float(jnp.max(jnp.abs(out - ref_mixed)))
    assert err_mixed < 1e-2, err_mixed

    # Loose check vs the pure-f32 reference (bf16 MXU operands => ~1e-2 noise).
    ref_f32 = reference_forward(x, params)
    err_f32 = float(jnp.max(jnp.abs(out - ref_f32)))
    assert err_f32 < 1e-1, err_f32

    print("KERNEL_OK")
</pallas_src>

<mosaic_0001>
module attributes {stable_mosaic.version = 11 : i64} {
  func.func @convblock_kernel(%arg0: i32, %arg1: memref<1x16x16x128xf32, #tpu.memory_space<vmem>>, %arg2: memref<1152x128xbf16, #tpu.memory_space<vmem>>, %arg3: memref<1152x128xbf16, #tpu.memory_space<vmem>>, %arg4: memref<1x1x128xf32, #tpu.memory_space<vmem>>, %arg5: memref<1x1x128xf32, #tpu.memory_space<vmem>>, %arg6: memref<1x1x128xf32, #tpu.memory_space<vmem>>, %arg7: memref<1x1x128xf32, #tpu.memory_space<vmem>>, %arg8: memref<1x16x16x128xf32, #tpu.memory_space<vmem>>, %arg9: memref<18x32x128xbf16, #tpu.memory_space<vmem>>, %arg10: memref<256x1152xbf16, #tpu.memory_space<vmem>>) attributes {dimension_semantics = [#tpu.dimension_semantics<parallel>], iteration_bounds = array<i64: 2>, scalar_prefetch = 0 : i64, scratch_operands = 2 : i64, tpu.core_type = #tpu.core_type<tc>, window_params = [{transform_indices = @transform_0, window_bounds = array<i64: 1, 16, 16, 128>}, {pipeline_mode = #tpu.pipeline_mode<synchronous>, transform_indices = @transform_1, window_bounds = array<i64: 1152, 128>}, {pipeline_mode = #tpu.pipeline_mode<synchronous>, transform_indices = @transform_2, window_bounds = array<i64: 1152, 128>}, {pipeline_mode = #tpu.pipeline_mode<synchronous>, transform_indices = @transform_3, window_bounds = array<i64: 1, 1, 128>}, {pipeline_mode = #tpu.pipeline_mode<synchronous>, transform_indices = @transform_4, window_bounds = array<i64: 1, 1, 128>}, {pipeline_mode = #tpu.pipeline_mode<synchronous>, transform_indices = @transform_5, window_bounds = array<i64: 1, 1, 128>}, {pipeline_mode = #tpu.pipeline_mode<synchronous>, transform_indices = @transform_6, window_bounds = array<i64: 1, 1, 128>}, {transform_indices = @transform_7, window_bounds = array<i64: 1, 16, 16, 128>}]} {
    %cst = arith.constant 0.000000e+00 : bf16
    %0 = vector.broadcast %cst : bf16 to vector<18x8x128xbf16>
    %c0 = arith.constant 0 : index
    %c0_0 = arith.constant 0 : index
    %c0_1 = arith.constant 0 : index
    %1 = vector.load %arg9[%c0, %c0_0, %c0_1] : memref<18x32x128xbf16, #tpu.memory_space<vmem>>, vector<18x8x128xbf16>
    tpu.vector_store %arg9[%c0, %c0_0, %c0_1], %0 {strides = array<i32>} : memref<18x32x128xbf16, #tpu.memory_space<vmem>>, vector<18x8x128xbf16>,
    %cst_2 = arith.constant 0.000000e+00 : bf16
    %2 = vector.broadcast %cst_2 : bf16 to vector<18x8x128xbf16>
    %c0_3 = arith.constant 0 : index
    %c24 = arith.constant 24 : index
    %c0_4 = arith.constant 0 : index
    %3 = vector.load %arg9[%c0_3, %c24, %c0_4] : memref<18x32x128xbf16, #tpu.memory_space<vmem>>, vector<18x8x128xbf16>
    tpu.vector_store %arg9[%c0_3, %c24, %c0_4], %2 {strides = array<i32>} : memref<18x32x128xbf16, #tpu.memory_space<vmem>>, vector<18x8x128xbf16>,
    %cst_5 = arith.constant 0.000000e+00 : bf16
    %4 = vector.broadcast %cst_5 : bf16 to vector<1x32x128xbf16>
    %c0_6 = arith.constant 0 : index
    %c0_7 = arith.constant 0 : index
    %c0_8 = arith.constant 0 : index
    %5 = vector.load %arg9[%c0_6, %c0_7, %c0_8] : memref<18x32x128xbf16, #tpu.memory_space<vmem>>, vector<1x32x128xbf16>
    tpu.vector_store %arg9[%c0_6, %c0_7, %c0_8], %4 {strides = array<i32>} : memref<18x32x128xbf16, #tpu.memory_space<vmem>>, vector<1x32x128xbf16>,
    %cst_9 = arith.constant 0.000000e+00 : bf16
    %6 = vector.broadcast %cst_9 : bf16 to vector<1x32x128xbf16>
    %c17 = arith.constant 17 : index
    %c0_10 = arith.constant 0 : index
    %c0_11 = arith.constant 0 : index
    %7 = vector.load %arg9[%c17, %c0_10, %c0_11] : memref<18x32x128xbf16, #tpu.memory_space<vmem>>, vector<1x32x128xbf16>
    tpu.vector_store %arg9[%c17, %c0_10, %c0_11], %6 {strides = array<i32>} : memref<18x32x128xbf16, #tpu.memory_space<vmem>>, vector<1x32x128xbf16>,
    %c0_12 = arith.constant 0 : index
    %c0_13 = arith.constant 0 : index
    %c0_14 = arith.constant 0 : index
    %c0_15 = arith.constant 0 : index
    %8 = vector.load %arg1[%c0_12, %c0_13, %c0_14, %c0_15] : memref<1x16x16x128xf32, #tpu.memory_space<vmem>>, vector<1x16x16x128xf32>
    %9 = vector.shape_cast %8 : vector<1x16x16x128xf32> to vector<16x16x128xf32>
    %10 = arith.truncf %9 : vector<16x16x128xf32> to vector<16x16x128xbf16>
    %c1 = arith.constant 1 : index
    %c8 = arith.constant 8 : index
    %c0_16 = arith.constant 0 : index
    %11 = vector.load %arg9[%c1, %c8, %c0_16] : memref<18x32x128xbf16, #tpu.memory_space<vmem>>, vector<16x16x128xbf16>
    tpu.vector_store %arg9[%c1, %c8, %c0_16], %10 {strides = array<i32>} : memref<18x32x128xbf16, #tpu.memory_space<vmem>>, vector<16x16x128xbf16>,
    %c0_17 = arith.constant 0 : index
    %c7 = arith.constant 7 : index
    %c0_18 = arith.constant 0 : index
    %12 = vector.load %arg9[%c0_17, %c7, %c0_18] : memref<18x32x128xbf16, #tpu.memory_space<vmem>>, vector<16x16x128xbf16>
    %13 = vector.shape_cast %12 : vector<16x16x128xbf16> to vector<256x128xbf16>
    %c0_19 = arith.constant 0 : index
    %c0_20 = arith.constant 0 : index
    %14 = vector.load %arg10[%c0_19, %c0_20] : memref<256x1152xbf16, #tpu.memory_space<vmem>>, vector<256x128xbf16>
    tpu.vector_store %arg10[%c0_19, %c0_20], %13 {strides = array<i32>} : memref<256x1152xbf16, #tpu.memory_space<vmem>>, vector<256x128xbf16>,
    %c0_21 = arith.constant 0 : index
    %c8_22 = arith.constant 8 : index
    %c0_23 = arith.constant 0 : index
    %15 = vector.load %arg9[%c0_21, %c8_22, %c0_23] : memref<18x32x128xbf16, #tpu.memory_space<vmem>>, vector<16x16x128xbf16>
    %16 = vector.shape_cast %15 : vector<16x16x128xbf16> to vector<256x128xbf16>
    %c0_24 = arith.constant 0 : index
    %c128 = arith.constant 128 : index
    %17 = vector.load %arg10[%c0_24, %c128] : memref<256x1152xbf16, #tpu.memory_space<vmem>>, vector<256x128xbf16>
    tpu.vector_store %arg10[%c0_24, %c128], %16 {strides = array<i32>} : memref<256x1152xbf16, #tpu.memory_space<vmem>>, vector<256x128xbf16>,
    %c0_25 = arith.constant 0 : index
    %c9 = arith.constant 9 : index
    %c0_26 = arith.constant 0 : index
    %18 = vector.load %arg9[%c0_25, %c9, %c0_26] : memref<18x32x128xbf16, #tpu.memory_space<vmem>>, vector<16x16x128xbf16>
    %19 = vector.shape_cast %18 : vector<16x16x128xbf16> to vector<256x128xbf16>
    %c0_27 = arith.constant 0 : index
    %c256 = arith.constant 256 : index
    %20 = vector.load %arg10[%c0_27, %c256] : memref<256x1152xbf16, #tpu.memory_space<vmem>>, vector<256x128xbf16>
    tpu.vector_store %arg10[%c0_27, %c256], %19 {strides = array<i32>} : memref<256x1152xbf16, #tpu.memory_space<vmem>>, vector<256x128xbf16>,
    %c1_28 = arith.constant 1 : index
    %c7_29 = arith.constant 7 : index
    %c0_30 = arith.constant 0 : index
    %21 = vector.load %arg9[%c1_28, %c7_29, %c0_30] : memref<18x32x128xbf16, #tpu.memory_space<vmem>>, vector<16x16x128xbf16>
    %22 = vector.shape_cast %21 : vector<16x16x128xbf16> to vector<256x128xbf16>
    %c0_31 = arith.constant 0 : index
    %c384 = arith.constant 384 : index
    %23 = vector.load %arg10[%c0_31, %c384] : memref<256x1152xbf16, #tpu.memory_space<vmem>>, vector<256x128xbf16>
    tpu.vector_store %arg10[%c0_31, %c384], %22 {strides = array<i32>} : memref<256x1152xbf16, #tpu.memory_space<vmem>>, vector<256x128xbf16>,
    %c1_32 = arith.constant 1 : index
    %c8_33 = arith.constant 8 : index
    %c0_34 = arith.constant 0 : index
    %24 = vector.load %arg9[%c1_32, %c8_33, %c0_34] : memref<18x32x128xbf16, #tpu.memory_space<vmem>>, vector<16x16x128xbf16>
    %25 = vector.shape_cast %24 : vector<16x16x128xbf16> to vector<256x128xbf16>
    %c0_35 = arith.constant 0 : index
    %c512 = arith.constant 512 : index
    %26 = vector.load %arg10[%c0_35, %c512] : memref<256x1152xbf16, #tpu.memory_space<vmem>>, vector<256x128xbf16>
    tpu.vector_store %arg10[%c0_35, %c512], %25 {strides = array<i32>} : memref<256x1152xbf16, #tpu.memory_space<vmem>>, vector<256x128xbf16>,
    %c1_36 = arith.constant 1 : index
    %c9_37 = arith.constant 9 : index
    %c0_38 = arith.constant 0 : index
    %27 = vector.load %arg9[%c1_36, %c9_37, %c0_38] : memref<18x32x128xbf16, #tpu.memory_space<vmem>>, vector<16x16x128xbf16>
    %28 = vector.shape_cast %27 : vector<16x16x128xbf16> to vector<256x128xbf16>
    %c0_39 = arith.constant 0 : index
    %c640 = arith.constant 640 : index
    %29 = vector.load %arg10[%c0_39, %c640] : memref<256x1152xbf16, #tpu.memory_space<vmem>>, vector<256x128xbf16>
    tpu.vector_store %arg10[%c0_39, %c640], %28 {strides = array<i32>} : memref<256x1152xbf16, #tpu.memory_space<vmem>>, vector<256x128xbf16>,
    %c2 = arith.constant 2 : index
    %c7_40 = arith.constant 7 : index
    %c0_41 = arith.constant 0 : index
    %30 = vector.load %arg9[%c2, %c7_40, %c0_41] : memref<18x32x128xbf16, #tpu.memory_space<vmem>>, vector<16x16x128xbf16>
    %31 = vector.shape_cast %30 : vector<16x16x128xbf16> to vector<256x128xbf16>
    %c0_42 = arith.constant 0 : index
    %c768 = arith.constant 768 : index
    %32 = vector.load %arg10[%c0_42, %c768] : memref<256x1152xbf16, #tpu.memory_space<vmem>>, vector<256x128xbf16>
    tpu.vector_store %arg10[%c0_42, %c768], %31 {strides = array<i32>} : memref<256x1152xbf16, #tpu.memory_space<vmem>>, vector<256x128xbf16>,
    %c2_43 = arith.constant 2 : index
    %c8_44 = arith.constant 8 : index
    %c0_45 = arith.constant 0 : index
    %33 = vector.load %arg9[%c2_43, %c8_44, %c0_45] : memref<18x32x128xbf16, #tpu.memory_space<vmem>>, vector<16x16x128xbf16>
    %34 = vector.shape_cast %33 : vector<16x16x128xbf16> to vector<256x128xbf16>
    %c0_46 = arith.constant 0 : index
    %c896 = arith.constant 896 : index
    %35 = vector.load %arg10[%c0_46, %c896] : memref<256x1152xbf16, #tpu.memory_space<vmem>>, vector<256x128xbf16>
    tpu.vector_store %arg10[%c0_46, %c896], %34 {strides = array<i32>} : memref<256x1152xbf16, #tpu.memory_space<vmem>>, vector<256x128xbf16>,
    %c2_47 = arith.constant 2 : index
    %c9_48 = arith.constant 9 : index
    %c0_49 = arith.constant 0 : index
    %36 = vector.load %arg9[%c2_47, %c9_48, %c0_49] : memref<18x32x128xbf16, #tpu.memory_space<vmem>>, vector<16x16x128xbf16>
    %37 = vector.shape_cast %36 : vector<16x16x128xbf16> to vector<256x128xbf16>
    %c0_50 = arith.constant 0 : index
    %c1024 = arith.constant 1024 : index
    %38 = vector.load %arg10[%c0_50, %c1024] : memref<256x1152xbf16, #tpu.memory_space<vmem>>, vector<256x128xbf16>
    tpu.vector_store %arg10[%c0_50, %c1024], %37 {strides = array<i32>} : memref<256x1152xbf16, #tpu.memory_space<vmem>>, vector<256x128xbf16>,
    %c0_51 = arith.constant 0 : index
    %c0_52 = arith.constant 0 : index
    %39 = vector.load %arg10[%c0_51, %c0_52] : memref<256x1152xbf16, #tpu.memory_space<vmem>>, vector<256x1152xbf16>
    %c0_53 = arith.constant 0 : index
    %c0_54 = arith.constant 0 : index
    %40 = vector.load %arg2[%c0_53, %c0_54] : memref<1152x128xbf16, #tpu.memory_space<vmem>>, vector<1152x128xbf16>
    %cst_55 = arith.constant dense<0.000000e+00> : vector<256x128xf32>
    %41 = tpu.matmul %39, %40, %cst_55 {dimension_numbers = #tpu.dot_dimension_numbers<[1], [0], [0], [1], [0, 0, 1, 1], [], []>} : vector<256x1152xbf16>, vector<1152x128xbf16>, vector<256x128xf32> -> vector<256x128xf32>
    %42 = vector.shape_cast %41 : vector<256x128xf32> to vector<16x16x128xf32>
    %c0_56 = arith.constant 0 : index
    %c0_57 = arith.constant 0 : index
    %c0_58 = arith.constant 0 : index
    %43 = vector.load %arg4[%c0_56, %c0_57, %c0_58] : memref<1x1x128xf32, #tpu.memory_space<vmem>>, vector<1x1x128xf32>
    %44 = vector.broadcast %43 : vector<1x1x128xf32> to vector<16x16x128xf32>
    %45 = arith.mulf %42, %44 : vector<16x16x128xf32>
    %c0_59 = arith.constant 0 : index
    %c0_60 = arith.constant 0 : index
    %c0_61 = arith.constant 0 : index
    %46 = vector.load %arg5[%c0_59, %c0_60, %c0_61] : memref<1x1x128xf32, #tpu.memory_space<vmem>>, vector<1x1x128xf32>
    %47 = vector.broadcast %46 : vector<1x1x128xf32> to vector<16x16x128xf32>
    %48 = arith.addf %45, %47 : vector<16x16x128xf32>
    %cst_62 = arith.constant 0.000000e+00 : f32
    %49 = vector.broadcast %cst_62 : f32 to vector<16x16x128xf32>
    %50 = arith.maximumf %48, %49 : vector<16x16x128xf32>
    %51 = arith.truncf %50 : vector<16x16x128xf32> to vector<16x16x128xbf16>
    %c1_63 = arith.constant 1 : index
    %c8_64 = arith.constant 8 : index
    %c0_65 = arith.constant 0 : index
    %52 = vector.load %arg9[%c1_63, %c8_64, %c0_65] : memref<18x32x128xbf16, #tpu.memory_space<vmem>>, vector<16x16x128xbf16>
    tpu.vector_store %arg9[%c1_63, %c8_64, %c0_65], %51 {strides = array<i32>} : memref<18x32x128xbf16, #tpu.memory_space<vmem>>, vector<16x16x128xbf16>,
    %c0_66 = arith.constant 0 : index
    %c7_67 = arith.constant 7 : index
    %c0_68 = arith.constant 0 : index
    %53 = vector.load %arg9[%c0_66, %c7_67, %c0_68] : memref<18x32x128xbf16, #tpu.memory_space<vmem>>, vector<16x16x128xbf16>
    %54 = vector.shape_cast %53 : vector<16x16x128xbf16> to vector<256x128xbf16>
    %c0_69 = arith.constant 0 : index
    %c0_70 = arith.constant 0 : index
    %55 = vector.load %arg10[%c0_69, %c0_70] : memref<256x1152xbf16, #tpu.memory_space<vmem>>, vector<256x128xbf16>
    tpu.vector_store %arg10[%c0_69, %c0_70], %54 {strides = array<i32>} : memref<256x1152xbf16, #tpu.memory_space<vmem>>, vector<256x128xbf16>,
    %c0_71 = arith.constant 0 : index
    %c8_72 = arith.constant 8 : index
    %c0_73 = arith.constant 0 : index
    %56 = vector.load %arg9[%c0_71, %c8_72, %c0_73] : memref<18x32x128xbf16, #tpu.memory_space<vmem>>, vector<16x16x128xbf16>
    %57 = vector.shape_cast %56 : vector<16x16x128xbf16> to vector<256x128xbf16>
    %c0_74 = arith.constant 0 : index
    %c128_75 = arith.constant 128 : index
    %58 = vector.load %arg10[%c0_74, %c128_75] : memref<256x1152xbf16, #tpu.memory_space<vmem>>, vector<256x128xbf16>
    tpu.vector_store %arg10[%c0_74, %c128_75], %57 {strides = array<i32>} : memref<256x1152xbf16, #tpu.memory_space<vmem>>, vector<256x128xbf16>,
    %c0_76 = arith.constant 0 : index
    %c9_77 = arith.constant 9 : index
    %c0_78 = arith.constant 0 : index
    %59 = vector.load %arg9[%c0_76, %c9_77, %c0_78] : memref<18x32x128xbf16, #tpu.memory_space<vmem>>, vector<16x16x128xbf16>
    %60 = vector.shape_cast %59 : vector<16x16x128xbf16> to vector<256x128xbf16>
    %c0_79 = arith.constant 0 : index
    %c256_80 = arith.constant 256 : index
    %61 = vector.load %arg10[%c0_79, %c256_80] : memref<256x1152xbf16, #tpu.memory_space<vmem>>, vector<256x128xbf16>
    tpu.vector_store %arg10[%c0_79, %c256_80], %60 {strides = array<i32>} : memref<256x1152xbf16, #tpu.memory_space<vmem>>, vector<256x128xbf16>,
    %c1_81 = arith.constant 1 : index
    %c7_82 = arith.constant 7 : index
    %c0_83 = arith.constant 0 : index
    %62 = vector.load %arg9[%c1_81, %c7_82, %c0_83] : memref<18x32x128xbf16, #tpu.memory_space<vmem>>, vector<16x16x128xbf16>
    %63 = vector.shape_cast %62 : vector<16x16x128xbf16> to vector<256x128xbf16>
    %c0_84 = arith.constant 0 : index
    %c384_85 = arith.constant 384 : index
    %64 = vector.load %arg10[%c0_84, %c384_85] : memref<256x1152xbf16, #tpu.memory_space<vmem>>, vector<256x128xbf16>
    tpu.vector_store %arg10[%c0_84, %c384_85], %63 {strides = array<i32>} : memref<256x1152xbf16, #tpu.memory_space<vmem>>, vector<256x128xbf16>,
    %c1_86 = arith.constant 1 : index
    %c8_87 = arith.constant 8 : index
    %c0_88 = arith.constant 0 : index
    %65 = vector.load %arg9[%c1_86, %c8_87, %c0_88] : memref<18x32x128xbf16, #tpu.memory_space<vmem>>, vector<16x16x128xbf16>
    %66 = vector.shape_cast %65 : vector<16x16x128xbf16> to vector<256x128xbf16>
    %c0_89 = arith.constant 0 : index
    %c512_90 = arith.constant 512 : index
    %67 = vector.load %arg10[%c0_89, %c512_90] : memref<256x1152xbf16, #tpu.memory_space<vmem>>, vector<256x128xbf16>
    tpu.vector_store %arg10[%c0_89, %c512_90], %66 {strides = array<i32>} : memref<256x1152xbf16, #tpu.memory_space<vmem>>, vector<256x128xbf16>,
    %c1_91 = arith.constant 1 : index
    %c9_92 = arith.constant 9 : index
    %c0_93 = arith.constant 0 : index
    %68 = vector.load %arg9[%c1_91, %c9_92, %c0_93] : memref<18x32x128xbf16, #tpu.memory_space<vmem>>, vector<16x16x128xbf16>
    %69 = vector.shape_cast %68 : vector<16x16x128xbf16> to vector<256x128xbf16>
    %c0_94 = arith.constant 0 : index
    %c640_95 = arith.constant 640 : index
    %70 = vector.load %arg10[%c0_94, %c640_95] : memref<256x1152xbf16, #tpu.memory_space<vmem>>, vector<256x128xbf16>
    tpu.vector_store %arg10[%c0_94, %c640_95], %69 {strides = array<i32>} : memref<256x1152xbf16, #tpu.memory_space<vmem>>, vector<256x128xbf16>,
    %c2_96 = arith.constant 2 : index
    %c7_97 = arith.constant 7 : index
    %c0_98 = arith.constant 0 : index
    %71 = vector.load %arg9[%c2_96, %c7_97, %c0_98] : memref<18x32x128xbf16, #tpu.memory_space<vmem>>, vector<16x16x128xbf16>
    %72 = vector.shape_cast %71 : vector<16x16x128xbf16> to vector<256x128xbf16>
    %c0_99 = arith.constant 0 : index
    %c768_100 = arith.constant 768 : index
    %73 = vector.load %arg10[%c0_99, %c768_100] : memref<256x1152xbf16, #tpu.memory_space<vmem>>, vector<256x128xbf16>
    tpu.vector_store %arg10[%c0_99, %c768_100], %72 {strides = array<i32>} : memref<256x1152xbf16, #tpu.memory_space<vmem>>, vector<256x128xbf16>,
    %c2_101 = arith.constant 2 : index
    %c8_102 = arith.constant 8 : index
    %c0_103 = arith.constant 0 : index
    %74 = vector.load %arg9[%c2_101, %c8_102, %c0_103] : memref<18x32x128xbf16, #tpu.memory_space<vmem>>, vector<16x16x128xbf16>
    %75 = vector.shape_cast %74 : vector<16x16x128xbf16> to vector<256x128xbf16>
    %c0_104 = arith.constant 0 : index
    %c896_105 = arith.constant 896 : index
    %76 = vector.load %arg10[%c0_104, %c896_105] : memref<256x1152xbf16, #tpu.memory_space<vmem>>, vector<256x128xbf16>
    tpu.vector_store %arg10[%c0_104, %c896_105], %75 {strides = array<i32>} : memref<256x1152xbf16, #tpu.memory_space<vmem>>, vector<256x128xbf16>,
    %c2_106 = arith.constant 2 : index
    %c9_107 = arith.constant 9 : index
    %c0_108 = arith.constant 0 : index
    %77 = vector.load %arg9[%c2_106, %c9_107, %c0_108] : memref<18x32x128xbf16, #tpu.memory_space<vmem>>, vector<16x16x128xbf16>
    %78 = vector.shape_cast %77 : vector<16x16x128xbf16> to vector<256x128xbf16>
    %c0_109 = arith.constant 0 : index
    %c1024_110 = arith.constant 1024 : index
    %79 = vector.load %arg10[%c0_109, %c1024_110] : memref<256x1152xbf16, #tpu.memory_space<vmem>>, vector<256x128xbf16>
    tpu.vector_store %arg10[%c0_109, %c1024_110], %78 {strides = array<i32>} : memref<256x1152xbf16, #tpu.memory_space<vmem>>, vector<256x128xbf16>,
    %c0_111 = arith.constant 0 : index
    %c0_112 = arith.constant 0 : index
    %80 = vector.load %arg10[%c0_111, %c0_112] : memref<256x1152xbf16, #tpu.memory_space<vmem>>, vector<256x1152xbf16>
    %c0_113 = arith.constant 0 : index
    %c0_114 = arith.constant 0 : index
    %81 = vector.load %arg3[%c0_113, %c0_114] : memref<1152x128xbf16, #tpu.memory_space<vmem>>, vector<1152x128xbf16>
    %cst_115 = arith.constant dense<0.000000e+00> : vector<256x128xf32>
    %82 = tpu.matmul %80, %81, %cst_115 {dimension_numbers = #tpu.dot_dimension_numbers<[1], [0], [0], [1], [0, 0, 1, 1], [], []>} : vector<256x1152xbf16>, vector<1152x128xbf16>, vector<256x128xf32> -> vector<256x128xf32>
    %83 = vector.shape_cast %82 : vector<256x128xf32> to vector<1x16x16x128xf32>
    %c0_116 = arith.constant 0 : index
    %c0_117 = arith.constant 0 : index
    %c0_118 = arith.constant 0 : index
    %84 = vector.load %arg6[%c0_116, %c0_117, %c0_118] : memref<1x1x128xf32, #tpu.memory_space<vmem>>, vector<1x1x128xf32>
    %85 = vector.shape_cast %84 : vector<1x1x128xf32> to vector<1x1x1x128xf32>
    %86 = vector.broadcast %85 : vector<1x1x1x128xf32> to vector<1x16x16x128xf32>
    %87 = arith.mulf %83, %86 : vector<1x16x16x128xf32>
    %c0_119 = arith.constant 0 : index
    %c0_120 = arith.constant 0 : index
    %c0_121 = arith.constant 0 : index
    %88 = vector.load %arg7[%c0_119, %c0_120, %c0_121] : memref<1x1x128xf32, #tpu.memory_space<vmem>>, vector<1x1x128xf32>
    %89 = vector.shape_cast %88 : vector<1x1x128xf32> to vector<1x1x1x128xf32>
    %90 = vector.broadcast %89 : vector<1x1x1x128xf32> to vector<1x16x16x128xf32>
    %91 = arith.addf %87, %90 : vector<1x16x16x128xf32>
    %c0_122 = arith.constant 0 : index
    %c0_123 = arith.constant 0 : index
    %c0_124 = arith.constant 0 : index
    %c0_125 = arith.constant 0 : index
    %92 = vector.load %arg1[%c0_122, %c0_123, %c0_124, %c0_125] : memref<1x16x16x128xf32, #tpu.memory_space<vmem>>, vector<1x16x16x128xf32>
    %93 = arith.addf %91, %92 : vector<1x16x16x128xf32>
    %cst_126 = arith.constant 0.000000e+00 : f32
    %94 = vector.broadcast %cst_126 : f32 to vector<1x16x16x128xf32>
    %95 = arith.maximumf %93, %94 : vector<1x16x16x128xf32>
    %c0_127 = arith.constant 0 : index
    %c0_128 = arith.constant 0 : index
    %c0_129 = arith.constant 0 : index
    %c0_130 = arith.constant 0 : index
    %96 = vector.load %arg8[%c0_127, %c0_128, %c0_129, %c0_130] : memref<1x16x16x128xf32, #tpu.memory_space<vmem>>, vector<1x16x16x128xf32>
    tpu.vector_store %arg8[%c0_127, %c0_128, %c0_129, %c0_130], %95 {strides = array<i32>} : memref<1x16x16x128xf32, #tpu.memory_space<vmem>>, vector<1x16x16x128xf32>,
    return
  }
  func.func @transform_0(%arg0: i32) -> (i32, i32, i32, i32) {
    %c0_i32 = arith.constant 0 : i32
    %c0_i32_0 = arith.constant 0 : i32
    %c0_i32_1 = arith.constant 0 : i32
    %c0_i32_2 = arith.constant 0 : i32
    return %arg0, %c0_i32, %c0_i32_0, %c0_i32_1 : i32, i32, i32, i32
  }
  func.func @transform_1(%arg0: i32) -> (i32, i32) {
    %c0_i32 = arith.constant 0 : i32
    %c0_i32_0 = arith.constant 0 : i32
    %c0_i32_1 = arith.constant 0 : i32
    return %c0_i32, %c0_i32_0 : i32, i32
  }
  func.func @transform_2(%arg0: i32) -> (i32, i32) {
    %c0_i32 = arith.constant 0 : i32
    %c0_i32_0 = arith.constant 0 : i32
    %c0_i32_1 = arith.constant 0 : i32
    return %c0_i32, %c0_i32_0 : i32, i32
  }
  func.func @transform_3(%arg0: i32) -> (i32, i32, i32) {
    %c0_i32 = arith.constant 0 : i32
    %c0_i32_0 = arith.constant 0 : i32
    %c0_i32_1 = arith.constant 0 : i32
    %c0_i32_2 = arith.constant 0 : i32
    return %c0_i32, %c0_i32_0, %c0_i32_1 : i32, i32, i32
  }
  func.func @transform_4(%arg0: i32) -> (i32, i32, i32) {
    %c0_i32 = arith.constant 0 : i32
    %c0_i32_0 = arith.constant 0 : i32
    %c0_i32_1 = arith.constant 0 : i32
    %c0_i32_2 = arith.constant 0 : i32
    return %c0_i32, %c0_i32_0, %c0_i32_1 : i32, i32, i32
  }
  func.func @transform_5(%arg0: i32) -> (i32, i32, i32) {
    %c0_i32 = arith.constant 0 : i32
    %c0_i32_0 = arith.constant 0 : i32
    %c0_i32_1 = arith.constant 0 : i32
    %c0_i32_2 = arith.constant 0 : i32
    return %c0_i32, %c0_i32_0, %c0_i32_1 : i32, i32, i32
  }
  func.func @transform_6(%arg0: i32) -> (i32, i32, i32) {
    %c0_i32 = arith.constant 0 : i32
    %c0_i32_0 = arith.constant 0 : i32
    %c0_i32_1 = arith.constant 0 : i32
    %c0_i32_2 = arith.constant 0 : i32
    return %c0_i32, %c0_i32_0, %c0_i32_1 : i32, i32, i32
  }
  func.func @transform_7(%arg0: i32) -> (i32, i32, i32, i32) {
    %c0_i32 = arith.constant 0 : i32
    %c0_i32_0 = arith.constant 0 : i32
    %c0_i32_1 = arith.constant 0 : i32
    %c0_i32_2 = arith.constant 0 : i32
    return %arg0, %c0_i32, %c0_i32_0, %c0_i32_1 : i32, i32, i32, i32
  }
}

</mosaic_0001>

<llo_original>
// kernel: conv_block_forward.1
$region0: #{conv_block_forward.1}
  #allocation0 [shape = 'u32[]', space=smem, size = 0x4, offset = 0x4, fixed_abs, tag = 'smem constant byte address 0x4 - core index']
  #allocation1 [shape = 'u32[144,128]{1,0:T(1,128)}', space=vmem, size = 0x12000, scoped, tag = 'internal scratch']
  #allocation2 [shape = 'bf16[18,32,128]{2,1,0:T(16,128)(2,1)}', space=vmem, size = 0x24000, scoped, tag = 'scratch operand']
  #allocation3 [shape = 'bf16[256,1152]{1,0:T(16,128)(2,1)}', space=vmem, size = 0x90000, scoped, tag = 'scratch operand']
  %s0 = inlined_call_operand.vmem [shape: f32[2,16,16,128], index: 0, kind: input, shape index: {}]
  %s1 = inlined_call_operand.vmem [shape: bf16[1152,128], index: 1, kind: input, shape index: {}]
  %s2 = inlined_call_operand.vmem [shape: bf16[1152,128], index: 2, kind: input, shape index: {}]
  %s3 = inlined_call_operand.vmem [shape: f32[1,1,128], index: 3, kind: input, shape index: {}]
  %s4 = inlined_call_operand.vmem [shape: f32[1,1,128], index: 4, kind: input, shape index: {}]
  %s5 = inlined_call_operand.vmem [shape: f32[1,1,128], index: 5, kind: input, shape index: {}]
  %s6 = inlined_call_operand.vmem [shape: f32[1,1,128], index: 6, kind: input, shape index: {}]
  %s7 = inlined_call_operand.vmem [shape: f32[2,16,16,128], index: 7, kind: output, shape index: {}]
  %s8 = sld [smem:[#allocation0]]
  $region61: #{conv_block_forward.1} parent=0
    _
  %s10 = ssub.s32 1, %s8
  %s11 = scalar_select 0, %s10, %s8
  loop: start=0, step=1, limit=4
  $region2: #{conv_block_forward.1} parent=0 // loop_pre_header
    _
  $region3: #{conv_block_forward.1} parent=0 // loop_header
    %s13 = sphi 0, %s17
    %p14 = scmp.ge.s32.totalorder %s13, 4
    %s23 = sphi 0, %s25
    %s26 = sphi 0, %s23
    %s27 = sphi 0, %s26
    %s43 = sphi 0, %s27
    %s47 = sphi 0, %s47
    %s49 = sphi 0, %s47
    %s50 = sphi 0, %s49
    %s64 = sphi 0, %s50
    %s68 = sphi 0, %s68
    %s70 = sphi 0, %s68
    %s71 = sphi 0, %s70
    %s85 = sphi 0, %s71
    %s89 = sphi 0, %s89
    %s91 = sphi 0, %s89
    %s92 = sphi 0, %s91
    %s106 = sphi 0, %s92
    %s110 = sphi 0, %s110
    %s112 = sphi 0, %s110
    %s113 = sphi 0, %s112
    %s127 = sphi 0, %s113
    %s131 = sphi 0, %s131
    %s133 = sphi 0, %s131
    %s134 = sphi 0, %s133
    %s148 = sphi 0, %s134
    %s152 = sphi 0, %s152
    %s154 = sphi 0, %s152
    %s155 = sphi 0, %s154
    %s169 = sphi 0, %s155
    %s175 = sphi 0, %s177
    %s178 = sphi 0, %s175
    %s179 = sphi 0, %s178
    %s195 = sphi 0, %s179
  $region4: #{conv_block_forward.1} parent=0 // loop_header_branch
    %16 = sbr.rel (%p14) target = $region8
  $region5: #{conv_block_forward.1} parent=0 // loop_body
    %s18 = ssub.s32 %s13, 1
    %s19 = ssub.s32 %s13, 2
    %s20 = sadd.s32 %s13, 1
    %s21 = ssub.s32 %s13, %s20
    %p22 = scmp.eq.s32.totalorder %s21, 0
    %s24 = sadd.s32 %s23, 1
    %s25 = scalar_select %p22, %s23, %s24
    %p28 = pneg %p22
    %p29 = scmp.eq.s32.totalorder %s13, 1
    %p30 = por %p28, %p29
    %p31 = scmp.ne.s32.totalorder %s23, %s26
    %p32 = scmp.eq.s32.totalorder %s13, 0
    %p33 = por %p31, %p32
    %p34 = scmp.ne.s32.totalorder %s23, %s26
    %p35 = scmp.eq.s32.totalorder %s18, 1
    %p36 = por %p34, %p35
    %p37 = scmp.ne.s32.totalorder %s26, %s27
    %p38 = scmp.eq.s32.totalorder %s18, 0
    %p39 = por %p37, %p38
    %p40 = scmp.ne.s32.totalorder %s26, %s27
    %p41 = scmp.eq.s32.totalorder %s19, 1
    %p42 = por %p40, %p41
    %p44 = scmp.ne.s32.totalorder %s27, %s43
    %p45 = scmp.eq.s32.totalorder %s19, 0
    %p46 = por %p44, %p45
    %s48 = sadd.s32 %s47, 1
    %p51 = scmp.eq.s32.totalorder %s13, 1
    %p52 = scmp.ne.s32.totalorder %s47, %s49
    %p53 = scmp.eq.s32.totalorder %s13, 0
    %p54 = por %p52, %p53
    %p55 = scmp.ne.s32.totalorder %s47, %s49
    %p56 = scmp.eq.s32.totalorder %s18, 1
    %p57 = por %p55, %p56
    %p58 = scmp.ne.s32.totalorder %s49, %s50
    %p59 = scmp.eq.s32.totalorder %s18, 0
    %p60 = por %p58, %p59
    %p61 = scmp.ne.s32.totalorder %s49, %s50
    %p62 = scmp.eq.s32.totalorder %s19, 1
    %p63 = por %p61, %p62
    %p65 = scmp.ne.s32.totalorder %s50, %s64
    %p66 = scmp.eq.s32.totalorder %s19, 0
    %p67 = por %p65, %p66
    %s69 = sadd.s32 %s68, 1
    %p72 = scmp.eq.s32.totalorder %s13, 1
    %p73 = scmp.ne.s32.totalorder %s68, %s70
    %p74 = scmp.eq.s32.totalorder %s13, 0
    %p75 = por %p73, %p74
    %p76 = scmp.ne.s32.totalorder %s68, %s70
    %p77 = scmp.eq.s32.totalorder %s18, 1
    %p78 = por %p76, %p77
    %p79 = scmp.ne.s32.totalorder %s70, %s71
    %p80 = scmp.eq.s32.totalorder %s18, 0
    %p81 = por %p79, %p80
    %p82 = scmp.ne.s32.totalorder %s70, %s71
    %p83 = scmp.eq.s32.totalorder %s19, 1
    %p84 = por %p82, %p83
    %p86 = scmp.ne.s32.totalorder %s71, %s85
    %p87 = scmp.eq.s32.totalorder %s19, 0
    %p88 = por %p86, %p87
    %s90 = sadd.s32 %s89, 1
    %p93 = scmp.eq.s32.totalorder %s13, 1
    %p94 = scmp.ne.s32.totalorder %s89, %s91
    %p95 = scmp.eq.s32.totalorder %s13, 0
    %p96 = por %p94, %p95
    %p97 = scmp.ne.s32.totalorder %s89, %s91
    %p98 = scmp.eq.s32.totalorder %s18, 1
    %p99 = por %p97, %p98
    %p100 = scmp.ne.s32.totalorder %s91, %s92
    %p101 = scmp.eq.s32.totalorder %s18, 0
    %p102 = por %p100, %p101
    %p103 = scmp.ne.s32.totalorder %s91, %s92
    %p104 = scmp.eq.s32.totalorder %s19, 1
    %p105 = por %p103, %p104
    %p107 = scmp.ne.s32.totalorder %s92, %s106
    %p108 = scmp.eq.s32.totalorder %s19, 0
    %p109 = por %p107, %p108
    %s111 = sadd.s32 %s110, 1
    %p114 = scmp.eq.s32.totalorder %s13, 1
    %p115 = scmp.ne.s32.totalorder %s110, %s112
    %p116 = scmp.eq.s32.totalorder %s13, 0
    %p117 = por %p115, %p116
    %p118 = scmp.ne.s32.totalorder %s110, %s112
    %p119 = scmp.eq.s32.totalorder %s18, 1
    %p120 = por %p118, %p119
    %p121 = scmp.ne.s32.totalorder %s112, %s113
    %p122 = scmp.eq.s32.totalorder %s18, 0
    %p123 = por %p121, %p122
    %p124 = scmp.ne.s32.totalorder %s112, %s113
    %p125 = scmp.eq.s32.totalorder %s19, 1
    %p126 = por %p124, %p125
    %p128 = scmp.ne.s32.totalorder %s113, %s127
    %p129 = scmp.eq.s32.totalorder %s19, 0
    %p130 = por %p128, %p129
    %s132 = sadd.s32 %s131, 1
    %p135 = scmp.eq.s32.totalorder %s13, 1
    %p136 = scmp.ne.s32.totalorder %s131, %s133
    %p137 = scmp.eq.s32.totalorder %s13, 0
    %p138 = por %p136, %p137
    %p139 = scmp.ne.s32.totalorder %s131, %s133
    %p140 = scmp.eq.s32.totalorder %s18, 1
    %p141 = por %p139, %p140
    %p142 = scmp.ne.s32.totalorder %s133, %s134
    %p143 = scmp.eq.s32.totalorder %s18, 0
    %p144 = por %p142, %p143
    %p145 = scmp.ne.s32.totalorder %s133, %s134
    %p146 = scmp.eq.s32.totalorder %s19, 1
    %p147 = por %p145, %p146
    %p149 = scmp.ne.s32.totalorder %s134, %s148
    %p150 = scmp.eq.s32.totalorder %s19, 0
    %p151 = por %p149, %p150
    %s153 = sadd.s32 %s152, 1
    %p156 = scmp.eq.s32.totalorder %s13, 1
    %p157 = scmp.ne.s32.totalorder %s152, %s154
    %p158 = scmp.eq.s32.totalorder %s13, 0
    %p159 = por %p157, %p158
    %p160 = scmp.ne.s32.totalorder %s152, %s154
    %p161 = scmp.eq.s32.totalorder %s18, 1
    %p162 = por %p160, %p161
    %p163 = scmp.ne.s32.totalorder %s154, %s155
    %p164 = scmp.eq.s32.totalorder %s18, 0
    %p165 = por %p163, %p164
    %p166 = scmp.ne.s32.totalorder %s154, %s155
    %p167 = scmp.eq.s32.totalorder %s19, 1
    %p168 = por %p166, %p167
    %p170 = scmp.ne.s32.totalorder %s155, %s169
    %p171 = scmp.eq.s32.totalorder %s19, 0
    %p172 = por %p170, %p171
    %s173 = ssub.s32 %s13, %s20
    %p174 = scmp.eq.s32.totalorder %s173, 0
    %s176 = sadd.s32 %s175, 1
    %s177 = scalar_select %p174, %s175, %s176
    %p180 = pneg %p174
    %p181 = scmp.eq.s32.totalorder %s13, 1
    %p182 = por %p180, %p181
    %p183 = scmp.ne.s32.totalorder %s175, %s178
    %p184 = scmp.eq.s32.totalorder %s13, 0
    %p185 = por %p183, %p184
    %p186 = scmp.ne.s32.totalorder %s175, %s178
    %p187 = scmp.eq.s32.totalorder %s18, 1
    %p188 = por %p186, %p187
    %p189 = scmp.ne.s32.totalorder %s178, %s179
    %p190 = scmp.eq.s32.totalorder %s18, 0
    %p191 = por %p189, %p190
    %p192 = scmp.ne.s32.totalorder %s178, %s179
    %p193 = scmp.eq.s32.totalorder %s19, 1
    %p194 = por %p192, %p193
    %p196 = scmp.ne.s32.totalorder %s179, %s195
    %p197 = scmp.eq.s32.totalorder %s19, 0
    %p198 = por %p196, %p197
    %p199 = scmp.le.s32.totalorder 1, %s13
    %p200 = scmp.lt.s32.totalorder %s13, 3
    %p201 = pnand %p199, %p200
    %p202 = pneg %p201
    // Predicated region
    $region9: #{conv_block_forward.1} parent=5 // pred_check
      _
    $region10: #{conv_block_forward.1} parent=5 // pred_check_branch
      %204 = sbr.rel (%p201) target = $region12
    $region11: #{conv_block_forward.1} parent=5 // pred_region
      %s205 = ssub.s32 %s13, 1
      // Predicated region
      $region13: #{conv_block_forward.1} parent=11 // pred_check
        %p206 = pneg %p60
      $region14: #{conv_block_forward.1} parent=11 // pred_check_branch
        %208 = sbr.rel (%p206) target = $region16
      $region15: #{conv_block_forward.1} parent=11 // pred_region
        _
      $region16: #{conv_block_forward.1} parent=11 // pred_fallthru
        _
      // Predicated region
      $region17: #{conv_block_forward.1} parent=11 // pred_check
        %p209 = pneg %p81
      $region18: #{conv_block_forward.1} parent=11 // pred_check_branch
        %211 = sbr.rel (%p209) target = $region20
      $region19: #{conv_block_forward.1} parent=11 // pred_region
        _
      $region20: #{conv_block_forward.1} parent=11 // pred_fallthru
        _
      // Predicated region
      $region21: #{conv_block_forward.1} parent=11 // pred_check
        %p212 = pneg %p102
      $region22: #{conv_block_forward.1} parent=11 // pred_check_branch
        %214 = sbr.rel (%p212) target = $region24
      $region23: #{conv_block_forward.1} parent=11 // pred_region
        _
      $region24: #{conv_block_forward.1} parent=11 // pred_fallthru
        _
      // Predicated region
      $region25: #{conv_block_forward.1} parent=11 // pred_check
        %p215 = pneg %p123
      $region26: #{conv_block_forward.1} parent=11 // pred_check_branch
        %217 = sbr.rel (%p215) target = $region28
      $region27: #{conv_block_forward.1} parent=11 // pred_region
        _
      $region28: #{conv_block_forward.1} parent=11 // pred_fallthru
        _
      // Predicated region
      $region29: #{conv_block_forward.1} parent=11 // pred_check
        %p218 = pneg %p144
      $region30: #{conv_block_forward.1} parent=11 // pred_check_branch
        %220 = sbr.rel (%p218) target = $region32
      $region31: #{conv_block_forward.1} parent=11 // pred_region
        _
      $region32: #{conv_block_forward.1} parent=11 // pred_fallthru
        _
      // Predicated region
      $region33: #{conv_block_forward.1} parent=11 // pred_check
        %p221 = pneg %p165
      $region34: #{conv_block_forward.1} parent=11 // pred_check_branch
        %223 = sbr.rel (%p221) target = $region36
      $region35: #{conv_block_forward.1} parent=11 // pred_region
        _
      $region36: #{conv_block_forward.1} parent=11 // pred_fallthru
        _
    $region12: #{conv_block_forward.1} parent=5 // pred_fallthru
      _
    %p224 = scmp.lt.s32.totalorder %s13, 2
    // Predicated region
    $region37: #{conv_block_forward.1} parent=5 // pred_check
      %p225 = pneg %p224
    $region38: #{conv_block_forward.1} parent=5 // pred_check_branch
      %227 = sbr.rel (%p225) target = $region40
    $region39: #{conv_block_forward.1} parent=5 // pred_region
      // Predicated region
      $region41: #{conv_block_forward.1} parent=39 // pred_check
        %p228 = pneg %p33
      $region42: #{conv_block_forward.1} parent=39 // pred_check_branch
        %230 = sbr.rel (%p228) target = $region44
      $region43: #{conv_block_forward.1} parent=39 // pred_region
        %p231 = scmp.lt.s32.totalorder %s13, 1
        %s232 = scalar_select %p231, %s13, 1
        %s233 = smul.addr %s232, 32
        %s234 = smul.addr %s233, 8
        %s235 = scalar_lea.vmem %s0, %s234
      $region44: #{conv_block_forward.1} parent=39 // pred_fallthru
        _
    $region40: #{conv_block_forward.1} parent=5 // pred_fallthru
      _
    %p236 = scmp.le.s32.totalorder 1, %s13
    %p237 = scmp.lt.s32.totalorder %s13, 3
    %p238 = pnand %p236, %p237
    %p239 = pneg %p238
    // Predicated region
    $region45: #{conv_block_forward.1} parent=5 // pred_check
      _
    $region46: #{conv_block_forward.1} parent=5 // pred_check_branch
      %241 = sbr.rel (%p238) target = $region48
    $region47: #{conv_block_forward.1} parent=5 // pred_region
      %s242 = ssub.s32 %s13, 1
      %p243 = scmp.lt.s32.totalorder %s18, 1
      %s244 = scalar_select %p243, %s18, 1
      %s245 = smul.addr %s244, 32
      %s246 = smul.addr %s245, 8
      %s247 = scalar_lea.vmem %s0, %s246
      %p248 = pneg %p39
      %p249 = pneg %p36
      %p250 = pneg %p60
      %p251 = pneg %p57
      %p252 = pneg %p81
      %p253 = pneg %p78
      %p254 = pneg %p102
      %p255 = pneg %p99
      %p256 = pneg %p123
      %p257 = pneg %p120
      %p258 = pneg %p144
      %p259 = pneg %p141
      %p260 = pneg %p165
      %p261 = pneg %p162
      %p262 = pneg %p191
      %p263 = pneg %p188
      %p264 = scmp.lt.s32.totalorder %s18, 1
      %s265 = scalar_select %p264, %s18, 1
      %s266 = smul.addr %s265, 32
      %s267 = smul.addr %s266, 8
      %s268 = scalar_lea.vmem %s7, %s267
      %p269 = scmp.lt.s32.totalorder %s18, 1
      %s270 = scalar_select %p269, %s18, 1
      %s271 = smul.addr %s270, 32
      %s272 = smul.addr %s271, 8
      %s273 = scalar_lea.vmem %s0, %s272
      %p274 = scmp.lt.s32.totalorder %s18, 1
      %s275 = scalar_select %p274, %s18, 1
      %s276 = smul.addr %s275, 32
      %s277 = smul.addr %s276, 8
      %s278 = scalar_lea.vmem %s7, %s277
      %280 = vst [vmem:[#allocation2] sm:$0xf] 0
      %281 = vst [vmem:[#allocation2 + $0x10] sm:$0xf] 0
      %282 = vst [vmem:[#allocation2 + $0x20] sm:$0xf] 0
      %283 = vst [vmem:[#allocation2 + $0x30] sm:$0xf] 0
      %284 = vst [vmem:[#allocation2 + $0x40] sm:$0xf] 0
      %285 = vst [vmem:[#allocation2 + $0x50] sm:$0xf] 0
      %286 = vst [vmem:[#allocation2 + $0x60] sm:$0xf] 0
      %287 = vst [vmem:[#allocation2 + $0x70] sm:$0xf] 0
      %288 = vst [vmem:[#allocation2 + $0x80] sm:$0xf] 0
      %289 = vst [vmem:[#allocation2 + $0x90] sm:$0xf] 0
      %290 = vst [vmem:[#allocation2 + $0xa0] sm:$0xf] 0
      %291 = vst [vmem:[#allocation2 + $0xb0] sm:$0xf] 0
      %292 = vst [vmem:[#allocation2 + $0xc0] sm:$0xf] 0
      %293 = vst [vmem:[#allocation2 + $0xd0] sm:$0xf] 0
      %294 = vst [vmem:[#allocation2 + $0xe0] sm:$0xf] 0
      %295 = vst [vmem:[#allocation2 + $0xf0] sm:$0xf] 0
      %296 = vst [vmem:[#allocation2 + $0x100] sm:$0xf] 0
      %297 = vst [vmem:[#allocation2 + $0x110] sm:$0xf] 0
      %298 = vst [vmem:[#allocation2 + $0x8] sm:$0xf0] 0
      %299 = vst [vmem:[#allocation2 + $0x18] sm:$0xf0] 0
      %300 = vst [vmem:[#allocation2 + $0x28] sm:$0xf0] 0
      %301 = vst [vmem:[#allocation2 + $0x38] sm:$0xf0] 0
      %302 = vst [vmem:[#allocation2 + $0x48] sm:$0xf0] 0
      %303 = vst [vmem:[#allocation2 + $0x58] sm:$0xf0] 0
      %304 = vst [vmem:[#allocation2 + $0x68] sm:$0xf0] 0
      %305 = vst [vmem:[#allocation2 + $0x78] sm:$0xf0] 0
      %306 = vst [vmem:[#allocation2 + $0x88] sm:$0xf0] 0
      %307 = vst [vmem:[#allocation2 + $0x98] sm:$0xf0] 0
      %308 = vst [vmem:[#allocation2 + $0xa8] sm:$0xf0] 0
      %309 = vst [vmem:[#allocation2 + $0xb8] sm:$0xf0] 0
      %310 = vst [vmem:[#allocation2 + $0xc8] sm:$0xf0] 0
      %311 = vst [vmem:[#allocation2 + $0xd8] sm:$0xf0] 0
      %312 = vst [vmem:[#allocation2 + $0xe8] sm:$0xf0] 0
      %313 = vst [vmem:[#allocation2 + $0xf8] sm:$0xf0] 0
      %314 = vst [vmem:[#allocation2 + $0x108] sm:$0xf0] 0
      %315 = vst [vmem:[#allocation2 + $0x118] sm:$0xf0] 0
      %316 = vst [vmem:[#allocation2] sm:$0xff] 0
      %317 = vst [vmem:[#allocation2 + $0x8] sm:$0xff] 0
      %s318 = scalar_lea.vmem [#allocation2], 272
      %319 = vst [vmem:[%s318] sm:$0xff] 0
      %320 = vst [vmem:[%s318 + $0x8] sm:$0xff] 0
      %v321 = vld [vmem:[%s273] sm:$0xff]
      %v322 = vld [vmem:[%s273 + $0x8] sm:$0xff]
      %v323 = vld [vmem:[%s273 + $0x10] sm:$0xff]
      %v324 = vld [vmem:[%s273 + $0x18] sm:$0xff]
      %v325 = vld [vmem:[%s273 + $0x20] sm:$0xff]
      %v326 = vld [vmem:[%s273 + $0x28] sm:$0xff]
      %v327 = vld [vmem:[%s273 + $0x30] sm:$0xff]
      %v328 = vld [vmem:[%s273 + $0x38] sm:$0xff]
      %v329 = vld [vmem:[%s273 + $0x40] sm:$0xff]
      %v330 = vld [vmem:[%s273 + $0x48] sm:$0xff]
      %v331 = vld [vmem:[%s273 + $0x50] sm:$0xff]
      %v332 = vld [vmem:[%s273 + $0x58] sm:$0xff]
      %v333 = vld [vmem:[%s273 + $0x60] sm:$0xff]
      %v334 = vld [vmem:[%s273 + $0x68] sm:$0xff]
      %v335 = vld [vmem:[%s273 + $0x70] sm:$0xff]
      %v336 = vld [vmem:[%s273 + $0x78] sm:$0xff]
      %v337 = vld [vmem:[%s273 + $0x80] sm:$0xff]
      %v338 = vld [vmem:[%s273 + $0x88] sm:$0xff]
      %v339 = vld [vmem:[%s273 + $0x90] sm:$0xff]
      %v340 = vld [vmem:[%s273 + $0x98] sm:$0xff]
      %v341 = vld [vmem:[%s273 + $0xa0] sm:$0xff]
      %v342 = vld [vmem:[%s273 + $0xa8] sm:$0xff]
      %v343 = vld [vmem:[%s273 + $0xb0] sm:$0xff]
      %v344 = vld [vmem:[%s273 + $0xb8] sm:$0xff]
      %v345 = vld [vmem:[%s273 + $0xc0] sm:$0xff]
      %v346 = vld [vmem:[%s273 + $0xc8] sm:$0xff]
      %v347 = vld [vmem:[%s273 + $0xd0] sm:$0xff]
      %v348 = vld [vmem:[%s273 + $0xd8] sm:$0xff]
      %v349 = vld [vmem:[%s273 + $0xe0] sm:$0xff]
      %v350 = vld [vmem:[%s273 + $0xe8] sm:$0xff]
      %v351 = vld [vmem:[%s273 + $0xf0] sm:$0xff]
      %v352 = vld [vmem:[%s273 + $0xf8] sm:$0xff]
      %v353 = vpack.c.bf16 %v322, %v321
      %v354 = vpack.c.bf16 %v324, %v323
      %v355 = vpack.c.bf16 %v326, %v325
      %v356 = vpack.c.bf16 %v328, %v327
      %v357 = vpack.c.bf16 %v330, %v329
      %v358 = vpack.c.bf16 %v332, %v331
      %v359 = vpack.c.bf16 %v334, %v333
      %v360 = vpack.c.bf16 %v336, %v335
      %v361 = vpack.c.bf16 %v338, %v337
      %v362 = vpack.c.bf16 %v340, %v339
      %v363 = vpack.c.bf16 %v342, %v341
      %v364 = vpack.c.bf16 %v344, %v343
      %v365 = vpack.c.bf16 %v346, %v345
      %v366 = vpack.c.bf16 %v348, %v347
      %v367 = vpack.c.bf16 %v350, %v349
      %v368 = vpack.c.bf16 %v352, %v351
      %v385 = vrot.slane %v353, 4
      %v386 = vrot.slane %v354, 4
      %v387 = vrot.slane %v355, 4
      %v388 = vrot.slane %v356, 4
      %v389 = vrot.slane %v357, 4
      %v390 = vrot.slane %v358, 4
      %v391 = vrot.slane %v359, 4
      %v392 = vrot.slane %v360, 4
      %v393 = vrot.slane %v361, 4
      %v394 = vrot.slane %v362, 4
      %v395 = vrot.slane %v363, 4
      %v396 = vrot.slane %v364, 4
      %v397 = vrot.slane %v365, 4
      %v398 = vrot.slane %v366, 4
      %v399 = vrot.slane %v367, 4
      %v400 = vrot.slane %v368, 4
      %s417 = scalar_lea.vmem [#allocation2], 16
      %418 = vst [vmem:[%s417] sm:$0xf0] %v385
      %419 = vst [vmem:[%s417 + $0x8] sm:$0xf] %v385
      %420 = vst [vmem:[%s417 + $0x10] sm:$0xf0] %v386
      %421 = vst [vmem:[%s417 + $0x18] sm:$0xf] %v386
      %422 = vst [vmem:[%s417 + $0x20] sm:$0xf0] %v387
      %423 = vst [vmem:[%s417 + $0x28] sm:$0xf] %v387
      %424 = vst [vmem:[%s417 + $0x30] sm:$0xf0] %v388
      %425 = vst [vmem:[%s417 + $0x38] sm:$0xf] %v388
      %426 = vst [vmem:[%s417 + $0x40] sm:$0xf0] %v389
      %427 = vst [vmem:[%s417 + $0x48] sm:$0xf] %v389
      %428 = vst [vmem:[%s417 + $0x50] sm:$0xf0] %v390
      %429 = vst [vmem:[%s417 + $0x58] sm:$0xf] %v390
      %430 = vst [vmem:[%s417 + $0x60] sm:$0xf0] %v391
      %431 = vst [vmem:[%s417 + $0x68] sm:$0xf] %v391
      %432 = vst [vmem:[%s417 + $0x70] sm:$0xf0] %v392
      %433 = vst [vmem:[%s417 + $0x78] sm:$0xf] %v392
      %434 = vst [vmem:[%s417 + $0x80] sm:$0xf0] %v393
      %435 = vst [vmem:[%s417 + $0x88] sm:$0xf] %v393
      %436 = vst [vmem:[%s417 + $0x90] sm:$0xf0] %v394
      %437 = vst [vmem:[%s417 + $0x98] sm:$0xf] %v394
      %438 = vst [vmem:[%s417 + $0xa0] sm:$0xf0] %v395
      %439 = vst [vmem:[%s417 + $0xa8] sm:$0xf] %v395
      %440 = vst [vmem:[%s417 + $0xb0] sm:$0xf0] %v396
      %441 = vst [vmem:[%s417 + $0xb8] sm:$0xf] %v396
      %442 = vst [vmem:[%s417 + $0xc0] sm:$0xf0] %v397
      %443 = vst [vmem:[%s417 + $0xc8] sm:$0xf] %v397
      %444 = vst [vmem:[%s417 + $0xd0] sm:$0xf0] %v398
      %445 = vst [vmem:[%s417 + $0xd8] sm:$0xf] %v398
      %446 = vst [vmem:[%s417 + $0xe0] sm:$0xf0] %v399
      %447 = vst [vmem:[%s417 + $0xe8] sm:$0xf] %v399
      %448 = vst [vmem:[%s417 + $0xf0] sm:$0xf0] %v400
      %449 = vst [vmem:[%s417 + $0xf8] sm:$0xf] %v400
      %v450 = vld [vmem:[#allocation2] sm:$0xf8]
      %v451 = vld [vmem:[#allocation2 + $0x8] sm:$0xf]
      %v452 = vld [vmem:[#allocation2 + $0x10] sm:$0xf8]
      %v453 = vld [vmem:[#allocation2 + $0x18] sm:$0xf]
      %v454 = vld [vmem:[#allocation2 + $0x20] sm:$0xf8]
      %v455 = vld [vmem:[#allocation2 + $0x28] sm:$0xf]
      %v456 = vld [vmem:[#allocation2 + $0x30] sm:$0xf8]
      %v457 = vld [vmem:[#allocation2 + $0x38] sm:$0xf]
      %v458 = vld [vmem:[#allocation2 + $0x40] sm:$0xf8]
      %v459 = vld [vmem:[#allocation2 + $0x48] sm:$0xf]
      %v460 = vld [vmem:[#allocation2 + $0x50] sm:$0xf8]
      %v461 = vld [vmem:[#allocation2 + $0x58] sm:$0xf]
      %v462 = vld [vmem:[#allocation2 + $0x60] sm:$0xf8]
      %v463 = vld [vmem:[#allocation2 + $0x68] sm:$0xf]
      %v464 = vld [vmem:[#allocation2 + $0x70] sm:$0xf8]
      %v465 = vld [vmem:[#allocation2 + $0x78] sm:$0xf]
      %v466 = vld [vmem:[#allocation2 + $0x80] sm:$0xf8]
      %v467 = vld [vmem:[#allocation2 + $0x88] sm:$0xf]
      %v468 = vld [vmem:[#allocation2 + $0x90] sm:$0xf8]
      %v469 = vld [vmem:[#allocation2 + $0x98] sm:$0xf]
      %v470 = vld [vmem:[#allocation2 + $0xa0] sm:$0xf8]
      %v471 = vld [vmem:[#allocation2 + $0xa8] sm:$0xf]
      %v472 = vld [vmem:[#allocation2 + $0xb0] sm:$0xf8]
      %v473 = vld [vmem:[#allocation2 + $0xb8] sm:$0xf]
      %v474 = vld [vmem:[#allocation2 + $0xc0] sm:$0xf8]
      %v475 = vld [vmem:[#allocation2 + $0xc8] sm:$0xf]
      %v476 = vld [vmem:[#allocation2 + $0xd0] sm:$0xf8]
      %v477 = vld [vmem:[#allocation2 + $0xd8] sm:$0xf]
      %v478 = vld [vmem:[#allocation2 + $0xe0] sm:$0xf8]
      %v479 = vld [vmem:[#allocation2 + $0xe8] sm:$0xf]
      %v480 = vld [vmem:[#allocation2 + $0xf0] sm:$0xf8]
      %v481 = vld [vmem:[#allocation2 + $0xf8] sm:$0xf]
      %vm482 = vsmask.f32 4352
      %v484 = vshrl.u32 %v450, 16
      %v486 = vrot.slane %v484, 3
      %v487 = vshll.u32 %v450, 16
      %v489 = vrot.slane %v487, 4
      %v490 = vor.u32 %v486, %v489
      %v492 = vshrl.u32 %v451, 16
      %v494 = vrot.slane %v492, 3
      %v495 = vshll.u32 %v451, 16
      %v497 = vrot.slane %v495, 4
      %v498 = vor.u32 %v494, %v497
      %v499 = vsel %vm482, %v490, %v498
      %v501 = vshrl.u32 %v452, 16
      %v503 = vrot.slane %v501, 3
      %v504 = vshll.u32 %v452, 16
      %v506 = vrot.slane %v504, 4
      %v507 = vor.u32 %v503, %v506
      %v509 = vshrl.u32 %v453, 16
      %v511 = vrot.slane %v509, 3
      %v512 = vshll.u32 %v453, 16
      %v514 = vrot.slane %v512, 4
      %v515 = vor.u32 %v511, %v514
      %v516 = vsel %vm482, %v507, %v515
      %v518 = vshrl.u32 %v454, 16
      %v520 = vrot.slane %v518, 3
      %v521 = vshll.u32 %v454, 16
      %v523 = vrot.slane %v521, 4
      %v524 = vor.u32 %v520, %v523
      %v526 = vshrl.u32 %v455, 16
      %v528 = vrot.slane %v526, 3
      %v529 = vshll.u32 %v455, 16
      %v531 = vrot.slane %v529, 4
      %v532 = vor.u32 %v528, %v531
      %v533 = vsel %vm482, %v524, %v532
      %v535 = vshrl.u32 %v456, 16
      %v537 = vrot.slane %v535, 3
      %v538 = vshll.u32 %v456, 16
      %v540 = vrot.slane %v538, 4
      %v541 = vor.u32 %v537, %v540
      %v543 = vshrl.u32 %v457, 16
      %v545 = vrot.slane %v543, 3
      %v546 = vshll.u32 %v457, 16
      %v548 = vrot.slane %v546, 4
      %v549 = vor.u32 %v545, %v548
      %v550 = vsel %vm482, %v541, %v549
      %v552 = vshrl.u32 %v458, 16
      %v554 = vrot.slane %v552, 3
      %v555 = vshll.u32 %v458, 16
      %v557 = vrot.slane %v555, 4
      %v558 = vor.u32 %v554, %v557
      %v560 = vshrl.u32 %v459, 16
      %v562 = vrot.slane %v560, 3
      %v563 = vshll.u32 %v459, 16
      %v565 = vrot.slane %v563, 4
      %v566 = vor.u32 %v562, %v565
      %v567 = vsel %vm482, %v558, %v566
      %v569 = vshrl.u32 %v460, 16
      %v571 = vrot.slane %v569, 3
      %v572 = vshll.u32 %v460, 16
      %v574 = vrot.slane %v572, 4
      %v575 = vor.u32 %v571, %v574
      %v577 = vshrl.u32 %v461, 16
      %v579 = vrot.slane %v577, 3
      %v580 = vshll.u32 %v461, 16
      %v582 = vrot.slane %v580, 4
      %v583 = vor.u32 %v579, %v582
      %v584 = vsel %vm482, %v575, %v583
      %v586 = vshrl.u32 %v462, 16
      %v588 = vrot.slane %v586, 3
      %v589 = vshll.u32 %v462, 16
      %v591 = vrot.slane %v589, 4
      %v592 = vor.u32 %v588, %v591
      %v594 = vshrl.u32 %v463, 16
      %v596 = vrot.slane %v594, 3
      %v597 = vshll.u32 %v463, 16
      %v599 = vrot.slane %v597, 4
      %v600 = vor.u32 %v596, %v599
      %v601 = vsel %vm482, %v592, %v600
      %v603 = vshrl.u32 %v464, 16
      %v605 = vrot.slane %v603, 3
      %v606 = vshll.u32 %v464, 16
      %v608 = vrot.slane %v606, 4
      %v609 = vor.u32 %v605, %v608
      %v611 = vshrl.u32 %v465, 16
      %v613 = vrot.slane %v611, 3
      %v614 = vshll.u32 %v465, 16
      %v616 = vrot.slane %v614, 4
      %v617 = vor.u32 %v613, %v616
      %v618 = vsel %vm482, %v609, %v617
      %v620 = vshrl.u32 %v466, 16
      %v622 = vrot.slane %v620, 3
      %v623 = vshll.u32 %v466, 16
      %v625 = vrot.slane %v623, 4
      %v626 = vor.u32 %v622, %v625
      %v628 = vshrl.u32 %v467, 16
      %v630 = vrot.slane %v628, 3
      %v631 = vshll.u32 %v467, 16
      %v633 = vrot.slane %v631, 4
      %v634 = vor.u32 %v630, %v633
      %v635 = vsel %vm482, %v626, %v634
      %v637 = vshrl.u32 %v468, 16
      %v639 = vrot.slane %v637, 3
      %v640 = vshll.u32 %v468, 16
      %v642 = vrot.slane %v640, 4
      %v643 = vor.u32 %v639, %v642
      %v645 = vshrl.u32 %v469, 16
      %v647 = vrot.slane %v645, 3
      %v648 = vshll.u32 %v469, 16
      %v650 = vrot.slane %v648, 4
      %v651 = vor.u32 %v647, %v650
      %v652 = vsel %vm482, %v643, %v651
      %v654 = vshrl.u32 %v470, 16
      %v656 = vrot.slane %v654, 3
      %v657 = vshll.u32 %v470, 16
      %v659 = vrot.slane %v657, 4
      %v660 = vor.u32 %v656, %v659
      %v662 = vshrl.u32 %v471, 16
      %v664 = vrot.slane %v662, 3
      %v665 = vshll.u32 %v471, 16
      %v667 = vrot.slane %v665, 4
      %v668 = vor.u32 %v664, %v667
      %v669 = vsel %vm482, %v660, %v668
      %v671 = vshrl.u32 %v472, 16
      %v673 = vrot.slane %v671, 3
      %v674 = vshll.u32 %v472, 16
      %v676 = vrot.slane %v674, 4
      %v677 = vor.u32 %v673, %v676
      %v679 = vshrl.u32 %v473, 16
      %v681 = vrot.slane %v679, 3
      %v682 = vshll.u32 %v473, 16
      %v684 = vrot.slane %v682, 4
      %v685 = vor.u32 %v681, %v684
      %v686 = vsel %vm482, %v677, %v685
      %v688 = vshrl.u32 %v474, 16
      %v690 = vrot.slane %v688, 3
      %v691 = vshll.u32 %v474, 16
      %v693 = vrot.slane %v691, 4
      %v694 = vor.u32 %v690, %v693
      %v696 = vshrl.u32 %v475, 16
      %v698 = vrot.slane %v696, 3
      %v699 = vshll.u32 %v475, 16
      %v701 = vrot.slane %v699, 4
      %v702 = vor.u32 %v698, %v701
      %v703 = vsel %vm482, %v694, %v702
      %v705 = vshrl.u32 %v476, 16
      %v707 = vrot.slane %v705, 3
      %v708 = vshll.u32 %v476, 16
      %v710 = vrot.slane %v708, 4
      %v711 = vor.u32 %v707, %v710
      %v713 = vshrl.u32 %v477, 16
      %v715 = vrot.slane %v713, 3
      %v716 = vshll.u32 %v477, 16
      %v718 = vrot.slane %v716, 4
      %v719 = vor.u32 %v715, %v718
      %v720 = vsel %vm482, %v711, %v719
      %v722 = vshrl.u32 %v478, 16
      %v724 = vrot.slane %v722, 3
      %v725 = vshll.u32 %v478, 16
      %v727 = vrot.slane %v725, 4
      %v728 = vor.u32 %v724, %v727
      %v730 = vshrl.u32 %v479, 16
      %v732 = vrot.slane %v730, 3
      %v733 = vshll.u32 %v479, 16
      %v735 = vrot.slane %v733, 4
      %v736 = vor.u32 %v732, %v735
      %v737 = vsel %vm482, %v728, %v736
      %v739 = vshrl.u32 %v480, 16
      %v741 = vrot.slane %v739, 3
      %v742 = vshll.u32 %v480, 16
      %v744 = vrot.slane %v742, 4
      %v745 = vor.u32 %v741, %v744
      %v747 = vshrl.u32 %v481, 16
      %v749 = vrot.slane %v747, 3
      %v750 = vshll.u32 %v481, 16
      %v752 = vrot.slane %v750, 4
      %v753 = vor.u32 %v749, %v752
      %v754 = vsel %vm482, %v745, %v753
      %771 = vst [vmem:[#allocation3] sm:$0xff] %v499
      %772 = vst [vmem:[#allocation3 + $0x48] sm:$0xff] %v516
      %773 = vst [vmem:[#allocation3 + $0x90] sm:$0xff] %v533
      %774 = vst [vmem:[#allocation3 + $0xd8] sm:$0xff] %v550
      %775 = vst [vmem:[#allocation3 + $0x120] sm:$0xff] %v567
      %776 = vst [vmem:[#allocation3 + $0x168] sm:$0xff] %v584
      %777 = vst [vmem:[#allocation3 + $0x1b0] sm:$0xff] %v601
      %778 = vst [vmem:[#allocation3 + $0x1f8] sm:$0xff] %v618
      %779 = vst [vmem:[#allocation3 + $0x240] sm:$0xff] %v635
      %780 = vst [vmem:[#allocation3 + $0x288] sm:$0xff] %v652
      %781 = vst [vmem:[#allocation3 + $0x2d0] sm:$0xff] %v669
      %782 = vst [vmem:[#allocation3 + $0x318] sm:$0xff] %v686
      %783 = vst [vmem:[#allocation3 + $0x360] sm:$0xff] %v703
      %784 = vst [vmem:[#allocation3 + $0x3a8] sm:$0xff] %v720
      %785 = vst [vmem:[#allocation3 + $0x3f0] sm:$0xff] %v737
      %786 = vst [vmem:[#allocation3 + $0x438] sm:$0xff] %v754
      %v787 = vld [vmem:[#allocation2] sm:$0xf0]
      %v788 = vld [vmem:[#allocation2 + $0x8] sm:$0xf]
      %v789 = vld [vmem:[#allocation2 + $0x10] sm:$0xf0]
      %v790 = vld [vmem:[#allocation2 + $0x18] sm:$0xf]
      %v791 = vld [vmem:[#allocation2 + $0x20] sm:$0xf0]
      %v792 = vld [vmem:[#allocation2 + $0x28] sm:$0xf]
      %v793 = vld [vmem:[#allocation2 + $0x30] sm:$0xf0]
      %v794 = vld [vmem:[#allocation2 + $0x38] sm:$0xf]
      %v795 = vld [vmem:[#allocation2 + $0x40] sm:$0xf0]
      %v796 = vld [vmem:[#allocation2 + $0x48] sm:$0xf]
      %v797 = vld [vmem:[#allocation2 + $0x50] sm:$0xf0]
      %v798 = vld [vmem:[#allocation2 + $0x58] sm:$0xf]
      %v799 = vld [vmem:[#allocation2 + $0x60] sm:$0xf0]
      %v800 = vld [vmem:[#allocation2 + $0x68] sm:$0xf]
      %v801 = vld [vmem:[#allocation2 + $0x70] sm:$0xf0]
      %v802 = vld [vmem:[#allocation2 + $0x78] sm:$0xf]
      %v803 = vld [vmem:[#allocation2 + $0x80] sm:$0xf0]
      %v804 = vld [vmem:[#allocation2 + $0x88] sm:$0xf]
      %v805 = vld [vmem:[#allocation2 + $0x90] sm:$0xf0]
      %v806 = vld [vmem:[#allocation2 + $0x98] sm:$0xf]
      %v807 = vld [vmem:[#allocation2 + $0xa0] sm:$0xf0]
      %v808 = vld [vmem:[#allocation2 + $0xa8] sm:$0xf]
      %v809 = vld [vmem:[#allocation2 + $0xb0] sm:$0xf0]
      %v810 = vld [vmem:[#allocation2 + $0xb8] sm:$0xf]
      %v811 = vld [vmem:[#allocation2 + $0xc0] sm:$0xf0]
      %v812 = vld [vmem:[#allocation2 + $0xc8] sm:$0xf]
      %v813 = vld [vmem:[#allocation2 + $0xd0] sm:$0xf0]
      %v814 = vld [vmem:[#allocation2 + $0xd8] sm:$0xf]
      %v815 = vld [vmem:[#allocation2 + $0xe0] sm:$0xf0]
      %v816 = vld [vmem:[#allocation2 + $0xe8] sm:$0xf]
      %v817 = vld [vmem:[#allocation2 + $0xf0] sm:$0xf0]
      %v818 = vld [vmem:[#allocation2 + $0xf8] sm:$0xf]
      %vm851 = vcmask 1043456
      %v852 = vrot.slane %v787, 4
      %v853 = vrot.slane %v788, 4
      %v854 = vsel %vm851, %v852, %v853
      %v855 = vrot.slane %v789, 4
      %v856 = vrot.slane %v790, 4
      %v857 = vsel %vm851, %v855, %v856
      %v858 = vrot.slane %v791, 4
      %v859 = vrot.slane %v792, 4
      %v860 = vsel %vm851, %v858, %v859
      %v861 = vrot.slane %v793, 4
      %v862 = vrot.slane %v794, 4
      %v863 = vsel %vm851, %v861, %v862
      %v864 = vrot.slane %v795, 4
      %v865 = vrot.slane %v796, 4
      %v866 = vsel %vm851, %v864, %v865
      %v867 = vrot.slane %v797, 4
      %v868 = vrot.slane %v798, 4
      %v869 = vsel %vm851, %v867, %v868
      %v870 = vrot.slane %v799, 4
      %v871 = vrot.slane %v800, 4
      %v872 = vsel %vm851, %v870, %v871
      %v873 = vrot.slane %v801, 4
      %v874 = vrot.slane %v802, 4
      %v875 = vsel %vm851, %v873, %v874
      %v876 = vrot.slane %v803, 4
      %v877 = vrot.slane %v804, 4
      %v878 = vsel %vm851, %v876, %v877
      %v879 = vrot.slane %v805, 4
      %v880 = vrot.slane %v806, 4
      %v881 = vsel %vm851, %v879, %v880
      %v882 = vrot.slane %v807, 4
      %v883 = vrot.slane %v808, 4
      %v884 = vsel %vm851, %v882, %v883
      %v885 = vrot.slane %v809, 4
      %v886 = vrot.slane %v810, 4
      %v887 = vsel %vm851, %v885, %v886
      %v888 = vrot.slane %v811, 4
      %v889 = vrot.slane %v812, 4
      %v890 = vsel %vm851, %v888, %v889
      %v891 = vrot.slane %v813, 4
      %v892 = vrot.slane %v814, 4
      %v893 = vsel %vm851, %v891, %v892
      %v894 = vrot.slane %v815, 4
      %v895 = vrot.slane %v816, 4
      %v896 = vsel %vm851, %v894, %v895
      %v897 = vrot.slane %v817, 4
      %v898 = vrot.slane %v818, 4
      %v899 = vsel %vm851, %v897, %v898
      %916 = vst [vmem:[#allocation3 + $0x8] sm:$0xff] %v854
      %917 = vst [vmem:[#allocation3 + $0x50] sm:$0xff] %v857
      %918 = vst [vmem:[#allocation3 + $0x98] sm:$0xff] %v860
      %919 = vst [vmem:[#allocation3 + $0xe0] sm:$0xff] %v863
      %920 = vst [vmem:[#allocation3 + $0x128] sm:$0xff] %v866
      %921 = vst [vmem:[#allocation3 + $0x170] sm:$0xff] %v869
      %922 = vst [vmem:[#allocation3 + $0x1b8] sm:$0xff] %v872
      %923 = vst [vmem:[#allocation3 + $0x200] sm:$0xff] %v875
      %924 = vst [vmem:[#allocation3 + $0x248] sm:$0xff] %v878
      %925 = vst [vmem:[#allocation3 + $0x290] sm:$0xff] %v881
      %926 = vst [vmem:[#allocation3 + $0x2d8] sm:$0xff] %v884
      %927 = vst [vmem:[#allocation3 + $0x320] sm:$0xff] %v887
      %928 = vst [vmem:[#allocation3 + $0x368] sm:$0xff] %v890
      %929 = vst [vmem:[#allocation3 + $0x3b0] sm:$0xff] %v893
      %930 = vst [vmem:[#allocation3 + $0x3f8] sm:$0xff] %v896
      %931 = vst [vmem:[#allocation3 + $0x440] sm:$0xff] %v899
      %v932 = vld [vmem:[#allocation2] sm:$0xf0]
      %v933 = vld [vmem:[#allocation2 + $0x8] sm:$0x1f]
      %v934 = vld [vmem:[#allocation2 + $0x10] sm:$0xf0]
      %v935 = vld [vmem:[#allocation2 + $0x18] sm:$0x1f]
      %v936 = vld [vmem:[#allocation2 + $0x20] sm:$0xf0]
      %v937 = vld [vmem:[#allocation2 + $0x28] sm:$0x1f]
      %v938 = vld [vmem:[#allocation2 + $0x30] sm:$0xf0]
      %v939 = vld [vmem:[#allocation2 + $0x38] sm:$0x1f]
      %v940 = vld [vmem:[#allocation2 + $0x40] sm:$0xf0]
      %v941 = vld [vmem:[#allocation2 + $0x48] sm:$0x1f]
      %v942 = vld [vmem:[#allocation2 + $0x50] sm:$0xf0]
      %v943 = vld [vmem:[#allocation2 + $0x58] sm:$0x1f]
      %v944 = vld [vmem:[#allocation2 + $0x60] sm:$0xf0]
      %v945 = vld [vmem:[#allocation2 + $0x68] sm:$0x1f]
      %v946 = vld [vmem:[#allocation2 + $0x70] sm:$0xf0]
      %v947 = vld [vmem:[#allocation2 + $0x78] sm:$0x1f]
      %v948 = vld [vmem:[#allocation2 + $0x80] sm:$0xf0]
      %v949 = vld [vmem:[#allocation2 + $0x88] sm:$0x1f]
      %v950 = vld [vmem:[#allocation2 + $0x90] sm:$0xf0]
      %v951 = vld [vmem:[#allocation2 + $0x98] sm:$0x1f]
      %v952 = vld [vmem:[#allocation2 + $0xa0] sm:$0xf0]
      %v953 = vld [vmem:[#allocation2 + $0xa8] sm:$0x1f]
      %v954 = vld [vmem:[#allocation2 + $0xb0] sm:$0xf0]
      %v955 = vld [vmem:[#allocation2 + $0xb8] sm:$0x1f]
      %v956 = vld [vmem:[#allocation2 + $0xc0] sm:$0xf0]
      %v957 = vld [vmem:[#allocation2 + $0xc8] sm:$0x1f]
      %v958 = vld [vmem:[#allocation2 + $0xd0] sm:$0xf0]
      %v959 = vld [vmem:[#allocation2 + $0xd8] sm:$0x1f]
      %v960 = vld [vmem:[#allocation2 + $0xe0] sm:$0xf0]
      %v961 = vld [vmem:[#allocation2 + $0xe8] sm:$0x1f]
      %v962 = vld [vmem:[#allocation2 + $0xf0] sm:$0xf0]
      %v963 = vld [vmem:[#allocation2 + $0xf8] sm:$0x1f]
      %vm964 = vsmask.f32 3328
      %v966 = vshrl.u32 %v932, 16
      %v968 = vrot.slane %v966, 4
      %v969 = vshll.u32 %v932, 16
      %v971 = vrot.slane %v969, 5
      %v972 = vor.u32 %v968, %v971
      %v974 = vshrl.u32 %v933, 16
      %v976 = vrot.slane %v974, 4
      %v977 = vshll.u32 %v933, 16
      %v979 = vrot.slane %v977, 5
      %v980 = vor.u32 %v976, %v979
      %v981 = vsel %vm964, %v972, %v980
      %v983 = vshrl.u32 %v934, 16
      %v985 = vrot.slane %v983, 4
      %v986 = vshll.u32 %v934, 16
      %v988 = vrot.slane %v986, 5
      %v989 = vor.u32 %v985, %v988
      %v991 = vshrl.u32 %v935, 16
      %v993 = vrot.slane %v991, 4
      %v994 = vshll.u32 %v935, 16
      %v996 = vrot.slane %v994, 5
      %v997 = vor.u32 %v993, %v996
      %v998 = vsel %vm964, %v989, %v997
      %v1000 = vshrl.u32 %v936, 16
      %v1002 = vrot.slane %v1000, 4
      %v1003 = vshll.u32 %v936, 16
      %v1005 = vrot.slane %v1003, 5
      %v1006 = vor.u32 %v1002, %v1005
      %v1008 = vshrl.u32 %v937, 16
      %v1010 = vrot.slane %v1008, 4
      %v1011 = vshll.u32 %v937, 16
      %v1013 = vrot.slane %v1011, 5
      %v1014 = vor.u32 %v1010, %v1013
      %v1015 = vsel %vm964, %v1006, %v1014
      %v1017 = vshrl.u32 %v938, 16
      %v1019 = vrot.slane %v1017, 4
      %v1020 = vshll.u32 %v938, 16
      %v1022 = vrot.slane %v1020, 5
      %v1023 = vor.u32 %v1019, %v1022
      %v1025 = vshrl.u32 %v939, 16
      %v1027 = vrot.slane %v1025, 4
      %v1028 = vshll.u32 %v939, 16
      %v1030 = vrot.slane %v1028, 5
      %v1031 = vor.u32 %v1027, %v1030
      %v1032 = vsel %vm964, %v1023, %v1031
      %v1034 = vshrl.u32 %v940, 16
      %v1036 = vrot.slane %v1034, 4
      %v1037 = vshll.u32 %v940, 16
      %v1039 = vrot.slane %v1037, 5
      %v1040 = vor.u32 %v1036, %v1039
      %v1042 = vshrl.u32 %v941, 16
      %v1044 = vrot.slane %v1042, 4
      %v1045 = vshll.u32 %v941, 16
      %v1047 = vrot.slane %v1045, 5
      %v1048 = vor.u32 %v1044, %v1047
      %v1049 = vsel %vm964, %v1040, %v1048
      %v1051 = vshrl.u32 %v942, 16
      %v1053 = vrot.slane %v1051, 4
      %v1054 = vshll.u32 %v942, 16
      %v1056 = vrot.slane %v1054, 5
      %v1057 = vor.u32 %v1053, %v1056
      %v1059 = vshrl.u32 %v943, 16
      %v1061 = vrot.slane %v1059, 4
      %v1062 = vshll.u32 %v943, 16
      %v1064 = vrot.slane %v1062, 5
      %v1065 = vor.u32 %v1061, %v1064
      %v1066 = vsel %vm964, %v1057, %v1065
      %v1068 = vshrl.u32 %v944, 16
      %v1070 = vrot.slane %v1068, 4
      %v1071 = vshll.u32 %v944, 16
      %v1073 = vrot.slane %v1071, 5
      %v1074 = vor.u32 %v1070, %v1073
      %v1076 = vshrl.u32 %v945, 16
      %v1078 = vrot.slane %v1076, 4
      %v1079 = vshll.u32 %v945, 16
      %v1081 = vrot.slane %v1079, 5
      %v1082 = vor.u32 %v1078, %v1081
      %v1083 = vsel %vm964, %v1074, %v1082
      %v1085 = vshrl.u32 %v946, 16
      %v1087 = vrot.slane %v1085, 4
      %v1088 = vshll.u32 %v946, 16
      %v1090 = vrot.slane %v1088, 5
      %v1091 = vor.u32 %v1087, %v1090
      %v1093 = vshrl.u32 %v947, 16
      %v1095 = vrot.slane %v1093, 4
      %v1096 = vshll.u32 %v947, 16
      %v1098 = vrot.slane %v1096, 5
      %v1099 = vor.u32 %v1095, %v1098
      %v1100 = vsel %vm964, %v1091, %v1099
      %v1102 = vshrl.u32 %v948, 16
      %v1104 = vrot.slane %v1102, 4
      %v1105 = vshll.u32 %v948, 16
      %v1107 = vrot.slane %v1105, 5
      %v1108 = vor.u32 %v1104, %v1107
      %v1110 = vshrl.u32 %v949, 16
      %v1112 = vrot.slane %v1110, 4
      %v1113 = vshll.u32 %v949, 16
      %v1115 = vrot.slane %v1113, 5
      %v1116 = vor.u32 %v1112, %v1115
      %v1117 = vsel %vm964, %v1108, %v1116
      %v1119 = vshrl.u32 %v950, 16
      %v1121 = vrot.slane %v1119, 4
      %v1122 = vshll.u32 %v950, 16
      %v1124 = vrot.slane %v1122, 5
      %v1125 = vor.u32 %v1121, %v1124
      %v1127 = vshrl.u32 %v951, 16
      %v1129 = vrot.slane %v1127, 4
      %v1130 = vshll.u32 %v951, 16
      %v1132 = vrot.slane %v1130, 5
      %v1133 = vor.u32 %v1129, %v1132
      %v1134 = vsel %vm964, %v1125, %v1133
      %v1136 = vshrl.u32 %v952, 16
      %v1138 = vrot.slane %v1136, 4
      %v1139 = vshll.u32 %v952, 16
      %v1141 = vrot.slane %v1139, 5
      %v1142 = vor.u32 %v1138, %v1141
      %v1144 = vshrl.u32 %v953, 16
      %v1146 = vrot.slane %v1144, 4
      %v1147 = vshll.u32 %v953, 16
      %v1149 = vrot.slane %v1147, 5
      %v1150 = vor.u32 %v1146, %v1149
      %v1151 = vsel %vm964, %v1142, %v1150
      %v1153 = vshrl.u32 %v954, 16
      %v1155 = vrot.slane %v1153, 4
      %v1156 = vshll.u32 %v954, 16
      %v1158 = vrot.slane %v1156, 5
      %v1159 = vor.u32 %v1155, %v1158
      %v1161 = vshrl.u32 %v955, 16
      %v1163 = vrot.slane %v1161, 4
      %v1164 = vshll.u32 %v955, 16
      %v1166 = vrot.slane %v1164, 5
      %v1167 = vor.u32 %v1163, %v1166
      %v1168 = vsel %vm964, %v1159, %v1167
      %v1170 = vshrl.u32 %v956, 16
      %v1172 = vrot.slane %v1170, 4
      %v1173 = vshll.u32 %v956, 16
      %v1175 = vrot.slane %v1173, 5
      %v1176 = vor.u32 %v1172, %v1175
      %v1178 = vshrl.u32 %v957, 16
      %v1180 = vrot.slane %v1178, 4
      %v1181 = vshll.u32 %v957, 16
      %v1183 = vrot.slane %v1181, 5
      %v1184 = vor.u32 %v1180, %v1183
      %v1185 = vsel %vm964, %v1176, %v1184
      %v1187 = vshrl.u32 %v958, 16
      %v1189 = vrot.slane %v1187, 4
      %v1190 = vshll.u32 %v958, 16
      %v1192 = vrot.slane %v1190, 5
      %v1193 = vor.u32 %v1189, %v1192
      %v1195 = vshrl.u32 %v959, 16
      %v1197 = vrot.slane %v1195, 4
      %v1198 = vshll.u32 %v959, 16
      %v1200 = vrot.slane %v1198, 5
      %v1201 = vor.u32 %v1197, %v1200
      %v1202 = vsel %vm964, %v1193, %v1201
      %v1204 = vshrl.u32 %v960, 16
      %v1206 = vrot.slane %v1204, 4
      %v1207 = vshll.u32 %v960, 16
      %v1209 = vrot.slane %v1207, 5
      %v1210 = vor.u32 %v1206, %v1209
      %v1212 = vshrl.u32 %v961, 16
      %v1214 = vrot.slane %v1212, 4
      %v1215 = vshll.u32 %v961, 16
      %v1217 = vrot.slane %v1215, 5
      %v1218 = vor.u32 %v1214, %v1217
      %v1219 = vsel %vm964, %v1210, %v1218
      %v1221 = vshrl.u32 %v962, 16
      %v1223 = vrot.slane %v1221, 4
      %v1224 = vshll.u32 %v962, 16
      %v1226 = vrot.slane %v1224, 5
      %v1227 = vor.u32 %v1223, %v1226
      %v1229 = vshrl.u32 %v963, 16
      %v1231 = vrot.slane %v1229, 4
      %v1232 = vshll.u32 %v963, 16
      %v1234 = vrot.slane %v1232, 5
      %v1235 = vor.u32 %v1231, %v1234
      %v1236 = vsel %vm964, %v1227, %v1235
      %1253 = vst [vmem:[#allocation3 + $0x10] sm:$0xff] %v981
      %1254 = vst [vmem:[#allocation3 + $0x58] sm:$0xff] %v998
      %1255 = vst [vmem:[#allocation3 + $0xa0] sm:$0xff] %v1015
      %1256 = vst [vmem:[#allocation3 + $0xe8] sm:$0xff] %v1032
      %1257 = vst [vmem:[#allocation3 + $0x130] sm:$0xff] %v1049
      %1258 = vst [vmem:[#allocation3 + $0x178] sm:$0xff] %v1066
      %1259 = vst [vmem:[#allocation3 + $0x1c0] sm:$0xff] %v1083
      %1260 = vst [vmem:[#allocation3 + $0x208] sm:$0xff] %v1100
      %1261 = vst [vmem:[#allocation3 + $0x250] sm:$0xff] %v1117
      %1262 = vst [vmem:[#allocation3 + $0x298] sm:$0xff] %v1134
      %1263 = vst [vmem:[#allocation3 + $0x2e0] sm:$0xff] %v1151
      %1264 = vst [vmem:[#allocation3 + $0x328] sm:$0xff] %v1168
      %1265 = vst [vmem:[#allocation3 + $0x370] sm:$0xff] %v1185
      %1266 = vst [vmem:[#allocation3 + $0x3b8] sm:$0xff] %v1202
      %1267 = vst [vmem:[#allocation3 + $0x400] sm:$0xff] %v1219
      %1268 = vst [vmem:[#allocation3 + $0x448] sm:$0xff] %v1236
      %v1269 = vld [vmem:[%s417] sm:$0xf8]
      %v1270 = vld [vmem:[%s417 + $0x8] sm:$0xf]
      %v1271 = vld [vmem:[%s417 + $0x10] sm:$0xf8]
      %v1272 = vld [vmem:[%s417 + $0x18] sm:$0xf]
      %v1273 = vld [vmem:[%s417 + $0x20] sm:$0xf8]
      %v1274 = vld [vmem:[%s417 + $0x28] sm:$0xf]
      %v1275 = vld [vmem:[%s417 + $0x30] sm:$0xf8]
      %v1276 = vld [vmem:[%s417 + $0x38] sm:$0xf]
      %v1277 = vld [vmem:[%s417 + $0x40] sm:$0xf8]
      %v1278 = vld [vmem:[%s417 + $0x48] sm:$0xf]
      %v1279 = vld [vmem:[%s417 + $0x50] sm:$0xf8]
      %v1280 = vld [vmem:[%s417 + $0x58] sm:$0xf]
      %v1281 = vld [vmem:[%s417 + $0x60] sm:$0xf8]
      %v1282 = vld [vmem:[%s417 + $0x68] sm:$0xf]
      %v1283 = vld [vmem:[%s417 + $0x70] sm:$0xf8]
      %v1284 = vld [vmem:[%s417 + $0x78] sm:$0xf]
      %v1285 = vld [vmem:[%s417 + $0x80] sm:$0xf8]
      %v1286 = vld [vmem:[%s417 + $0x88] sm:$0xf]
      %v1287 = vld [vmem:[%s417 + $0x90] sm:$0xf8]
      %v1288 = vld [vmem:[%s417 + $0x98] sm:$0xf]
      %v1289 = vld [vmem:[%s417 + $0xa0] sm:$0xf8]
      %v1290 = vld [vmem:[%s417 + $0xa8] sm:$0xf]
      %v1291 = vld [vmem:[%s417 + $0xb0] sm:$0xf8]
      %v1292 = vld [vmem:[%s417 + $0xb8] sm:$0xf]
      %v1293 = vld [vmem:[%s417 + $0xc0] sm:$0xf8]
      %v1294 = vld [vmem:[%s417 + $0xc8] sm:$0xf]
      %v1295 = vld [vmem:[%s417 + $0xd0] sm:$0xf8]
      %v1296 = vld [vmem:[%s417 + $0xd8] sm:$0xf]
      %v1297 = vld [vmem:[%s417 + $0xe0] sm:$0xf8]
      %v1298 = vld [vmem:[%s417 + $0xe8] sm:$0xf]
      %v1299 = vld [vmem:[%s417 + $0xf0] sm:$0xf8]
      %v1300 = vld [vmem:[%s417 + $0xf8] sm:$0xf]
      %v1302 = vshrl.u32 %v1269, 16
      %v1304 = vrot.slane %v1302, 3
      %v1305 = vshll.u32 %v1269, 16
      %v1307 = vrot.slane %v1305, 4
      %v1308 = vor.u32 %v1304, %v1307
      %v1310 = vshrl.u32 %v1270, 16
      %v1312 = vrot.slane %v1310, 3
      %v1313 = vshll.u32 %v1270, 16
      %v1315 = vrot.slane %v1313, 4
      %v1316 = vor.u32 %v1312, %v1315
      %v1317 = vsel %vm482, %v1308, %v1316
      %v1319 = vshrl.u32 %v1271, 16
      %v1321 = vrot.slane %v1319, 3
      %v1322 = vshll.u32 %v1271, 16
      %v1324 = vrot.slane %v1322, 4
      %v1325 = vor.u32 %v1321, %v1324
      %v1327 = vshrl.u32 %v1272, 16
      %v1329 = vrot.slane %v1327, 3
      %v1330 = vshll.u32 %v1272, 16
      %v1332 = vrot.slane %v1330, 4
      %v1333 = vor.u32 %v1329, %v1332
      %v1334 = vsel %vm482, %v1325, %v1333
      %v1336 = vshrl.u32 %v1273, 16
      %v1338 = vrot.slane %v1336, 3
      %v1339 = vshll.u32 %v1273, 16
      %v1341 = vrot.slane %v1339, 4
      %v1342 = vor.u32 %v1338, %v1341
      %v1344 = vshrl.u32 %v1274, 16
      %v1346 = vrot.slane %v1344, 3
      %v1347 = vshll.u32 %v1274, 16
      %v1349 = vrot.slane %v1347, 4
      %v1350 = vor.u32 %v1346, %v1349
      %v1351 = vsel %vm482, %v1342, %v1350
      %v1353 = vshrl.u32 %v1275, 16
      %v1355 = vrot.slane %v1353, 3
      %v1356 = vshll.u32 %v1275, 16
      %v1358 = vrot.slane %v1356, 4
      %v1359 = vor.u32 %v1355, %v1358
      %v1361 = vshrl.u32 %v1276, 16
      %v1363 = vrot.slane %v1361, 3
      %v1364 = vshll.u32 %v1276, 16
      %v1366 = vrot.slane %v1364, 4
      %v1367 = vor.u32 %v1363, %v1366
      %v1368 = vsel %vm482, %v1359, %v1367
      %v1370 = vshrl.u32 %v1277, 16
      %v1372 = vrot.slane %v1370, 3
      %v1373 = vshll.u32 %v1277, 16
      %v1375 = vrot.slane %v1373, 4
      %v1376 = vor.u32 %v1372, %v1375
      %v1378 = vshrl.u32 %v1278, 16
      %v1380 = vrot.slane %v1378, 3
      %v1381 = vshll.u32 %v1278, 16
      %v1383 = vrot.slane %v1381, 4
      %v1384 = vor.u32 %v1380, %v1383
      %v1385 = vsel %vm482, %v1376, %v1384
      %v1387 = vshrl.u32 %v1279, 16
      %v1389 = vrot.slane %v1387, 3
      %v1390 = vshll.u32 %v1279, 16
      %v1392 = vrot.slane %v1390, 4
      %v1393 = vor.u32 %v1389, %v1392
      %v1395 = vshrl.u32 %v1280, 16
      %v1397 = vrot.slane %v1395, 3
      %v1398 = vshll.u32 %v1280, 16
      %v1400 = vrot.slane %v1398, 4
      %v1401 = vor.u32 %v1397, %v1400
      %v1402 = vsel %vm482, %v1393, %v1401
      %v1404 = vshrl.u32 %v1281, 16
      %v1406 = vrot.slane %v1404, 3
      %v1407 = vshll.u32 %v1281, 16
      %v1409 = vrot.slane %v1407, 4
      %v1410 = vor.u32 %v1406, %v1409
      %v1412 = vshrl.u32 %v1282, 16
      %v1414 = vrot.slane %v1412, 3
      %v1415 = vshll.u32 %v1282, 16
      %v1417 = vrot.slane %v1415, 4
      %v1418 = vor.u32 %v1414, %v1417
      %v1419 = vsel %vm482, %v1410, %v1418
      %v1421 = vshrl.u32 %v1283, 16
      %v1423 = vrot.slane %v1421, 3
      %v1424 = vshll.u32 %v1283, 16
      %v1426 = vrot.slane %v1424, 4
      %v1427 = vor.u32 %v1423, %v1426
      %v1429 = vshrl.u32 %v1284, 16
      %v1431 = vrot.slane %v1429, 3
      %v1432 = vshll.u32 %v1284, 16
      %v1434 = vrot.slane %v1432, 4
      %v1435 = vor.u32 %v1431, %v1434
      %v1436 = vsel %vm482, %v1427, %v1435
      %v1438 = vshrl.u32 %v1285, 16
      %v1440 = vrot.slane %v1438, 3
      %v1441 = vshll.u32 %v1285, 16
      %v1443 = vrot.slane %v1441, 4
      %v1444 = vor.u32 %v1440, %v1443
      %v1446 = vshrl.u32 %v1286, 16
      %v1448 = vrot.slane %v1446, 3
      %v1449 = vshll.u32 %v1286, 16
      %v1451 = vrot.slane %v1449, 4
      %v1452 = vor.u32 %v1448, %v1451
      %v1453 = vsel %vm482, %v1444, %v1452
      %v1455 = vshrl.u32 %v1287, 16
      %v1457 = vrot.slane %v1455, 3
      %v1458 = vshll.u32 %v1287, 16
      %v1460 = vrot.slane %v1458, 4
      %v1461 = vor.u32 %v1457, %v1460
      %v1463 = vshrl.u32 %v1288, 16
      %v1465 = vrot.slane %v1463, 3
      %v1466 = vshll.u32 %v1288, 16
      %v1468 = vrot.slane %v1466, 4
      %v1469 = vor.u32 %v1465, %v1468
      %v1470 = vsel %vm482, %v1461, %v1469
      %v1472 = vshrl.u32 %v1289, 16
      %v1474 = vrot.slane %v1472, 3
      %v1475 = vshll.u32 %v1289, 16
      %v1477 = vrot.slane %v1475, 4
      %v1478 = vor.u32 %v1474, %v1477
      %v1480 = vshrl.u32 %v1290, 16
      %v1482 = vrot.slane %v1480, 3
      %v1483 = vshll.u32 %v1290, 16
      %v1485 = vrot.slane %v1483, 4
      %v1486 = vor.u32 %v1482, %v1485
      %v1487 = vsel %vm482, %v1478, %v1486
      %v1489 = vshrl.u32 %v1291, 16
      %v1491 = vrot.slane %v1489, 3
      %v1492 = vshll.u32 %v1291, 16
      %v1494 = vrot.slane %v1492, 4
      %v1495 = vor.u32 %v1491, %v1494
      %v1497 = vshrl.u32 %v1292, 16
      %v1499 = vrot.slane %v1497, 3
      %v1500 = vshll.u32 %v1292, 16
      %v1502 = vrot.slane %v1500, 4
      %v1503 = vor.u32 %v1499, %v1502
      %v1504 = vsel %vm482, %v1495, %v1503
      %v1506 = vshrl.u32 %v1293, 16
      %v1508 = vrot.slane %v1506, 3
      %v1509 = vshll.u32 %v1293, 16
      %v1511 = vrot.slane %v1509, 4
      %v1512 = vor.u32 %v1508, %v1511
      %v1514 = vshrl.u32 %v1294, 16
      %v1516 = vrot.slane %v1514, 3
      %v1517 = vshll.u32 %v1294, 16
      %v1519 = vrot.slane %v1517, 4
      %v1520 = vor.u32 %v1516, %v1519
      %v1521 = vsel %vm482, %v1512, %v1520
      %v1523 = vshrl.u32 %v1295, 16
      %v1525 = vrot.slane %v1523, 3
      %v1526 = vshll.u32 %v1295, 16
      %v1528 = vrot.slane %v1526, 4
      %v1529 = vor.u32 %v1525, %v1528
      %v1531 = vshrl.u32 %v1296, 16
      %v1533 = vrot.slane %v1531, 3
      %v1534 = vshll.u32 %v1296, 16
      %v1536 = vrot.slane %v1534, 4
      %v1537 = vor.u32 %v1533, %v1536
      %v1538 = vsel %vm482, %v1529, %v1537
      %v1540 = vshrl.u32 %v1297, 16
      %v1542 = vrot.slane %v1540, 3
      %v1543 = vshll.u32 %v1297, 16
      %v1545 = vrot.slane %v1543, 4
      %v1546 = vor.u32 %v1542, %v1545
      %v1548 = vshrl.u32 %v1298, 16
      %v1550 = vrot.slane %v1548, 3
      %v1551 = vshll.u32 %v1298, 16
      %v1553 = vrot.slane %v1551, 4
      %v1554 = vor.u32 %v1550, %v1553
      %v1555 = vsel %vm482, %v1546, %v1554
      %v1557 = vshrl.u32 %v1299, 16
      %v1559 = vrot.slane %v1557, 3
      %v1560 = vshll.u32 %v1299, 16
      %v1562 = vrot.slane %v1560, 4
      %v1563 = vor.u32 %v1559, %v1562
      %v1565 = vshrl.u32 %v1300, 16
      %v1567 = vrot.slane %v1565, 3
      %v1568 = vshll.u32 %v1300, 16
      %v1570 = vrot.slane %v1568, 4
      %v1571 = vor.u32 %v1567, %v1570
      %v1572 = vsel %vm482, %v1563, %v1571
      %1589 = vst [vmem:[#allocation3 + $0x18] sm:$0xff] %v1317
      %1590 = vst [vmem:[#allocation3 + $0x60] sm:$0xff] %v1334
      %1591 = vst [vmem:[#allocation3 + $0xa8] sm:$0xff] %v1351
      %1592 = vst [vmem:[#allocation3 + $0xf0] sm:$0xff] %v1368
      %1593 = vst [vmem:[#allocation3 + $0x138] sm:$0xff] %v1385
      %1594 = vst [vmem:[#allocation3 + $0x180] sm:$0xff] %v1402
      %1595 = vst [vmem:[#allocation3 + $0x1c8] sm:$0xff] %v1419
      %1596 = vst [vmem:[#allocation3 + $0x210] sm:$0xff] %v1436
      %1597 = vst [vmem:[#allocation3 + $0x258] sm:$0xff] %v1453
      %1598 = vst [vmem:[#allocation3 + $0x2a0] sm:$0xff] %v1470
      %1599 = vst [vmem:[#allocation3 + $0x2e8] sm:$0xff] %v1487
      %1600 = vst [vmem:[#allocation3 + $0x330] sm:$0xff] %v1504
      %1601 = vst [vmem:[#allocation3 + $0x378] sm:$0xff] %v1521
      %1602 = vst [vmem:[#allocation3 + $0x3c0] sm:$0xff] %v1538
      %1603 = vst [vmem:[#allocation3 + $0x408] sm:$0xff] %v1555
      %1604 = vst [vmem:[#allocation3 + $0x450] sm:$0xff] %v1572
      %v1605 = vld [vmem:[%s417] sm:$0xf0]
      %v1606 = vld [vmem:[%s417 + $0x8] sm:$0xf]
      %v1607 = vld [vmem:[%s417 + $0x10] sm:$0xf0]
      %v1608 = vld [vmem:[%s417 + $0x18] sm:$0xf]
      %v1609 = vld [vmem:[%s417 + $0x20] sm:$0xf0]
      %v1610 = vld [vmem:[%s417 + $0x28] sm:$0xf]
      %v1611 = vld [vmem:[%s417 + $0x30] sm:$0xf0]
      %v1612 = vld [vmem:[%s417 + $0x38] sm:$0xf]
      %v1613 = vld [vmem:[%s417 + $0x40] sm:$0xf0]
      %v1614 = vld [vmem:[%s417 + $0x48] sm:$0xf]
      %v1615 = vld [vmem:[%s417 + $0x50] sm:$0xf0]
      %v1616 = vld [vmem:[%s417 + $0x58] sm:$0xf]
      %v1617 = vld [vmem:[%s417 + $0x60] sm:$0xf0]
      %v1618 = vld [vmem:[%s417 + $0x68] sm:$0xf]
      %v1619 = vld [vmem:[%s417 + $0x70] sm:$0xf0]
      %v1620 = vld [vmem:[%s417 + $0x78] sm:$0xf]
      %v1621 = vld [vmem:[%s417 + $0x80] sm:$0xf0]
      %v1622 = vld [vmem:[%s417 + $0x88] sm:$0xf]
      %v1623 = vld [vmem:[%s417 + $0x90] sm:$0xf0]
      %v1624 = vld [vmem:[%s417 + $0x98] sm:$0xf]
      %v1625 = vld [vmem:[%s417 + $0xa0] sm:$0xf0]
      %v1626 = vld [vmem:[%s417 + $0xa8] sm:$0xf]
      %v1627 = vld [vmem:[%s417 + $0xb0] sm:$0xf0]
      %v1628 = vld [vmem:[%s417 + $0xb8] sm:$0xf]
      %v1629 = vld [vmem:[%s417 + $0xc0] sm:$0xf0]
      %v1630 = vld [vmem:[%s417 + $0xc8] sm:$0xf]
      %v1631 = vld [vmem:[%s417 + $0xd0] sm:$0xf0]
      %v1632 = vld [vmem:[%s417 + $0xd8] sm:$0xf]
      %v1633 = vld [vmem:[%s417 + $0xe0] sm:$0xf0]
      %v1634 = vld [vmem:[%s417 + $0xe8] sm:$0xf]
      %v1635 = vld [vmem:[%s417 + $0xf0] sm:$0xf0]
      %v1636 = vld [vmem:[%s417 + $0xf8] sm:$0xf]
      %v1669 = vrot.slane %v1605, 4
      %v1670 = vrot.slane %v1606, 4
      %v1671 = vsel %vm851, %v1669, %v1670
      %v1672 = vrot.slane %v1607, 4
      %v1673 = vrot.slane %v1608, 4
      %v1674 = vsel %vm851, %v1672, %v1673
      %v1675 = vrot.slane %v1609, 4
      %v1676 = vrot.slane %v1610, 4
      %v1677 = vsel %vm851, %v1675, %v1676
      %v1678 = vrot.slane %v1611, 4
      %v1679 = vrot.slane %v1612, 4
      %v1680 = vsel %vm851, %v1678, %v1679
      %v1681 = vrot.slane %v1613, 4
      %v1682 = vrot.slane %v1614, 4
      %v1683 = vsel %vm851, %v1681, %v1682
      %v1684 = vrot.slane %v1615, 4
      %v1685 = vrot.slane %v1616, 4
      %v1686 = vsel %vm851, %v1684, %v1685
      %v1687 = vrot.slane %v1617, 4
      %v1688 = vrot.slane %v1618, 4
      %v1689 = vsel %vm851, %v1687, %v1688
      %v1690 = vrot.slane %v1619, 4
      %v1691 = vrot.slane %v1620, 4
      %v1692 = vsel %vm851, %v1690, %v1691
      %v1693 = vrot.slane %v1621, 4
      %v1694 = vrot.slane %v1622, 4
      %v1695 = vsel %vm851, %v1693, %v1694
      %v1696 = vrot.slane %v1623, 4
      %v1697 = vrot.slane %v1624, 4
      %v1698 = vsel %vm851, %v1696, %v1697
      %v1699 = vrot.slane %v1625, 4
      %v1700 = vrot.slane %v1626, 4
      %v1701 = vsel %vm851, %v1699, %v1700
      %v1702 = vrot.slane %v1627, 4
      %v1703 = vrot.slane %v1628, 4
      %v1704 = vsel %vm851, %v1702, %v1703
      %v1705 = vrot.slane %v1629, 4
      %v1706 = vrot.slane %v1630, 4
      %v1707 = vsel %vm851, %v1705, %v1706
      %v1708 = vrot.slane %v1631, 4
      %v1709 = vrot.slane %v1632, 4
      %v1710 = vsel %vm851, %v1708, %v1709
      %v1711 = vrot.slane %v1633, 4
      %v1712 = vrot.slane %v1634, 4
      %v1713 = vsel %vm851, %v1711, %v1712
      %v1714 = vrot.slane %v1635, 4
      %v1715 = vrot.slane %v1636, 4
      %v1716 = vsel %vm851, %v1714, %v1715
      %1733 = vst [vmem:[#allocation3 + $0x20] sm:$0xff] %v1671
      %1734 = vst [vmem:[#allocation3 + $0x68] sm:$0xff] %v1674
      %1735 = vst [vmem:[#allocation3 + $0xb0] sm:$0xff] %v1677
      %1736 = vst [vmem:[#allocation3 + $0xf8] sm:$0xff] %v1680
      %1737 = vst [vmem:[#allocation3 + $0x140] sm:$0xff] %v1683
      %1738 = vst [vmem:[#allocation3 + $0x188] sm:$0xff] %v1686
      %1739 = vst [vmem:[#allocation3 + $0x1d0] sm:$0xff] %v1689
      %1740 = vst [vmem:[#allocation3 + $0x218] sm:$0xff] %v1692
      %1741 = vst [vmem:[#allocation3 + $0x260] sm:$0xff] %v1695
      %1742 = vst [vmem:[#allocation3 + $0x2a8] sm:$0xff] %v1698
      %1743 = vst [vmem:[#allocation3 + $0x2f0] sm:$0xff] %v1701
      %1744 = vst [vmem:[#allocation3 + $0x338] sm:$0xff] %v1704
      %1745 = vst [vmem:[#allocation3 + $0x380] sm:$0xff] %v1707
      %1746 = vst [vmem:[#allocation3 + $0x3c8] sm:$0xff] %v1710
      %1747 = vst [vmem:[#allocation3 + $0x410] sm:$0xff] %v1713
      %1748 = vst [vmem:[#allocation3 + $0x458] sm:$0xff] %v1716
      %v1749 = vld [vmem:[%s417] sm:$0xf0]
      %v1750 = vld [vmem:[%s417 + $0x8] sm:$0x1f]
      %v1751 = vld [vmem:[%s417 + $0x10] sm:$0xf0]
      %v1752 = vld [vmem:[%s417 + $0x18] sm:$0x1f]
      %v1753 = vld [vmem:[%s417 + $0x20] sm:$0xf0]
      %v1754 = vld [vmem:[%s417 + $0x28] sm:$0x1f]
      %v1755 = vld [vmem:[%s417 + $0x30] sm:$0xf0]
      %v1756 = vld [vmem:[%s417 + $0x38] sm:$0x1f]
      %v1757 = vld [vmem:[%s417 + $0x40] sm:$0xf0]
      %v1758 = vld [vmem:[%s417 + $0x48] sm:$0x1f]
      %v1759 = vld [vmem:[%s417 + $0x50] sm:$0xf0]
      %v1760 = vld [vmem:[%s417 + $0x58] sm:$0x1f]
      %v1761 = vld [vmem:[%s417 + $0x60] sm:$0xf0]
      %v1762 = vld [vmem:[%s417 + $0x68] sm:$0x1f]
      %v1763 = vld [vmem:[%s417 + $0x70] sm:$0xf0]
      %v1764 = vld [vmem:[%s417 + $0x78] sm:$0x1f]
      %v1765 = vld [vmem:[%s417 + $0x80] sm:$0xf0]
      %v1766 = vld [vmem:[%s417 + $0x88] sm:$0x1f]
      %v1767 = vld [vmem:[%s417 + $0x90] sm:$0xf0]
      %v1768 = vld [vmem:[%s417 + $0x98] sm:$0x1f]
      %v1769 = vld [vmem:[%s417 + $0xa0] sm:$0xf0]
      %v1770 = vld [vmem:[%s417 + $0xa8] sm:$0x1f]
      %v1771 = vld [vmem:[%s417 + $0xb0] sm:$0xf0]
      %v1772 = vld [vmem:[%s417 + $0xb8] sm:$0x1f]
      %v1773 = vld [vmem:[%s417 + $0xc0] sm:$0xf0]
      %v1774 = vld [vmem:[%s417 + $0xc8] sm:$0x1f]
      %v1775 = vld [vmem:[%s417 + $0xd0] sm:$0xf0]
      %v1776 = vld [vmem:[%s417 + $0xd8] sm:$0x1f]
      %v1777 = vld [vmem:[%s417 + $0xe0] sm:$0xf0]
      %v1778 = vld [vmem:[%s417 + $0xe8] sm:$0x1f]
      %v1779 = vld [vmem:[%s417 + $0xf0] sm:$0xf0]
      %v1780 = vld [vmem:[%s417 + $0xf8] sm:$0x1f]
      %v1782 = vshrl.u32 %v1749, 16
      %v1784 = vrot.slane %v1782, 4
      %v1785 = vshll.u32 %v1749, 16
      %v1787 = vrot.slane %v1785, 5
      %v1788 = vor.u32 %v1784, %v1787
      %v1790 = vshrl.u32 %v1750, 16
      %v1792 = vrot.slane %v1790, 4
      %v1793 = vshll.u32 %v1750, 16
      %v1795 = vrot.slane %v1793, 5
      %v1796 = vor.u32 %v1792, %v1795
      %v1797 = vsel %vm964, %v1788, %v1796
      %v1799 = vshrl.u32 %v1751, 16
      %v1801 = vrot.slane %v1799, 4
      %v1802 = vshll.u32 %v1751, 16
      %v1804 = vrot.slane %v1802, 5
      %v1805 = vor.u32 %v1801, %v1804
      %v1807 = vshrl.u32 %v1752, 16
      %v1809 = vrot.slane %v1807, 4
      %v1810 = vshll.u32 %v1752, 16
      %v1812 = vrot.slane %v1810, 5
      %v1813 = vor.u32 %v1809, %v1812
      %v1814 = vsel %vm964, %v1805, %v1813
      %v1816 = vshrl.u32 %v1753, 16
      %v1818 = vrot.slane %v1816, 4
      %v1819 = vshll.u32 %v1753, 16
      %v1821 = vrot.slane %v1819, 5
      %v1822 = vor.u32 %v1818, %v1821
      %v1824 = vshrl.u32 %v1754, 16
      %v1826 = vrot.slane %v1824, 4
      %v1827 = vshll.u32 %v1754, 16
      %v1829 = vrot.slane %v1827, 5
      %v1830 = vor.u32 %v1826, %v1829
      %v1831 = vsel %vm964, %v1822, %v1830
      %v1833 = vshrl.u32 %v1755, 16
      %v1835 = vrot.slane %v1833, 4
      %v1836 = vshll.u32 %v1755, 16
      %v1838 = vrot.slane %v1836, 5
      %v1839 = vor.u32 %v1835, %v1838
      %v1841 = vshrl.u32 %v1756, 16
      %v1843 = vrot.slane %v1841, 4
      %v1844 = vshll.u32 %v1756, 16
      %v1846 = vrot.slane %v1844, 5
      %v1847 = vor.u32 %v1843, %v1846
      %v1848 = vsel %vm964, %v1839, %v1847
      %v1850 = vshrl.u32 %v1757, 16
      %v1852 = vrot.slane %v1850, 4
      %v1853 = vshll.u32 %v1757, 16
      %v1855 = vrot.slane %v1853, 5
      %v1856 = vor.u32 %v1852, %v1855
      %v1858 = vshrl.u32 %v1758, 16
      %v1860 = vrot.slane %v1858, 4
      %v1861 = vshll.u32 %v1758, 16
      %v1863 = vrot.slane %v1861, 5
      %v1864 = vor.u32 %v1860, %v1863
      %v1865 = vsel %vm964, %v1856, %v1864
      %v1867 = vshrl.u32 %v1759, 16
      %v1869 = vrot.slane %v1867, 4
      %v1870 = vshll.u32 %v1759, 16
      %v1872 = vrot.slane %v1870, 5
      %v1873 = vor.u32 %v1869, %v1872
      %v1875 = vshrl.u32 %v1760, 16
      %v1877 = vrot.slane %v1875, 4
      %v1878 = vshll.u32 %v1760, 16
      %v1880 = vrot.slane %v1878, 5
      %v1881 = vor.u32 %v1877, %v1880
      %v1882 = vsel %vm964, %v1873, %v1881
      %v1884 = vshrl.u32 %v1761, 16
      %v1886 = vrot.slane %v1884, 4
      %v1887 = vshll.u32 %v1761, 16
      %v1889 = vrot.slane %v1887, 5
      %v1890 = vor.u32 %v1886, %v1889
      %v1892 = vshrl.u32 %v1762, 16
      %v1894 = vrot.slane %v1892, 4
      %v1895 = vshll.u32 %v1762, 16
      %v1897 = vrot.slane %v1895, 5
      %v1898 = vor.u32 %v1894, %v1897
      %v1899 = vsel %vm964, %v1890, %v1898
      %v1901 = vshrl.u32 %v1763, 16
      %v1903 = vrot.slane %v1901, 4
      %v1904 = vshll.u32 %v1763, 16
      %v1906 = vrot.slane %v1904, 5
      %v1907 = vor.u32 %v1903, %v1906
      %v1909 = vshrl.u32 %v1764, 16
      %v1911 = vrot.slane %v1909, 4
      %v1912 = vshll.u32 %v1764, 16
      %v1914 = vrot.slane %v1912, 5
      %v1915 = vor.u32 %v1911, %v1914
      %v1916 = vsel %vm964, %v1907, %v1915
      %v1918 = vshrl.u32 %v1765, 16
      %v1920 = vrot.slane %v1918, 4
      %v1921 = vshll.u32 %v1765, 16
      %v1923 = vrot.slane %v1921, 5
      %v1924 = vor.u32 %v1920, %v1923
      %v1926 = vshrl.u32 %v1766, 16
      %v1928 = vrot.slane %v1926, 4
      %v1929 = vshll.u32 %v1766, 16
      %v1931 = vrot.slane %v1929, 5
      %v1932 = vor.u32 %v1928, %v1931
      %v1933 = vsel %vm964, %v1924, %v1932
      %v1935 = vshrl.u32 %v1767, 16
      %v1937 = vrot.slane %v1935, 4
      %v1938 = vshll.u32 %v1767, 16
      %v1940 = vrot.slane %v1938, 5
      %v1941 = vor.u32 %v1937, %v1940
      %v1943 = vshrl.u32 %v1768, 16
      %v1945 = vrot.slane %v1943, 4
      %v1946 = vshll.u32 %v1768, 16
      %v1948 = vrot.slane %v1946, 5
      %v1949 = vor.u32 %v1945, %v1948
      %v1950 = vsel %vm964, %v1941, %v1949
      %v1952 = vshrl.u32 %v1769, 16
      %v1954 = vrot.slane %v1952, 4
      %v1955 = vshll.u32 %v1769, 16
      %v1957 = vrot.slane %v1955, 5
      %v1958 = vor.u32 %v1954, %v1957
      %v1960 = vshrl.u32 %v1770, 16
      %v1962 = vrot.slane %v1960, 4
      %v1963 = vshll.u32 %v1770, 16
      %v1965 = vrot.slane %v1963, 5
      %v1966 = vor.u32 %v1962, %v1965
      %v1967 = vsel %vm964, %v1958, %v1966
      %v1969 = vshrl.u32 %v1771, 16
      %v1971 = vrot.slane %v1969, 4
      %v1972 = vshll.u32 %v1771, 16
      %v1974 = vrot.slane %v1972, 5
      %v1975 = vor.u32 %v1971, %v1974
      %v1977 = vshrl.u32 %v1772, 16
      %v1979 = vrot.slane %v1977, 4
      %v1980 = vshll.u32 %v1772, 16
      %v1982 = vrot.slane %v1980, 5
      %v1983 = vor.u32 %v1979, %v1982
      %v1984 = vsel %vm964, %v1975, %v1983
      %v1986 = vshrl.u32 %v1773, 16
      %v1988 = vrot.slane %v1986, 4
      %v1989 = vshll.u32 %v1773, 16
      %v1991 = vrot.slane %v1989, 5
      %v1992 = vor.u32 %v1988, %v1991
      %v1994 = vshrl.u32 %v1774, 16
      %v1996 = vrot.slane %v1994, 4
      %v1997 = vshll.u32 %v1774, 16
      %v1999 = vrot.slane %v1997, 5
      %v2000 = vor.u32 %v1996, %v1999
      %v2001 = vsel %vm964, %v1992, %v2000
      %v2003 = vshrl.u32 %v1775, 16
      %v2005 = vrot.slane %v2003, 4
      %v2006 = vshll.u32 %v1775, 16
      %v2008 = vrot.slane %v2006, 5
      %v2009 = vor.u32 %v2005, %v2008
      %v2011 = vshrl.u32 %v1776, 16
      %v2013 = vrot.slane %v2011, 4
      %v2014 = vshll.u32 %v1776, 16
      %v2016 = vrot.slane %v2014, 5
      %v2017 = vor.u32 %v2013, %v2016
      %v2018 = vsel %vm964, %v2009, %v2017
      %v2020 = vshrl.u32 %v1777, 16
      %v2022 = vrot.slane %v2020, 4
      %v2023 = vshll.u32 %v1777, 16
      %v2025 = vrot.slane %v2023, 5
      %v2026 = vor.u32 %v2022, %v2025
      %v2028 = vshrl.u32 %v1778, 16
      %v2030 = vrot.slane %v2028, 4
      %v2031 = vshll.u32 %v1778, 16
      %v2033 = vrot.slane %v2031, 5
      %v2034 = vor.u32 %v2030, %v2033
      %v2035 = vsel %vm964, %v2026, %v2034
      %v2037 = vshrl.u32 %v1779, 16
      %v2039 = vrot.slane %v2037, 4
      %v2040 = vshll.u32 %v1779, 16
      %v2042 = vrot.slane %v2040, 5
      %v2043 = vor.u32 %v2039, %v2042
      %v2045 = vshrl.u32 %v1780, 16
      %v2047 = vrot.slane %v2045, 4
      %v2048 = vshll.u32 %v1780, 16
      %v2050 = vrot.slane %v2048, 5
      %v2051 = vor.u32 %v2047, %v2050
      %v2052 = vsel %vm964, %v2043, %v2051
      %2069 = vst [vmem:[#allocation3 + $0x28] sm:$0xff] %v1797
      %2070 = vst [vmem:[#allocation3 + $0x70] sm:$0xff] %v1814
      %2071 = vst [vmem:[#allocation3 + $0xb8] sm:$0xff] %v1831
      %2072 = vst [vmem:[#allocation3 + $0x100] sm:$0xff] %v1848
      %2073 = vst [vmem:[#allocation3 + $0x148] sm:$0xff] %v1865
      %2074 = vst [vmem:[#allocation3 + $0x190] sm:$0xff] %v1882
      %2075 = vst [vmem:[#allocation3 + $0x1d8] sm:$0xff] %v1899
      %2076 = vst [vmem:[#allocation3 + $0x220] sm:$0xff] %v1916
      %2077 = vst [vmem:[#allocation3 + $0x268] sm:$0xff] %v1933
      %2078 = vst [vmem:[#allocation3 + $0x2b0] sm:$0xff] %v1950
      %2079 = vst [vmem:[#allocation3 + $0x2f8] sm:$0xff] %v1967
      %2080 = vst [vmem:[#allocation3 + $0x340] sm:$0xff] %v1984
      %2081 = vst [vmem:[#allocation3 + $0x388] sm:$0xff] %v2001
      %2082 = vst [vmem:[#allocation3 + $0x3d0] sm:$0xff] %v2018
      %2083 = vst [vmem:[#allocation3 + $0x418] sm:$0xff] %v2035
      %2084 = vst [vmem:[#allocation3 + $0x460] sm:$0xff] %v2052
      %s2085 = scalar_lea.vmem [#allocation2], 32
      %v2086 = vld [vmem:[%s2085] sm:$0xf8]
      %v2087 = vld [vmem:[%s2085 + $0x8] sm:$0xf]
      %v2088 = vld [vmem:[%s2085 + $0x10] sm:$0xf8]
      %v2089 = vld [vmem:[%s2085 + $0x18] sm:$0xf]
      %v2090 = vld [vmem:[%s2085 + $0x20] sm:$0xf8]
      %v2091 = vld [vmem:[%s2085 + $0x28] sm:$0xf]
      %v2092 = vld [vmem:[%s2085 + $0x30] sm:$0xf8]
      %v2093 = vld [vmem:[%s2085 + $0x38] sm:$0xf]
      %v2094 = vld [vmem:[%s2085 + $0x40] sm:$0xf8]
      %v2095 = vld [vmem:[%s2085 + $0x48] sm:$0xf]
      %v2096 = vld [vmem:[%s2085 + $0x50] sm:$0xf8]
      %v2097 = vld [vmem:[%s2085 + $0x58] sm:$0xf]
      %v2098 = vld [vmem:[%s2085 + $0x60] sm:$0xf8]
      %v2099 = vld [vmem:[%s2085 + $0x68] sm:$0xf]
      %v2100 = vld [vmem:[%s2085 + $0x70] sm:$0xf8]
      %v2101 = vld [vmem:[%s2085 + $0x78] sm:$0xf]
      %v2102 = vld [vmem:[%s2085 + $0x80] sm:$0xf8]
      %v2103 = vld [vmem:[%s2085 + $0x88] sm:$0xf]
      %v2104 = vld [vmem:[%s2085 + $0x90] sm:$0xf8]
      %v2105 = vld [vmem:[%s2085 + $0x98] sm:$0xf]
      %v2106 = vld [vmem:[%s2085 + $0xa0] sm:$0xf8]
      %v2107 = vld [vmem:[%s2085 + $0xa8] sm:$0xf]
      %v2108 = vld [vmem:[%s2085 + $0xb0] sm:$0xf8]
      %v2109 = vld [vmem:[%s2085 + $0xb8] sm:$0xf]
      %v2110 = vld [vmem:[%s2085 + $0xc0] sm:$0xf8]
      %v2111 = vld [vmem:[%s2085 + $0xc8] sm:$0xf]
      %v2112 = vld [vmem:[%s2085 + $0xd0] sm:$0xf8]
      %v2113 = vld [vmem:[%s2085 + $0xd8] sm:$0xf]
      %v2114 = vld [vmem:[%s2085 + $0xe0] sm:$0xf8]
      %v2115 = vld [vmem:[%s2085 + $0xe8] sm:$0xf]
      %v2116 = vld [vmem:[%s2085 + $0xf0] sm:$0xf8]
      %v2117 = vld [vmem:[%s2085 + $0xf8] sm:$0xf]
      %v2119 = vshrl.u32 %v2086, 16
      %v2121 = vrot.slane %v2119, 3
      %v2122 = vshll.u32 %v2086, 16
      %v2124 = vrot.slane %v2122, 4
      %v2125 = vor.u32 %v2121, %v2124
      %v2127 = vshrl.u32 %v2087, 16
      %v2129 = vrot.slane %v2127, 3
      %v2130 = vshll.u32 %v2087, 16
      %v2132 = vrot.slane %v2130, 4
      %v2133 = vor.u32 %v2129, %v2132
      %v2134 = vsel %vm482, %v2125, %v2133
      %v2136 = vshrl.u32 %v2088, 16
      %v2138 = vrot.slane %v2136, 3
      %v2139 = vshll.u32 %v2088, 16
      %v2141 = vrot.slane %v2139, 4
      %v2142 = vor.u32 %v2138, %v2141
      %v2144 = vshrl.u32 %v2089, 16
      %v2146 = vrot.slane %v2144, 3
      %v2147 = vshll.u32 %v2089, 16
      %v2149 = vrot.slane %v2147, 4
      %v2150 = vor.u32 %v2146, %v2149
      %v2151 = vsel %vm482, %v2142, %v2150
      %v2153 = vshrl.u32 %v2090, 16
      %v2155 = vrot.slane %v2153, 3
      %v2156 = vshll.u32 %v2090, 16
      %v2158 = vrot.slane %v2156, 4
      %v2159 = vor.u32 %v2155, %v2158
      %v2161 = vshrl.u32 %v2091, 16
      %v2163 = vrot.slane %v2161, 3
      %v2164 = vshll.u32 %v2091, 16
      %v2166 = vrot.slane %v2164, 4
      %v2167 = vor.u32 %v2163, %v2166
      %v2168 = vsel %vm482, %v2159, %v2167
      %v2170 = vshrl.u32 %v2092, 16
      %v2172 = vrot.slane %v2170, 3
      %v2173 = vshll.u32 %v2092, 16
      %v2175 = vrot.slane %v2173, 4
      %v2176 = vor.u32 %v2172, %v2175
      %v2178 = vshrl.u32 %v2093, 16
      %v2180 = vrot.slane %v2178, 3
      %v2181 = vshll.u32 %v2093, 16
      %v2183 = vrot.slane %v2181, 4
      %v2184 = vor.u32 %v2180, %v2183
      %v2185 = vsel %vm482, %v2176, %v2184
      %v2187 = vshrl.u32 %v2094, 16
      %v2189 = vrot.slane %v2187, 3
      %v2190 = vshll.u32 %v2094, 16
      %v2192 = vrot.slane %v2190, 4
      %v2193 = vor.u32 %v2189, %v2192
      %v2195 = vshrl.u32 %v2095, 16
      %v2197 = vrot.slane %v2195, 3
      %v2198 = vshll.u32 %v2095, 16
      %v2200 = vrot.slane %v2198, 4
      %v2201 = vor.u32 %v2197, %v2200
      %v2202 = vsel %vm482, %v2193, %v2201
      %v2204 = vshrl.u32 %v2096, 16
      %v2206 = vrot.slane %v2204, 3
      %v2207 = vshll.u32 %v2096, 16
      %v2209 = vrot.slane %v2207, 4
      %v2210 = vor.u32 %v2206, %v2209
      %v2212 = vshrl.u32 %v2097, 16
      %v2214 = vrot.slane %v2212, 3
      %v2215 = vshll.u32 %v2097, 16
      %v2217 = vrot.slane %v2215, 4
      %v2218 = vor.u32 %v2214, %v2217
      %v2219 = vsel %vm482, %v2210, %v2218
      %v2221 = vshrl.u32 %v2098, 16
      %v2223 = vrot.slane %v2221, 3
      %v2224 = vshll.u32 %v2098, 16
      %v2226 = vrot.slane %v2224, 4
      %v2227 = vor.u32 %v2223, %v2226
      %v2229 = vshrl.u32 %v2099, 16
      %v2231 = vrot.slane %v2229, 3
      %v2232 = vshll.u32 %v2099, 16
      %v2234 = vrot.slane %v2232, 4
      %v2235 = vor.u32 %v2231, %v2234
      %v2236 = vsel %vm482, %v2227, %v2235
      %v2238 = vshrl.u32 %v2100, 16
      %v2240 = vrot.slane %v2238, 3
      %v2241 = vshll.u32 %v2100, 16
      %v2243 = vrot.slane %v2241, 4
      %v2244 = vor.u32 %v2240, %v2243
      %v2246 = vshrl.u32 %v2101, 16
      %v2248 = vrot.slane %v2246, 3
      %v2249 = vshll.u32 %v2101, 16
      %v2251 = vrot.slane %v2249, 4
      %v2252 = vor.u32 %v2248, %v2251
      %v2253 = vsel %vm482, %v2244, %v2252
      %v2255 = vshrl.u32 %v2102, 16
      %v2257 = vrot.slane %v2255, 3
      %v2258 = vshll.u32 %v2102, 16
      %v2260 = vrot.slane %v2258, 4
      %v2261 = vor.u32 %v2257, %v2260
      %v2263 = vshrl.u32 %v2103, 16
      %v2265 = vrot.slane %v2263, 3
      %v2266 = vshll.u32 %v2103, 16
      %v2268 = vrot.slane %v2266, 4
      %v2269 = vor.u32 %v2265, %v2268
      %v2270 = vsel %vm482, %v2261, %v2269
      %v2272 = vshrl.u32 %v2104, 16
      %v2274 = vrot.slane %v2272, 3
      %v2275 = vshll.u32 %v2104, 16
      %v2277 = vrot.slane %v2275, 4
      %v2278 = vor.u32 %v2274, %v2277
      %v2280 = vshrl.u32 %v2105, 16
      %v2282 = vrot.slane %v2280, 3
      %v2283 = vshll.u32 %v2105, 16
      %v2285 = vrot.slane %v2283, 4
      %v2286 = vor.u32 %v2282, %v2285
      %v2287 = vsel %vm482, %v2278, %v2286
      %v2289 = vshrl.u32 %v2106, 16
      %v2291 = vrot.slane %v2289, 3
      %v2292 = vshll.u32 %v2106, 16
      %v2294 = vrot.slane %v2292, 4
      %v2295 = vor.u32 %v2291, %v2294
      %v2297 = vshrl.u32 %v2107, 16
      %v2299 = vrot.slane %v2297, 3
      %v2300 = vshll.u32 %v2107, 16
      %v2302 = vrot.slane %v2300, 4
      %v2303 = vor.u32 %v2299, %v2302
      %v2304 = vsel %vm482, %v2295, %v2303
      %v2306 = vshrl.u32 %v2108, 16
      %v2308 = vrot.slane %v2306, 3
      %v2309 = vshll.u32 %v2108, 16
      %v2311 = vrot.slane %v2309, 4
      %v2312 = vor.u32 %v2308, %v2311
      %v2314 = vshrl.u32 %v2109, 16
      %v2316 = vrot.slane %v2314, 3
      %v2317 = vshll.u32 %v2109, 16
      %v2319 = vrot.slane %v2317, 4
      %v2320 = vor.u32 %v2316, %v2319
      %v2321 = vsel %vm482, %v2312, %v2320
      %v2323 = vshrl.u32 %v2110, 16
      %v2325 = vrot.slane %v2323, 3
      %v2326 = vshll.u32 %v2110, 16
      %v2328 = vrot.slane %v2326, 4
      %v2329 = vor.u32 %v2325, %v2328
      %v2331 = vshrl.u32 %v2111, 16
      %v2333 = vrot.slane %v2331, 3
      %v2334 = vshll.u32 %v2111, 16
      %v2336 = vrot.slane %v2334, 4
      %v2337 = vor.u32 %v2333, %v2336
      %v2338 = vsel %vm482, %v2329, %v2337
      %v2340 = vshrl.u32 %v2112, 16
      %v2342 = vrot.slane %v2340, 3
      %v2343 = vshll.u32 %v2112, 16
      %v2345 = vrot.slane %v2343, 4
      %v2346 = vor.u32 %v2342, %v2345
      %v2348 = vshrl.u32 %v2113, 16
      %v2350 = vrot.slane %v2348, 3
      %v2351 = vshll.u32 %v2113, 16
      %v2353 = vrot.slane %v2351, 4
      %v2354 = vor.u32 %v2350, %v2353
      %v2355 = vsel %vm482, %v2346, %v2354
      %v2357 = vshrl.u32 %v2114, 16
      %v2359 = vrot.slane %v2357, 3
      %v2360 = vshll.u32 %v2114, 16
      %v2362 = vrot.slane %v2360, 4
      %v2363 = vor.u32 %v2359, %v2362
      %v2365 = vshrl.u32 %v2115, 16
      %v2367 = vrot.slane %v2365, 3
      %v2368 = vshll.u32 %v2115, 16
      %v2370 = vrot.slane %v2368, 4
      %v2371 = vor.u32 %v2367, %v2370
      %v2372 = vsel %vm482, %v2363, %v2371
      %v2374 = vshrl.u32 %v2116, 16
      %v2376 = vrot.slane %v2374, 3
      %v2377 = vshll.u32 %v2116, 16
      %v2379 = vrot.slane %v2377, 4
      %v2380 = vor.u32 %v2376, %v2379
      %v2382 = vshrl.u32 %v2117, 16
      %v2384 = vrot.slane %v2382, 3
      %v2385 = vshll.u32 %v2117, 16
      %v2387 = vrot.slane %v2385, 4
      %v2388 = vor.u32 %v2384, %v2387
      %v2389 = vsel %vm482, %v2380, %v2388
      %2406 = vst [vmem:[#allocation3 + $0x30] sm:$0xff] %v2134
      %2407 = vst [vmem:[#allocation3 + $0x78] sm:$0xff] %v2151
      %2408 = vst [vmem:[#allocation3 + $0xc0] sm:$0xff] %v2168
      %2409 = vst [vmem:[#allocation3 + $0x108] sm:$0xff] %v2185
      %2410 = vst [vmem:[#allocation3 + $0x150] sm:$0xff] %v2202
      %2411 = vst [vmem:[#allocation3 + $0x198] sm:$0xff] %v2219
      %2412 = vst [vmem:[#allocation3 + $0x1e0] sm:$0xff] %v2236
      %2413 = vst [vmem:[#allocation3 + $0x228] sm:$0xff] %v2253
      %2414 = vst [vmem:[#allocation3 + $0x270] sm:$0xff] %v2270
      %2415 = vst [vmem:[#allocation3 + $0x2b8] sm:$0xff] %v2287
      %2416 = vst [vmem:[#allocation3 + $0x300] sm:$0xff] %v2304
      %2417 = vst [vmem:[#allocation3 + $0x348] sm:$0xff] %v2321
      %2418 = vst [vmem:[#allocation3 + $0x390] sm:$0xff] %v2338
      %2419 = vst [vmem:[#allocation3 + $0x3d8] sm:$0xff] %v2355
      %2420 = vst [vmem:[#allocation3 + $0x420] sm:$0xff] %v2372
      %2421 = vst [vmem:[#allocation3 + $0x468] sm:$0xff] %v2389
      %v2422 = vld [vmem:[%s2085] sm:$0xf0]
      %v2423 = vld [vmem:[%s2085 + $0x8] sm:$0xf]
      %v2424 = vld [vmem:[%s2085 + $0x10] sm:$0xf0]
      %v2425 = vld [vmem:[%s2085 + $0x18] sm:$0xf]
      %v2426 = vld [vmem:[%s2085 + $0x20] sm:$0xf0]
      %v2427 = vld [vmem:[%s2085 + $0x28] sm:$0xf]
      %v2428 = vld [vmem:[%s2085 + $0x30] sm:$0xf0]
      %v2429 = vld [vmem:[%s2085 + $0x38] sm:$0xf]
      %v2430 = vld [vmem:[%s2085 + $0x40] sm:$0xf0]
      %v2431 = vld [vmem:[%s2085 + $0x48] sm:$0xf]
      %v2432 = vld [vmem:[%s2085 + $0x50] sm:$0xf0]
      %v2433 = vld [vmem:[%s2085 + $0x58] sm:$0xf]
      %v2434 = vld [vmem:[%s2085 + $0x60] sm:$0xf0]
      %v2435 = vld [vmem:[%s2085 + $0x68] sm:$0xf]
      %v2436 = vld [vmem:[%s2085 + $0x70] sm:$0xf0]
      %v2437 = vld [vmem:[%s2085 + $0x78] sm:$0xf]
      %v2438 = vld [vmem:[%s2085 + $0x80] sm:$0xf0]
      %v2439 = vld [vmem:[%s2085 + $0x88] sm:$0xf]
      %v2440 = vld [vmem:[%s2085 + $0x90] sm:$0xf0]
      %v2441 = vld [vmem:[%s2085 + $0x98] sm:$0xf]
      %v2442 = vld [vmem:[%s2085 + $0xa0] sm:$0xf0]
      %v2443 = vld [vmem:[%s2085 + $0xa8] sm:$0xf]
      %v2444 = vld [vmem:[%s2085 + $0xb0] sm:$0xf0]
      %v2445 = vld [vmem:[%s2085 + $0xb8] sm:$0xf]
      %v2446 = vld [vmem:[%s2085 + $0xc0] sm:$0xf0]
      %v2447 = vld [vmem:[%s2085 + $0xc8] sm:$0xf]
      %v2448 = vld [vmem:[%s2085 + $0xd0] sm:$0xf0]
      %v2449 = vld [vmem:[%s2085 + $0xd8] sm:$0xf]
      %v2450 = vld [vmem:[%s2085 + $0xe0] sm:$0xf0]
      %v2451 = vld [vmem:[%s2085 + $0xe8] sm:$0xf]
      %v2452 = vld [vmem:[%s2085 + $0xf0] sm:$0xf0]
      %v2453 = vld [vmem:[%s2085 + $0xf8] sm:$0xf]
      %v2486 = vrot.slane %v2422, 4
      %v2487 = vrot.slane %v2423, 4
      %v2488 = vsel %vm851, %v2486, %v2487
      %v2489 = vrot.slane %v2424, 4
      %v2490 = vrot.slane %v2425, 4
      %v2491 = vsel %vm851, %v2489, %v2490
      %v2492 = vrot.slane %v2426, 4
      %v2493 = vrot.slane %v2427, 4
      %v2494 = vsel %vm851, %v2492, %v2493
      %v2495 = vrot.slane %v2428, 4
      %v2496 = vrot.slane %v2429, 4
      %v2497 = vsel %vm851, %v2495, %v2496
      %v2498 = vrot.slane %v2430, 4
      %v2499 = vrot.slane %v2431, 4
      %v2500 = vsel %vm851, %v2498, %v2499
      %v2501 = vrot.slane %v2432, 4
      %v2502 = vrot.slane %v2433, 4
      %v2503 = vsel %vm851, %v2501, %v2502
      %v2504 = vrot.slane %v2434, 4
      %v2505 = vrot.slane %v2435, 4
      %v2506 = vsel %vm851, %v2504, %v2505
      %v2507 = vrot.slane %v2436, 4
      %v2508 = vrot.slane %v2437, 4
      %v2509 = vsel %vm851, %v2507, %v2508
      %v2510 = vrot.slane %v2438, 4
      %v2511 = vrot.slane %v2439, 4
      %v2512 = vsel %vm851, %v2510, %v2511
      %v2513 = vrot.slane %v2440, 4
      %v2514 = vrot.slane %v2441, 4
      %v2515 = vsel %vm851, %v2513, %v2514
      %v2516 = vrot.slane %v2442, 4
      %v2517 = vrot.slane %v2443, 4
      %v2518 = vsel %vm851, %v2516, %v2517
      %v2519 = vrot.slane %v2444, 4
      %v2520 = vrot.slane %v2445, 4
      %v2521 = vsel %vm851, %v2519, %v2520
      %v2522 = vrot.slane %v2446, 4
      %v2523 = vrot.slane %v2447, 4
      %v2524 = vsel %vm851, %v2522, %v2523
      %v2525 = vrot.slane %v2448, 4
      %v2526 = vrot.slane %v2449, 4
      %v2527 = vsel %vm851, %v2525, %v2526
      %v2528 = vrot.slane %v2450, 4
      %v2529 = vrot.slane %v2451, 4
      %v2530 = vsel %vm851, %v2528, %v2529
      %v2531 = vrot.slane %v2452, 4
      %v2532 = vrot.slane %v2453, 4
      %v2533 = vsel %vm851, %v2531, %v2532
      %2550 = vst [vmem:[#allocation3 + $0x38] sm:$0xff] %v2488
      %2551 = vst [vmem:[#allocation3 + $0x80] sm:$0xff] %v2491
      %2552 = vst [vmem:[#allocation3 + $0xc8] sm:$0xff] %v2494
      %2553 = vst [vmem:[#allocation3 + $0x110] sm:$0xff] %v2497
      %2554 = vst [vmem:[#allocation3 + $0x158] sm:$0xff] %v2500
      %2555 = vst [vmem:[#allocation3 + $0x1a0] sm:$0xff] %v2503
      %2556 = vst [vmem:[#allocation3 + $0x1e8] sm:$0xff] %v2506
      %2557 = vst [vmem:[#allocation3 + $0x230] sm:$0xff] %v2509
      %2558 = vst [vmem:[#allocation3 + $0x278] sm:$0xff] %v2512
      %2559 = vst [vmem:[#allocation3 + $0x2c0] sm:$0xff] %v2515
      %2560 = vst [vmem:[#allocation3 + $0x308] sm:$0xff] %v2518
      %2561 = vst [vmem:[#allocation3 + $0x350] sm:$0xff] %v2521
      %2562 = vst [vmem:[#allocation3 + $0x398] sm:$0xff] %v2524
      %2563 = vst [vmem:[#allocation3 + $0x3e0] sm:$0xff] %v2527
      %2564 = vst [vmem:[#allocation3 + $0x428] sm:$0xff] %v2530
      %2565 = vst [vmem:[#allocation3 + $0x470] sm:$0xff] %v2533
      %v2566 = vld [vmem:[%s2085] sm:$0xf0]
      %v2567 = vld [vmem:[%s2085 + $0x8] sm:$0x1f]
      %v2568 = vld [vmem:[%s2085 + $0x10] sm:$0xf0]
      %v2569 = vld [vmem:[%s2085 + $0x18] sm:$0x1f]
      %v2570 = vld [vmem:[%s2085 + $0x20] sm:$0xf0]
      %v2571 = vld [vmem:[%s2085 + $0x28] sm:$0x1f]
      %v2572 = vld [vmem:[%s2085 + $0x30] sm:$0xf0]
      %v2573 = vld [vmem:[%s2085 + $0x38] sm:$0x1f]
      %v2574 = vld [vmem:[%s2085 + $0x40] sm:$0xf0]
      %v2575 = vld [vmem:[%s2085 + $0x48] sm:$0x1f]
      %v2576 = vld [vmem:[%s2085 + $0x50] sm:$0xf0]
      %v2577 = vld [vmem:[%s2085 + $0x58] sm:$0x1f]
      %v2578 = vld [vmem:[%s2085 + $0x60] sm:$0xf0]
      %v2579 = vld [vmem:[%s2085 + $0x68] sm:$0x1f]
      %v2580 = vld [vmem:[%s2085 + $0x70] sm:$0xf0]
      %v2581 = vld [vmem:[%s2085 + $0x78] sm:$0x1f]
      %v2582 = vld [vmem:[%s2085 + $0x80] sm:$0xf0]
      %v2583 = vld [vmem:[%s2085 + $0x88] sm:$0x1f]
      %v2584 = vld [vmem:[%s2085 + $0x90] sm:$0xf0]
      %v2585 = vld [vmem:[%s2085 + $0x98] sm:$0x1f]
      %v2586 = vld [vmem:[%s2085 + $0xa0] sm:$0xf0]
      %v2587 = vld [vmem:[%s2085 + $0xa8] sm:$0x1f]
      %v2588 = vld [vmem:[%s2085 + $0xb0] sm:$0xf0]
      %v2589 = vld [vmem:[%s2085 + $0xb8] sm:$0x1f]
      %v2590 = vld [vmem:[%s2085 + $0xc0] sm:$0xf0]
      %v2591 = vld [vmem:[%s2085 + $0xc8] sm:$0x1f]
      %v2592 = vld [vmem:[%s2085 + $0xd0] sm:$0xf0]
      %v2593 = vld [vmem:[%s2085 + $0xd8] sm:$0x1f]
      %v2594 = vld [vmem:[%s2085 + $0xe0] sm:$0xf0]
      %v2595 = vld [vmem:[%s2085 + $0xe8] sm:$0x1f]
      %v2596 = vld [vmem:[%s2085 + $0xf0] sm:$0xf0]
      %v2597 = vld [vmem:[%s2085 + $0xf8] sm:$0x1f]
      %v2599 = vshrl.u32 %v2566, 16
      %v2601 = vrot.slane %v2599, 4
      %v2602 = vshll.u32 %v2566, 16
      %v2604 = vrot.slane %v2602, 5
      %v2605 = vor.u32 %v2601, %v2604
      %v2607 = vshrl.u32 %v2567, 16
      %v2609 = vrot.slane %v2607, 4
      %v2610 = vshll.u32 %v2567, 16
      %v2612 = vrot.slane %v2610, 5
      %v2613 = vor.u32 %v2609, %v2612
      %v2614 = vsel %vm964, %v2605, %v2613
      %v2616 = vshrl.u32 %v2568, 16
      %v2618 = vrot.slane %v2616, 4
      %v2619 = vshll.u32 %v2568, 16
      %v2621 = vrot.slane %v2619, 5
      %v2622 = vor.u32 %v2618, %v2621
      %v2624 = vshrl.u32 %v2569, 16
      %v2626 = vrot.slane %v2624, 4
      %v2627 = vshll.u32 %v2569, 16
      %v2629 = vrot.slane %v2627, 5
      %v2630 = vor.u32 %v2626, %v2629
      %v2631 = vsel %vm964, %v2622, %v2630
      %v2633 = vshrl.u32 %v2570, 16
      %v2635 = vrot.slane %v2633, 4
      %v2636 = vshll.u32 %v2570, 16
      %v2638 = vrot.slane %v2636, 5
      %v2639 = vor.u32 %v2635, %v2638
      %v2641 = vshrl.u32 %v2571, 16
      %v2643 = vrot.slane %v2641, 4
      %v2644 = vshll.u32 %v2571, 16
      %v2646 = vrot.slane %v2644, 5
      %v2647 = vor.u32 %v2643, %v2646
      %v2648 = vsel %vm964, %v2639, %v2647
      %v2650 = vshrl.u32 %v2572, 16
      %v2652 = vrot.slane %v2650, 4
      %v2653 = vshll.u32 %v2572, 16
      %v2655 = vrot.slane %v2653, 5
      %v2656 = vor.u32 %v2652, %v2655
      %v2658 = vshrl.u32 %v2573, 16
      %v2660 = vrot.slane %v2658, 4
      %v2661 = vshll.u32 %v2573, 16
      %v2663 = vrot.slane %v2661, 5
      %v2664 = vor.u32 %v2660, %v2663
      %v2665 = vsel %vm964, %v2656, %v2664
      %v2667 = vshrl.u32 %v2574, 16
      %v2669 = vrot.slane %v2667, 4
      %v2670 = vshll.u32 %v2574, 16
      %v2672 = vrot.slane %v2670, 5
      %v2673 = vor.u32 %v2669, %v2672
      %v2675 = vshrl.u32 %v2575, 16
      %v2677 = vrot.slane %v2675, 4
      %v2678 = vshll.u32 %v2575, 16
      %v2680 = vrot.slane %v2678, 5
      %v2681 = vor.u32 %v2677, %v2680
      %v2682 = vsel %vm964, %v2673, %v2681
      %v2684 = vshrl.u32 %v2576, 16
      %v2686 = vrot.slane %v2684, 4
      %v2687 = vshll.u32 %v2576, 16
      %v2689 = vrot.slane %v2687, 5
      %v2690 = vor.u32 %v2686, %v2689
      %v2692 = vshrl.u32 %v2577, 16
      %v2694 = vrot.slane %v2692, 4
      %v2695 = vshll.u32 %v2577, 16
      %v2697 = vrot.slane %v2695, 5
      %v2698 = vor.u32 %v2694, %v2697
      %v2699 = vsel %vm964, %v2690, %v2698
      %v2701 = vshrl.u32 %v2578, 16
      %v2703 = vrot.slane %v2701, 4
      %v2704 = vshll.u32 %v2578, 16
      %v2706 = vrot.slane %v2704, 5
      %v2707 = vor.u32 %v2703, %v2706
      %v2709 = vshrl.u32 %v2579, 16
      %v2711 = vrot.slane %v2709, 4
      %v2712 = vshll.u32 %v2579, 16
      %v2714 = vrot.slane %v2712, 5
      %v2715 = vor.u32 %v2711, %v2714
      %v2716 = vsel %vm964, %v2707, %v2715
      %v2718 = vshrl.u32 %v2580, 16
      %v2720 = vrot.slane %v2718, 4
      %v2721 = vshll.u32 %v2580, 16
      %v2723 = vrot.slane %v2721, 5
      %v2724 = vor.u32 %v2720, %v2723
      %v2726 = vshrl.u32 %v2581, 16
      %v2728 = vrot.slane %v2726, 4
      %v2729 = vshll.u32 %v2581, 16
      %v2731 = vrot.slane %v2729, 5
      %v2732 = vor.u32 %v2728, %v2731
      %v2733 = vsel %vm964, %v2724, %v2732
      %v2735 = vshrl.u32 %v2582, 16
      %v2737 = vrot.slane %v2735, 4
      %v2738 = vshll.u32 %v2582, 16
      %v2740 = vrot.slane %v2738, 5
      %v2741 = vor.u32 %v2737, %v2740
      %v2743 = vshrl.u32 %v2583, 16
      %v2745 = vrot.slane %v2743, 4
      %v2746 = vshll.u32 %v2583, 16
      %v2748 = vrot.slane %v2746, 5
      %v2749 = vor.u32 %v2745, %v2748
      %v2750 = vsel %vm964, %v2741, %v2749
      %v2752 = vshrl.u32 %v2584, 16
      %v2754 = vrot.slane %v2752, 4
      %v2755 = vshll.u32 %v2584, 16
      %v2757 = vrot.slane %v2755, 5
      %v2758 = vor.u32 %v2754, %v2757
      %v2760 = vshrl.u32 %v2585, 16
      %v2762 = vrot.slane %v2760, 4
      %v2763 = vshll.u32 %v2585, 16
      %v2765 = vrot.slane %v2763, 5
      %v2766 = vor.u32 %v2762, %v2765
      %v2767 = vsel %vm964, %v2758, %v2766
      %v2769 = vshrl.u32 %v2586, 16
      %v2771 = vrot.slane %v2769, 4
      %v2772 = vshll.u32 %v2586, 16
      %v2774 = vrot.slane %v2772, 5
      %v2775 = vor.u32 %v2771, %v2774
      %v2777 = vshrl.u32 %v2587, 16
      %v2779 = vrot.slane %v2777, 4
      %v2780 = vshll.u32 %v2587, 16
      %v2782 = vrot.slane %v2780, 5
      %v2783 = vor.u32 %v2779, %v2782
      %v2784 = vsel %vm964, %v2775, %v2783
      %v2786 = vshrl.u32 %v2588, 16
      %v2788 = vrot.slane %v2786, 4
      %v2789 = vshll.u32 %v2588, 16
      %v2791 = vrot.slane %v2789, 5
      %v2792 = vor.u32 %v2788, %v2791
      %v2794 = vshrl.u32 %v2589, 16
      %v2796 = vrot.slane %v2794, 4
      %v2797 = vshll.u32 %v2589, 16
      %v2799 = vrot.slane %v2797, 5
      %v2800 = vor.u32 %v2796, %v2799
      %v2801 = vsel %vm964, %v2792, %v2800
      %v2803 = vshrl.u32 %v2590, 16
      %v2805 = vrot.slane %v2803, 4
      %v2806 = vshll.u32 %v2590, 16
      %v2808 = vrot.slane %v2806, 5
      %v2809 = vor.u32 %v2805, %v2808
      %v2811 = vshrl.u32 %v2591, 16
      %v2813 = vrot.slane %v2811, 4
      %v2814 = vshll.u32 %v2591, 16
      %v2816 = vrot.slane %v2814, 5
      %v2817 = vor.u32 %v2813, %v2816
      %v2818 = vsel %vm964, %v2809, %v2817
      %v2820 = vshrl.u32 %v2592, 16
      %v2822 = vrot.slane %v2820, 4
      %v2823 = vshll.u32 %v2592, 16
      %v2825 = vrot.slane %v2823, 5
      %v2826 = vor.u32 %v2822, %v2825
      %v2828 = vshrl.u32 %v2593, 16
      %v2830 = vrot.slane %v2828, 4
      %v2831 = vshll.u32 %v2593, 16
      %v2833 = vrot.slane %v2831, 5
      %v2834 = vor.u32 %v2830, %v2833
      %v2835 = vsel %vm964, %v2826, %v2834
      %v2837 = vshrl.u32 %v2594, 16
      %v2839 = vrot.slane %v2837, 4
      %v2840 = vshll.u32 %v2594, 16
      %v2842 = vrot.slane %v2840, 5
      %v2843 = vor.u32 %v2839, %v2842
      %v2845 = vshrl.u32 %v2595, 16
      %v2847 = vrot.slane %v2845, 4
      %v2848 = vshll.u32 %v2595, 16
      %v2850 = vrot.slane %v2848, 5
      %v2851 = vor.u32 %v2847, %v2850
      %v2852 = vsel %vm964, %v2843, %v2851
      %v2854 = vshrl.u32 %v2596, 16
      %v2856 = vrot.slane %v2854, 4
      %v2857 = vshll.u32 %v2596, 16
      %v2859 = vrot.slane %v2857, 5
      %v2860 = vor.u32 %v2856, %v2859
      %v2862 = vshrl.u32 %v2597, 16
      %v2864 = vrot.slane %v2862, 4
      %v2865 = vshll.u32 %v2597, 16
      %v2867 = vrot.slane %v2865, 5
      %v2868 = vor.u32 %v2864, %v2867
      %v2869 = vsel %vm964, %v2860, %v2868
      %2886 = vst [vmem:[#allocation3 + $0x40] sm:$0xff] %v2614
      %2887 = vst [vmem:[#allocation3 + $0x88] sm:$0xff] %v2631
      %2888 = vst [vmem:[#allocation3 + $0xd0] sm:$0xff] %v2648
      %2889 = vst [vmem:[#allocation3 + $0x118] sm:$0xff] %v2665
      %2890 = vst [vmem:[#allocation3 + $0x160] sm:$0xff] %v2682
      %2891 = vst [vmem:[#allocation3 + $0x1a8] sm:$0xff] %v2699
      %2892 = vst [vmem:[#allocation3 + $0x1f0] sm:$0xff] %v2716
      %2893 = vst [vmem:[#allocation3 + $0x238] sm:$0xff] %v2733
      %2894 = vst [vmem:[#allocation3 + $0x280] sm:$0xff] %v2750
      %2895 = vst [vmem:[#allocation3 + $0x2c8] sm:$0xff] %v2767
      %2896 = vst [vmem:[#allocation3 + $0x310] sm:$0xff] %v2784
      %2897 = vst [vmem:[#allocation3 + $0x358] sm:$0xff] %v2801
      %2898 = vst [vmem:[#allocation3 + $0x3a0] sm:$0xff] %v2818
      %2899 = vst [vmem:[#allocation3 + $0x3e8] sm:$0xff] %v2835
      %2900 = vst [vmem:[#allocation3 + $0x430] sm:$0xff] %v2852
      %2901 = vst [vmem:[#allocation3 + $0x478] sm:$0xff] %v2869
      %v2902 = vld [vmem:[#allocation3] sm:$0xff]
      %v2903 = vld [vmem:[#allocation3 + $0x8] sm:$0xff]
      %v2904 = vld [vmem:[#allocation3 + $0x10] sm:$0xff]
      %v2905 = vld [vmem:[#allocation3 + $0x18] sm:$0xff]
      %v2906 = vld [vmem:[#allocation3 + $0x20] sm:$0xff]
      %v2907 = vld [vmem:[#allocation3 + $0x28] sm:$0xff]
      %v2908 = vld [vmem:[#allocation3 + $0x30] sm:$0xff]
      %v2909 = vld [vmem:[#allocation3 + $0x38] sm:$0xff]
      %v2910 = vld [vmem:[#allocation3 + $0x40] sm:$0xff]
      %v2911 = vld [vmem:[#allocation3 + $0x48] sm:$0xff]
      %v2912 = vld [vmem:[#allocation3 + $0x50] sm:$0xff]
      %v2913 = vld [vmem:[#allocation3 + $0x58] sm:$0xff]
      %v2914 = vld [vmem:[#allocation3 + $0x60] sm:$0xff]
      %v2915 = vld [vmem:[#allocation3 + $0x68] sm:$0xff]
      %v2916 = vld [vmem:[#allocation3 + $0x70] sm:$0xff]
      %v2917 = vld [vmem:[#allocation3 + $0x78] sm:$0xff]
      %v2918 = vld [vmem:[#allocation3 + $0x80] sm:$0xff]
      %v2919 = vld [vmem:[#allocation3 + $0x88] sm:$0xff]
      %v2920 = vld [vmem:[#allocation3 + $0x90] sm:$0xff]
      %v2921 = vld [vmem:[#allocation3 + $0x98] sm:$0xff]
      %v2922 = vld [vmem:[#allocation3 + $0xa0] sm:$0xff]
      %v2923 = vld [vmem:[#allocation3 + $0xa8] sm:$0xff]
      %v2924 = vld [vmem:[#allocation3 + $0xb0] sm:$0xff]
      %v2925 = vld [vmem:[#allocation3 + $0xb8] sm:$0xff]
      %v2926 = vld [vmem:[#allocation3 + $0xc0] sm:$0xff]
      %v2927 = vld [vmem:[#allocation3 + $0xc8] sm:$0xff]
      %v2928 = vld [vmem:[#allocation3 + $0xd0] sm:$0xff]
      %v2929 = vld [vmem:[#allocation3 + $0xd8] sm:$0xff]
      %v2930 = vld [vmem:[#allocation3 + $0xe0] sm:$0xff]
      %v2931 = vld [vmem:[#allocation3 + $0xe8] sm:$0xff]
      %v2932 = vld [vmem:[#allocation3 + $0xf0] sm:$0xff]
      %v2933 = vld [vmem:[#allocation3 + $0xf8] sm:$0xff]
      %v2934 = vld [vmem:[#allocation3 + $0x100] sm:$0xff]
      %v2935 = vld [vmem:[#allocation3 + $0x108] sm:$0xff]
      %v2936 = vld [vmem:[#allocation3 + $0x110] sm:$0xff]
      %v2937 = vld [vmem:[#allocation3 + $0x118] sm:$0xff]
      %v2938 = vld [vmem:[#allocation3 + $0x120] sm:$0xff]
      %v2939 = vld [vmem:[#allocation3 + $0x128] sm:$0xff]
      %v2940 = vld [vmem:[#allocation3 + $0x130] sm:$0xff]
      %v2941 = vld [vmem:[#allocation3 + $0x138] sm:$0xff]
      %v2942 = vld [vmem:[#allocation3 + $0x140] sm:$0xff]
      %v2943 = vld [vmem:[#allocation3 + $0x148] sm:$0xff]
      %v2944 = vld [vmem:[#allocation3 + $0x150] sm:$0xff]
      %v2945 = vld [vmem:[#allocation3 + $0x158] sm:$0xff]
      %v2946 = vld [vmem:[#allocation3 + $0x160] sm:$0xff]
      %v2947 = vld [vmem:[#allocation3 + $0x168] sm:$0xff]
      %v2948 = vld [vmem:[#allocation3 + $0x170] sm:$0xff]
      %v2949 = vld [vmem:[#allocation3 + $0x178] sm:$0xff]
      %v2950 = vld [vmem:[#allocation3 + $0x180] sm:$0xff]
      %v2951 = vld [vmem:[#allocation3 + $0x188] sm:$0xff]
      %v2952 = vld [vmem:[#allocation3 + $0x190] sm:$0xff]
      %v2953 = vld [vmem:[#allocation3 + $0x198] sm:$0xff]
      %v2954 = vld [vmem:[#allocation3 + $0x1a0] sm:$0xff]
      %v2955 = vld [vmem:[#allocation3 + $0x1a8] sm:$0xff]
      %v2956 = vld [vmem:[#allocation3 + $0x1b0] sm:$0xff]
      %v2957 = vld [vmem:[#allocation3 + $0x1b8] sm:$0xff]
      %v2958 = vld [vmem:[#allocation3 + $0x1c0] sm:$0xff]
      %v2959 = vld [vmem:[#allocation3 + $0x1c8] sm:$0xff]
      %v2960 = vld [vmem:[#allocation3 + $0x1d0] sm:$0xff]
      %v2961 = vld [vmem:[#allocation3 + $0x1d8] sm:$0xff]
      %v2962 = vld [vmem:[#allocation3 + $0x1e0] sm:$0xff]
      %v2963 = vld [vmem:[#allocation3 + $0x1e8] sm:$0xff]
      %v2964 = vld [vmem:[#allocation3 + $0x1f0] sm:$0xff]
      %v2965 = vld [vmem:[#allocation3 + $0x1f8] sm:$0xff]
      %v2966 = vld [vmem:[#allocation3 + $0x200] sm:$0xff]
      %v2967 = vld [vmem:[#allocation3 + $0x208] sm:$0xff]
      %v2968 = vld [vmem:[#allocation3 + $0x210] sm:$0xff]
      %v2969 = vld [vmem:[#allocation3 + $0x218] sm:$0xff]
      %v2970 = vld [vmem:[#allocation3 + $0x220] sm:$0xff]
      %v2971 = vld [vmem:[#allocation3 + $0x228] sm:$0xff]
      %v2972 = vld [vmem:[#allocation3 + $0x230] sm:$0xff]
      %v2973 = vld [vmem:[#allocation3 + $0x238] sm:$0xff]
      %v2974 = vld [vmem:[#allocation3 + $0x240] sm:$0xff]
      %v2975 = vld [vmem:[#allocation3 + $0x248] sm:$0xff]
      %v2976 = vld [vmem:[#allocation3 + $0x250] sm:$0xff]
      %v2977 = vld [vmem:[#allocation3 + $0x258] sm:$0xff]
      %v2978 = vld [vmem:[#allocation3 + $0x260] sm:$0xff]
      %v2979 = vld [vmem:[#allocation3 + $0x268] sm:$0xff]
      %v2980 = vld [vmem:[#allocation3 + $0x270] sm:$0xff]
      %v2981 = vld [vmem:[#allocation3 + $0x278] sm:$0xff]
      %v2982 = vld [vmem:[#allocation3 + $0x280] sm:$0xff]
      %v2983 = vld [vmem:[#allocation3 + $0x288] sm:$0xff]
      %v2984 = vld [vmem:[#allocation3 + $0x290] sm:$0xff]
      %v2985 = vld [vmem:[#allocation3 + $0x298] sm:$0xff]
      %v2986 = vld [vmem:[#allocation3 + $0x2a0] sm:$0xff]
      %v2987 = vld [vmem:[#allocation3 + $0x2a8] sm:$0xff]
      %v2988 = vld [vmem:[#allocation3 + $0x2b0] sm:$0xff]
      %v2989 = vld [vmem:[#allocation3 + $0x2b8] sm:$0xff]
      %v2990 = vld [vmem:[#allocation3 + $0x2c0] sm:$0xff]
      %v2991 = vld [vmem:[#allocation3 + $0x2c8] sm:$0xff]
      %v2992 = vld [vmem:[#allocation3 + $0x2d0] sm:$0xff]
      %v2993 = vld [vmem:[#allocation3 + $0x2d8] sm:$0xff]
      %v2994 = vld [vmem:[#allocation3 + $0x2e0] sm:$0xff]
      %v2995 = vld [vmem:[#allocation3 + $0x2e8] sm:$0xff]
      %v2996 = vld [vmem:[#allocation3 + $0x2f0] sm:$0xff]
      %v2997 = vld [vmem:[#allocation3 + $0x2f8] sm:$0xff]
      %v2998 = vld [vmem:[#allocation3 + $0x300] sm:$0xff]
      %v2999 = vld [vmem:[#allocation3 + $0x308] sm:$0xff]
      %v3000 = vld [vmem:[#allocation3 + $0x310] sm:$0xff]
      %v3001 = vld [vmem:[#allocation3 + $0x318] sm:$0xff]
      %v3002 = vld [vmem:[#allocation3 + $0x320] sm:$0xff]
      %v3003 = vld [vmem:[#allocation3 + $0x328] sm:$0xff]
      %v3004 = vld [vmem:[#allocation3 + $0x330] sm:$0xff]
      %v3005 = vld [vmem:[#allocation3 + $0x338] sm:$0xff]
      %v3006 = vld [vmem:[#allocation3 + $0x340] sm:$0xff]
      %v3007 = vld [vmem:[#allocation3 + $0x348] sm:$0xff]
      %v3008 = vld [vmem:[#allocation3 + $0x350] sm:$0xff]
      %v3009 = vld [vmem:[#allocation3 + $0x358] sm:$0xff]
      %v3010 = vld [vmem:[#allocation3 + $0x360] sm:$0xff]
      %v3011 = vld [vmem:[#allocation3 + $0x368] sm:$0xff]
      %v3012 = vld [vmem:[#allocation3 + $0x370] sm:$0xff]
      %v3013 = vld [vmem:[#allocation3 + $0x378] sm:$0xff]
      %v3014 = vld [vmem:[#allocation3 + $0x380] sm:$0xff]
      %v3015 = vld [vmem:[#allocation3 + $0x388] sm:$0xff]
      %v3016 = vld [vmem:[#allocation3 + $0x390] sm:$0xff]
      %v3017 = vld [vmem:[#allocation3 + $0x398] sm:$0xff]
      %v3018 = vld [vmem:[#allocation3 + $0x3a0] sm:$0xff]
      %v3019 = vld [vmem:[#allocation3 + $0x3a8] sm:$0xff]
      %v3020 = vld [vmem:[#allocation3 + $0x3b0] sm:$0xff]
      %v3021 = vld [vmem:[#allocation3 + $0x3b8] sm:$0xff]
      %v3022 = vld [vmem:[#allocation3 + $0x3c0] sm:$0xff]
      %v3023 = vld [vmem:[#allocation3 + $0x3c8] sm:$0xff]
      %v3024 = vld [vmem:[#allocation3 + $0x3d0] sm:$0xff]
      %v3025 = vld [vmem:[#allocation3 + $0x3d8] sm:$0xff]
      %v3026 = vld [vmem:[#allocation3 + $0x3e0] sm:$0xff]
      %v3027 = vld [vmem:[#allocation3 + $0x3e8] sm:$0xff]
      %v3028 = vld [vmem:[#allocation3 + $0x3f0] sm:$0xff]
      %v3029 = vld [vmem:[#allocation3 + $0x3f8] sm:$0xff]
      %v3030 = vld [vmem:[#allocation3 + $0x400] sm:$0xff]
      %v3031 = vld [vmem:[#allocation3 + $0x408] sm:$0xff]
      %v3032 = vld [vmem:[#allocation3 + $0x410] sm:$0xff]
      %v3033 = vld [vmem:[#allocation3 + $0x418] sm:$0xff]
      %v3034 = vld [vmem:[#allocation3 + $0x420] sm:$0xff]
      %v3035 = vld [vmem:[#allocation3 + $0x428] sm:$0xff]
      %v3036 = vld [vmem:[#allocation3 + $0x430] sm:$0xff]
      %v3037 = vld [vmem:[#allocation3 + $0x438] sm:$0xff]
      %v3038 = vld [vmem:[#allocation3 + $0x440] sm:$0xff]
      %v3039 = vld [vmem:[#allocation3 + $0x448] sm:$0xff]
      %v3040 = vld [vmem:[#allocation3 + $0x450] sm:$0xff]
      %v3041 = vld [vmem:[#allocation3 + $0x458] sm:$0xff]
      %v3042 = vld [vmem:[#allocation3 + $0x460] sm:$0xff]
      %v3043 = vld [vmem:[#allocation3 + $0x468] sm:$0xff]
      %v3044 = vld [vmem:[#allocation3 + $0x470] sm:$0xff]
      %v3045 = vld [vmem:[#allocation3 + $0x478] sm:$0xff]
      %v3046 = vld [vmem:[%s1] sm:$0xf]
      %v3047 = vld [vmem:[%s1 + $0x4] sm:$0xf]
      %v3048 = vld [vmem:[%s1 + $0x8] sm:$0xf]
      %v3049 = vld [vmem:[%s1 + $0xc] sm:$0xf]
      %v3050 = vld [vmem:[%s1 + $0x10] sm:$0xf]
      %v3051 = vld [vmem:[%s1 + $0x14] sm:$0xf]
      %v3052 = vld [vmem:[%s1 + $0x18] sm:$0xf]
      %v3053 = vld [vmem:[%s1 + $0x1c] sm:$0xf]
      %v3054 = vld [vmem:[%s1 + $0x20] sm:$0xf]
      %v3055 = vld [vmem:[%s1 + $0x24] sm:$0xf]
      %v3056 = vld [vmem:[%s1 + $0x28] sm:$0xf]
      %v3057 = vld [vmem:[%s1 + $0x2c] sm:$0xf]
      %v3058 = vld [vmem:[%s1 + $0x30] sm:$0xf]
      %v3059 = vld [vmem:[%s1 + $0x34] sm:$0xf]
      %v3060 = vld [vmem:[%s1 + $0x38] sm:$0xf]
      %v3061 = vld [vmem:[%s1 + $0x3c] sm:$0xf]
      %v3062 = vld [vmem:[%s1 + $0x40] sm:$0xf]
      %v3063 = vld [vmem:[%s1 + $0x44] sm:$0xf]
      %v3064 = vld [vmem:[%s1 + $0x48] sm:$0xf]
      %v3065 = vld [vmem:[%s1 + $0x4c] sm:$0xf]
      %v3066 = vld [vmem:[%s1 + $0x50] sm:$0xf]
      %v3067 = vld [vmem:[%s1 + $0x54] sm:$0xf]
      %v3068 = vld [vmem:[%s1 + $0x58] sm:$0xf]
      %v3069 = vld [vmem:[%s1 + $0x5c] sm:$0xf]
      %v3070 = vld [vmem:[%s1 + $0x60] sm:$0xf]
      %v3071 = vld [vmem:[%s1 + $0x64] sm:$0xf]
      %v3072 = vld [vmem:[%s1 + $0x68] sm:$0xf]
      %v3073 = vld [vmem:[%s1 + $0x6c] sm:$0xf]
      %v3074 = vld [vmem:[%s1 + $0x70] sm:$0xf]
      %v3075 = vld [vmem:[%s1 + $0x74] sm:$0xf]
      %v3076 = vld [vmem:[%s1 + $0x78] sm:$0xf]
      %v3077 = vld [vmem:[%s1 + $0x7c] sm:$0xf]
      %v3078 = vld [vmem:[%s1 + $0x80] sm:$0xf]
      %v3079 = vld [vmem:[%s1 + $0x84] sm:$0xf]
      %v3080 = vld [vmem:[%s1 + $0x88] sm:$0xf]
      %v3081 = vld [vmem:[%s1 + $0x8c] sm:$0xf]
      %v3082 = vld [vmem:[%s1 + $0x90] sm:$0xf]
      %v3083 = vld [vmem:[%s1 + $0x94] sm:$0xf]
      %v3084 = vld [vmem:[%s1 + $0x98] sm:$0xf]
      %v3085 = vld [vmem:[%s1 + $0x9c] sm:$0xf]
      %v3086 = vld [vmem:[%s1 + $0xa0] sm:$0xf]
      %v3087 = vld [vmem:[%s1 + $0xa4] sm:$0xf]
      %v3088 = vld [vmem:[%s1 + $0xa8] sm:$0xf]
      %v3089 = vld [vmem:[%s1 + $0xac] sm:$0xf]
      %v3090 = vld [vmem:[%s1 + $0xb0] sm:$0xf]
      %v3091 = vld [vmem:[%s1 + $0xb4] sm:$0xf]
      %v3092 = vld [vmem:[%s1 + $0xb8] sm:$0xf]
      %v3093 = vld [vmem:[%s1 + $0xbc] sm:$0xf]
      %v3094 = vld [vmem:[%s1 + $0xc0] sm:$0xf]
      %v3095 = vld [vmem:[%s1 + $0xc4] sm:$0xf]
      %v3096 = vld [vmem:[%s1 + $0xc8] sm:$0xf]
      %v3097 = vld [vmem:[%s1 + $0xcc] sm:$0xf]
      %v3098 = vld [vmem:[%s1 + $0xd0] sm:$0xf]
      %v3099 = vld [vmem:[%s1 + $0xd4] sm:$0xf]
      %v3100 = vld [vmem:[%s1 + $0xd8] sm:$0xf]
      %v3101 = vld [vmem:[%s1 + $0xdc] sm:$0xf]
      %v3102 = vld [vmem:[%s1 + $0xe0] sm:$0xf]
      %v3103 = vld [vmem:[%s1 + $0xe4] sm:$0xf]
      %v3104 = vld [vmem:[%s1 + $0xe8] sm:$0xf]
      %v3105 = vld [vmem:[%s1 + $0xec] sm:$0xf]
      %v3106 = vld [vmem:[%s1 + $0xf0] sm:$0xf]
      %v3107 = vld [vmem:[%s1 + $0xf4] sm:$0xf]
      %v3108 = vld [vmem:[%s1 + $0xf8] sm:$0xf]
      %v3109 = vld [vmem:[%s1 + $0xfc] sm:$0xf]
      %v3110 = vld [vmem:[%s1 + $0x100] sm:$0xf]
      %v3111 = vld [vmem:[%s1 + $0x104] sm:$0xf]
      %v3112 = vld [vmem:[%s1 + $0x108] sm:$0xf]
      %v3113 = vld [vmem:[%s1 + $0x10c] sm:$0xf]
      %v3114 = vld [vmem:[%s1 + $0x110] sm:$0xf]
      %v3115 = vld [vmem:[%s1 + $0x114] sm:$0xf]
      %v3116 = vld [vmem:[%s1 + $0x118] sm:$0xf]
      %v3117 = vld [vmem:[%s1 + $0x11c] sm:$0xf]
      %v3118 = vld [vmem:[%s1 + $0x120] sm:$0xf]
      %v3119 = vld [vmem:[%s1 + $0x124] sm:$0xf]
      %v3120 = vld [vmem:[%s1 + $0x128] sm:$0xf]
      %v3121 = vld [vmem:[%s1 + $0x12c] sm:$0xf]
      %v3122 = vld [vmem:[%s1 + $0x130] sm:$0xf]
      %v3123 = vld [vmem:[%s1 + $0x134] sm:$0xf]
      %v3124 = vld [vmem:[%s1 + $0x138] sm:$0xf]
      %v3125 = vld [vmem:[%s1 + $0x13c] sm:$0xf]
      %v3126 = vld [vmem:[%s1 + $0x140] sm:$0xf]
      %v3127 = vld [vmem:[%s1 + $0x144] sm:$0xf]
      %v3128 = vld [vmem:[%s1 + $0x148] sm:$0xf]
      %v3129 = vld [vmem:[%s1 + $0x14c] sm:$0xf]
      %v3130 = vld [vmem:[%s1 + $0x150] sm:$0xf]
      %v3131 = vld [vmem:[%s1 + $0x154] sm:$0xf]
      %v3132 = vld [vmem:[%s1 + $0x158] sm:$0xf]
      %v3133 = vld [vmem:[%s1 + $0x15c] sm:$0xf]
      %v3134 = vld [vmem:[%s1 + $0x160] sm:$0xf]
      %v3135 = vld [vmem:[%s1 + $0x164] sm:$0xf]
      %v3136 = vld [vmem:[%s1 + $0x168] sm:$0xf]
      %v3137 = vld [vmem:[%s1 + $0x16c] sm:$0xf]
      %v3138 = vld [vmem:[%s1 + $0x170] sm:$0xf]
      %v3139 = vld [vmem:[%s1 + $0x174] sm:$0xf]
      %v3140 = vld [vmem:[%s1 + $0x178] sm:$0xf]
      %v3141 = vld [vmem:[%s1 + $0x17c] sm:$0xf]
      %v3142 = vld [vmem:[%s1 + $0x180] sm:$0xf]
      %v3143 = vld [vmem:[%s1 + $0x184] sm:$0xf]
      %v3144 = vld [vmem:[%s1 + $0x188] sm:$0xf]
      %v3145 = vld [vmem:[%s1 + $0x18c] sm:$0xf]
      %v3146 = vld [vmem:[%s1 + $0x190] sm:$0xf]
      %v3147 = vld [vmem:[%s1 + $0x194] sm:$0xf]
      %v3148 = vld [vmem:[%s1 + $0x198] sm:$0xf]
      %v3149 = vld [vmem:[%s1 + $0x19c] sm:$0xf]
      %v3150 = vld [vmem:[%s1 + $0x1a0] sm:$0xf]
      %v3151 = vld [vmem:[%s1 + $0x1a4] sm:$0xf]
      %v3152 = vld [vmem:[%s1 + $0x1a8] sm:$0xf]
      %v3153 = vld [vmem:[%s1 + $0x1ac] sm:$0xf]
      %v3154 = vld [vmem:[%s1 + $0x1b0] sm:$0xf]
      %v3155 = vld [vmem:[%s1 + $0x1b4] sm:$0xf]
      %v3156 = vld [vmem:[%s1 + $0x1b8] sm:$0xf]
      %v3157 = vld [vmem:[%s1 + $0x1bc] sm:$0xf]
      %v3158 = vld [vmem:[%s1 + $0x1c0] sm:$0xf]
      %v3159 = vld [vmem:[%s1 + $0x1c4] sm:$0xf]
      %v3160 = vld [vmem:[%s1 + $0x1c8] sm:$0xf]
      %v3161 = vld [vmem:[%s1 + $0x1cc] sm:$0xf]
      %v3162 = vld [vmem:[%s1 + $0x1d0] sm:$0xf]
      %v3163 = vld [vmem:[%s1 + $0x1d4] sm:$0xf]
      %v3164 = vld [vmem:[%s1 + $0x1d8] sm:$0xf]
      %v3165 = vld [vmem:[%s1 + $0x1dc] sm:$0xf]
      %v3166 = vld [vmem:[%s1 + $0x1e0] sm:$0xf]
      %v3167 = vld [vmem:[%s1 + $0x1e4] sm:$0xf]
      %v3168 = vld [vmem:[%s1 + $0x1e8] sm:$0xf]
      %v3169 = vld [vmem:[%s1 + $0x1ec] sm:$0xf]
      %v3170 = vld [vmem:[%s1 + $0x1f0] sm:$0xf]
      %v3171 = vld [vmem:[%s1 + $0x1f4] sm:$0xf]
      %v3172 = vld [vmem:[%s1 + $0x1f8] sm:$0xf]
      %v3173 = vld [vmem:[%s1 + $0x1fc] sm:$0xf]
      %v3174 = vld [vmem:[%s1 + $0x200] sm:$0xf]
      %v3175 = vld [vmem:[%s1 + $0x204] sm:$0xf]
      %v3176 = vld [vmem:[%s1 + $0x208] sm:$0xf]
      %v3177 = vld [vmem:[%s1 + $0x20c] sm:$0xf]
      %v3178 = vld [vmem:[%s1 + $0x210] sm:$0xf]
      %v3179 = vld [vmem:[%s1 + $0x214] sm:$0xf]
      %v3180 = vld [vmem:[%s1 + $0x218] sm:$0xf]
      %v3181 = vld [vmem:[%s1 + $0x21c] sm:$0xf]
      %v3182 = vld [vmem:[%s1 + $0x220] sm:$0xf]
      %v3183 = vld [vmem:[%s1 + $0x224] sm:$0xf]
      %v3184 = vld [vmem:[%s1 + $0x228] sm:$0xf]
      %v3185 = vld [vmem:[%s1 + $0x22c] sm:$0xf]
      %v3186 = vld [vmem:[%s1 + $0x230] sm:$0xf]
      %v3187 = vld [vmem:[%s1 + $0x234] sm:$0xf]
      %v3188 = vld [vmem:[%s1 + $0x238] sm:$0xf]
      %v3189 = vld [vmem:[%s1 + $0x23c] sm:$0xf]
      %v3334 = vunpack.c.l.b16 %v3046
      %v3335 = vunpack.c.l.b16 %v3047
      %v3336 = vunpack.c.l.b16 %v3048
      %v3337 = vunpack.c.l.b16 %v3049
      %v3338 = vunpack.c.l.b16 %v3050
      %v3339 = vunpack.c.l.b16 %v3051
      %v3340 = vunpack.c.l.b16 %v3052
      %v3341 = vunpack.c.l.b16 %v3053
      %v3342 = vunpack.c.l.b16 %v3054
      %v3343 = vunpack.c.l.b16 %v3055
      %v3344 = vunpack.c.l.b16 %v3056
      %v3345 = vunpack.c.l.b16 %v3057
      %v3346 = vunpack.c.l.b16 %v3058
      %v3347 = vunpack.c.l.b16 %v3059
      %v3348 = vunpack.c.l.b16 %v3060
      %v3349 = vunpack.c.l.b16 %v3061
      %v3350 = vunpack.c.l.b16 %v3062
      %v3351 = vunpack.c.l.b16 %v3063
      %v3352 = vunpack.c.l.b16 %v3064
      %v3353 = vunpack.c.l.b16 %v3065
      %v3354 = vunpack.c.l.b16 %v3066
      %v3355 = vunpack.c.l.b16 %v3067
      %v3356 = vunpack.c.l.b16 %v3068
      %v3357 = vunpack.c.l.b16 %v3069
      %v3358 = vunpack.c.l.b16 %v3070
      %v3359 = vunpack.c.l.b16 %v3071
      %v3360 = vunpack.c.l.b16 %v3072
      %v3361 = vunpack.c.l.b16 %v3073
      %v3362 = vunpack.c.l.b16 %v3074
      %v3363 = vunpack.c.l.b16 %v3075
      %v3364 = vunpack.c.l.b16 %v3076
      %v3365 = vunpack.c.l.b16 %v3077
      %v3366 = vunpack.c.l.b16 %v3078
      %v3367 = vunpack.c.l.b16 %v3079
      %v3368 = vunpack.c.l.b16 %v3080
      %v3369 = vunpack.c.l.b16 %v3081
      %v3370 = vunpack.c.l.b16 %v3082
      %v3371 = vunpack.c.l.b16 %v3083
      %v3372 = vunpack.c.l.b16 %v3084
      %v3373 = vunpack.c.l.b16 %v3085
      %v3374 = vunpack.c.l.b16 %v3086
      %v3375 = vunpack.c.l.b16 %v3087
      %v3376 = vunpack.c.l.b16 %v3088
      %v3377 = vunpack.c.l.b16 %v3089
      %v3378 = vunpack.c.l.b16 %v3090
      %v3379 = vunpack.c.l.b16 %v3091
      %v3380 = vunpack.c.l.b16 %v3092
      %v3381 = vunpack.c.l.b16 %v3093
      %v3382 = vunpack.c.l.b16 %v3094
      %v3383 = vunpack.c.l.b16 %v3095
      %v3384 = vunpack.c.l.b16 %v3096
      %v3385 = vunpack.c.l.b16 %v3097
      %v3386 = vunpack.c.l.b16 %v3098
      %v3387 = vunpack.c.l.b16 %v3099
      %v3388 = vunpack.c.l.b16 %v3100
      %v3389 = vunpack.c.l.b16 %v3101
      %v3390 = vunpack.c.l.b16 %v3102
      %v3391 = vunpack.c.l.b16 %v3103
      %v3392 = vunpack.c.l.b16 %v3104
      %v3393 = vunpack.c.l.b16 %v3105
      %v3394 = vunpack.c.l.b16 %v3106
      %v3395 = vunpack.c.l.b16 %v3107
      %v3396 = vunpack.c.l.b16 %v3108
      %v3397 = vunpack.c.l.b16 %v3109
      %v3398 = vunpack.c.l.b16 %v3110
      %v3399 = vunpack.c.l.b16 %v3111
      %v3400 = vunpack.c.l.b16 %v3112
      %v3401 = vunpack.c.l.b16 %v3113
      %v3402 = vunpack.c.l.b16 %v3114
      %v3403 = vunpack.c.l.b16 %v3115
      %v3404 = vunpack.c.l.b16 %v3116
      %v3405 = vunpack.c.l.b16 %v3117
      %v3406 = vunpack.c.l.b16 %v3118
      %v3407 = vunpack.c.l.b16 %v3119
      %v3408 = vunpack.c.l.b16 %v3120
      %v3409 = vunpack.c.l.b16 %v3121
      %v3410 = vunpack.c.l.b16 %v3122
      %v3411 = vunpack.c.l.b16 %v3123
      %v3412 = vunpack.c.l.b16 %v3124
      %v3413 = vunpack.c.l.b16 %v3125
      %v3414 = vunpack.c.l.b16 %v3126
      %v3415 = vunpack.c.l.b16 %v3127
      %v3416 = vunpack.c.l.b16 %v3128
      %v3417 = vunpack.c.l.b16 %v3129
      %v3418 = vunpack.c.l.b16 %v3130
      %v3419 = vunpack.c.l.b16 %v3131
      %v3420 = vunpack.c.l.b16 %v3132
      %v3421 = vunpack.c.l.b16 %v3133
      %v3422 = vunpack.c.l.b16 %v3134
      %v3423 = vunpack.c.l.b16 %v3135
      %v3424 = vunpack.c.l.b16 %v3136
      %v3425 = vunpack.c.l.b16 %v3137
      %v3426 = vunpack.c.l.b16 %v3138
      %v3427 = vunpack.c.l.b16 %v3139
      %v3428 = vunpack.c.l.b16 %v3140
      %v3429 = vunpack.c.l.b16 %v3141
      %v3430 = vunpack.c.l.b16 %v3142
      %v3431 = vunpack.c.l.b16 %v3143
      %v3432 = vunpack.c.l.b16 %v3144
      %v3433 = vunpack.c.l.b16 %v3145
      %v3434 = vunpack.c.l.b16 %v3146
      %v3435 = vunpack.c.l.b16 %v3147
      %v3436 = vunpack.c.l.b16 %v3148
      %v3437 = vunpack.c.l.b16 %v3149
      %v3438 = vunpack.c.l.b16 %v3150
      %v3439 = vunpack.c.l.b16 %v3151
      %v3440 = vunpack.c.l.b16 %v3152
      %v3441 = vunpack.c.l.b16 %v3153
      %v3442 = vunpack.c.l.b16 %v3154
      %v3443 = vunpack.c.l.b16 %v3155
      %v3444 = vunpack.c.l.b16 %v3156
      %v3445 = vunpack.c.l.b16 %v3157
      %v3446 = vunpack.c.l.b16 %v3158
      %v3447 = vunpack.c.l.b16 %v3159
      %v3448 = vunpack.c.l.b16 %v3160
      %v3449 = vunpack.c.l.b16 %v3161
      %v3450 = vunpack.c.l.b16 %v3162
      %v3451 = vunpack.c.l.b16 %v3163
      %v3452 = vunpack.c.l.b16 %v3164
      %v3453 = vunpack.c.l.b16 %v3165
      %v3454 = vunpack.c.l.b16 %v3166
      %v3455 = vunpack.c.l.b16 %v3167
      %v3456 = vunpack.c.l.b16 %v3168
      %v3457 = vunpack.c.l.b16 %v3169
      %v3458 = vunpack.c.l.b16 %v3170
      %v3459 = vunpack.c.l.b16 %v3171
      %v3460 = vunpack.c.l.b16 %v3172
      %v3461 = vunpack.c.l.b16 %v3173
      %v3462 = vunpack.c.l.b16 %v3174
      %v3463 = vunpack.c.l.b16 %v3175
      %v3464 = vunpack.c.l.b16 %v3176
      %v3465 = vunpack.c.l.b16 %v3177
      %v3466 = vunpack.c.l.b16 %v3178
      %v3467 = vunpack.c.l.b16 %v3179
      %v3468 = vunpack.c.l.b16 %v3180
      %v3469 = vunpack.c.l.b16 %v3181
      %v3470 = vunpack.c.l.b16 %v3182
      %v3471 = vunpack.c.l.b16 %v3183
      %v3472 = vunpack.c.l.b16 %v3184
      %v3473 = vunpack.c.l.b16 %v3185
      %v3474 = vunpack.c.l.b16 %v3186
      %v3475 = vunpack.c.l.b16 %v3187
      %v3476 = vunpack.c.l.b16 %v3188
      %v3477 = vunpack.c.l.b16 %v3189
      %v3478 = vpack.c.b16 %v3335, %v3334
      %v3479 = vpack.c.b16 %v3337, %v3336
      %v3480 = vpack.c.b16 %v3339, %v3338
      %v3481 = vpack.c.b16 %v3341, %v3340
      %v3482 = vpack.c.b16 %v3343, %v3342
      %v3483 = vpack.c.b16 %v3345, %v3344
      %v3484 = vpack.c.b16 %v3347, %v3346
      %v3485 = vpack.c.b16 %v3349, %v3348
      %v3486 = vpack.c.b16 %v3351, %v3350
      %v3487 = vpack.c.b16 %v3353, %v3352
      %v3488 = vpack.c.b16 %v3355, %v3354
      %v3489 = vpack.c.b16 %v3357, %v3356
      %v3490 = vpack.c.b16 %v3359, %v3358
      %v3491 = vpack.c.b16 %v3361, %v3360
      %v3492 = vpack.c.b16 %v3363, %v3362
      %v3493 = vpack.c.b16 %v3365, %v3364
      %v3494 = vpack.c.b16 %v3367, %v3366
      %v3495 = vpack.c.b16 %v3369, %v3368
      %v3496 = vpack.c.b16 %v3371, %v3370
      %v3497 = vpack.c.b16 %v3373, %v3372
      %v3498 = vpack.c.b16 %v3375, %v3374
      %v3499 = vpack.c.b16 %v3377, %v3376
      %v3500 = vpack.c.b16 %v3379, %v3378
      %v3501 = vpack.c.b16 %v3381, %v3380
      %v3502 = vpack.c.b16 %v3383, %v3382
      %v3503 = vpack.c.b16 %v3385, %v3384
      %v3504 = vpack.c.b16 %v3387, %v3386
      %v3505 = vpack.c.b16 %v3389, %v3388
      %v3506 = vpack.c.b16 %v3391, %v3390
      %v3507 = vpack.c.b16 %v3393, %v3392
      %v3508 = vpack.c.b16 %v3395, %v3394
      %v3509 = vpack.c.b16 %v3397, %v3396
      %v3510 = vpack.c.b16 %v3399, %v3398
      %v3511 = vpack.c.b16 %v3401, %v3400
      %v3512 = vpack.c.b16 %v3403, %v3402
      %v3513 = vpack.c.b16 %v3405, %v3404
      %v3514 = vpack.c.b16 %v3407, %v3406
      %v3515 = vpack.c.b16 %v3409, %v3408
      %v3516 = vpack.c.b16 %v3411, %v3410
      %v3517 = vpack.c.b16 %v3413, %v3412
      %v3518 = vpack.c.b16 %v3415, %v3414
      %v3519 = vpack.c.b16 %v3417, %v3416
      %v3520 = vpack.c.b16 %v3419, %v3418
      %v3521 = vpack.c.b16 %v3421, %v3420
      %v3522 = vpack.c.b16 %v3423, %v3422
      %v3523 = vpack.c.b16 %v3425, %v3424
      %v3524 = vpack.c.b16 %v3427, %v3426
      %v3525 = vpack.c.b16 %v3429, %v3428
      %v3526 = vpack.c.b16 %v3431, %v3430
      %v3527 = vpack.c.b16 %v3433, %v3432
      %v3528 = vpack.c.b16 %v3435, %v3434
      %v3529 = vpack.c.b16 %v3437, %v3436
      %v3530 = vpack.c.b16 %v3439, %v3438
      %v3531 = vpack.c.b16 %v3441, %v3440
      %v3532 = vpack.c.b16 %v3443, %v3442
      %v3533 = vpack.c.b16 %v3445, %v3444
      %v3534 = vpack.c.b16 %v3447, %v3446
      %v3535 = vpack.c.b16 %v3449, %v3448
      %v3536 = vpack.c.b16 %v3451, %v3450
      %v3537 = vpack.c.b16 %v3453, %v3452
      %v3538 = vpack.c.b16 %v3455, %v3454
      %v3539 = vpack.c.b16 %v3457, %v3456
      %v3540 = vpack.c.b16 %v3459, %v3458
      %v3541 = vpack.c.b16 %v3461, %v3460
      %v3542 = vpack.c.b16 %v3463, %v3462
      %v3543 = vpack.c.b16 %v3465, %v3464
      %v3544 = vpack.c.b16 %v3467, %v3466
      %v3545 = vpack.c.b16 %v3469, %v3468
      %v3546 = vpack.c.b16 %v3471, %v3470
      %v3547 = vpack.c.b16 %v3473, %v3472
      %v3548 = vpack.c.b16 %v3475, %v3474
      %v3549 = vpack.c.b16 %v3477, %v3476
      %3622 = vmatprep.subr.bf16.mxu0 0
      %3623 = vmatpush1.bf16.msra.mxu0 %v3478
      %3624 = vmatprep.subr.bf16.mxu0 0
      %3625 = vmatpush1.bf16.msra.mxu0 %v3479
      %3626 = vmatprep.subr.bf16.mxu0 0
      %3627 = vmatpush1.bf16.msra.mxu0 %v3480
      %3628 = vmatprep.subr.bf16.mxu0 0
      %3629 = vmatpush1.bf16.msra.mxu0 %v3481
      %3630 = vmatprep.subr.bf16.mxu0 0
      %3631 = vmatpush1.bf16.msra.mxu0 %v3482
      %3632 = vmatprep.subr.bf16.mxu0 0
      %3633 = vmatpush1.bf16.msra.mxu0 %v3483
      %3634 = vmatprep.subr.bf16.mxu0 0
      %3635 = vmatpush1.bf16.msra.mxu0 %v3484
      %3636 = vmatprep.subr.bf16.mxu0 0
      %3637 = vmatpush1.bf16.msra.mxu0 %v3485
      %3638 = vmatprep.subr.bf16.mxu0 0
      %3639 = vmatpush1.bf16.msra.mxu0 %v3486
      %3640 = vmatprep.subr.bf16.mxu0 0
      %3641 = vmatpush1.bf16.msra.mxu0 %v3487
      %3642 = vmatprep.subr.bf16.mxu0 0
      %3643 = vmatpush1.bf16.msra.mxu0 %v3488
      %3644 = vmatprep.subr.bf16.mxu0 0
      %3645 = vmatpush1.bf16.msra.mxu0 %v3489
      %3646 = vmatprep.subr.bf16.mxu0 0
      %3647 = vmatpush1.bf16.msra.mxu0 %v3490
      %3648 = vmatprep.subr.bf16.mxu0 0
      %3649 = vmatpush1.bf16.msra.mxu0 %v3491
      %3650 = vmatprep.subr.bf16.mxu0 0
      %3651 = vmatpush1.bf16.msra.mxu0 %v3492
      %3652 = vmatprep.subr.bf16.mxu0 0
      %3653 = vmatpush1.bf16.msra.mxu0 %v3493
      %3654 = vmatprep.mubr.bf16.mxu0 %v2903
      %3655 = vmatmul.mubr.bf16.gmra.mrb[0].mxu0 %v2902
      %v3656 = vpop.f32.mrb[0].mxu0
      %v3657 = vadd.f32 0.0, %v3656
      %v3658 = vpop.f32.mrb[0].mxu0
      %v3659 = vpop.f32.mrb[0].mxu0
      %v3660 = vadd.f32 0.0, %v3659
      %v3661 = vpop.f32.mrb[0].mxu0
      %3662 = vmatprep.mubr.bf16.mxu0 %v2912
      %3663 = vmatmul.mubr.bf16.gmra.mrb[0].mxu0 %v2911
      %v3664 = vpop.f32.mrb[0].mxu0
      %v3665 = vadd.f32 0.0, %v3664
      %v3666 = vpop.f32.mrb[0].mxu0
      %v3667 = vpop.f32.mrb[0].mxu0
      %v3668 = vadd.f32 0.0, %v3667
      %v3669 = vpop.f32.mrb[0].mxu0
      %3670 = vmatprep.mubr.bf16.mxu0 %v2921
      %3671 = vmatmul.mubr.bf16.gmra.mrb[0].mxu0 %v2920
      %v3672 = vpop.f32.mrb[0].mxu0
      %v3673 = vadd.f32 0.0, %v3672
      %v3674 = vpop.f32.mrb[0].mxu0
      %v3675 = vpop.f32.mrb[0].mxu0
      %v3676 = vadd.f32 0.0, %v3675
      %v3677 = vpop.f32.mrb[0].mxu0
      %3678 = vmatprep.mubr.bf16.mxu0 %v2930
      %3679 = vmatmul.mubr.bf16.gmra.mrb[0].mxu0 %v2929
      %v3680 = vpop.f32.mrb[0].mxu0
      %v3681 = vadd.f32 0.0, %v3680
      %v3682 = vpop.f32.mrb[0].mxu0
      %v3683 = vpop.f32.mrb[0].mxu0
      %v3684 = vadd.f32 0.0, %v3683
      %v3685 = vpop.f32.mrb[0].mxu0
      %3686 = vmatprep.mubr.bf16.mxu0 %v2939
      %3687 = vmatmul.mubr.bf16.gmra.mrb[0].mxu0 %v2938
      %v3688 = vpop.f32.mrb[0].mxu0
      %v3689 = vadd.f32 0.0, %v3688
      %v3690 = vpop.f32.mrb[0].mxu0
      %v3691 = vpop.f32.mrb[0].mxu0
      %v3692 = vadd.f32 0.0, %v3691
      %v3693 = vpop.f32.mrb[0].mxu0
      %3694 = vmatprep.mubr.bf16.mxu0 %v2948
      %3695 = vmatmul.mubr.bf16.gmra.mrb[0].mxu0 %v2947
      %v3696 = vpop.f32.mrb[0].mxu0
      %v3697 = vadd.f32 0.0, %v3696
      %v3698 = vpop.f32.mrb[0].mxu0
      %v3699 = vpop.f32.mrb[0].mxu0
      %v3700 = vadd.f32 0.0, %v3699
      %v3701 = vpop.f32.mrb[0].mxu0
      %3702 = vmatprep.mubr.bf16.mxu0 %v2957
      %3703 = vmatmul.mubr.bf16.gmra.mrb[0].mxu0 %v2956
      %v3704 = vpop.f32.mrb[0].mxu0
      %v3705 = vadd.f32 0.0, %v3704
      %v3706 = vpop.f32.mrb[0].mxu0
      %v3707 = vpop.f32.mrb[0].mxu0
      %v3708 = vadd.f32 0.0, %v3707
      %v3709 = vpop.f32.mrb[0].mxu0
      %3710 = vmatprep.mubr.bf16.mxu0 %v2966
      %3711 = vmatmul.mubr.bf16.gmra.mrb[0].mxu0 %v2965
      %v3712 = vpop.f32.mrb[0].mxu0
      %v3713 = vadd.f32 0.0, %v3712
      %v3714 = vpop.f32.mrb[0].mxu0
      %v3715 = vpop.f32.mrb[0].mxu0
      %v3716 = vadd.f32 0.0, %v3715
      %v3717 = vpop.f32.mrb[0].mxu0
      %3718 = vmatprep.mubr.bf16.mxu0 %v2975
      %3719 = vmatmul.mubr.bf16.gmra.mrb[0].mxu0 %v2974
      %v3720 = vpop.f32.mrb[0].mxu0
      %v3721 = vadd.f32 0.0, %v3720
      %v3722 = vpop.f32.mrb[0].mxu0
      %v3723 = vpop.f32.mrb[0].mxu0
      %v3724 = vadd.f32 0.0, %v3723
      %v3725 = vpop.f32.mrb[0].mxu0
      %3726 = vmatprep.mubr.bf16.mxu0 %v2984
      %3727 = vmatmul.mubr.bf16.gmra.mrb[0].mxu0 %v2983
      %v3728 = vpop.f32.mrb[0].mxu0
      %v3729 = vadd.f32 0.0, %v3728
      %v3730 = vpop.f32.mrb[0].mxu0
      %v3731 = vpop.f32.mrb[0].mxu0
      %v3732 = vadd.f32 0.0, %v3731
      %v3733 = vpop.f32.mrb[0].mxu0
      %3734 = vmatprep.mubr.bf16.mxu0 %v2993
      %3735 = vmatmul.mubr.bf16.gmra.mrb[0].mxu0 %v2992
      %v3736 = vpop.f32.mrb[0].mxu0
      %v3737 = vadd.f32 0.0, %v3736
      %v3738 = vpop.f32.mrb[0].mxu0
      %v3739 = vpop.f32.mrb[0].mxu0
      %v3740 = vadd.f32 0.0, %v3739
      %v3741 = vpop.f32.mrb[0].mxu0
      %3742 = vmatprep.mubr.bf16.mxu0 %v3002
      %3743 = vmatmul.mubr.bf16.gmra.mrb[0].mxu0 %v3001
      %v3744 = vpop.f32.mrb[0].mxu0
      %v3745 = vadd.f32 0.0, %v3744
      %v3746 = vpop.f32.mrb[0].mxu0
      %v3747 = vpop.f32.mrb[0].mxu0
      %v3748 = vadd.f32 0.0, %v3747
      %v3749 = vpop.f32.mrb[0].mxu0
      %3750 = vmatprep.mubr.bf16.mxu0 %v3011
      %3751 = vmatmul.mubr.bf16.gmra.mrb[0].mxu0 %v3010
      %v3752 = vpop.f32.mrb[0].mxu0
      %v3753 = vadd.f32 0.0, %v3752
      %v3754 = vpop.f32.mrb[0].mxu0
      %v3755 = vpop.f32.mrb[0].mxu0
      %v3756 = vadd.f32 0.0, %v3755
      %v3757 = vpop.f32.mrb[0].mxu0
      %3758 = vmatprep.mubr.bf16.mxu0 %v3020
      %3759 = vmatmul.mubr.bf16.gmra.mrb[0].mxu0 %v3019
      %v3760 = vpop.f32.mrb[0].mxu0
      %v3761 = vadd.f32 0.0, %v3760
      %v3762 = vpop.f32.mrb[0].mxu0
      %v3763 = vpop.f32.mrb[0].mxu0
      %v3764 = vadd.f32 0.0, %v3763
      %v3765 = vpop.f32.mrb[0].mxu0
      %3766 = vmatprep.mubr.bf16.mxu0 %v3029
      %3767 = vmatmul.mubr.bf16.gmra.mrb[0].mxu0 %v3028
      %v3768 = vpop.f32.mrb[0].mxu0
      %v3769 = vadd.f32 0.0, %v3768
      %v3770 = vpop.f32.mrb[0].mxu0
      %v3771 = vpop.f32.mrb[0].mxu0
      %v3772 = vadd.f32 0.0, %v3771
      %v3773 = vpop.f32.mrb[0].mxu0
      %3774 = vmatprep.mubr.bf16.mxu0 %v3038
      %3775 = vmatmul.mubr.bf16.gmra.mrb[0].mxu0 %v3037
      %v3776 = vpop.f32.mrb[0].mxu0
      %v3777 = vadd.f32 0.0, %v3776
      %v3778 = vpop.f32.mrb[0].mxu0
      %v3779 = vpop.f32.mrb[0].mxu0
      %v3780 = vadd.f32 0.0, %v3779
      %v3781 = vpop.f32.mrb[0].mxu0
      %3782 = vdwg.mxu0
      %3783 = vmatprep.subr.bf16.mxu0 0
      %3784 = vmatpush1.bf16.msra.mxu0 %v3494
      %3785 = vmatprep.subr.bf16.mxu0 0
      %3786 = vmatpush1.bf16.msra.mxu0 %v3495
      %3787 = vmatprep.subr.bf16.mxu0 0
      %3788 = vmatpush1.bf16.msra.mxu0 %v3496
      %3789 = vmatprep.subr.bf16.mxu0 0
      %3790 = vmatpush1.bf16.msra.mxu0 %v3497
      %3791 = vmatprep.subr.bf16.mxu0 0
      %3792 = vmatpush1.bf16.msra.mxu0 %v3498
      %3793 = vmatprep.subr.bf16.mxu0 0
      %3794 = vmatpush1.bf16.msra.mxu0 %v3499
      %3795 = vmatprep.subr.bf16.mxu0 0
      %3796 = vmatpush1.bf16.msra.mxu0 %v3500
      %3797 = vmatprep.subr.bf16.mxu0 0
      %3798 = vmatpush1.bf16.msra.mxu0 %v3501
      %3799 = vmatprep.subr.bf16.mxu0 0
      %3800 = vmatpush1.bf16.msra.mxu0 %v3502
      %3801 = vmatprep.subr.bf16.mxu0 0
      %3802 = vmatpush1.bf16.msra.mxu0 %v3503
      %3803 = vmatprep.subr.bf16.mxu0 0
      %3804 = vmatpush1.bf16.msra.mxu0 %v3504
      %3805 = vmatprep.subr.bf16.mxu0 0
      %3806 = vmatpush1.bf16.msra.mxu0 %v3505
      %3807 = vmatprep.subr.bf16.mxu0 0
      %3808 = vmatpush1.bf16.msra.mxu0 %v3506
      %3809 = vmatprep.subr.bf16.mxu0 0
      %3810 = vmatpush1.bf16.msra.mxu0 %v3507
      %3811 = vmatprep.subr.bf16.mxu0 0
      %3812 = vmatpush1.bf16.msra.mxu0 %v3508
      %3813 = vmatprep.subr.bf16.mxu0 0
      %3814 = vmatpush1.bf16.msra.mxu0 %v3509
      %3815 = vmatprep.mubr.bf16.mxu0 %v2905
      %3816 = vmatmul.mubr.bf16.gmra.mrb[0].mxu0 %v2904
      %v3817 = vpop.f32.mrb[0].mxu0
      %v3818 = vadd.f32 %v3657, %v3817
      %v3819 = vpop.f32.mrb[0].mxu0
      %v3820 = vpop.f32.mrb[0].mxu0
      %v3821 = vadd.f32 %v3660, %v3820
      %v3822 = vpop.f32.mrb[0].mxu0
      %3823 = vmatprep.mubr.bf16.mxu0 %v2914
      %3824 = vmatmul.mubr.bf16.gmra.mrb[0].mxu0 %v2913
      %v3825 = vpop.f32.mrb[0].mxu0
      %v3826 = vadd.f32 %v3665, %v3825
      %v3827 = vpop.f32.mrb[0].mxu0
      %v3828 = vpop.f32.mrb[0].mxu0
      %v3829 = vadd.f32 %v3668, %v3828
      %v3830 = vpop.f32.mrb[0].mxu0
      %3831 = vmatprep.mubr.bf16.mxu0 %v2923
      %3832 = vmatmul.mubr.bf16.gmra.mrb[0].mxu0 %v2922
      %v3833 = vpop.f32.mrb[0].mxu0
      %v3834 = vadd.f32 %v3673, %v3833
      %v3835 = vpop.f32.mrb[0].mxu0
      %v3836 = vpop.f32.mrb[0].mxu0
      %v3837 = vadd.f32 %v3676, %v3836
      %v3838 = vpop.f32.mrb[0].mxu0
      %3839 = vmatprep.mubr.bf16.mxu0 %v2932
      %3840 = vmatmul.mubr.bf16.gmra.mrb[0].mxu0 %v2931
      %v3841 = vpop.f32.mrb[0].mxu0
      %v3842 = vadd.f32 %v3681, %v3841
      %v3843 = vpop.f32.mrb[0].mxu0
      %v3844 = vpop.f32.mrb[0].mxu0
      %v3845 = vadd.f32 %v3684, %v3844
      %v3846 = vpop.f32.mrb[0].mxu0
      %3847 = vmatprep.mubr.bf16.mxu0 %v2941
      %3848 = vmatmul.mubr.bf16.gmra.mrb[0].mxu0 %v2940
      %v3849 = vpop.f32.mrb[0].mxu0
      %v3850 = vadd.f32 %v3689, %v3849
      %v3851 = vpop.f32.mrb[0].mxu0
      %v3852 = vpop.f32.mrb[0].mxu0
      %v3853 = vadd.f32 %v3692, %v3852
      %v3854 = vpop.f32.mrb[0].mxu0
      %3855 = vmatprep.mubr.bf16.mxu0 %v2950
      %3856 = vmatmul.mubr.bf16.gmra.mrb[0].mxu0 %v2949
      %v3857 = vpop.f32.mrb[0].mxu0
      %v3858 = vadd.f32 %v3697, %v3857
      %v3859 = vpop.f32.mrb[0].mxu0
      %v3860 = vpop.f32.mrb[0].mxu0
      %v3861 = vadd.f32 %v3700, %v3860
      %v3862 = vpop.f32.mrb[0].mxu0
      %3863 = vmatprep.mubr.bf16.mxu0 %v2959
      %3864 = vmatmul.mubr.bf16.gmra.mrb[0].mxu0 %v2958
      %v3865 = vpop.f32.mrb[0].mxu0
      %v3866 = vadd.f32 %v3705, %v3865
      %v3867 = vpop.f32.mrb[0].mxu0
      %v3868 = vpop.f32.mrb[0].mxu0
      %v3869 = vadd.f32 %v3708, %v3868
      %v3870 = vpop.f32.mrb[0].mxu0
      %3871 = vmatprep.mubr.bf16.mxu0 %v2968
      %3872 = vmatmul.mubr.bf16.gmra.mrb[0].mxu0 %v2967
      %v3873 = vpop.f32.mrb[0].mxu0
      %v3874 = vadd.f32 %v3713, %v3873
      %v3875 = vpop.f32.mrb[0].mxu0
      %v3876 = vpop.f32.mrb[0].mxu0
      %v3877 = vadd.f32 %v3716, %v3876
      %v3878 = vpop.f32.mrb[0].mxu0
      %3879 = vmatprep.mubr.bf16.mxu0 %v2977
      %3880 = vmatmul.mubr.bf16.gmra.mrb[0].mxu0 %v2976
      %v3881 = vpop.f32.mrb[0].mxu0
      %v3882 = vadd.f32 %v3721, %v3881
      %v3883 = vpop.f32.mrb[0].mxu0
      %v3884 = vpop.f32.mrb[0].mxu0
      %v3885 = vadd.f32 %v3724, %v3884
      %v3886 = vpop.f32.mrb[0].mxu0
      %3887 = vmatprep.mubr.bf16.mxu0 %v2986
      %3888 = vmatmul.mubr.bf16.gmra.mrb[0].mxu0 %v2985
      %v3889 = vpop.f32.mrb[0].mxu0
      %v3890 = vadd.f32 %v3729, %v3889
      %v3891 = vpop.f32.mrb[0].mxu0
      %v3892 = vpop.f32.mrb[0].mxu0
      %v3893 = vadd.f32 %v3732, %v3892
      %v3894 = vpop.f32.mrb[0].mxu0
      %3895 = vmatprep.mubr.bf16.mxu0 %v2995
      %3896 = vmatmul.mubr.bf16.gmra.mrb[0].mxu0 %v2994
      %v3897 = vpop.f32.mrb[0].mxu0
      %v3898 = vadd.f32 %v3737, %v3897
      %v3899 = vpop.f32.mrb[0].mxu0
      %v3900 = vpop.f32.mrb[0].mxu0
      %v3901 = vadd.f32 %v3740, %v3900
      %v3902 = vpop.f32.mrb[0].mxu0
      %3903 = vmatprep.mubr.bf16.mxu0 %v3004
      %3904 = vmatmul.mubr.bf16.gmra.mrb[0].mxu0 %v3003
      %v3905 = vpop.f32.mrb[0].mxu0
      %v3906 = vadd.f32 %v3745, %v3905
      %v3907 = vpop.f32.mrb[0].mxu0
      %v3908 = vpop.f32.mrb[0].mxu0
      %v3909 = vadd.f32 %v3748, %v3908
      %v3910 = vpop.f32.mrb[0].mxu0
      %3911 = vmatprep.mubr.bf16.mxu0 %v3013
      %3912 = vmatmul.mubr.bf16.gmra.mrb[0].mxu0 %v3012
      %v3913 = vpop.f32.mrb[0].mxu0
      %v3914 = vadd.f32 %v3753, %v3913
      %v3915 = vpop.f32.mrb[0].mxu0
      %v3916 = vpop.f32.mrb[0].mxu0
      %v3917 = vadd.f32 %v3756, %v3916
      %v3918 = vpop.f32.mrb[0].mxu0
      %3919 = vmatprep.mubr.bf16.mxu0 %v3022
      %3920 = vmatmul.mubr.bf16.gmra.mrb[0].mxu0 %v3021
      %v3921 = vpop.f32.mrb[0].mxu0
      %v3922 = vadd.f32 %v3761, %v3921
      %v3923 = vpop.f32.mrb[0].mxu0
      %v3924 = vpop.f32.mrb[0].mxu0
      %v3925 = vadd.f32 %v3764, %v3924
      %v3926 = vpop.f32.mrb[0].mxu0
      %3927 = vmatprep.mubr.bf16.mxu0 %v3031
      %3928 = vmatmul.mubr.bf16.gmra.mrb[0].mxu0 %v3030
      %v3929 = vpop.f32.mrb[0].mxu0
      %v3930 = vadd.f32 %v3769, %v3929
      %v3931 = vpop.f32.mrb[0].mxu0
      %v3932 = vpop.f32.mrb[0].mxu0
      %v3933 = vadd.f32 %v3772, %v3932
      %v3934 = vpop.f32.mrb[0].mxu0
      %3935 = vmatprep.mubr.bf16.mxu0 %v3040
      %3936 = vmatmul.mubr.bf16.gmra.mrb[0].mxu0 %v3039
      %v3937 = vpop.f32.mrb[0].mxu0
      %v3938 = vadd.f32 %v3777, %v3937
      %v3939 = vpop.f32.mrb[0].mxu0
      %v3940 = vpop.f32.mrb[0].mxu0
      %v3941 = vadd.f32 %v3780, %v3940
      %v3942 = vpop.f32.mrb[0].mxu0
      %3943 = vdwg.mxu0
      %3944 = vmatprep.subr.bf16.mxu0 0
      %3945 = vmatpush1.bf16.msra.mxu0 %v3510
      %3946 = vmatprep.subr.bf16.mxu0 0
      %3947 = vmatpush1.bf16.msra.mxu0 %v3511
      %3948 = vmatprep.subr.bf16.mxu0 0
      %3949 = vmatpush1.bf16.msra.mxu0 %v3512
      %3950 = vmatprep.subr.bf16.mxu0 0
      %3951 = vmatpush1.bf16.msra.mxu0 %v3513
      %3952 = vmatprep.subr.bf16.mxu0 0
      %3953 = vmatpush1.bf16.msra.mxu0 %v3514
      %3954 = vmatprep.subr.bf16.mxu0 0
      %3955 = vmatpush1.bf16.msra.mxu0 %v3515
      %3956 = vmatprep.subr.bf16.mxu0 0
      %3957 = vmatpush1.bf16.msra.mxu0 %v3516
      %3958 = vmatprep.subr.bf16.mxu0 0
      %3959 = vmatpush1.bf16.msra.mxu0 %v3517
      %3960 = vmatprep.subr.bf16.mxu0 0
      %3961 = vmatpush1.bf16.msra.mxu0 %v3518
      %3962 = vmatprep.subr.bf16.mxu0 0
      %3963 = vmatpush1.bf16.msra.mxu0 %v3519
      %3964 = vmatprep.subr.bf16.mxu0 0
      %3965 = vmatpush1.bf16.msra.mxu0 %v3520
      %3966 = vmatprep.subr.bf16.mxu0 0
      %3967 = vmatpush1.bf16.msra.mxu0 %v3521
      %3968 = vmatprep.subr.bf16.mxu0 0
      %3969 = vmatpush1.bf16.msra.mxu0 %v3522
      %3970 = vmatprep.subr.bf16.mxu0 0
      %3971 = vmatpush1.bf16.msra.mxu0 %v3523
      %3972 = vmatprep.subr.bf16.mxu0 0
      %3973 = vmatpush1.bf16.msra.mxu0 %v3524
      %3974 = vmatprep.subr.bf16.mxu0 0
      %3975 = vmatpush1.bf16.msra.mxu0 %v3525
      %3976 = vmatprep.mubr.bf16.mxu0 %v2907
      %3977 = vmatmul.mubr.bf16.gmra.mrb[0].mxu0 %v2906
      %v3978 = vpop.f32.mrb[0].mxu0
      %v3979 = vadd.f32 %v3818, %v3978
      %v3980 = vpop.f32.mrb[0].mxu0
      %v3981 = vpop.f32.mrb[0].mxu0
      %v3982 = vadd.f32 %v3821, %v3981
      %v3983 = vpop.f32.mrb[0].mxu0
      %3984 = vmatprep.mubr.bf16.mxu0 %v2916
      %3985 = vmatmul.mubr.bf16.gmra.mrb[0].mxu0 %v2915
      %v3986 = vpop.f32.mrb[0].mxu0
      %v3987 = vadd.f32 %v3826, %v3986
      %v3988 = vpop.f32.mrb[0].mxu0
      %v3989 = vpop.f32.mrb[0].mxu0
      %v3990 = vadd.f32 %v3829, %v3989
      %v3991 = vpop.f32.mrb[0].mxu0
      %3992 = vmatprep.mubr.bf16.mxu0 %v2925
      %3993 = vmatmul.mubr.bf16.gmra.mrb[0].mxu0 %v2924
      %v3994 = vpop.f32.mrb[0].mxu0
      %v3995 = vadd.f32 %v3834, %v3994
      %v3996 = vpop.f32.mrb[0].mxu0
      %v3997 = vpop.f32.mrb[0].mxu0
      %v3998 = vadd.f32 %v3837, %v3997
      %v3999 = vpop.f32.mrb[0].mxu0
      %4000 = vmatprep.mubr.bf16.mxu0 %v2934
      %4001 = vmatmul.mubr.bf16.gmra.mrb[0].mxu0 %v2933
      %v4002 = vpop.f32.mrb[0].mxu0
      %v4003 = vadd.f32 %v3842, %v4002
      %v4004 = vpop.f32.mrb[0].mxu0
      %v4005 = vpop.f32.mrb[0].mxu0
      %v4006 = vadd.f32 %v3845, %v4005
      %v4007 = vpop.f32.mrb[0].mxu0
      %4008 = vmatprep.mubr.bf16.mxu0 %v2943
      %4009 = vmatmul.mubr.bf16.gmra.mrb[0].mxu0 %v2942
      %v4010 = vpop.f32.mrb[0].mxu0
      %v4011 = vadd.f32 %v3850, %v4010
      %v4012 = vpop.f32.mrb[0].mxu0
      %v4013 = vpop.f32.mrb[0].mxu0
      %v4014 = vadd.f32 %v3853, %v4013
      %v4015 = vpop.f32.mrb[0].mxu0
      %4016 = vmatprep.mubr.bf16.mxu0 %v2952
      %4017 = vmatmul.mubr.bf16.gmra.mrb[0].mxu0 %v2951
      %v4018 = vpop.f32.mrb[0].mxu0
      %v4019 = vadd.f32 %v3858, %v4018
      %v4020 = vpop.f32.mrb[0].mxu0
      %v4021 = vpop.f32.mrb[0].mxu0
      %v4022 = vadd.f32 %v3861, %v4021
      %v4023 = vpop.f32.mrb[0].mxu0
      %4024 = vmatprep.mubr.bf16.mxu0 %v2961
      %4025 = vmatmul.mubr.bf16.gmra.mrb[0].mxu0 %v2960
      %v4026 = vpop.f32.mrb[0].mxu0
      %v4027 = vadd.f32 %v3866, %v4026
      %v4028 = vpop.f32.mrb[0].mxu0
      %v4029 = vpop.f32.mrb[0].mxu0
      %v4030 = vadd.f32 %v3869, %v4029
      %v4031 = vpop.f32.mrb[0].mxu0
      %4032 = vmatprep.mubr.bf16.mxu0 %v2970
      %4033 = vmatmul.mubr.bf16.gmra.mrb[0].mxu0 %v2969
      %v4034 = vpop.f32.mrb[0].mxu0
      %v4035 = vadd.f32 %v3874, %v4034
      %v4036 = vpop.f32.mrb[0].mxu0
      %v4037 = vpop.f32.mrb[0].mxu0
      %v4038 = vadd.f32 %v3877, %v4037
      %v4039 = vpop.f32.mrb[0].mxu0
      %4040 = vmatprep.mubr.bf16.mxu0 %v2979
      %4041 = vmatmul.mubr.bf16.gmra.mrb[0].mxu0 %v2978
      %v4042 = vpop.f32.mrb[0].mxu0
      %v4043 = vadd.f32 %v3882, %v4042
      %v4044 = vpop.f32.mrb[0].mxu0
      %v4045 = vpop.f32.mrb[0].mxu0
      %v4046 = vadd.f32 %v3885, %v4045
      %v4047 = vpop.f32.mrb[0].mxu0
      %4048 = vmatprep.mubr.bf16.mxu0 %v2988
      %4049 = vmatmul.mubr.bf16.gmra.mrb[0].mxu0 %v2987
      %v4050 = vpop.f32.mrb[0].mxu0
      %v4051 = vadd.f32 %v3890, %v4050
      %v4052 = vpop.f32.mrb[0].mxu0
      %v4053 = vpop.f32.mrb[0].mxu0
      %v4054 = vadd.f32 %v3893, %v4053
      %v4055 = vpop.f32.mrb[0].mxu0
      %4056 = vmatprep.mubr.bf16.mxu0 %v2997
      %4057 = vmatmul.mubr.bf16.gmra.mrb[0].mxu0 %v2996
      %v4058 = vpop.f32.mrb[0].mxu0
      %v4059 = vadd.f32 %v3898, %v4058
      %v4060 = vpop.f32.mrb[0].mxu0
      %v4061 = vpop.f32.mrb[0].mxu0
      %v4062 = vadd.f32 %v3901, %v4061
      %v4063 = vpop.f32.mrb[0].mxu0
      %4064 = vmatprep.mubr.bf16.mxu0 %v3006
      %4065 = vmatmul.mubr.bf16.gmra.mrb[0].mxu0 %v3005
      %v4066 = vpop.f32.mrb[0].mxu0
      %v4067 = vadd.f32 %v3906, %v4066
      %v4068 = vpop.f32.mrb[0].mxu0
      %v4069 = vpop.f32.mrb[0].mxu0
      %v4070 = vadd.f32 %v3909, %v4069
      %v4071 = vpop.f32.mrb[0].mxu0
      %4072 = vmatprep.mubr.bf16.mxu0 %v3015
      %4073 = vmatmul.mubr.bf16.gmra.mrb[0].mxu0 %v3014
      %v4074 = vpop.f32.mrb[0].mxu0
      %v4075 = vadd.f32 %v3914, %v4074
      %v4076 = vpop.f32.mrb[0].mxu0
      %v4077 = vpop.f32.mrb[0].mxu0
      %v4078 = vadd.f32 %v3917, %v4077
      %v4079 = vpop.f32.mrb[0].mxu0
      %4080 = vmatprep.mubr.bf16.mxu0 %v3024
      %4081 = vmatmul.mubr.bf16.gmra.mrb[0].mxu0 %v3023
      %v4082 = vpop.f32.mrb[0].mxu0
      %v4083 = vadd.f32 %v3922, %v4082
      %v4084 = vpop.f32.mrb[0].mxu0
      %v4085 = vpop.f32.mrb[0].mxu0
      %v4086 = vadd.f32 %v3925, %v4085
      %v4087 = vpop.f32.mrb[0].mxu0
      %4088 = vmatprep.mubr.bf16.mxu0 %v3033
      %4089 = vmatmul.mubr.bf16.gmra.mrb[0].mxu0 %v3032
      %v4090 = vpop.f32.mrb[0].mxu0
      %v4091 = vadd.f32 %v3930, %v4090
      %v4092 = vpop.f32.mrb[0].mxu0
      %v4093 = vpop.f32.mrb[0].mxu0
      %v4094 = vadd.f32 %v3933, %v4093
      %v4095 = vpop.f32.mrb[0].mxu0
      %4096 = vmatprep.mubr.bf16.mxu0 %v3042
      %4097 = vmatmul.mubr.bf16.gmra.mrb[0].mxu0 %v3041
      %v4098 = vpop.f32.mrb[0].mxu0
      %v4099 = vadd.f32 %v3938, %v4098
      %v4100 = vpop.f32.mrb[0].mxu0
      %v4101 = vpop.f32.mrb[0].mxu0
      %v4102 = vadd.f32 %v3941, %v4101
      %v4103 = vpop.f32.mrb[0].mxu0
      %4104 = vdwg.mxu0
      %4105 = vmatprep.subr.bf16.mxu0 0
      %4106 = vmatpush1.bf16.msra.mxu0 %v3526
      %4107 = vmatprep.subr.bf16.mxu0 0
      %4108 = vmatpush1.bf16.msra.mxu0 %v3527
      %4109 = vmatprep.subr.bf16.mxu0 0
      %4110 = vmatpush1.bf16.msra.mxu0 %v3528
      %4111 = vmatprep.subr.bf16.mxu0 0
      %4112 = vmatpush1.bf16.msra.mxu0 %v3529
      %4113 = vmatprep.subr.bf16.mxu0 0
      %4114 = vmatpush1.bf16.msra.mxu0 %v3530
      %4115 = vmatprep.subr.bf16.mxu0 0
      %4116 = vmatpush1.bf16.msra.mxu0 %v3531
      %4117 = vmatprep.subr.bf16.mxu0 0
      %4118 = vmatpush1.bf16.msra.mxu0 %v3532
      %4119 = vmatprep.subr.bf16.mxu0 0
      %4120 = vmatpush1.bf16.msra.mxu0 %v3533
      %4121 = vmatprep.subr.bf16.mxu0 0
      %4122 = vmatpush1.bf16.msra.mxu0 %v3534
      %4123 = vmatprep.subr.bf16.mxu0 0
      %4124 = vmatpush1.bf16.msra.mxu0 %v3535
      %4125 = vmatprep.subr.bf16.mxu0 0
      %4126 = vmatpush1.bf16.msra.mxu0 %v3536
      %4127 = vmatprep.subr.bf16.mxu0 0
      %4128 = vmatpush1.bf16.msra.mxu0 %v3537
      %4129 = vmatprep.subr.bf16.mxu0 0
      %4130 = vmatpush1.bf16.msra.mxu0 %v3538
      %4131 = vmatprep.subr.bf16.mxu0 0
      %4132 = vmatpush1.bf16.msra.mxu0 %v3539
      %4133 = vmatprep.subr.bf16.mxu0 0
      %4134 = vmatpush1.bf16.msra.mxu0 %v3540
      %4135 = vmatprep.subr.bf16.mxu0 0
      %4136 = vmatpush1.bf16.msra.mxu0 %v3541
      %4137 = vmatprep.mubr.bf16.mxu0 %v2909
      %4138 = vmatmul.mubr.bf16.gmra.mrb[0].mxu0 %v2908
      %v4139 = vpop.f32.mrb[0].mxu0
      %v4140 = vadd.f32 %v3979, %v4139
      %v4141 = vpop.f32.mrb[0].mxu0
      %v4142 = vpop.f32.mrb[0].mxu0
      %v4143 = vadd.f32 %v3982, %v4142
      %v4144 = vpop.f32.mrb[0].mxu0
      %4145 = vmatprep.mubr.bf16.mxu0 %v2918
      %4146 = vmatmul.mubr.bf16.gmra.mrb[0].mxu0 %v2917
      %v4147 = vpop.f32.mrb[0].mxu0
      %v4148 = vadd.f32 %v3987, %v4147
      %v4149 = vpop.f32.mrb[0].mxu0
      %v4150 = vpop.f32.mrb[0].mxu0
      %v4151 = vadd.f32 %v3990, %v4150
      %v4152 = vpop.f32.mrb[0].mxu0
      %4153 = vmatprep.mubr.bf16.mxu0 %v2927
      %4154 = vmatmul.mubr.bf16.gmra.mrb[0].mxu0 %v2926
      %v4155 = vpop.f32.mrb[0].mxu0
      %v4156 = vadd.f32 %v3995, %v4155
      %v4157 = vpop.f32.mrb[0].mxu0
      %v4158 = vpop.f32.mrb[0].mxu0
      %v4159 = vadd.f32 %v3998, %v4158
      %v4160 = vpop.f32.mrb[0].mxu0
      %4161 = vmatprep.mubr.bf16.mxu0 %v2936
      %4162 = vmatmul.mubr.bf16.gmra.mrb[0].mxu0 %v2935
      %v4163 = vpop.f32.mrb[0].mxu0
      %v4164 = vadd.f32 %v4003, %v4163
      %v4165 = vpop.f32.mrb[0].mxu0
      %v4166 = vpop.f32.mrb[0].mxu0
      %v4167 = vadd.f32 %v4006, %v4166
      %v4168 = vpop.f32.mrb[0].mxu0
      %4169 = vmatprep.mubr.bf16.mxu0 %v2945
      %4170 = vmatmul.mubr.bf16.gmra.mrb[0].mxu0 %v2944
      %v4171 = vpop.f32.mrb[0].mxu0
      %v4172 = vadd.f32 %v4011, %v4171
      %v4173 = vpop.f32.mrb[0].mxu0
      %v4174 = vpop.f32.mrb[0].mxu0
      %v4175 = vadd.f32 %v4014, %v4174
      %v4176 = vpop.f32.mrb[0].mxu0
      %4177 = vmatprep.mubr.bf16.mxu0 %v2954
      %4178 = vmatmul.mubr.bf16.gmra.mrb[0].mxu0 %v2953
      %v4179 = vpop.f32.mrb[0].mxu0
      %v4180 = vadd.f32 %v4019, %v4179
      %v4181 = vpop.f32.mrb[0].mxu0
      %v4182 = vpop.f32.mrb[0].mxu0
      %v4183 = vadd.f32 %v4022, %v4182
      %v4184 = vpop.f32.mrb[0].mxu0
      %4185 = vmatprep.mubr.bf16.mxu0 %v2963
      %4186 = vmatmul.mubr.bf16.gmra.mrb[0].mxu0 %v2962
      %v4187 = vpop.f32.mrb[0].mxu0
      %v4188 = vadd.f32 %v4027, %v4187
      %v4189 = vpop.f32.mrb[0].mxu0
      %v4190 = vpop.f32.mrb[0].mxu0
      %v4191 = vadd.f32 %v4030, %v4190
      %v4192 = vpop.f32.mrb[0].mxu0
      %4193 = vmatprep.mubr.bf16.mxu0 %v2972
      %4194 = vmatmul.mubr.bf16.gmra.mrb[0].mxu0 %v2971
      %v4195 = vpop.f32.mrb[0].mxu0
      %v4196 = vadd.f32 %v4035, %v4195
      %v4197 = vpop.f32.mrb[0].mxu0
      %v4198 = vpop.f32.mrb[0].mxu0
      %v4199 = vadd.f32 %v4038, %v4198
      %v4200 = vpop.f32.mrb[0].mxu0
      %4201 = vmatprep.mubr.bf16.mxu0 %v2981
      %4202 = vmatmul.mubr.bf16.gmra.mrb[0].mxu0 %v2980
      %v4203 = vpop.f32.mrb[0].mxu0
      %v4204 = vadd.f32 %v4043, %v4203
      %v4205 = vpop.f32.mrb[0].mxu0
      %v4206 = vpop.f32.mrb[0].mxu0
      %v4207 = vadd.f32 %v4046, %v4206
      %v4208 = vpop.f32.mrb[0].mxu0
      %4209 = vmatprep.mubr.bf16.mxu0 %v2990
      %4210 = vmatmul.mubr.bf16.gmra.mrb[0].mxu0 %v2989
      %v4211 = vpop.f32.mrb[0].mxu0
      %v4212 = vadd.f32 %v4051, %v4211
      %v4213 = vpop.f32.mrb[0].mxu0
      %v4214 = vpop.f32.mrb[0].mxu0
      %v4215 = vadd.f32 %v4054, %v4214
      %v4216 = vpop.f32.mrb[0].mxu0
      %4217 = vmatprep.mubr.bf16.mxu0 %v2999
      %4218 = vmatmul.mubr.bf16.gmra.mrb[0].mxu0 %v2998
      %v4219 = vpop.f32.mrb[0].mxu0
      %v4220 = vadd.f32 %v4059, %v4219
      %v4221 = vpop.f32.mrb[0].mxu0
      %v4222 = vpop.f32.mrb[0].mxu0
      %v4223 = vadd.f32 %v4062, %v4222
      %v4224 = vpop.f32.mrb[0].mxu0
      %4225 = vmatprep.mubr.bf16.mxu0 %v3008
      %4226 = vmatmul.mubr.bf16.gmra.mrb[0].mxu0 %v3007
      %v4227 = vpop.f32.mrb[0].mxu0
      %v4228 = vadd.f32 %v4067, %v4227
      %v4229 = vpop.f32.mrb[0].mxu0
      %v4230 = vpop.f32.mrb[0].mxu0
      %v4231 = vadd.f32 %v4070, %v4230
      %v4232 = vpop.f32.mrb[0].mxu0
      %4233 = vmatprep.mubr.bf16.mxu0 %v3017
      %4234 = vmatmul.mubr.bf16.gmra.mrb[0].mxu0 %v3016
      %v4235 = vpop.f32.mrb[0].mxu0
      %v4236 = vadd.f32 %v4075, %v4235
      %v4237 = vpop.f32.mrb[0].mxu0
      %v4238 = vpop.f32.mrb[0].mxu0
      %v4239 = vadd.f32 %v4078, %v4238
      %v4240 = vpop.f32.mrb[0].mxu0
      %4241 = vmatprep.mubr.bf16.mxu0 %v3026
      %4242 = vmatmul.mubr.bf16.gmra.mrb[0].mxu0 %v3025
      %v4243 = vpop.f32.mrb[0].mxu0
      %v4244 = vadd.f32 %v4083, %v4243
      %v4245 = vpop.f32.mrb[0].mxu0
      %v4246 = vpop.f32.mrb[0].mxu0
      %v4247 = vadd.f32 %v4086, %v4246
      %v4248 = vpop.f32.mrb[0].mxu0
      %4249 = vmatprep.mubr.bf16.mxu0 %v3035
      %4250 = vmatmul.mubr.bf16.gmra.mrb[0].mxu0 %v3034
      %v4251 = vpop.f32.mrb[0].mxu0
      %v4252 = vadd.f32 %v4091, %v4251
      %v4253 = vpop.f32.mrb[0].mxu0
      %v4254 = vpop.f32.mrb[0].mxu0
      %v4255 = vadd.f32 %v4094, %v4254
      %v4256 = vpop.f32.mrb[0].mxu0
      %4257 = vmatprep.mubr.bf16.mxu0 %v3044
      %4258 = vmatmul.mubr.bf16.gmra.mrb[0].mxu0 %v3043
      %v4259 = vpop.f32.mrb[0].mxu0
      %v4260 = vadd.f32 %v4099, %v4259
      %v4261 = vpop.f32.mrb[0].mxu0
      %v4262 = vpop.f32.mrb[0].mxu0
      %v4263 = vadd.f32 %v4102, %v4262
      %v4264 = vpop.f32.mrb[0].mxu0
      %4265 = vdwg.mxu0
      %4266 = vmatprep.subr.bf16.mxu0 0
      %4267 = vmatpush1.bf16.msra.mxu0 %v3542
      %4268 = vmatprep.subr.bf16.mxu0 0
      %4269 = vmatpush1.bf16.msra.mxu0 %v3543
      %4270 = vmatprep.subr.bf16.mxu0 0
      %4271 = vmatpush1.bf16.msra.mxu0 %v3544
      %4272 = vmatprep.subr.bf16.mxu0 0
      %4273 = vmatpush1.bf16.msra.mxu0 %v3545
      %4274 = vmatprep.subr.bf16.mxu0 0
      %4275 = vmatpush1.bf16.msra.mxu0 %v3546
      %4276 = vmatprep.subr.bf16.mxu0 0
      %4277 = vmatpush1.bf16.msra.mxu0 %v3547
      %4278 = vmatprep.subr.bf16.mxu0 0
      %4279 = vmatpush1.bf16.msra.mxu0 %v3548
      %4280 = vmatprep.subr.bf16.mxu0 0
      %4281 = vmatpush1.bf16.msra.mxu0 %v3549
      %4282 = vmatprep.subr.bf16.mxu0 0
      %4283 = vmatpush1.bf16.msra.mxu0 0
      %4284 = vmatprep.subr.bf16.mxu0 0
      %4285 = vmatpush1.bf16.msra.mxu0 0
      %4286 = vmatprep.subr.bf16.mxu0 0
      %4287 = vmatpush1.bf16.msra.mxu0 0
      %4288 = vmatprep.subr.bf16.mxu0 0
      %4289 = vmatpush1.bf16.msra.mxu0 0
      %4290 = vmatprep.subr.bf16.mxu0 0
      %4291 = vmatpush1.bf16.msra.mxu0 0
      %4292 = vmatprep.subr.bf16.mxu0 0
      %4293 = vmatpush1.bf16.msra.mxu0 0
      %4294 = vmatprep.subr.bf16.mxu0 0
      %4295 = vmatpush1.bf16.msra.mxu0 0
      %4296 = vmatprep.subr.bf16.mxu0 0
      %4297 = vmatpush1.bf16.msra.mxu0 0
      %4298 = vmatprep.mubr.bf16.mxu0 0
      %4299 = vmatmul.mubr.bf16.gmra.mrb[0].mxu0 %v2910
      %v4300 = vpop.f32.mrb[0].mxu0
      %v4301 = vadd.f32 %v4140, %v4300
      %v4302 = vpop.f32.mrb[0].mxu0
      %v4303 = vpop.f32.mrb[0].mxu0
      %v4304 = vadd.f32 %v4143, %v4303
      %v4305 = vpop.f32.mrb[0].mxu0
      %4306 = vmatprep.mubr.bf16.mxu0 0
      %4307 = vmatmul.mubr.bf16.gmra.mrb[0].mxu0 %v2919
      %v4308 = vpop.f32.mrb[0].mxu0
      %v4309 = vadd.f32 %v4148, %v4308
      %v4310 = vpop.f32.mrb[0].mxu0
      %v4311 = vpop.f32.mrb[0].mxu0
      %v4312 = vadd.f32 %v4151, %v4311
      %v4313 = vpop.f32.mrb[0].mxu0
      %4314 = vmatprep.mubr.bf16.mxu0 0
      %4315 = vmatmul.mubr.bf16.gmra.mrb[0].mxu0 %v2928
      %v4316 = vpop.f32.mrb[0].mxu0
      %v4317 = vadd.f32 %v4156, %v4316
      %v4318 = vpop.f32.mrb[0].mxu0
      %v4319 = vpop.f32.mrb[0].mxu0
      %v4320 = vadd.f32 %v4159, %v4319
      %v4321 = vpop.f32.mrb[0].mxu0
      %4322 = vmatprep.mubr.bf16.mxu0 0
      %4323 = vmatmul.mubr.bf16.gmra.mrb[0].mxu0 %v2937
      %v4324 = vpop.f32.mrb[0].mxu0
      %v4325 = vadd.f32 %v4164, %v4324
      %v4326 = vpop.f32.mrb[0].mxu0
      %v4327 = vpop.f32.mrb[0].mxu0
      %v4328 = vadd.f32 %v4167, %v4327
      %v4329 = vpop.f32.mrb[0].mxu0
      %4330 = vmatprep.mubr.bf16.mxu0 0
      %4331 = vmatmul.mubr.bf16.gmra.mrb[0].mxu0 %v2946
      %v4332 = vpop.f32.mrb[0].mxu0
      %v4333 = vadd.f32 %v4172, %v4332
      %v4334 = vpop.f32.mrb[0].mxu0
      %v4335 = vpop.f32.mrb[0].mxu0
      %v4336 = vadd.f32 %v4175, %v4335
      %v4337 = vpop.f32.mrb[0].mxu0
      %4338 = vmatprep.mubr.bf16.mxu0 0
      %4339 = vmatmul.mubr.bf16.gmra.mrb[0].mxu0 %v2955
      %v4340 = vpop.f32.mrb[0].mxu0
      %v4341 = vadd.f32 %v4180, %v4340
      %v4342 = vpop.f32.mrb[0].mxu0
      %v4343 = vpop.f32.mrb[0].mxu0
      %v4344 = vadd.f32 %v4183, %v4343
      %v4345 = vpop.f32.mrb[0].mxu0
      %4346 = vmatprep.mubr.bf16.mxu0 0
      %4347 = vmatmul.mubr.bf16.gmra.mrb[0].mxu0 %v2964
      %v4348 = vpop.f32.mrb[0].mxu0
      %v4349 = vadd.f32 %v4188, %v4348
      %v4350 = vpop.f32.mrb[0].mxu0
      %v4351 = vpop.f32.mrb[0].mxu0
      %v4352 = vadd.f32 %v4191, %v4351
      %v4353 = vpop.f32.mrb[0].mxu0
      %4354 = vmatprep.mubr.bf16.mxu0 0
      %4355 = vmatmul.mubr.bf16.gmra.mrb[0].mxu0 %v2973
      %v4356 = vpop.f32.mrb[0].mxu0
      %v4357 = vadd.f32 %v4196, %v4356
      %v4358 = vpop.f32.mrb[0].mxu0
      %v4359 = vpop.f32.mrb[0].mxu0
      %v4360 = vadd.f32 %v4199, %v4359
      %v4361 = vpop.f32.mrb[0].mxu0
      %4362 = vmatprep.mubr.bf16.mxu0 0
      %4363 = vmatmul.mubr.bf16.gmra.mrb[0].mxu0 %v2982
      %v4364 = vpop.f32.mrb[0].mxu0
      %v4365 = vadd.f32 %v4204, %v4364
      %v4366 = vpop.f32.mrb[0].mxu0
      %v4367 = vpop.f32.mrb[0].mxu0
      %v4368 = vadd.f32 %v4207, %v4367
      %v4369 = vpop.f32.mrb[0].mxu0
      %4370 = vmatprep.mubr.bf16.mxu0 0
      %4371 = vmatmul.mubr.bf16.gmra.mrb[0].mxu0 %v2991
      %v4372 = vpop.f32.mrb[0].mxu0
      %v4373 = vadd.f32 %v4212, %v4372
      %v4374 = vpop.f32.mrb[0].mxu0
      %v4375 = vpop.f32.mrb[0].mxu0
      %v4376 = vadd.f32 %v4215, %v4375
      %v4377 = vpop.f32.mrb[0].mxu0
      %4378 = vmatprep.mubr.bf16.mxu0 0
      %4379 = vmatmul.mubr.bf16.gmra.mrb[0].mxu0 %v3000
      %v4380 = vpop.f32.mrb[0].mxu0
      %v4381 = vadd.f32 %v4220, %v4380
      %v4382 = vpop.f32.mrb[0].mxu0
      %v4383 = vpop.f32.mrb[0].mxu0
      %v4384 = vadd.f32 %v4223, %v4383
      %v4385 = vpop.f32.mrb[0].mxu0
      %4386 = vmatprep.mubr.bf16.mxu0 0
      %4387 = vmatmul.mubr.bf16.gmra.mrb[0].mxu0 %v3009
      %v4388 = vpop.f32.mrb[0].mxu0
      %v4389 = vadd.f32 %v4228, %v4388
      %v4390 = vpop.f32.mrb[0].mxu0
      %v4391 = vpop.f32.mrb[0].mxu0
      %v4392 = vadd.f32 %v4231, %v4391
      %v4393 = vpop.f32.mrb[0].mxu0
      %4394 = vmatprep.mubr.bf16.mxu0 0
      %4395 = vmatmul.mubr.bf16.gmra.mrb[0].mxu0 %v3018
      %v4396 = vpop.f32.mrb[0].mxu0
      %v4397 = vadd.f32 %v4236, %v4396
      %v4398 = vpop.f32.mrb[0].mxu0
      %v4399 = vpop.f32.mrb[0].mxu0
      %v4400 = vadd.f32 %v4239, %v4399
      %v4401 = vpop.f32.mrb[0].mxu0
      %4402 = vmatprep.mubr.bf16.mxu0 0
      %4403 = vmatmul.mubr.bf16.gmra.mrb[0].mxu0 %v3027
      %v4404 = vpop.f32.mrb[0].mxu0
      %v4405 = vadd.f32 %v4244, %v4404
      %v4406 = vpop.f32.mrb[0].mxu0
      %v4407 = vpop.f32.mrb[0].mxu0
      %v4408 = vadd.f32 %v4247, %v4407
      %v4409 = vpop.f32.mrb[0].mxu0
      %4410 = vmatprep.mubr.bf16.mxu0 0
      %4411 = vmatmul.mubr.bf16.gmra.mrb[0].mxu0 %v3036
      %v4412 = vpop.f32.mrb[0].mxu0
      %v4413 = vadd.f32 %v4252, %v4412
      %v4414 = vpop.f32.mrb[0].mxu0
      %v4415 = vpop.f32.mrb[0].mxu0
      %v4416 = vadd.f32 %v4255, %v4415
      %v4417 = vpop.f32.mrb[0].mxu0
      %4418 = vmatprep.mubr.bf16.mxu0 0
      %4419 = vmatmul.mubr.bf16.gmra.mrb[0].mxu0 %v3045
      %v4420 = vpop.f32.mrb[0].mxu0
      %v4421 = vadd.f32 %v4260, %v4420
      %v4422 = vpop.f32.mrb[0].mxu0
      %v4423 = vpop.f32.mrb[0].mxu0
      %v4424 = vadd.f32 %v4263, %v4423
      %v4425 = vpop.f32.mrb[0].mxu0
      %4426 = vdwg.mxu0
      %v4427 = vld [vmem:[%s3] sm:$0x1]
      %v4429 = vlaneseq
      %v4430 = vshrl.u32 %v4429, 7
      %v4431 = vsub.s32 0, %v4430
      %v4432 = vrot.slane %v4427, %v4431
      %v4434 = vmul.f32 %v4301, %v4432
      %v4435 = vmul.f32 %v4304, %v4432
      %v4436 = vmul.f32 %v4309, %v4432
      %v4437 = vmul.f32 %v4312, %v4432
      %v4438 = vmul.f32 %v4317, %v4432
      %v4439 = vmul.f32 %v4320, %v4432
      %v4440 = vmul.f32 %v4325, %v4432
      %v4441 = vmul.f32 %v4328, %v4432
      %v4442 = vmul.f32 %v4333, %v4432
      %v4443 = vmul.f32 %v4336, %v4432
      %v4444 = vmul.f32 %v4341, %v4432
      %v4445 = vmul.f32 %v4344, %v4432
      %v4446 = vmul.f32 %v4349, %v4432
      %v4447 = vmul.f32 %v4352, %v4432
      %v4448 = vmul.f32 %v4357, %v4432
      %v4449 = vmul.f32 %v4360, %v4432
      %v4450 = vmul.f32 %v4365, %v4432
      %v4451 = vmul.f32 %v4368, %v4432
      %v4452 = vmul.f32 %v4373, %v4432
      %v4453 = vmul.f32 %v4376, %v4432
      %v4454 = vmul.f32 %v4381, %v4432
      %v4455 = vmul.f32 %v4384, %v4432
      %v4456 = vmul.f32 %v4389, %v4432
      %v4457 = vmul.f32 %v4392, %v4432
      %v4458 = vmul.f32 %v4397, %v4432
      %v4459 = vmul.f32 %v4400, %v4432
      %v4460 = vmul.f32 %v4405, %v4432
      %v4461 = vmul.f32 %v4408, %v4432
      %v4462 = vmul.f32 %v4413, %v4432
      %v4463 = vmul.f32 %v4416, %v4432
      %v4464 = vmul.f32 %v4421, %v4432
      %v4465 = vmul.f32 %v4424, %v4432
      %v4466 = vld [vmem:[%s4] sm:$0x1]
      %v4468 = vlaneseq
      %v4469 = vshrl.u32 %v4468, 7
      %v4470 = vsub.s32 0, %v4469
      %v4471 = vrot.slane %v4466, %v4470
      %v4473 = vadd.f32 %v4434, %v4471
      %v4474 = vadd.f32 %v4435, %v4471
      %v4475 = vadd.f32 %v4436, %v4471
      %v4476 = vadd.f32 %v4437, %v4471
      %v4477 = vadd.f32 %v4438, %v4471
      %v4478 = vadd.f32 %v4439, %v4471
      %v4479 = vadd.f32 %v4440, %v4471
      %v4480 = vadd.f32 %v4441, %v4471
      %v4481 = vadd.f32 %v4442, %v4471
      %v4482 = vadd.f32 %v4443, %v4471
      %v4483 = vadd.f32 %v4444, %v4471
      %v4484 = vadd.f32 %v4445, %v4471
      %v4485 = vadd.f32 %v4446, %v4471
      %v4486 = vadd.f32 %v4447, %v4471
      %v4487 = vadd.f32 %v4448, %v4471
      %v4488 = vadd.f32 %v4449, %v4471
      %v4489 = vadd.f32 %v4450, %v4471
      %v4490 = vadd.f32 %v4451, %v4471
      %v4491 = vadd.f32 %v4452, %v4471
      %v4492 = vadd.f32 %v4453, %v4471
      %v4493 = vadd.f32 %v4454, %v4471
      %v4494 = vadd.f32 %v4455, %v4471
      %v4495 = vadd.f32 %v4456, %v4471
      %v4496 = vadd.f32 %v4457, %v4471
      %v4497 = vadd.f32 %v4458, %v4471
      %v4498 = vadd.f32 %v4459, %v4471
      %v4499 = vadd.f32 %v4460, %v4471
      %v4500 = vadd.f32 %v4461, %v4471
      %v4501 = vadd.f32 %v4462, %v4471
      %v4502 = vadd.f32 %v4463, %v4471
      %v4503 = vadd.f32 %v4464, %v4471
      %v4504 = vadd.f32 %v4465, %v4471
      %v4505 = vmax.f32 %v4473, 0.0
      %v4506 = vmax.f32 %v4474, 0.0
      %v4507 = vmax.f32 %v4475, 0.0
      %v4508 = vmax.f32 %v4476, 0.0
      %v4509 = vmax.f32 %v4477, 0.0
      %v4510 = vmax.f32 %v4478, 0.0
      %v4511 = vmax.f32 %v4479, 0.0
      %v4512 = vmax.f32 %v4480, 0.0
      %v4513 = vmax.f32 %v4481, 0.0
      %v4514 = vmax.f32 %v4482, 0.0
      %v4515 = vmax.f32 %v4483, 0.0
      %v4516 = vmax.f32 %v4484, 0.0
      %v4517 = vmax.f32 %v4485, 0.0
      %v4518 = vmax.f32 %v4486, 0.0
      %v4519 = vmax.f32 %v4487, 0.0
      %v4520 = vmax.f32 %v4488, 0.0
      %v4521 = vmax.f32 %v4489, 0.0
      %v4522 = vmax.f32 %v4490, 0.0
      %v4523 = vmax.f32 %v4491, 0.0
      %v4524 = vmax.f32 %v4492, 0.0
      %v4525 = vmax.f32 %v4493, 0.0
      %v4526 = vmax.f32 %v4494, 0.0
      %v4527 = vmax.f32 %v4495, 0.0
      %v4528 = vmax.f32 %v4496, 0.0
      %v4529 = vmax.f32 %v4497, 0.0
      %v4530 = vmax.f32 %v4498, 0.0
      %v4531 = vmax.f32 %v4499, 0.0
      %v4532 = vmax.f32 %v4500, 0.0
      %v4533 = vmax.f32 %v4501, 0.0
      %v4534 = vmax.f32 %v4502, 0.0
      %v4535 = vmax.f32 %v4503, 0.0
      %v4536 = vmax.f32 %v4504, 0.0
      %v4537 = vpack.c.bf16 %v4506, %v4505
      %v4538 = vpack.c.bf16 %v4508, %v4507
      %v4539 = vpack.c.bf16 %v4510, %v4509
      %v4540 = vpack.c.bf16 %v4512, %v4511
      %v4541 = vpack.c.bf16 %v4514, %v4513
      %v4542 = vpack.c.bf16 %v4516, %v4515
      %v4543 = vpack.c.bf16 %v4518, %v4517
      %v4544 = vpack.c.bf16 %v4520, %v4519
      %v4545 = vpack.c.bf16 %v4522, %v4521
      %v4546 = vpack.c.bf16 %v4524, %v4523
      %v4547 = vpack.c.bf16 %v4526, %v4525
      %v4548 = vpack.c.bf16 %v4528, %v4527
      %v4549 = vpack.c.bf16 %v4530, %v4529
      %v4550 = vpack.c.bf16 %v4532, %v4531
      %v4551 = vpack.c.bf16 %v4534, %v4533
      %v4552 = vpack.c.bf16 %v4536, %v4535
      %v4569 = vrot.slane %v4537, 4
      %v4570 = vrot.slane %v4538, 4
      %v4571 = vrot.slane %v4539, 4
      %v4572 = vrot.slane %v4540, 4
      %v4573 = vrot.slane %v4541, 4
      %v4574 = vrot.slane %v4542, 4
      %v4575 = vrot.slane %v4543, 4
      %v4576 = vrot.slane %v4544, 4
      %v4577 = vrot.slane %v4545, 4
      %v4578 = vrot.slane %v4546, 4
      %v4579 = vrot.slane %v4547, 4
      %v4580 = vrot.slane %v4548, 4
      %v4581 = vrot.slane %v4549, 4
      %v4582 = vrot.slane %v4550, 4
      %v4583 = vrot.slane %v4551, 4
      %v4584 = vrot.slane %v4552, 4
      %4601 = vst [vmem:[%s417] sm:$0xf0] %v4569
      %4602 = vst [vmem:[%s417 + $0x8] sm:$0xf] %v4569
      %4603 = vst [vmem:[%s417 + $0x10] sm:$0xf0] %v4570
      %4604 = vst [vmem:[%s417 + $0x18] sm:$0xf] %v4570
      %4605 = vst [vmem:[%s417 + $0x20] sm:$0xf0] %v4571
      %4606 = vst [vmem:[%s417 + $0x28] sm:$0xf] %v4571
      %4607 = vst [vmem:[%s417 + $0x30] sm:$0xf0] %v4572
      %4608 = vst [vmem:[%s417 + $0x38] sm:$0xf] %v4572
      %4609 = vst [vmem:[%s417 + $0x40] sm:$0xf0] %v4573
      %4610 = vst [vmem:[%s417 + $0x48] sm:$0xf] %v4573
      %4611 = vst [vmem:[%s417 + $0x50] sm:$0xf0] %v4574
      %4612 = vst [vmem:[%s417 + $0x58] sm:$0xf] %v4574
      %4613 = vst [vmem:[%s417 + $0x60] sm:$0xf0] %v4575
      %4614 = vst [vmem:[%s417 + $0x68] sm:$0xf] %v4575
      %4615 = vst [vmem:[%s417 + $0x70] sm:$0xf0] %v4576
      %4616 = vst [vmem:[%s417 + $0x78] sm:$0xf] %v4576
      %4617 = vst [vmem:[%s417 + $0x80] sm:$0xf0] %v4577
      %4618 = vst [vmem:[%s417 + $0x88] sm:$0xf] %v4577
      %4619 = vst [vmem:[%s417 + $0x90] sm:$0xf0] %v4578
      %4620 = vst [vmem:[%s417 + $0x98] sm:$0xf] %v4578
      %4621 = vst [vmem:[%s417 + $0xa0] sm:$0xf0] %v4579
      %4622 = vst [vmem:[%s417 + $0xa8] sm:$0xf] %v4579
      %4623 = vst [vmem:[%s417 + $0xb0] sm:$0xf0] %v4580
      %4624 = vst [vmem:[%s417 + $0xb8] sm:$0xf] %v4580
      %4625 = vst [vmem:[%s417 + $0xc0] sm:$0xf0] %v4581
      %4626 = vst [vmem:[%s417 + $0xc8] sm:$0xf] %v4581
      %4627 = vst [vmem:[%s417 + $0xd0] sm:$0xf0] %v4582
      %4628 = vst [vmem:[%s417 + $0xd8] sm:$0xf] %v4582
      %4629 = vst [vmem:[%s417 + $0xe0] sm:$0xf0] %v4583
      %4630 = vst [vmem:[%s417 + $0xe8] sm:$0xf] %v4583
      %4631 = vst [vmem:[%s417 + $0xf0] sm:$0xf0] %v4584
      %4632 = vst [vmem:[%s417 + $0xf8] sm:$0xf] %v4584
      %v4633 = vld [vmem:[#allocation2] sm:$0xf8]
      %v4634 = vld [vmem:[#allocation2 + $0x8] sm:$0xf]
      %v4635 = vld [vmem:[#allocation2 + $0x10] sm:$0xf8]
      %v4636 = vld [vmem:[#allocation2 + $0x18] sm:$0xf]
      %v4637 = vld [vmem:[#allocation2 + $0x20] sm:$0xf8]
      %v4638 = vld [vmem:[#allocation2 + $0x28] sm:$0xf]
      %v4639 = vld [vmem:[#allocation2 + $0x30] sm:$0xf8]
      %v4640 = vld [vmem:[#allocation2 + $0x38] sm:$0xf]
      %v4641 = vld [vmem:[#allocation2 + $0x40] sm:$0xf8]
      %v4642 = vld [vmem:[#allocation2 + $0x48] sm:$0xf]
      %v4643 = vld [vmem:[#allocation2 + $0x50] sm:$0xf8]
      %v4644 = vld [vmem:[#allocation2 + $0x58] sm:$0xf]
      %v4645 = vld [vmem:[#allocation2 + $0x60] sm:$0xf8]
      %v4646 = vld [vmem:[#allocation2 + $0x68] sm:$0xf]
      %v4647 = vld [vmem:[#allocation2 + $0x70] sm:$0xf8]
      %v4648 = vld [vmem:[#allocation2 + $0x78] sm:$0xf]
      %v4649 = vld [vmem:[#allocation2 + $0x80] sm:$0xf8]
      %v4650 = vld [vmem:[#allocation2 + $0x88] sm:$0xf]
      %v4651 = vld [vmem:[#allocation2 + $0x90] sm:$0xf8]
      %v4652 = vld [vmem:[#allocation2 + $0x98] sm:$0xf]
      %v4653 = vld [vmem:[#allocation2 + $0xa0] sm:$0xf8]
      %v4654 = vld [vmem:[#allocation2 + $0xa8] sm:$0xf]
      %v4655 = vld [vmem:[#allocation2 + $0xb0] sm:$0xf8]
      %v4656 = vld [vmem:[#allocation2 + $0xb8] sm:$0xf]
      %v4657 = vld [vmem:[#allocation2 + $0xc0] sm:$0xf8]
      %v4658 = vld [vmem:[#allocation2 + $0xc8] sm:$0xf]
      %v4659 = vld [vmem:[#allocation2 + $0xd0] sm:$0xf8]
      %v4660 = vld [vmem:[#allocation2 + $0xd8] sm:$0xf]
      %v4661 = vld [vmem:[#allocation2 + $0xe0] sm:$0xf8]
      %v4662 = vld [vmem:[#allocation2 + $0xe8] sm:$0xf]
      %v4663 = vld [vmem:[#allocation2 + $0xf0] sm:$0xf8]
      %v4664 = vld [vmem:[#allocation2 + $0xf8] sm:$0xf]
      %v4666 = vshrl.u32 %v4633, 16
      %v4668 = vrot.slane %v4666, 3
      %v4669 = vshll.u32 %v4633, 16
      %v4671 = vrot.slane %v4669, 4
      %v4672 = vor.u32 %v4668, %v4671
      %v4674 = vshrl.u32 %v4634, 16
      %v4676 = vrot.slane %v4674, 3
      %v4677 = vshll.u32 %v4634, 16
      %v4679 = vrot.slane %v4677, 4
      %v4680 = vor.u32 %v4676, %v4679
      %v4681 = vsel %vm482, %v4672, %v4680
      %v4683 = vshrl.u32 %v4635, 16
      %v4685 = vrot.slane %v4683, 3
      %v4686 = vshll.u32 %v4635, 16
      %v4688 = vrot.slane %v4686, 4
      %v4689 = vor.u32 %v4685, %v4688
      %v4691 = vshrl.u32 %v4636, 16
      %v4693 = vrot.slane %v4691, 3
      %v4694 = vshll.u32 %v4636, 16
      %v4696 = vrot.slane %v4694, 4
      %v4697 = vor.u32 %v4693, %v4696
      %v4698 = vsel %vm482, %v4689, %v4697
      %v4700 = vshrl.u32 %v4637, 16
      %v4702 = vrot.slane %v4700, 3
      %v4703 = vshll.u32 %v4637, 16
      %v4705 = vrot.slane %v4703, 4
      %v4706 = vor.u32 %v4702, %v4705
      %v4708 = vshrl.u32 %v4638, 16
      %v4710 = vrot.slane %v4708, 3
      %v4711 = vshll.u32 %v4638, 16
      %v4713 = vrot.slane %v4711, 4
      %v4714 = vor.u32 %v4710, %v4713
      %v4715 = vsel %vm482, %v4706, %v4714
      %v4717 = vshrl.u32 %v4639, 16
      %v4719 = vrot.slane %v4717, 3
      %v4720 = vshll.u32 %v4639, 16
      %v4722 = vrot.slane %v4720, 4
      %v4723 = vor.u32 %v4719, %v4722
      %v4725 = vshrl.u32 %v4640, 16
      %v4727 = vrot.slane %v4725, 3
      %v4728 = vshll.u32 %v4640, 16
      %v4730 = vrot.slane %v4728, 4
      %v4731 = vor.u32 %v4727, %v4730
      %v4732 = vsel %vm482, %v4723, %v4731
      %v4734 = vshrl.u32 %v4641, 16
      %v4736 = vrot.slane %v4734, 3
      %v4737 = vshll.u32 %v4641, 16
      %v4739 = vrot.slane %v4737, 4
      %v4740 = vor.u32 %v4736, %v4739
      %v4742 = vshrl.u32 %v4642, 16
      %v4744 = vrot.slane %v4742, 3
      %v4745 = vshll.u32 %v4642, 16
      %v4747 = vrot.slane %v4745, 4
      %v4748 = vor.u32 %v4744, %v4747
      %v4749 = vsel %vm482, %v4740, %v4748
      %v4751 = vshrl.u32 %v4643, 16
      %v4753 = vrot.slane %v4751, 3
      %v4754 = vshll.u32 %v4643, 16
      %v4756 = vrot.slane %v4754, 4
      %v4757 = vor.u32 %v4753, %v4756
      %v4759 = vshrl.u32 %v4644, 16
      %v4761 = vrot.slane %v4759, 3
      %v4762 = vshll.u32 %v4644, 16
      %v4764 = vrot.slane %v4762, 4
      %v4765 = vor.u32 %v4761, %v4764
      %v4766 = vsel %vm482, %v4757, %v4765
      %v4768 = vshrl.u32 %v4645, 16
      %v4770 = vrot.slane %v4768, 3
      %v4771 = vshll.u32 %v4645, 16
      %v4773 = vrot.slane %v4771, 4
      %v4774 = vor.u32 %v4770, %v4773
      %v4776 = vshrl.u32 %v4646, 16
      %v4778 = vrot.slane %v4776, 3
      %v4779 = vshll.u32 %v4646, 16
      %v4781 = vrot.slane %v4779, 4
      %v4782 = vor.u32 %v4778, %v4781
      %v4783 = vsel %vm482, %v4774, %v4782
      %v4785 = vshrl.u32 %v4647, 16
      %v4787 = vrot.slane %v4785, 3
      %v4788 = vshll.u32 %v4647, 16
      %v4790 = vrot.slane %v4788, 4
      %v4791 = vor.u32 %v4787, %v4790
      %v4793 = vshrl.u32 %v4648, 16
      %v4795 = vrot.slane %v4793, 3
      %v4796 = vshll.u32 %v4648, 16
      %v4798 = vrot.slane %v4796, 4
      %v4799 = vor.u32 %v4795, %v4798
      %v4800 = vsel %vm482, %v4791, %v4799
      %v4802 = vshrl.u32 %v4649, 16
      %v4804 = vrot.slane %v4802, 3
      %v4805 = vshll.u32 %v4649, 16
      %v4807 = vrot.slane %v4805, 4
      %v4808 = vor.u32 %v4804, %v4807
      %v4810 = vshrl.u32 %v4650, 16
      %v4812 = vrot.slane %v4810, 3
      %v4813 = vshll.u32 %v4650, 16
      %v4815 = vrot.slane %v4813, 4
      %v4816 = vor.u32 %v4812, %v4815
      %v4817 = vsel %vm482, %v4808, %v4816
      %v4819 = vshrl.u32 %v4651, 16
      %v4821 = vrot.slane %v4819, 3
      %v4822 = vshll.u32 %v4651, 16
      %v4824 = vrot.slane %v4822, 4
      %v4825 = vor.u32 %v4821, %v4824
      %v4827 = vshrl.u32 %v4652, 16
      %v4829 = vrot.slane %v4827, 3
      %v4830 = vshll.u32 %v4652, 16
      %v4832 = vrot.slane %v4830, 4
      %v4833 = vor.u32 %v4829, %v4832
      %v4834 = vsel %vm482, %v4825, %v4833
      %v4836 = vshrl.u32 %v4653, 16
      %v4838 = vrot.slane %v4836, 3
      %v4839 = vshll.u32 %v4653, 16
      %v4841 = vrot.slane %v4839, 4
      %v4842 = vor.u32 %v4838, %v4841
      %v4844 = vshrl.u32 %v4654, 16
      %v4846 = vrot.slane %v4844, 3
      %v4847 = vshll.u32 %v4654, 16
      %v4849 = vrot.slane %v4847, 4
      %v4850 = vor.u32 %v4846, %v4849
      %v4851 = vsel %vm482, %v4842, %v4850
      %v4853 = vshrl.u32 %v4655, 16
      %v4855 = vrot.slane %v4853, 3
      %v4856 = vshll.u32 %v4655, 16
      %v4858 = vrot.slane %v4856, 4
      %v4859 = vor.u32 %v4855, %v4858
      %v4861 = vshrl.u32 %v4656, 16
      %v4863 = vrot.slane %v4861, 3
      %v4864 = vshll.u32 %v4656, 16
      %v4866 = vrot.slane %v4864, 4
      %v4867 = vor.u32 %v4863, %v4866
      %v4868 = vsel %vm482, %v4859, %v4867
      %v4870 = vshrl.u32 %v4657, 16
      %v4872 = vrot.slane %v4870, 3
      %v4873 = vshll.u32 %v4657, 16
      %v4875 = vrot.slane %v4873, 4
      %v4876 = vor.u32 %v4872, %v4875
      %v4878 = vshrl.u32 %v4658, 16
      %v4880 = vrot.slane %v4878, 3
      %v4881 = vshll.u32 %v4658, 16
      %v4883 = vrot.slane %v4881, 4
      %v4884 = vor.u32 %v4880, %v4883
      %v4885 = vsel %vm482, %v4876, %v4884
      %v4887 = vshrl.u32 %v4659, 16
      %v4889 = vrot.slane %v4887, 3
      %v4890 = vshll.u32 %v4659, 16
      %v4892 = vrot.slane %v4890, 4
      %v4893 = vor.u32 %v4889, %v4892
      %v4895 = vshrl.u32 %v4660, 16
      %v4897 = vrot.slane %v4895, 3
      %v4898 = vshll.u32 %v4660, 16
      %v4900 = vrot.slane %v4898, 4
      %v4901 = vor.u32 %v4897, %v4900
      %v4902 = vsel %vm482, %v4893, %v4901
      %v4904 = vshrl.u32 %v4661, 16
      %v4906 = vrot.slane %v4904, 3
      %v4907 = vshll.u32 %v4661, 16
      %v4909 = vrot.slane %v4907, 4
      %v4910 = vor.u32 %v4906, %v4909
      %v4912 = vshrl.u32 %v4662, 16
      %v4914 = vrot.slane %v4912, 3
      %v4915 = vshll.u32 %v4662, 16
      %v4917 = vrot.slane %v4915, 4
      %v4918 = vor.u32 %v4914, %v4917
      %v4919 = vsel %vm482, %v4910, %v4918
      %v4921 = vshrl.u32 %v4663, 16
      %v4923 = vrot.slane %v4921, 3
      %v4924 = vshll.u32 %v4663, 16
      %v4926 = vrot.slane %v4924, 4
      %v4927 = vor.u32 %v4923, %v4926
      %v4929 = vshrl.u32 %v4664, 16
      %v4931 = vrot.slane %v4929, 3
      %v4932 = vshll.u32 %v4664, 16
      %v4934 = vrot.slane %v4932, 4
      %v4935 = vor.u32 %v4931, %v4934
      %v4936 = vsel %vm482, %v4927, %v4935
      %4953 = vst [vmem:[#allocation3] sm:$0xff] %v4681
      %4954 = vst [vmem:[#allocation3 + $0x48] sm:$0xff] %v4698
      %4955 = vst [vmem:[#allocation3 + $0x90] sm:$0xff] %v4715
      %4956 = vst [vmem:[#allocation3 + $0xd8] sm:$0xff] %v4732
      %4957 = vst [vmem:[#allocation3 + $0x120] sm:$0xff] %v4749
      %4958 = vst [vmem:[#allocation3 + $0x168] sm:$0xff] %v4766
      %4959 = vst [vmem:[#allocation3 + $0x1b0] sm:$0xff] %v4783
      %4960 = vst [vmem:[#allocation3 + $0x1f8] sm:$0xff] %v4800
      %4961 = vst [vmem:[#allocation3 + $0x240] sm:$0xff] %v4817
      %4962 = vst [vmem:[#allocation3 + $0x288] sm:$0xff] %v4834
      %4963 = vst [vmem:[#allocation3 + $0x2d0] sm:$0xff] %v4851
      %4964 = vst [vmem:[#allocation3 + $0x318] sm:$0xff] %v4868
      %4965 = vst [vmem:[#allocation3 + $0x360] sm:$0xff] %v4885
      %4966 = vst [vmem:[#allocation3 + $0x3a8] sm:$0xff] %v4902
      %4967 = vst [vmem:[#allocation3 + $0x3f0] sm:$0xff] %v4919
      %4968 = vst [vmem:[#allocation3 + $0x438] sm:$0xff] %v4936
      %v4969 = vld [vmem:[#allocation2] sm:$0xf0]
      %v4970 = vld [vmem:[#allocation2 + $0x8] sm:$0xf]
      %v4971 = vld [vmem:[#allocation2 + $0x10] sm:$0xf0]
      %v4972 = vld [vmem:[#allocation2 + $0x18] sm:$0xf]
      %v4973 = vld [vmem:[#allocation2 + $0x20] sm:$0xf0]
      %v4974 = vld [vmem:[#allocation2 + $0x28] sm:$0xf]
      %v4975 = vld [vmem:[#allocation2 + $0x30] sm:$0xf0]
      %v4976 = vld [vmem:[#allocation2 + $0x38] sm:$0xf]
      %v4977 = vld [vmem:[#allocation2 + $0x40] sm:$0xf0]
      %v4978 = vld [vmem:[#allocation2 + $0x48] sm:$0xf]
      %v4979 = vld [vmem:[#allocation2 + $0x50] sm:$0xf0]
      %v4980 = vld [vmem:[#allocation2 + $0x58] sm:$0xf]
      %v4981 = vld [vmem:[#allocation2 + $0x60] sm:$0xf0]
      %v4982 = vld [vmem:[#allocation2 + $0x68] sm:$0xf]
      %v4983 = vld [vmem:[#allocation2 + $0x70] sm:$0xf0]
      %v4984 = vld [vmem:[#allocation2 + $0x78] sm:$0xf]
      %v4985 = vld [vmem:[#allocation2 + $0x80] sm:$0xf0]
      %v4986 = vld [vmem:[#allocation2 + $0x88] sm:$0xf]
      %v4987 = vld [vmem:[#allocation2 + $0x90] sm:$0xf0]
      %v4988 = vld [vmem:[#allocation2 + $0x98] sm:$0xf]
      %v4989 = vld [vmem:[#allocation2 + $0xa0] sm:$0xf0]
      %v4990 = vld [vmem:[#allocation2 + $0xa8] sm:$0xf]
      %v4991 = vld [vmem:[#allocation2 + $0xb0] sm:$0xf0]
      %v4992 = vld [vmem:[#allocation2 + $0xb8] sm:$0xf]
      %v4993 = vld [vmem:[#allocation2 + $0xc0] sm:$0xf0]
      %v4994 = vld [vmem:[#allocation2 + $0xc8] sm:$0xf]
      %v4995 = vld [vmem:[#allocation2 + $0xd0] sm:$0xf0]
      %v4996 = vld [vmem:[#allocation2 + $0xd8] sm:$0xf]
      %v4997 = vld [vmem:[#allocation2 + $0xe0] sm:$0xf0]
      %v4998 = vld [vmem:[#allocation2 + $0xe8] sm:$0xf]
      %v4999 = vld [vmem:[#allocation2 + $0xf0] sm:$0xf0]
      %v5000 = vld [vmem:[#allocation2 + $0xf8] sm:$0xf]
      %v5033 = vrot.slane %v4969, 4
      %v5034 = vrot.slane %v4970, 4
      %v5035 = vsel %vm851, %v5033, %v5034
      %v5036 = vrot.slane %v4971, 4
      %v5037 = vrot.slane %v4972, 4
      %v5038 = vsel %vm851, %v5036, %v5037
      %v5039 = vrot.slane %v4973, 4
      %v5040 = vrot.slane %v4974, 4
      %v5041 = vsel %vm851, %v5039, %v5040
      %v5042 = vrot.slane %v4975, 4
      %v5043 = vrot.slane %v4976, 4
      %v5044 = vsel %vm851, %v5042, %v5043
      %v5045 = vrot.slane %v4977, 4
      %v5046 = vrot.slane %v4978, 4
      %v5047 = vsel %vm851, %v5045, %v5046
      %v5048 = vrot.slane %v4979, 4
      %v5049 = vrot.slane %v4980, 4
      %v5050 = vsel %vm851, %v5048, %v5049
      %v5051 = vrot.slane %v4981, 4
      %v5052 = vrot.slane %v4982, 4
      %v5053 = vsel %vm851, %v5051, %v5052
      %v5054 = vrot.slane %v4983, 4
      %v5055 = vrot.slane %v4984, 4
      %v5056 = vsel %vm851, %v5054, %v5055
      %v5057 = vrot.slane %v4985, 4
      %v5058 = vrot.slane %v4986, 4
      %v5059 = vsel %vm851, %v5057, %v5058
      %v5060 = vrot.slane %v4987, 4
      %v5061 = vrot.slane %v4988, 4
      %v5062 = vsel %vm851, %v5060, %v5061
      %v5063 = vrot.slane %v4989, 4
      %v5064 = vrot.slane %v4990, 4
      %v5065 = vsel %vm851, %v5063, %v5064
      %v5066 = vrot.slane %v4991, 4
      %v5067 = vrot.slane %v4992, 4
      %v5068 = vsel %vm851, %v5066, %v5067
      %v5069 = vrot.slane %v4993, 4
      %v5070 = vrot.slane %v4994, 4
      %v5071 = vsel %vm851, %v5069, %v5070
      %v5072 = vrot.slane %v4995, 4
      %v5073 = vrot.slane %v4996, 4
      %v5074 = vsel %vm851, %v5072, %v5073
      %v5075 = vrot.slane %v4997, 4
      %v5076 = vrot.slane %v4998, 4
      %v5077 = vsel %vm851, %v5075, %v5076
      %v5078 = vrot.slane %v4999, 4
      %v5079 = vrot.slane %v5000, 4
      %v5080 = vsel %vm851, %v5078, %v5079
      %5097 = vst [vmem:[#allocation3 + $0x8] sm:$0xff] %v5035
      %5098 = vst [vmem:[#allocation3 + $0x50] sm:$0xff] %v5038
      %5099 = vst [vmem:[#allocation3 + $0x98] sm:$0xff] %v5041
      %5100 = vst [vmem:[#allocation3 + $0xe0] sm:$0xff] %v5044
      %5101 = vst [vmem:[#allocation3 + $0x128] sm:$0xff] %v5047
      %5102 = vst [vmem:[#allocation3 + $0x170] sm:$0xff] %v5050
      %5103 = vst [vmem:[#allocation3 + $0x1b8] sm:$0xff] %v5053
      %5104 = vst [vmem:[#allocation3 + $0x200] sm:$0xff] %v5056
      %5105 = vst [vmem:[#allocation3 + $0x248] sm:$0xff] %v5059
      %5106 = vst [vmem:[#allocation3 + $0x290] sm:$0xff] %v5062
      %5107 = vst [vmem:[#allocation3 + $0x2d8] sm:$0xff] %v5065
      %5108 = vst [vmem:[#allocation3 + $0x320] sm:$0xff] %v5068
      %5109 = vst [vmem:[#allocation3 + $0x368] sm:$0xff] %v5071
      %5110 = vst [vmem:[#allocation3 + $0x3b0] sm:$0xff] %v5074
      %5111 = vst [vmem:[#allocation3 + $0x3f8] sm:$0xff] %v5077
      %5112 = vst [vmem:[#allocation3 + $0x440] sm:$0xff] %v5080
      %v5113 = vld [vmem:[#allocation2] sm:$0xf0]
      %v5114 = vld [vmem:[#allocation2 + $0x8] sm:$0x1f]
      %v5115 = vld [vmem:[#allocation2 + $0x10] sm:$0xf0]
      %v5116 = vld [vmem:[#allocation2 + $0x18] sm:$0x1f]
      %v5117 = vld [vmem:[#allocation2 + $0x20] sm:$0xf0]
      %v5118 = vld [vmem:[#allocation2 + $0x28] sm:$0x1f]
      %v5119 = vld [vmem:[#allocation2 + $0x30] sm:$0xf0]
      %v5120 = vld [vmem:[#allocation2 + $0x38] sm:$0x1f]
      %v5121 = vld [vmem:[#allocation2 + $0x40] sm:$0xf0]
      %v5122 = vld [vmem:[#allocation2 + $0x48] sm:$0x1f]
      %v5123 = vld [vmem:[#allocation2 + $0x50] sm:$0xf0]
      %v5124 = vld [vmem:[#allocation2 + $0x58] sm:$0x1f]
      %v5125 = vld [vmem:[#allocation2 + $0x60] sm:$0xf0]
      %v5126 = vld [vmem:[#allocation2 + $0x68] sm:$0x1f]
      %v5127 = vld [vmem:[#allocation2 + $0x70] sm:$0xf0]
      %v5128 = vld [vmem:[#allocation2 + $0x78] sm:$0x1f]
      %v5129 = vld [vmem:[#allocation2 + $0x80] sm:$0xf0]
      %v5130 = vld [vmem:[#allocation2 + $0x88] sm:$0x1f]
      %v5131 = vld [vmem:[#allocation2 + $0x90] sm:$0xf0]
      %v5132 = vld [vmem:[#allocation2 + $0x98] sm:$0x1f]
      %v5133 = vld [vmem:[#allocation2 + $0xa0] sm:$0xf0]
      %v5134 = vld [vmem:[#allocation2 + $0xa8] sm:$0x1f]
      %v5135 = vld [vmem:[#allocation2 + $0xb0] sm:$0xf0]
      %v5136 = vld [vmem:[#allocation2 + $0xb8] sm:$0x1f]
      %v5137 = vld [vmem:[#allocation2 + $0xc0] sm:$0xf0]
      %v5138 = vld [vmem:[#allocation2 + $0xc8] sm:$0x1f]
      %v5139 = vld [vmem:[#allocation2 + $0xd0] sm:$0xf0]
      %v5140 = vld [vmem:[#allocation2 + $0xd8] sm:$0x1f]
      %v5141 = vld [vmem:[#allocation2 + $0xe0] sm:$0xf0]
      %v5142 = vld [vmem:[#allocation2 + $0xe8] sm:$0x1f]
      %v5143 = vld [vmem:[#allocation2 + $0xf0] sm:$0xf0]
      %v5144 = vld [vmem:[#allocation2 + $0xf8] sm:$0x1f]
      %v5146 = vshrl.u32 %v5113, 16
      %v5148 = vrot.slane %v5146, 4
      %v5149 = vshll.u32 %v5113, 16
      %v5151 = vrot.slane %v5149, 5
      %v5152 = vor.u32 %v5148, %v5151
      %v5154 = vshrl.u32 %v5114, 16
      %v5156 = vrot.slane %v5154, 4
      %v5157 = vshll.u32 %v5114, 16
      %v5159 = vrot.slane %v5157, 5
      %v5160 = vor.u32 %v5156, %v5159
      %v5161 = vsel %vm964, %v5152, %v5160
      %v5163 = vshrl.u32 %v5115, 16
      %v5165 = vrot.slane %v5163, 4
      %v5166 = vshll.u32 %v5115, 16
      %v5168 = vrot.slane %v5166, 5
      %v5169 = vor.u32 %v5165, %v5168
      %v5171 = vshrl.u32 %v5116, 16
      %v5173 = vrot.slane %v5171, 4
      %v5174 = vshll.u32 %v5116, 16
      %v5176 = vrot.slane %v5174, 5
      %v5177 = vor.u32 %v5173, %v5176
      %v5178 = vsel %vm964, %v5169, %v5177
      %v5180 = vshrl.u32 %v5117, 16
      %v5182 = vrot.slane %v5180, 4
      %v5183 = vshll.u32 %v5117, 16
      %v5185 = vrot.slane %v5183, 5
      %v5186 = vor.u32 %v5182, %v5185
      %v5188 = vshrl.u32 %v5118, 16
      %v5190 = vrot.slane %v5188, 4
      %v5191 = vshll.u32 %v5118, 16
      %v5193 = vrot.slane %v5191, 5
      %v5194 = vor.u32 %v5190, %v5193
      %v5195 = vsel %vm964, %v5186, %v5194
      %v5197 = vshrl.u32 %v5119, 16
      %v5199 = vrot.slane %v5197, 4
      %v5200 = vshll.u32 %v5119, 16
      %v5202 = vrot.slane %v5200, 5
      %v5203 = vor.u32 %v5199, %v5202
      %v5205 = vshrl.u32 %v5120, 16
      %v5207 = vrot.slane %v5205, 4
      %v5208 = vshll.u32 %v5120, 16
      %v5210 = vrot.slane %v5208, 5
      %v5211 = vor.u32 %v5207, %v5210
      %v5212 = vsel %vm964, %v5203, %v5211
      %v5214 = vshrl.u32 %v5121, 16
      %v5216 = vrot.slane %v5214, 4
      %v5217 = vshll.u32 %v5121, 16
      %v5219 = vrot.slane %v5217, 5
      %v5220 = vor.u32 %v5216, %v5219
      %v5222 = vshrl.u32 %v5122, 16
      %v5224 = vrot.slane %v5222, 4
      %v5225 = vshll.u32 %v5122, 16
      %v5227 = vrot.slane %v5225, 5
      %v5228 = vor.u32 %v5224, %v5227
      %v5229 = vsel %vm964, %v5220, %v5228
      %v5231 = vshrl.u32 %v5123, 16
      %v5233 = vrot.slane %v5231, 4
      %v5234 = vshll.u32 %v5123, 16
      %v5236 = vrot.slane %v5234, 5
      %v5237 = vor.u32 %v5233, %v5236
      %v5239 = vshrl.u32 %v5124, 16
      %v5241 = vrot.slane %v5239, 4
      %v5242 = vshll.u32 %v5124, 16
      %v5244 = vrot.slane %v5242, 5
      %v5245 = vor.u32 %v5241, %v5244
      %v5246 = vsel %vm964, %v5237, %v5245
      %v5248 = vshrl.u32 %v5125, 16
      %v5250 = vrot.slane %v5248, 4
      %v5251 = vshll.u32 %v5125, 16
      %v5253 = vrot.slane %v5251, 5
      %v5254 = vor.u32 %v5250, %v5253
      %v5256 = vshrl.u32 %v5126, 16
      %v5258 = vrot.slane %v5256, 4
      %v5259 = vshll.u32 %v5126, 16
      %v5261 = vrot.slane %v5259, 5
      %v5262 = vor.u32 %v5258, %v5261
      %v5263 = vsel %vm964, %v5254, %v5262
      %v5265 = vshrl.u32 %v5127, 16
      %v5267 = vrot.slane %v5265, 4
      %v5268 = vshll.u32 %v5127, 16
      %v5270 = vrot.slane %v5268, 5
      %v5271 = vor.u32 %v5267, %v5270
      %v5273 = vshrl.u32 %v5128, 16
      %v5275 = vrot.slane %v5273, 4
      %v5276 = vshll.u32 %v5128, 16
      %v5278 = vrot.slane %v5276, 5
      %v5279 = vor.u32 %v5275, %v5278
      %v5280 = vsel %vm964, %v5271, %v5279
      %v5282 = vshrl.u32 %v5129, 16
      %v5284 = vrot.slane %v5282, 4
      %v5285 = vshll.u32 %v5129, 16
      %v5287 = vrot.slane %v5285, 5
      %v5288 = vor.u32 %v5284, %v5287
      %v5290 = vshrl.u32 %v5130, 16
      %v5292 = vrot.slane %v5290, 4
      %v5293 = vshll.u32 %v5130, 16
      %v5295 = vrot.slane %v5293, 5
      %v5296 = vor.u32 %v5292, %v5295
      %v5297 = vsel %vm964, %v5288, %v5296
      %v5299 = vshrl.u32 %v5131, 16
      %v5301 = vrot.slane %v5299, 4
      %v5302 = vshll.u32 %v5131, 16
      %v5304 = vrot.slane %v5302, 5
      %v5305 = vor.u32 %v5301, %v5304
      %v5307 = vshrl.u32 %v5132, 16
      %v5309 = vrot.slane %v5307, 4
      %v5310 = vshll.u32 %v5132, 16
      %v5312 = vrot.slane %v5310, 5
      %v5313 = vor.u32 %v5309, %v5312
      %v5314 = vsel %vm964, %v5305, %v5313
      %v5316 = vshrl.u32 %v5133, 16
      %v5318 = vrot.slane %v5316, 4
      %v5319 = vshll.u32 %v5133, 16
      %v5321 = vrot.slane %v5319, 5
      %v5322 = vor.u32 %v5318, %v5321
      %v5324 = vshrl.u32 %v5134, 16
      %v5326 = vrot.slane %v5324, 4
      %v5327 = vshll.u32 %v5134, 16
      %v5329 = vrot.slane %v5327, 5
      %v5330 = vor.u32 %v5326, %v5329
      %v5331 = vsel %vm964, %v5322, %v5330
      %v5333 = vshrl.u32 %v5135, 16
      %v5335 = vrot.slane %v5333, 4
      %v5336 = vshll.u32 %v5135, 16
      %v5338 = vrot.slane %v5336, 5
      %v5339 = vor.u32 %v5335, %v5338
      %v5341 = vshrl.u32 %v5136, 16
      %v5343 = vrot.slane %v5341, 4
      %v5344 = vshll.u32 %v5136, 16
      %v5346 = vrot.slane %v5344, 5
      %v5347 = vor.u32 %v5343, %v5346
      %v5348 = vsel %vm964, %v5339, %v5347
      %v5350 = vshrl.u32 %v5137, 16
      %v5352 = vrot.slane %v5350, 4
      %v5353 = vshll.u32 %v5137, 16
      %v5355 = vrot.slane %v5353, 5
      %v5356 = vor.u32 %v5352, %v5355
      %v5358 = vshrl.u32 %v5138, 16
      %v5360 = vrot.slane %v5358, 4
      %v5361 = vshll.u32 %v5138, 16
      %v5363 = vrot.slane %v5361, 5
      %v5364 = vor.u32 %v5360, %v5363
      %v5365 = vsel %vm964, %v5356, %v5364
      %v5367 = vshrl.u32 %v5139, 16
      %v5369 = vrot.slane %v5367, 4
      %v5370 = vshll.u32 %v5139, 16
      %v5372 = vrot.slane %v5370, 5
      %v5373 = vor.u32 %v5369, %v5372
      %v5375 = vshrl.u32 %v5140, 16
      %v5377 = vrot.slane %v5375, 4
      %v5378 = vshll.u32 %v5140, 16
      %v5380 = vrot.slane %v5378, 5
      %v5381 = vor.u32 %v5377, %v5380
      %v5382 = vsel %vm964, %v5373, %v5381
      %v5384 = vshrl.u32 %v5141, 16
      %v5386 = vrot.slane %v5384, 4
      %v5387 = vshll.u32 %v5141, 16
      %v5389 = vrot.slane %v5387, 5
      %v5390 = vor.u32 %v5386, %v5389
      %v5392 = vshrl.u32 %v5142, 16
      %v5394 = vrot.slane %v5392, 4
      %v5395 = vshll.u32 %v5142, 16
      %v5397 = vrot.slane %v5395, 5
      %v5398 = vor.u32 %v5394, %v5397
      %v5399 = vsel %vm964, %v5390, %v5398
      %v5401 = vshrl.u32 %v5143, 16
      %v5403 = vrot.slane %v5401, 4
      %v5404 = vshll.u32 %v5143, 16
      %v5406 = vrot.slane %v5404, 5
      %v5407 = vor.u32 %v5403, %v5406
      %v5409 = vshrl.u32 %v5144, 16
      %v5411 = vrot.slane %v5409, 4
      %v5412 = vshll.u32 %v5144, 16
      %v5414 = vrot.slane %v5412, 5
      %v5415 = vor.u32 %v5411, %v5414
      %v5416 = vsel %vm964, %v5407, %v5415
      %5433 = vst [vmem:[#allocation3 + $0x10] sm:$0xff] %v5161
      %5434 = vst [vmem:[#allocation3 + $0x58] sm:$0xff] %v5178
      %5435 = vst [vmem:[#allocation3 + $0xa0] sm:$0xff] %v5195
      %5436 = vst [vmem:[#allocation3 + $0xe8] sm:$0xff] %v5212
      %5437 = vst [vmem:[#allocation3 + $0x130] sm:$0xff] %v5229
      %5438 = vst [vmem:[#allocation3 + $0x178] sm:$0xff] %v5246
      %5439 = vst [vmem:[#allocation3 + $0x1c0] sm:$0xff] %v5263
      %5440 = vst [vmem:[#allocation3 + $0x208] sm:$0xff] %v5280
      %5441 = vst [vmem:[#allocation3 + $0x250] sm:$0xff] %v5297
      %5442 = vst [vmem:[#allocation3 + $0x298] sm:$0xff] %v5314
      %5443 = vst [vmem:[#allocation3 + $0x2e0] sm:$0xff] %v5331
      %5444 = vst [vmem:[#allocation3 + $0x328] sm:$0xff] %v5348
      %5445 = vst [vmem:[#allocation3 + $0x370] sm:$0xff] %v5365
      %5446 = vst [vmem:[#allocation3 + $0x3b8] sm:$0xff] %v5382
      %5447 = vst [vmem:[#allocation3 + $0x400] sm:$0xff] %v5399
      %5448 = vst [vmem:[#allocation3 + $0x448] sm:$0xff] %v5416
      %v5449 = vld [vmem:[%s417] sm:$0xf8]
      %v5450 = vld [vmem:[%s417 + $0x8] sm:$0xf]
      %v5451 = vld [vmem:[%s417 + $0x10] sm:$0xf8]
      %v5452 = vld [vmem:[%s417 + $0x18] sm:$0xf]
      %v5453 = vld [vmem:[%s417 + $0x20] sm:$0xf8]
      %v5454 = vld [vmem:[%s417 + $0x28] sm:$0xf]
      %v5455 = vld [vmem:[%s417 + $0x30] sm:$0xf8]
      %v5456 = vld [vmem:[%s417 + $0x38] sm:$0xf]
      %v5457 = vld [vmem:[%s417 + $0x40] sm:$0xf8]
      %v5458 = vld [vmem:[%s417 + $0x48] sm:$0xf]
      %v5459 = vld [vmem:[%s417 + $0x50] sm:$0xf8]
      %v5460 = vld [vmem:[%s417 + $0x58] sm:$0xf]
      %v5461 = vld [vmem:[%s417 + $0x60] sm:$0xf8]
      %v5462 = vld [vmem:[%s417 + $0x68] sm:$0xf]
      %v5463 = vld [vmem:[%s417 + $0x70] sm:$0xf8]
      %v5464 = vld [vmem:[%s417 + $0x78] sm:$0xf]
      %v5465 = vld [vmem:[%s417 + $0x80] sm:$0xf8]
      %v5466 = vld [vmem:[%s417 + $0x88] sm:$0xf]
      %v5467 = vld [vmem:[%s417 + $0x90] sm:$0xf8]
      %v5468 = vld [vmem:[%s417 + $0x98] sm:$0xf]
      %v5469 = vld [vmem:[%s417 + $0xa0] sm:$0xf8]
      %v5470 = vld [vmem:[%s417 + $0xa8] sm:$0xf]
      %v5471 = vld [vmem:[%s417 + $0xb0] sm:$0xf8]
      %v5472 = vld [vmem:[%s417 + $0xb8] sm:$0xf]
      %v5473 = vld [vmem:[%s417 + $0xc0] sm:$0xf8]
      %v5474 = vld [vmem:[%s417 + $0xc8] sm:$0xf]
      %v5475 = vld [vmem:[%s417 + $0xd0] sm:$0xf8]
      %v5476 = vld [vmem:[%s417 + $0xd8] sm:$0xf]
      %v5477 = vld [vmem:[%s417 + $0xe0] sm:$0xf8]
      %v5478 = vld [vmem:[%s417 + $0xe8] sm:$0xf]
      %v5479 = vld [vmem:[%s417 + $0xf0] sm:$0xf8]
      %v5480 = vld [vmem:[%s417 + $0xf8] sm:$0xf]
      %v5482 = vshrl.u32 %v5449, 16
      %v5484 = vrot.slane %v5482, 3
      %v5485 = vshll.u32 %v5449, 16
      %v5487 = vrot.slane %v5485, 4
      %v5488 = vor.u32 %v5484, %v5487
      %v5490 = vshrl.u32 %v5450, 16
      %v5492 = vrot.slane %v5490, 3
      %v5493 = vshll.u32 %v5450, 16
      %v5495 = vrot.slane %v5493, 4
      %v5496 = vor.u32 %v5492, %v5495
      %v5497 = vsel %vm482, %v5488, %v5496
      %v5499 = vshrl.u32 %v5451, 16
      %v5501 = vrot.slane %v5499, 3
      %v5502 = vshll.u32 %v5451, 16
      %v5504 = vrot.slane %v5502, 4
      %v5505 = vor.u32 %v5501, %v5504
      %v5507 = vshrl.u32 %v5452, 16
      %v5509 = vrot.slane %v5507, 3
      %v5510 = vshll.u32 %v5452, 16
      %v5512 = vrot.slane %v5510, 4
      %v5513 = vor.u32 %v5509, %v5512
      %v5514 = vsel %vm482, %v5505, %v5513
      %v5516 = vshrl.u32 %v5453, 16
      %v5518 = vrot.slane %v5516, 3
      %v5519 = vshll.u32 %v5453, 16
      %v5521 = vrot.slane %v5519, 4
      %v5522 = vor.u32 %v5518, %v5521
      %v5524 = vshrl.u32 %v5454, 16
      %v5526 = vrot.slane %v5524, 3
      %v5527 = vshll.u32 %v5454, 16
      %v5529 = vrot.slane %v5527, 4
      %v5530 = vor.u32 %v5526, %v5529
      %v5531 = vsel %vm482, %v5522, %v5530
      %v5533 = vshrl.u32 %v5455, 16
      %v5535 = vrot.slane %v5533, 3
      %v5536 = vshll.u32 %v5455, 16
      %v5538 = vrot.slane %v5536, 4
      %v5539 = vor.u32 %v5535, %v5538
      %v5541 = vshrl.u32 %v5456, 16
      %v5543 = vrot.slane %v5541, 3
      %v5544 = vshll.u32 %v5456, 16
      %v5546 = vrot.slane %v5544, 4
      %v5547 = vor.u32 %v5543, %v5546
      %v5548 = vsel %vm482, %v5539, %v5547
      %v5550 = vshrl.u32 %v5457, 16
      %v5552 = vrot.slane %v5550, 3
      %v5553 = vshll.u32 %v5457, 16
      %v5555 = vrot.slane %v5553, 4
      %v5556 = vor.u32 %v5552, %v5555
      %v5558 = vshrl.u32 %v5458, 16
      %v5560 = vrot.slane %v5558, 3
      %v5561 = vshll.u32 %v5458, 16
      %v5563 = vrot.slane %v5561, 4
      %v5564 = vor.u32 %v5560, %v5563
      %v5565 = vsel %vm482, %v5556, %v5564
      %v5567 = vshrl.u32 %v5459, 16
      %v5569 = vrot.slane %v5567, 3
      %v5570 = vshll.u32 %v5459, 16
      %v5572 = vrot.slane %v5570, 4
      %v5573 = vor.u32 %v5569, %v5572
      %v5575 = vshrl.u32 %v5460, 16
      %v5577 = vrot.slane %v5575, 3
      %v5578 = vshll.u32 %v5460, 16
      %v5580 = vrot.slane %v5578, 4
      %v5581 = vor.u32 %v5577, %v5580
      %v5582 = vsel %vm482, %v5573, %v5581
      %v5584 = vshrl.u32 %v5461, 16
      %v5586 = vrot.slane %v5584, 3
      %v5587 = vshll.u32 %v5461, 16
      %v5589 = vrot.slane %v5587, 4
      %v5590 = vor.u32 %v5586, %v5589
      %v5592 = vshrl.u32 %v5462, 16
      %v5594 = vrot.slane %v5592, 3
      %v5595 = vshll.u32 %v5462, 16
      %v5597 = vrot.slane %v5595, 4
      %v5598 = vor.u32 %v5594, %v5597
      %v5599 = vsel %vm482, %v5590, %v5598
      %v5601 = vshrl.u32 %v5463, 16
      %v5603 = vrot.slane %v5601, 3
      %v5604 = vshll.u32 %v5463, 16
      %v5606 = vrot.slane %v5604, 4
      %v5607 = vor.u32 %v5603, %v5606
      %v5609 = vshrl.u32 %v5464, 16
      %v5611 = vrot.slane %v5609, 3
      %v5612 = vshll.u32 %v5464, 16
      %v5614 = vrot.slane %v5612, 4
      %v5615 = vor.u32 %v5611, %v5614
      %v5616 = vsel %vm482, %v5607, %v5615
      %v5618 = vshrl.u32 %v5465, 16
      %v5620 = vrot.slane %v5618, 3
      %v5621 = vshll.u32 %v5465, 16
      %v5623 = vrot.slane %v5621, 4
      %v5624 = vor.u32 %v5620, %v5623
      %v5626 = vshrl.u32 %v5466, 16
      %v5628 = vrot.slane %v5626, 3
      %v5629 = vshll.u32 %v5466, 16
      %v5631 = vrot.slane %v5629, 4
      %v5632 = vor.u32 %v5628, %v5631
      %v5633 = vsel %vm482, %v5624, %v5632
      %v5635 = vshrl.u32 %v5467, 16
      %v5637 = vrot.slane %v5635, 3
      %v5638 = vshll.u32 %v5467, 16
      %v5640 = vrot.slane %v5638, 4
      %v5641 = vor.u32 %v5637, %v5640
      %v5643 = vshrl.u32 %v5468, 16
      %v5645 = vrot.slane %v5643, 3
      %v5646 = vshll.u32 %v5468, 16
      %v5648 = vrot.slane %v5646, 4
      %v5649 = vor.u32 %v5645, %v5648
      %v5650 = vsel %vm482, %v5641, %v5649
      %v5652 = vshrl.u32 %v5469, 16
      %v5654 = vrot.slane %v5652, 3
      %v5655 = vshll.u32 %v5469, 16
      %v5657 = vrot.slane %v5655, 4
      %v5658 = vor.u32 %v5654, %v5657
      %v5660 = vshrl.u32 %v5470, 16
      %v5662 = vrot.slane %v5660, 3
      %v5663 = vshll.u32 %v5470, 16
      %v5665 = vrot.slane %v5663, 4
      %v5666 = vor.u32 %v5662, %v5665
      %v5667 = vsel %vm482, %v5658, %v5666
      %v5669 = vshrl.u32 %v5471, 16
      %v5671 = vrot.slane %v5669, 3
      %v5672 = vshll.u32 %v5471, 16
      %v5674 = vrot.slane %v5672, 4
      %v5675 = vor.u32 %v5671, %v5674
      %v5677 = vshrl.u32 %v5472, 16
      %v5679 = vrot.slane %v5677, 3
      %v5680 = vshll.u32 %v5472, 16
      %v5682 = vrot.slane %v5680, 4
      %v5683 = vor.u32 %v5679, %v5682
      %v5684 = vsel %vm482, %v5675, %v5683
      %v5686 = vshrl.u32 %v5473, 16
      %v5688 = vrot.slane %v5686, 3
      %v5689 = vshll.u32 %v5473, 16
      %v5691 = vrot.slane %v5689, 4
      %v5692 = vor.u32 %v5688, %v5691
      %v5694 = vshrl.u32 %v5474, 16
      %v5696 = vrot.slane %v5694, 3
      %v5697 = vshll.u32 %v5474, 16
      %v5699 = vrot.slane %v5697, 4
      %v5700 = vor.u32 %v5696, %v5699
      %v5701 = vsel %vm482, %v5692, %v5700
      %v5703 = vshrl.u32 %v5475, 16
      %v5705 = vrot.slane %v5703, 3
      %v5706 = vshll.u32 %v5475, 16
      %v5708 = vrot.slane %v5706, 4
      %v5709 = vor.u32 %v5705, %v5708
      %v5711 = vshrl.u32 %v5476, 16
      %v5713 = vrot.slane %v5711, 3
      %v5714 = vshll.u32 %v5476, 16
      %v5716 = vrot.slane %v5714, 4
      %v5717 = vor.u32 %v5713, %v5716
      %v5718 = vsel %vm482, %v5709, %v5717
      %v5720 = vshrl.u32 %v5477, 16
      %v5722 = vrot.slane %v5720, 3
      %v5723 = vshll.u32 %v5477, 16
      %v5725 = vrot.slane %v5723, 4
      %v5726 = vor.u32 %v5722, %v5725
      %v5728 = vshrl.u32 %v5478, 16
      %v5730 = vrot.slane %v5728, 3
      %v5731 = vshll.u32 %v5478, 16
      %v5733 = vrot.slane %v5731, 4
      %v5734 = vor.u32 %v5730, %v5733
      %v5735 = vsel %vm482, %v5726, %v5734
      %v5737 = vshrl.u32 %v5479, 16
      %v5739 = vrot.slane %v5737, 3
      %v5740 = vshll.u32 %v5479, 16
      %v5742 = vrot.slane %v5740, 4
      %v5743 = vor.u32 %v5739, %v5742
      %v5745 = vshrl.u32 %v5480, 16
      %v5747 = vrot.slane %v5745, 3
      %v5748 = vshll.u32 %v5480, 16
      %v5750 = vrot.slane %v5748, 4
      %v5751 = vor.u32 %v5747, %v5750
      %v5752 = vsel %vm482, %v5743, %v5751
      %5769 = vst [vmem:[#allocation3 + $0x18] sm:$0xff] %v5497
      %5770 = vst [vmem:[#allocation3 + $0x60] sm:$0xff] %v5514
      %5771 = vst [vmem:[#allocation3 + $0xa8] sm:$0xff] %v5531
      %5772 = vst [vmem:[#allocation3 + $0xf0] sm:$0xff] %v5548
      %5773 = vst [vmem:[#allocation3 + $0x138] sm:$0xff] %v5565
      %5774 = vst [vmem:[#allocation3 + $0x180] sm:$0xff] %v5582
      %5775 = vst [vmem:[#allocation3 + $0x1c8] sm:$0xff] %v5599
      %5776 = vst [vmem:[#allocation3 + $0x210] sm:$0xff] %v5616
      %5777 = vst [vmem:[#allocation3 + $0x258] sm:$0xff] %v5633
      %5778 = vst [vmem:[#allocation3 + $0x2a0] sm:$0xff] %v5650
      %5779 = vst [vmem:[#allocation3 + $0x2e8] sm:$0xff] %v5667
      %5780 = vst [vmem:[#allocation3 + $0x330] sm:$0xff] %v5684
      %5781 = vst [vmem:[#allocation3 + $0x378] sm:$0xff] %v5701
      %5782 = vst [vmem:[#allocation3 + $0x3c0] sm:$0xff] %v5718
      %5783 = vst [vmem:[#allocation3 + $0x408] sm:$0xff] %v5735
      %5784 = vst [vmem:[#allocation3 + $0x450] sm:$0xff] %v5752
      %v5785 = vld [vmem:[%s417] sm:$0xf0]
      %v5786 = vld [vmem:[%s417 + $0x8] sm:$0xf]
      %v5787 = vld [vmem:[%s417 + $0x10] sm:$0xf0]
      %v5788 = vld [vmem:[%s417 + $0x18] sm:$0xf]
      %v5789 = vld [vmem:[%s417 + $0x20] sm:$0xf0]
      %v5790 = vld [vmem:[%s417 + $0x28] sm:$0xf]
      %v5791 = vld [vmem:[%s417 + $0x30] sm:$0xf0]
      %v5792 = vld [vmem:[%s417 + $0x38] sm:$0xf]
      %v5793 = vld [vmem:[%s417 + $0x40] sm:$0xf0]
      %v5794 = vld [vmem:[%s417 + $0x48] sm:$0xf]
      %v5795 = vld [vmem:[%s417 + $0x50] sm:$0xf0]
      %v5796 = vld [vmem:[%s417 + $0x58] sm:$0xf]
      %v5797 = vld [vmem:[%s417 + $0x60] sm:$0xf0]
      %v5798 = vld [vmem:[%s417 + $0x68] sm:$0xf]
      %v5799 = vld [vmem:[%s417 + $0x70] sm:$0xf0]
      %v5800 = vld [vmem:[%s417 + $0x78] sm:$0xf]
      %v5801 = vld [vmem:[%s417 + $0x80] sm:$0xf0]
      %v5802 = vld [vmem:[%s417 + $0x88] sm:$0xf]
      %v5803 = vld [vmem:[%s417 + $0x90] sm:$0xf0]
      %v5804 = vld [vmem:[%s417 + $0x98] sm:$0xf]
      %v5805 = vld [vmem:[%s417 + $0xa0] sm:$0xf0]
      %v5806 = vld [vmem:[%s417 + $0xa8] sm:$0xf]
      %v5807 = vld [vmem:[%s417 + $0xb0] sm:$0xf0]
      %v5808 = vld [vmem:[%s417 + $0xb8] sm:$0xf]
      %v5809 = vld [vmem:[%s417 + $0xc0] sm:$0xf0]
      %v5810 = vld [vmem:[%s417 + $0xc8] sm:$0xf]
      %v5811 = vld [vmem:[%s417 + $0xd0] sm:$0xf0]
      %v5812 = vld [vmem:[%s417 + $0xd8] sm:$0xf]
      %v5813 = vld [vmem:[%s417 + $0xe0] sm:$0xf0]
      %v5814 = vld [vmem:[%s417 + $0xe8] sm:$0xf]
      %v5815 = vld [vmem:[%s417 + $0xf0] sm:$0xf0]
      %v5816 = vld [vmem:[%s417 + $0xf8] sm:$0xf]
      %v5849 = vrot.slane %v5785, 4
      %v5850 = vrot.slane %v5786, 4
      %v5851 = vsel %vm851, %v5849, %v5850
      %v5852 = vrot.slane %v5787, 4
      %v5853 = vrot.slane %v5788, 4
      %v5854 = vsel %vm851, %v5852, %v5853
      %v5855 = vrot.slane %v5789, 4
      %v5856 = vrot.slane %v5790, 4
      %v5857 = vsel %vm851, %v5855, %v5856
      %v5858 = vrot.slane %v5791, 4
      %v5859 = vrot.slane %v5792, 4
      %v5860 = vsel %vm851, %v5858, %v5859
      %v5861 = vrot.slane %v5793, 4
      %v5862 = vrot.slane %v5794, 4
      %v5863 = vsel %vm851, %v5861, %v5862
      %v5864 = vrot.slane %v5795, 4
      %v5865 = vrot.slane %v5796, 4
      %v5866 = vsel %vm851, %v5864, %v5865
      %v5867 = vrot.slane %v5797, 4
      %v5868 = vrot.slane %v5798, 4
      %v5869 = vsel %vm851, %v5867, %v5868
      %v5870 = vrot.slane %v5799, 4
      %v5871 = vrot.slane %v5800, 4
      %v5872 = vsel %vm851, %v5870, %v5871
      %v5873 = vrot.slane %v5801, 4
      %v5874 = vrot.slane %v5802, 4
      %v5875 = vsel %vm851, %v5873, %v5874
      %v5876 = vrot.slane %v5803, 4
      %v5877 = vrot.slane %v5804, 4
      %v5878 = vsel %vm851, %v5876, %v5877
      %v5879 = vrot.slane %v5805, 4
      %v5880 = vrot.slane %v5806, 4
      %v5881 = vsel %vm851, %v5879, %v5880
      %v5882 = vrot.slane %v5807, 4
      %v5883 = vrot.slane %v5808, 4
      %v5884 = vsel %vm851, %v5882, %v5883
      %v5885 = vrot.slane %v5809, 4
      %v5886 = vrot.slane %v5810, 4
      %v5887 = vsel %vm851, %v5885, %v5886
      %v5888 = vrot.slane %v5811, 4
      %v5889 = vrot.slane %v5812, 4
      %v5890 = vsel %vm851, %v5888, %v5889
      %v5891 = vrot.slane %v5813, 4
      %v5892 = vrot.slane %v5814, 4
      %v5893 = vsel %vm851, %v5891, %v5892
      %v5894 = vrot.slane %v5815, 4
      %v5895 = vrot.slane %v5816, 4
      %v5896 = vsel %vm851, %v5894, %v5895
      %5913 = vst [vmem:[#allocation3 + $0x20] sm:$0xff] %v5851
      %5914 = vst [vmem:[#allocation3 + $0x68] sm:$0xff] %v5854
      %5915 = vst [vmem:[#allocation3 + $0xb0] sm:$0xff] %v5857
      %5916 = vst [vmem:[#allocation3 + $0xf8] sm:$0xff] %v5860
      %5917 = vst [vmem:[#allocation3 + $0x140] sm:$0xff] %v5863
      %5918 = vst [vmem:[#allocation3 + $0x188] sm:$0xff] %v5866
      %5919 = vst [vmem:[#allocation3 + $0x1d0] sm:$0xff] %v5869
      %5920 = vst [vmem:[#allocation3 + $0x218] sm:$0xff] %v5872
      %5921 = vst [vmem:[#allocation3 + $0x260] sm:$0xff] %v5875
      %5922 = vst [vmem:[#allocation3 + $0x2a8] sm:$0xff] %v5878
      %5923 = vst [vmem:[#allocation3 + $0x2f0] sm:$0xff] %v5881
      %5924 = vst [vmem:[#allocation3 + $0x338] sm:$0xff] %v5884
      %5925 = vst [vmem:[#allocation3 + $0x380] sm:$0xff] %v5887
      %5926 = vst [vmem:[#allocation3 + $0x3c8] sm:$0xff] %v5890
      %5927 = vst [vmem:[#allocation3 + $0x410] sm:$0xff] %v5893
      %5928 = vst [vmem:[#allocation3 + $0x458] sm:$0xff] %v5896
      %v5929 = vld [vmem:[%s417] sm:$0xf0]
      %v5930 = vld [vmem:[%s417 + $0x8] sm:$0x1f]
      %v5931 = vld [vmem:[%s417 + $0x10] sm:$0xf0]
      %v5932 = vld [vmem:[%s417 + $0x18] sm:$0x1f]
      %v5933 = vld [vmem:[%s417 + $0x20] sm:$0xf0]
      %v5934 = vld [vmem:[%s417 + $0x28] sm:$0x1f]
      %v5935 = vld [vmem:[%s417 + $0x30] sm:$0xf0]
      %v5936 = vld [vmem:[%s417 + $0x38] sm:$0x1f]
      %v5937 = vld [vmem:[%s417 + $0x40] sm:$0xf0]
      %v5938 = vld [vmem:[%s417 + $0x48] sm:$0x1f]
      %v5939 = vld [vmem:[%s417 + $0x50] sm:$0xf0]
      %v5940 = vld [vmem:[%s417 + $0x58] sm:$0x1f]
      %v5941 = vld [vmem:[%s417 + $0x60] sm:$0xf0]
      %v5942 = vld [vmem:[%s417 + $0x68] sm:$0x1f]
      %v5943 = vld [vmem:[%s417 + $0x70] sm:$0xf0]
      %v5944 = vld [vmem:[%s417 + $0x78] sm:$0x1f]
      %v5945 = vld [vmem:[%s417 + $0x80] sm:$0xf0]
      %v5946 = vld [vmem:[%s417 + $0x88] sm:$0x1f]
      %v5947 = vld [vmem:[%s417 + $0x90] sm:$0xf0]
      %v5948 = vld [vmem:[%s417 + $0x98] sm:$0x1f]
      %v5949 = vld [vmem:[%s417 + $0xa0] sm:$0xf0]
      %v5950 = vld [vmem:[%s417 + $0xa8] sm:$0x1f]
      %v5951 = vld [vmem:[%s417 + $0xb0] sm:$0xf0]
      %v5952 = vld [vmem:[%s417 + $0xb8] sm:$0x1f]
      %v5953 = vld [vmem:[%s417 + $0xc0] sm:$0xf0]
      %v5954 = vld [vmem:[%s417 + $0xc8] sm:$0x1f]
      %v5955 = vld [vmem:[%s417 + $0xd0] sm:$0xf0]
      %v5956 = vld [vmem:[%s417 + $0xd8] sm:$0x1f]
      %v5957 = vld [vmem:[%s417 + $0xe0] sm:$0xf0]
      %v5958 = vld [vmem:[%s417 + $0xe8] sm:$0x1f]
      %v5959 = vld [vmem:[%s417 + $0xf0] sm:$0xf0]
      %v5960 = vld [vmem:[%s417 + $0xf8] sm:$0x1f]
      %v5962 = vshrl.u32 %v5929, 16
      %v5964 = vrot.slane %v5962, 4
      %v5965 = vshll.u32 %v5929, 16
      %v5967 = vrot.slane %v5965, 5
      %v5968 = vor.u32 %v5964, %v5967
      %v5970 = vshrl.u32 %v5930, 16
      %v5972 = vrot.slane %v5970, 4
      %v5973 = vshll.u32 %v5930, 16
      %v5975 = vrot.slane %v5973, 5
      %v5976 = vor.u32 %v5972, %v5975
      %v5977 = vsel %vm964, %v5968, %v5976
      %v5979 = vshrl.u32 %v5931, 16
      %v5981 = vrot.slane %v5979, 4
      %v5982 = vshll.u32 %v5931, 16
      %v5984 = vrot.slane %v5982, 5
      %v5985 = vor.u32 %v5981, %v5984
      %v5987 = vshrl.u32 %v5932, 16
      %v5989 = vrot.slane %v5987, 4
      %v5990 = vshll.u32 %v5932, 16
      %v5992 = vrot.slane %v5990, 5
      %v5993 = vor.u32 %v5989, %v5992
      %v5994 = vsel %vm964, %v5985, %v5993
      %v5996 = vshrl.u32 %v5933, 16
      %v5998 = vrot.slane %v5996, 4
      %v5999 = vshll.u32 %v5933, 16
      %v6001 = vrot.slane %v5999, 5
      %v6002 = vor.u32 %v5998, %v6001
      %v6004 = vshrl.u32 %v5934, 16
      %v6006 = vrot.slane %v6004, 4
      %v6007 = vshll.u32 %v5934, 16
      %v6009 = vrot.slane %v6007, 5
      %v6010 = vor.u32 %v6006, %v6009
      %v6011 = vsel %vm964, %v6002, %v6010
      %v6013 = vshrl.u32 %v5935, 16
      %v6015 = vrot.slane %v6013, 4
      %v6016 = vshll.u32 %v5935, 16
      %v6018 = vrot.slane %v6016, 5
      %v6019 = vor.u32 %v6015, %v6018
      %v6021 = vshrl.u32 %v5936, 16
      %v6023 = vrot.slane %v6021, 4
      %v6024 = vshll.u32 %v5936, 16
      %v6026 = vrot.slane %v6024, 5
      %v6027 = vor.u32 %v6023, %v6026
      %v6028 = vsel %vm964, %v6019, %v6027
      %v6030 = vshrl.u32 %v5937, 16
      %v6032 = vrot.slane %v6030, 4
      %v6033 = vshll.u32 %v5937, 16
      %v6035 = vrot.slane %v6033, 5
      %v6036 = vor.u32 %v6032, %v6035
      %v6038 = vshrl.u32 %v5938, 16
      %v6040 = vrot.slane %v6038, 4
      %v6041 = vshll.u32 %v5938, 16
      %v6043 = vrot.slane %v6041, 5
      %v6044 = vor.u32 %v6040, %v6043
      %v6045 = vsel %vm964, %v6036, %v6044
      %v6047 = vshrl.u32 %v5939, 16
      %v6049 = vrot.slane %v6047, 4
      %v6050 = vshll.u32 %v5939, 16
      %v6052 = vrot.slane %v6050, 5
      %v6053 = vor.u32 %v6049, %v6052
      %v6055 = vshrl.u32 %v5940, 16
      %v6057 = vrot.slane %v6055, 4
      %v6058 = vshll.u32 %v5940, 16
      %v6060 = vrot.slane %v6058, 5
      %v6061 = vor.u32 %v6057, %v6060
      %v6062 = vsel %vm964, %v6053, %v6061
      %v6064 = vshrl.u32 %v5941, 16
      %v6066 = vrot.slane %v6064, 4
      %v6067 = vshll.u32 %v5941, 16
      %v6069 = vrot.slane %v6067, 5
      %v6070 = vor.u32 %v6066, %v6069
      %v6072 = vshrl.u32 %v5942, 16
      %v6074 = vrot.slane %v6072, 4
      %v6075 = vshll.u32 %v5942, 16
      %v6077 = vrot.slane %v6075, 5
      %v6078 = vor.u32 %v6074, %v6077
      %v6079 = vsel %vm964, %v6070, %v6078
      %v6081 = vshrl.u32 %v5943, 16
      %v6083 = vrot.slane %v6081, 4
      %v6084 = vshll.u32 %v5943, 16
      %v6086 = vrot.slane %v6084, 5
      %v6087 = vor.u32 %v6083, %v6086
      %v6089 = vshrl.u32 %v5944, 16
      %v6091 = vrot.slane %v6089, 4
      %v6092 = vshll.u32 %v5944, 16
      %v6094 = vrot.slane %v6092, 5
      %v6095 = vor.u32 %v6091, %v6094
      %v6096 = vsel %vm964, %v6087, %v6095
      %v6098 = vshrl.u32 %v5945, 16
      %v6100 = vrot.slane %v6098, 4
      %v6101 = vshll.u32 %v5945, 16
      %v6103 = vrot.slane %v6101, 5
      %v6104 = vor.u32 %v6100, %v6103
      %v6106 = vshrl.u32 %v5946, 16
      %v6108 = vrot.slane %v6106, 4
      %v6109 = vshll.u32 %v5946, 16
      %v6111 = vrot.slane %v6109, 5
      %v6112 = vor.u32 %v6108, %v6111
      %v6113 = vsel %vm964, %v6104, %v6112
      %v6115 = vshrl.u32 %v5947, 16
      %v6117 = vrot.slane %v6115, 4
      %v6118 = vshll.u32 %v5947, 16
      %v6120 = vrot.slane %v6118, 5
      %v6121 = vor.u32 %v6117, %v6120
      %v6123 = vshrl.u32 %v5948, 16
      %v6125 = vrot.slane %v6123, 4
      %v6126 = vshll.u32 %v5948, 16
      %v6128 = vrot.slane %v6126, 5
      %v6129 = vor.u32 %v6125, %v6128
      %v6130 = vsel %vm964, %v6121, %v6129
      %v6132 = vshrl.u32 %v5949, 16
      %v6134 = vrot.slane %v6132, 4
      %v6135 = vshll.u32 %v5949, 16
      %v6137 = vrot.slane %v6135, 5
      %v6138 = vor.u32 %v6134, %v6137
      %v6140 = vshrl.u32 %v5950, 16
      %v6142 = vrot.slane %v6140, 4
      %v6143 = vshll.u32 %v5950, 16
      %v6145 = vrot.slane %v6143, 5
      %v6146 = vor.u32 %v6142, %v6145
      %v6147 = vsel %vm964, %v6138, %v6146
      %v6149 = vshrl.u32 %v5951, 16
      %v6151 = vrot.slane %v6149, 4
      %v6152 = vshll.u32 %v5951, 16
      %v6154 = vrot.slane %v6152, 5
      %v6155 = vor.u32 %v6151, %v6154
      %v6157 = vshrl.u32 %v5952, 16
      %v6159 = vrot.slane %v6157, 4
      %v6160 = vshll.u32 %v5952, 16
      %v6162 = vrot.slane %v6160, 5
      %v6163 = vor.u32 %v6159, %v6162
      %v6164 = vsel %vm964, %v6155, %v6163
      %v6166 = vshrl.u32 %v5953, 16
      %v6168 = vrot.slane %v6166, 4
      %v6169 = vshll.u32 %v5953, 16
      %v6171 = vrot.slane %v6169, 5
      %v6172 = vor.u32 %v6168, %v6171
      %v6174 = vshrl.u32 %v5954, 16
      %v6176 = vrot.slane %v6174, 4
      %v6177 = vshll.u32 %v5954, 16
      %v6179 = vrot.slane %v6177, 5
      %v6180 = vor.u32 %v6176, %v6179
      %v6181 = vsel %vm964, %v6172, %v6180
      %v6183 = vshrl.u32 %v5955, 16
      %v6185 = vrot.slane %v6183, 4
      %v6186 = vshll.u32 %v5955, 16
      %v6188 = vrot.slane %v6186, 5
      %v6189 = vor.u32 %v6185, %v6188
      %v6191 = vshrl.u32 %v5956, 16
      %v6193 = vrot.slane %v6191, 4
      %v6194 = vshll.u32 %v5956, 16
      %v6196 = vrot.slane %v6194, 5
      %v6197 = vor.u32 %v6193, %v6196
      %v6198 = vsel %vm964, %v6189, %v6197
      %v6200 = vshrl.u32 %v5957, 16
      %v6202 = vrot.slane %v6200, 4
      %v6203 = vshll.u32 %v5957, 16
      %v6205 = vrot.slane %v6203, 5
      %v6206 = vor.u32 %v6202, %v6205
      %v6208 = vshrl.u32 %v5958, 16
      %v6210 = vrot.slane %v6208, 4
      %v6211 = vshll.u32 %v5958, 16
      %v6213 = vrot.slane %v6211, 5
      %v6214 = vor.u32 %v6210, %v6213
      %v6215 = vsel %vm964, %v6206, %v6214
      %v6217 = vshrl.u32 %v5959, 16
      %v6219 = vrot.slane %v6217, 4
      %v6220 = vshll.u32 %v5959, 16
      %v6222 = vrot.slane %v6220, 5
      %v6223 = vor.u32 %v6219, %v6222
      %v6225 = vshrl.u32 %v5960, 16
      %v6227 = vrot.slane %v6225, 4
      %v6228 = vshll.u32 %v5960, 16
      %v6230 = vrot.slane %v6228, 5
      %v6231 = vor.u32 %v6227, %v6230
      %v6232 = vsel %vm964, %v6223, %v6231
      %6249 = vst [vmem:[#allocation3 + $0x28] sm:$0xff] %v5977
      %6250 = vst [vmem:[#allocation3 + $0x70] sm:$0xff] %v5994
      %6251 = vst [vmem:[#allocation3 + $0xb8] sm:$0xff] %v6011
      %6252 = vst [vmem:[#allocation3 + $0x100] sm:$0xff] %v6028
      %6253 = vst [vmem:[#allocation3 + $0x148] sm:$0xff] %v6045
      %6254 = vst [vmem:[#allocation3 + $0x190] sm:$0xff] %v6062
      %6255 = vst [vmem:[#allocation3 + $0x1d8] sm:$0xff] %v6079
      %6256 = vst [vmem:[#allocation3 + $0x220] sm:$0xff] %v6096
      %6257 = vst [vmem:[#allocation3 + $0x268] sm:$0xff] %v6113
      %6258 = vst [vmem:[#allocation3 + $0x2b0] sm:$0xff] %v6130
      %6259 = vst [vmem:[#allocation3 + $0x2f8] sm:$0xff] %v6147
      %6260 = vst [vmem:[#allocation3 + $0x340] sm:$0xff] %v6164
      %6261 = vst [vmem:[#allocation3 + $0x388] sm:$0xff] %v6181
      %6262 = vst [vmem:[#allocation3 + $0x3d0] sm:$0xff] %v6198
      %6263 = vst [vmem:[#allocation3 + $0x418] sm:$0xff] %v6215
      %6264 = vst [vmem:[#allocation3 + $0x460] sm:$0xff] %v6232
      %v6265 = vld [vmem:[%s2085] sm:$0xf8]
      %v6266 = vld [vmem:[%s2085 + $0x8] sm:$0xf]
      %v6267 = vld [vmem:[%s2085 + $0x10] sm:$0xf8]
      %v6268 = vld [vmem:[%s2085 + $0x18] sm:$0xf]
      %v6269 = vld [vmem:[%s2085 + $0x20] sm:$0xf8]
      %v6270 = vld [vmem:[%s2085 + $0x28] sm:$0xf]
      %v6271 = vld [vmem:[%s2085 + $0x30] sm:$0xf8]
      %v6272 = vld [vmem:[%s2085 + $0x38] sm:$0xf]
      %v6273 = vld [vmem:[%s2085 + $0x40] sm:$0xf8]
      %v6274 = vld [vmem:[%s2085 + $0x48] sm:$0xf]
      %v6275 = vld [vmem:[%s2085 + $0x50] sm:$0xf8]
      %v6276 = vld [vmem:[%s2085 + $0x58] sm:$0xf]
      %v6277 = vld [vmem:[%s2085 + $0x60] sm:$0xf8]
      %v6278 = vld [vmem:[%s2085 + $0x68] sm:$0xf]
      %v6279 = vld [vmem:[%s2085 + $0x70] sm:$0xf8]
      %v6280 = vld [vmem:[%s2085 + $0x78] sm:$0xf]
      %v6281 = vld [vmem:[%s2085 + $0x80] sm:$0xf8]
      %v6282 = vld [vmem:[%s2085 + $0x88] sm:$0xf]
      %v6283 = vld [vmem:[%s2085 + $0x90] sm:$0xf8]
      %v6284 = vld [vmem:[%s2085 + $0x98] sm:$0xf]
      %v6285 = vld [vmem:[%s2085 + $0xa0] sm:$0xf8]
      %v6286 = vld [vmem:[%s2085 + $0xa8] sm:$0xf]
      %v6287 = vld [vmem:[%s2085 + $0xb0] sm:$0xf8]
      %v6288 = vld [vmem:[%s2085 + $0xb8] sm:$0xf]
      %v6289 = vld [vmem:[%s2085 + $0xc0] sm:$0xf8]
      %v6290 = vld [vmem:[%s2085 + $0xc8] sm:$0xf]
      %v6291 = vld [vmem:[%s2085 + $0xd0] sm:$0xf8]
      %v6292 = vld [vmem:[%s2085 + $0xd8] sm:$0xf]
      %v6293 = vld [vmem:[%s2085 + $0xe0] sm:$0xf8]
      %v6294 = vld [vmem:[%s2085 + $0xe8] sm:$0xf]
      %v6295 = vld [vmem:[%s2085 + $0xf0] sm:$0xf8]
      %v6296 = vld [vmem:[%s2085 + $0xf8] sm:$0xf]
      %v6298 = vshrl.u32 %v6265, 16
      %v6300 = vrot.slane %v6298, 3
      %v6301 = vshll.u32 %v6265, 16
      %v6303 = vrot.slane %v6301, 4
      %v6304 = vor.u32 %v6300, %v6303
      %v6306 = vshrl.u32 %v6266, 16
      %v6308 = vrot.slane %v6306, 3
      %v6309 = vshll.u32 %v6266, 16
      %v6311 = vrot.slane %v6309, 4
      %v6312 = vor.u32 %v6308, %v6311
      %v6313 = vsel %vm482, %v6304, %v6312
      %v6315 = vshrl.u32 %v6267, 16
      %v6317 = vrot.slane %v6315, 3
      %v6318 = vshll.u32 %v6267, 16
      %v6320 = vrot.slane %v6318, 4
      %v6321 = vor.u32 %v6317, %v6320
      %v6323 = vshrl.u32 %v6268, 16
      %v6325 = vrot.slane %v6323, 3
      %v6326 = vshll.u32 %v6268, 16
      %v6328 = vrot.slane %v6326, 4
      %v6329 = vor.u32 %v6325, %v6328
      %v6330 = vsel %vm482, %v6321, %v6329
      %v6332 = vshrl.u32 %v6269, 16
      %v6334 = vrot.slane %v6332, 3
      %v6335 = vshll.u32 %v6269, 16
      %v6337 = vrot.slane %v6335, 4
      %v6338 = vor.u32 %v6334, %v6337
      %v6340 = vshrl.u32 %v6270, 16
      %v6342 = vrot.slane %v6340, 3
      %v6343 = vshll.u32 %v6270, 16
      %v6345 = vrot.slane %v6343, 4
      %v6346 = vor.u32 %v6342, %v6345
      %v6347 = vsel %vm482, %v6338, %v6346
      %v6349 = vshrl.u32 %v6271, 16
      %v6351 = vrot.slane %v6349, 3
      %v6352 = vshll.u32 %v6271, 16
      %v6354 = vrot.slane %v6352, 4
      %v6355 = vor.u32 %v6351, %v6354
      %v6357 = vshrl.u32 %v6272, 16
      %v6359 = vrot.slane %v6357, 3
      %v6360 = vshll.u32 %v6272, 16
      %v6362 = vrot.slane %v6360, 4
      %v6363 = vor.u32 %v6359, %v6362
      %v6364 = vsel %vm482, %v6355, %v6363
      %v6366 = vshrl.u32 %v6273, 16
      %v6368 = vrot.slane %v6366, 3
      %v6369 = vshll.u32 %v6273, 16
      %v6371 = vrot.slane %v6369, 4
      %v6372 = vor.u32 %v6368, %v6371
      %v6374 = vshrl.u32 %v6274, 16
      %v6376 = vrot.slane %v6374, 3
      %v6377 = vshll.u32 %v6274, 16
      %v6379 = vrot.slane %v6377, 4
      %v6380 = vor.u32 %v6376, %v6379
      %v6381 = vsel %vm482, %v6372, %v6380
      %v6383 = vshrl.u32 %v6275, 16
      %v6385 = vrot.slane %v6383, 3
      %v6386 = vshll.u32 %v6275, 16
      %v6388 = vrot.slane %v6386, 4
      %v6389 = vor.u32 %v6385, %v6388
      %v6391 = vshrl.u32 %v6276, 16
      %v6393 = vrot.slane %v6391, 3
      %v6394 = vshll.u32 %v6276, 16
      %v6396 = vrot.slane %v6394, 4
      %v6397 = vor.u32 %v6393, %v6396
      %v6398 = vsel %vm482, %v6389, %v6397
      %v6400 = vshrl.u32 %v6277, 16
      %v6402 = vrot.slane %v6400, 3
      %v6403 = vshll.u32 %v6277, 16
      %v6405 = vrot.slane %v6403, 4
      %v6406 = vor.u32 %v6402, %v6405
      %v6408 = vshrl.u32 %v6278, 16
      %v6410 = vrot.slane %v6408, 3
      %v6411 = vshll.u32 %v6278, 16
      %v6413 = vrot.slane %v6411, 4
      %v6414 = vor.u32 %v6410, %v6413
      %v6415 = vsel %vm482, %v6406, %v6414
      %v6417 = vshrl.u32 %v6279, 16
      %v6419 = vrot.slane %v6417, 3
      %v6420 = vshll.u32 %v6279, 16
      %v6422 = vrot.slane %v6420, 4
      %v6423 = vor.u32 %v6419, %v6422
      %v6425 = vshrl.u32 %v6280, 16
      %v6427 = vrot.slane %v6425, 3
      %v6428 = vshll.u32 %v6280, 16
      %v6430 = vrot.slane %v6428, 4
      %v6431 = vor.u32 %v6427, %v6430
      %v6432 = vsel %vm482, %v6423, %v6431
      %v6434 = vshrl.u32 %v6281, 16
      %v6436 = vrot.slane %v6434, 3
      %v6437 = vshll.u32 %v6281, 16
      %v6439 = vrot.slane %v6437, 4
      %v6440 = vor.u32 %v6436, %v6439
      %v6442 = vshrl.u32 %v6282, 16
      %v6444 = vrot.slane %v6442, 3
      %v6445 = vshll.u32 %v6282, 16
      %v6447 = vrot.slane %v6445, 4
      %v6448 = vor.u32 %v6444, %v6447
      %v6449 = vsel %vm482, %v6440, %v6448
      %v6451 = vshrl.u32 %v6283, 16
      %v6453 = vrot.slane %v6451, 3
      %v6454 = vshll.u32 %v6283, 16
      %v6456 = vrot.slane %v6454, 4
      %v6457 = vor.u32 %v6453, %v6456
      %v6459 = vshrl.u32 %v6284, 16
      %v6461 = vrot.slane %v6459, 3
      %v6462 = vshll.u32 %v6284, 16
      %v6464 = vrot.slane %v6462, 4
      %v6465 = vor.u32 %v6461, %v6464
      %v6466 = vsel %vm482, %v6457, %v6465
      %v6468 = vshrl.u32 %v6285, 16
      %v6470 = vrot.slane %v6468, 3
      %v6471 = vshll.u32 %v6285, 16
      %v6473 = vrot.slane %v6471, 4
      %v6474 = vor.u32 %v6470, %v6473
      %v6476 = vshrl.u32 %v6286, 16
      %v6478 = vrot.slane %v6476, 3
      %v6479 = vshll.u32 %v6286, 16
      %v6481 = vrot.slane %v6479, 4
      %v6482 = vor.u32 %v6478, %v6481
      %v6483 = vsel %vm482, %v6474, %v6482
      %v6485 = vshrl.u32 %v6287, 16
      %v6487 = vrot.slane %v6485, 3
      %v6488 = vshll.u32 %v6287, 16
      %v6490 = vrot.slane %v6488, 4
      %v6491 = vor.u32 %v6487, %v6490
      %v6493 = vshrl.u32 %v6288, 16
      %v6495 = vrot.slane %v6493, 3
      %v6496 = vshll.u32 %v6288, 16
      %v6498 = vrot.slane %v6496, 4
      %v6499 = vor.u32 %v6495, %v6498
      %v6500 = vsel %vm482, %v6491, %v6499
      %v6502 = vshrl.u32 %v6289, 16
      %v6504 = vrot.slane %v6502, 3
      %v6505 = vshll.u32 %v6289, 16
      %v6507 = vrot.slane %v6505, 4
      %v6508 = vor.u32 %v6504, %v6507
      %v6510 = vshrl.u32 %v6290, 16
      %v6512 = vrot.slane %v6510, 3
      %v6513 = vshll.u32 %v6290, 16
      %v6515 = vrot.slane %v6513, 4
      %v6516 = vor.u32 %v6512, %v6515
      %v6517 = vsel %vm482, %v6508, %v6516
      %v6519 = vshrl.u32 %v6291, 16
      %v6521 = vrot.slane %v6519, 3
      %v6522 = vshll.u32 %v6291, 16
      %v6524 = vrot.slane %v6522, 4
      %v6525 = vor.u32 %v6521, %v6524
      %v6527 = vshrl.u32 %v6292, 16
      %v6529 = vrot.slane %v6527, 3
      %v6530 = vshll.u32 %v6292, 16
      %v6532 = vrot.slane %v6530, 4
      %v6533 = vor.u32 %v6529, %v6532
      %v6534 = vsel %vm482, %v6525, %v6533
      %v6536 = vshrl.u32 %v6293, 16
      %v6538 = vrot.slane %v6536, 3
      %v6539 = vshll.u32 %v6293, 16
      %v6541 = vrot.slane %v6539, 4
      %v6542 = vor.u32 %v6538, %v6541
      %v6544 = vshrl.u32 %v6294, 16
      %v6546 = vrot.slane %v6544, 3
      %v6547 = vshll.u32 %v6294, 16
      %v6549 = vrot.slane %v6547, 4
      %v6550 = vor.u32 %v6546, %v6549
      %v6551 = vsel %vm482, %v6542, %v6550
      %v6553 = vshrl.u32 %v6295, 16
      %v6555 = vrot.slane %v6553, 3
      %v6556 = vshll.u32 %v6295, 16
      %v6558 = vrot.slane %v6556, 4
      %v6559 = vor.u32 %v6555, %v6558
      %v6561 = vshrl.u32 %v6296, 16
      %v6563 = vrot.slane %v6561, 3
      %v6564 = vshll.u32 %v6296, 16
      %v6566 = vrot.slane %v6564, 4
      %v6567 = vor.u32 %v6563, %v6566
      %v6568 = vsel %vm482, %v6559, %v6567
      %6585 = vst [vmem:[#allocation3 + $0x30] sm:$0xff] %v6313
      %6586 = vst [vmem:[#allocation3 + $0x78] sm:$0xff] %v6330
      %6587 = vst [vmem:[#allocation3 + $0xc0] sm:$0xff] %v6347
      %6588 = vst [vmem:[#allocation3 + $0x108] sm:$0xff] %v6364
      %6589 = vst [vmem:[#allocation3 + $0x150] sm:$0xff] %v6381
      %6590 = vst [vmem:[#allocation3 + $0x198] sm:$0xff] %v6398
      %6591 = vst [vmem:[#allocation3 + $0x1e0] sm:$0xff] %v6415
      %6592 = vst [vmem:[#allocation3 + $0x228] sm:$0xff] %v6432
      %6593 = vst [vmem:[#allocation3 + $0x270] sm:$0xff] %v6449
      %6594 = vst [vmem:[#allocation3 + $0x2b8] sm:$0xff] %v6466
      %6595 = vst [vmem:[#allocation3 + $0x300] sm:$0xff] %v6483
      %6596 = vst [vmem:[#allocation3 + $0x348] sm:$0xff] %v6500
      %6597 = vst [vmem:[#allocation3 + $0x390] sm:$0xff] %v6517
      %6598 = vst [vmem:[#allocation3 + $0x3d8] sm:$0xff] %v6534
      %6599 = vst [vmem:[#allocation3 + $0x420] sm:$0xff] %v6551
      %6600 = vst [vmem:[#allocation3 + $0x468] sm:$0xff] %v6568
      %v6601 = vld [vmem:[%s2085] sm:$0xf0]
      %v6602 = vld [vmem:[%s2085 + $0x8] sm:$0xf]
      %v6603 = vld [vmem:[%s2085 + $0x10] sm:$0xf0]
      %v6604 = vld [vmem:[%s2085 + $0x18] sm:$0xf]
      %v6605 = vld [vmem:[%s2085 + $0x20] sm:$0xf0]
      %v6606 = vld [vmem:[%s2085 + $0x28] sm:$0xf]
      %v6607 = vld [vmem:[%s2085 + $0x30] sm:$0xf0]
      %v6608 = vld [vmem:[%s2085 + $0x38] sm:$0xf]
      %v6609 = vld [vmem:[%s2085 + $0x40] sm:$0xf0]
      %v6610 = vld [vmem:[%s2085 + $0x48] sm:$0xf]
      %v6611 = vld [vmem:[%s2085 + $0x50] sm:$0xf0]
      %v6612 = vld [vmem:[%s2085 + $0x58] sm:$0xf]
      %v6613 = vld [vmem:[%s2085 + $0x60] sm:$0xf0]
      %v6614 = vld [vmem:[%s2085 + $0x68] sm:$0xf]
      %v6615 = vld [vmem:[%s2085 + $0x70] sm:$0xf0]
      %v6616 = vld [vmem:[%s2085 + $0x78] sm:$0xf]
      %v6617 = vld [vmem:[%s2085 + $0x80] sm:$0xf0]
      %v6618 = vld [vmem:[%s2085 + $0x88] sm:$0xf]
      %v6619 = vld [vmem:[%s2085 + $0x90] sm:$0xf0]
      %v6620 = vld [vmem:[%s2085 + $0x98] sm:$0xf]
      %v6621 = vld [vmem:[%s2085 + $0xa0] sm:$0xf0]
      %v6622 = vld [vmem:[%s2085 + $0xa8] sm:$0xf]
      %v6623 = vld [vmem:[%s2085 + $0xb0] sm:$0xf0]
      %v6624 = vld [vmem:[%s2085 + $0xb8] sm:$0xf]
      %v6625 = vld [vmem:[%s2085 + $0xc0] sm:$0xf0]
      %v6626 = vld [vmem:[%s2085 + $0xc8] sm:$0xf]
      %v6627 = vld [vmem:[%s2085 + $0xd0] sm:$0xf0]
      %v6628 = vld [vmem:[%s2085 + $0xd8] sm:$0xf]
      %v6629 = vld [vmem:[%s2085 + $0xe0] sm:$0xf0]
      %v6630 = vld [vmem:[%s2085 + $0xe8] sm:$0xf]
      %v6631 = vld [vmem:[%s2085 + $0xf0] sm:$0xf0]
      %v6632 = vld [vmem:[%s2085 + $0xf8] sm:$0xf]
      %v6665 = vrot.slane %v6601, 4
      %v6666 = vrot.slane %v6602, 4
      %v6667 = vsel %vm851, %v6665, %v6666
      %v6668 = vrot.slane %v6603, 4
      %v6669 = vrot.slane %v6604, 4
      %v6670 = vsel %vm851, %v6668, %v6669
      %v6671 = vrot.slane %v6605, 4
      %v6672 = vrot.slane %v6606, 4
      %v6673 = vsel %vm851, %v6671, %v6672
      %v6674 = vrot.slane %v6607, 4
      %v6675 = vrot.slane %v6608, 4
      %v6676 = vsel %vm851, %v6674, %v6675
      %v6677 = vrot.slane %v6609, 4
      %v6678 = vrot.slane %v6610, 4
      %v6679 = vsel %vm851, %v6677, %v6678
      %v6680 = vrot.slane %v6611, 4
      %v6681 = vrot.slane %v6612, 4
      %v6682 = vsel %vm851, %v6680, %v6681
      %v6683 = vrot.slane %v6613, 4
      %v6684 = vrot.slane %v6614, 4
      %v6685 = vsel %vm851, %v6683, %v6684
      %v6686 = vrot.slane %v6615, 4
      %v6687 = vrot.slane %v6616, 4
      %v6688 = vsel %vm851, %v6686, %v6687
      %v6689 = vrot.slane %v6617, 4
      %v6690 = vrot.slane %v6618, 4
      %v6691 = vsel %vm851, %v6689, %v6690
      %v6692 = vrot.slane %v6619, 4
      %v6693 = vrot.slane %v6620, 4
      %v6694 = vsel %vm851, %v6692, %v6693
      %v6695 = vrot.slane %v6621, 4
      %v6696 = vrot.slane %v6622, 4
      %v6697 = vsel %vm851, %v6695, %v6696
      %v6698 = vrot.slane %v6623, 4
      %v6699 = vrot.slane %v6624, 4
      %v6700 = vsel %vm851, %v6698, %v6699
      %v6701 = vrot.slane %v6625, 4
      %v6702 = vrot.slane %v6626, 4
      %v6703 = vsel %vm851, %v6701, %v6702
      %v6704 = vrot.slane %v6627, 4
      %v6705 = vrot.slane %v6628, 4
      %v6706 = vsel %vm851, %v6704, %v6705
      %v6707 = vrot.slane %v6629, 4
      %v6708 = vrot.slane %v6630, 4
      %v6709 = vsel %vm851, %v6707, %v6708
      %v6710 = vrot.slane %v6631, 4
      %v6711 = vrot.slane %v6632, 4
      %v6712 = vsel %vm851, %v6710, %v6711
      %6729 = vst [vmem:[#allocation3 + $0x38] sm:$0xff] %v6667
      %6730 = vst [vmem:[#allocation3 + $0x80] sm:$0xff] %v6670
      %6731 = vst [vmem:[#allocation3 + $0xc8] sm:$0xff] %v6673
      %6732 = vst [vmem:[#allocation3 + $0x110] sm:$0xff] %v6676
      %6733 = vst [vmem:[#allocation3 + $0x158] sm:$0xff] %v6679
      %6734 = vst [vmem:[#allocation3 + $0x1a0] sm:$0xff] %v6682
      %6735 = vst [vmem:[#allocation3 + $0x1e8] sm:$0xff] %v6685
      %6736 = vst [vmem:[#allocation3 + $0x230] sm:$0xff] %v6688
      %6737 = vst [vmem:[#allocation3 + $0x278] sm:$0xff] %v6691
      %6738 = vst [vmem:[#allocation3 + $0x2c0] sm:$0xff] %v6694
      %6739 = vst [vmem:[#allocation3 + $0x308] sm:$0xff] %v6697
      %6740 = vst [vmem:[#allocation3 + $0x350] sm:$0xff] %v6700
      %6741 = vst [vmem:[#allocation3 + $0x398] sm:$0xff] %v6703
      %6742 = vst [vmem:[#allocation3 + $0x3e0] sm:$0xff] %v6706
      %6743 = vst [vmem:[#allocation3 + $0x428] sm:$0xff] %v6709
      %6744 = vst [vmem:[#allocation3 + $0x470] sm:$0xff] %v6712
      %v6745 = vld [vmem:[%s2085] sm:$0xf0]
      %v6746 = vld [vmem:[%s2085 + $0x8] sm:$0x1f]
      %v6747 = vld [vmem:[%s2085 + $0x10] sm:$0xf0]
      %v6748 = vld [vmem:[%s2085 + $0x18] sm:$0x1f]
      %v6749 = vld [vmem:[%s2085 + $0x20] sm:$0xf0]
      %v6750 = vld [vmem:[%s2085 + $0x28] sm:$0x1f]
      %v6751 = vld [vmem:[%s2085 + $0x30] sm:$0xf0]
      %v6752 = vld [vmem:[%s2085 + $0x38] sm:$0x1f]
      %v6753 = vld [vmem:[%s2085 + $0x40] sm:$0xf0]
      %v6754 = vld [vmem:[%s2085 + $0x48] sm:$0x1f]
      %v6755 = vld [vmem:[%s2085 + $0x50] sm:$0xf0]
      %v6756 = vld [vmem:[%s2085 + $0x58] sm:$0x1f]
      %v6757 = vld [vmem:[%s2085 + $0x60] sm:$0xf0]
      %v6758 = vld [vmem:[%s2085 + $0x68] sm:$0x1f]
      %v6759 = vld [vmem:[%s2085 + $0x70] sm:$0xf0]
      %v6760 = vld [vmem:[%s2085 + $0x78] sm:$0x1f]
      %v6761 = vld [vmem:[%s2085 + $0x80] sm:$0xf0]
      %v6762 = vld [vmem:[%s2085 + $0x88] sm:$0x1f]
      %v6763 = vld [vmem:[%s2085 + $0x90] sm:$0xf0]
      %v6764 = vld [vmem:[%s2085 + $0x98] sm:$0x1f]
      %v6765 = vld [vmem:[%s2085 + $0xa0] sm:$0xf0]
      %v6766 = vld [vmem:[%s2085 + $0xa8] sm:$0x1f]
      %v6767 = vld [vmem:[%s2085 + $0xb0] sm:$0xf0]
      %v6768 = vld [vmem:[%s2085 + $0xb8] sm:$0x1f]
      %v6769 = vld [vmem:[%s2085 + $0xc0] sm:$0xf0]
      %v6770 = vld [vmem:[%s2085 + $0xc8] sm:$0x1f]
      %v6771 = vld [vmem:[%s2085 + $0xd0] sm:$0xf0]
      %v6772 = vld [vmem:[%s2085 + $0xd8] sm:$0x1f]
      %v6773 = vld [vmem:[%s2085 + $0xe0] sm:$0xf0]
      %v6774 = vld [vmem:[%s2085 + $0xe8] sm:$0x1f]
      %v6775 = vld [vmem:[%s2085 + $0xf0] sm:$0xf0]
      %v6776 = vld [vmem:[%s2085 + $0xf8] sm:$0x1f]
      %v6778 = vshrl.u32 %v6745, 16
      %v6780 = vrot.slane %v6778, 4
      %v6781 = vshll.u32 %v6745, 16
      %v6783 = vrot.slane %v6781, 5
      %v6784 = vor.u32 %v6780, %v6783
      %v6786 = vshrl.u32 %v6746, 16
      %v6788 = vrot.slane %v6786, 4
      %v6789 = vshll.u32 %v6746, 16
      %v6791 = vrot.slane %v6789, 5
      %v6792 = vor.u32 %v6788, %v6791
      %v6793 = vsel %vm964, %v6784, %v6792
      %v6795 = vshrl.u32 %v6747, 16
      %v6797 = vrot.slane %v6795, 4
      %v6798 = vshll.u32 %v6747, 16
      %v6800 = vrot.slane %v6798, 5
      %v6801 = vor.u32 %v6797, %v6800
      %v6803 = vshrl.u32 %v6748, 16
      %v6805 = vrot.slane %v6803, 4
      %v6806 = vshll.u32 %v6748, 16
      %v6808 = vrot.slane %v6806, 5
      %v6809 = vor.u32 %v6805, %v6808
      %v6810 = vsel %vm964, %v6801, %v6809
      %v6812 = vshrl.u32 %v6749, 16
      %v6814 = vrot.slane %v6812, 4
      %v6815 = vshll.u32 %v6749, 16
      %v6817 = vrot.slane %v6815, 5
      %v6818 = vor.u32 %v6814, %v6817
      %v6820 = vshrl.u32 %v6750, 16
      %v6822 = vrot.slane %v6820, 4
      %v6823 = vshll.u32 %v6750, 16
      %v6825 = vrot.slane %v6823, 5
      %v6826 = vor.u32 %v6822, %v6825
      %v6827 = vsel %vm964, %v6818, %v6826
      %v6829 = vshrl.u32 %v6751, 16
      %v6831 = vrot.slane %v6829, 4
      %v6832 = vshll.u32 %v6751, 16
      %v6834 = vrot.slane %v6832, 5
      %v6835 = vor.u32 %v6831, %v6834
      %v6837 = vshrl.u32 %v6752, 16
      %v6839 = vrot.slane %v6837, 4
      %v6840 = vshll.u32 %v6752, 16
      %v6842 = vrot.slane %v6840, 5
      %v6843 = vor.u32 %v6839, %v6842
      %v6844 = vsel %vm964, %v6835, %v6843
      %v6846 = vshrl.u32 %v6753, 16
      %v6848 = vrot.slane %v6846, 4
      %v6849 = vshll.u32 %v6753, 16
      %v6851 = vrot.slane %v6849, 5
      %v6852 = vor.u32 %v6848, %v6851
      %v6854 = vshrl.u32 %v6754, 16
      %v6856 = vrot.slane %v6854, 4
      %v6857 = vshll.u32 %v6754, 16
      %v6859 = vrot.slane %v6857, 5
      %v6860 = vor.u32 %v6856, %v6859
      %v6861 = vsel %vm964, %v6852, %v6860
      %v6863 = vshrl.u32 %v6755, 16
      %v6865 = vrot.slane %v6863, 4
      %v6866 = vshll.u32 %v6755, 16
      %v6868 = vrot.slane %v6866, 5
      %v6869 = vor.u32 %v6865, %v6868
      %v6871 = vshrl.u32 %v6756, 16
      %v6873 = vrot.slane %v6871, 4
      %v6874 = vshll.u32 %v6756, 16
      %v6876 = vrot.slane %v6874, 5
      %v6877 = vor.u32 %v6873, %v6876
      %v6878 = vsel %vm964, %v6869, %v6877
      %v6880 = vshrl.u32 %v6757, 16
      %v6882 = vrot.slane %v6880, 4
      %v6883 = vshll.u32 %v6757, 16
      %v6885 = vrot.slane %v6883, 5
      %v6886 = vor.u32 %v6882, %v6885
      %v6888 = vshrl.u32 %v6758, 16
      %v6890 = vrot.slane %v6888, 4
      %v6891 = vshll.u32 %v6758, 16
      %v6893 = vrot.slane %v6891, 5
      %v6894 = vor.u32 %v6890, %v6893
      %v6895 = vsel %vm964, %v6886, %v6894
      %v6897 = vshrl.u32 %v6759, 16
      %v6899 = vrot.slane %v6897, 4
      %v6900 = vshll.u32 %v6759, 16
      %v6902 = vrot.slane %v6900, 5
      %v6903 = vor.u32 %v6899, %v6902
      %v6905 = vshrl.u32 %v6760, 16
      %v6907 = vrot.slane %v6905, 4
      %v6908 = vshll.u32 %v6760, 16
      %v6910 = vrot.slane %v6908, 5
      %v6911 = vor.u32 %v6907, %v6910
      %v6912 = vsel %vm964, %v6903, %v6911
      %v6914 = vshrl.u32 %v6761, 16
      %v6916 = vrot.slane %v6914, 4
      %v6917 = vshll.u32 %v6761, 16
      %v6919 = vrot.slane %v6917, 5
      %v6920 = vor.u32 %v6916, %v6919
      %v6922 = vshrl.u32 %v6762, 16
      %v6924 = vrot.slane %v6922, 4
      %v6925 = vshll.u32 %v6762, 16
      %v6927 = vrot.slane %v6925, 5
      %v6928 = vor.u32 %v6924, %v6927
      %v6929 = vsel %vm964, %v6920, %v6928
      %v6931 = vshrl.u32 %v6763, 16
      %v6933 = vrot.slane %v6931, 4
      %v6934 = vshll.u32 %v6763, 16
      %v6936 = vrot.slane %v6934, 5
      %v6937 = vor.u32 %v6933, %v6936
      %v6939 = vshrl.u32 %v6764, 16
      %v6941 = vrot.slane %v6939, 4
      %v6942 = vshll.u32 %v6764, 16
      %v6944 = vrot.slane %v6942, 5
      %v6945 = vor.u32 %v6941, %v6944
      %v6946 = vsel %vm964, %v6937, %v6945
      %v6948 = vshrl.u32 %v6765, 16
      %v6950 = vrot.slane %v6948, 4
      %v6951 = vshll.u32 %v6765, 16
      %v6953 = vrot.slane %v6951, 5
      %v6954 = vor.u32 %v6950, %v6953
      %v6956 = vshrl.u32 %v6766, 16
      %v6958 = vrot.slane %v6956, 4
      %v6959 = vshll.u32 %v6766, 16
      %v6961 = vrot.slane %v6959, 5
      %v6962 = vor.u32 %v6958, %v6961
      %v6963 = vsel %vm964, %v6954, %v6962
      %v6965 = vshrl.u32 %v6767, 16
      %v6967 = vrot.slane %v6965, 4
      %v6968 = vshll.u32 %v6767, 16
      %v6970 = vrot.slane %v6968, 5
      %v6971 = vor.u32 %v6967, %v6970
      %v6973 = vshrl.u32 %v6768, 16
      %v6975 = vrot.slane %v6973, 4
      %v6976 = vshll.u32 %v6768, 16
      %v6978 = vrot.slane %v6976, 5
      %v6979 = vor.u32 %v6975, %v6978
      %v6980 = vsel %vm964, %v6971, %v6979
      %v6982 = vshrl.u32 %v6769, 16
      %v6984 = vrot.slane %v6982, 4
      %v6985 = vshll.u32 %v6769, 16
      %v6987 = vrot.slane %v6985, 5
      %v6988 = vor.u32 %v6984, %v6987
      %v6990 = vshrl.u32 %v6770, 16
      %v6992 = vrot.slane %v6990, 4
      %v6993 = vshll.u32 %v6770, 16
      %v6995 = vrot.slane %v6993, 5
      %v6996 = vor.u32 %v6992, %v6995
      %v6997 = vsel %vm964, %v6988, %v6996
      %v6999 = vshrl.u32 %v6771, 16
      %v7001 = vrot.slane %v6999, 4
      %v7002 = vshll.u32 %v6771, 16
      %v7004 = vrot.slane %v7002, 5
      %v7005 = vor.u32 %v7001, %v7004
      %v7007 = vshrl.u32 %v6772, 16
      %v7009 = vrot.slane %v7007, 4
      %v7010 = vshll.u32 %v6772, 16
      %v7012 = vrot.slane %v7010, 5
      %v7013 = vor.u32 %v7009, %v7012
      %v7014 = vsel %vm964, %v7005, %v7013
      %v7016 = vshrl.u32 %v6773, 16
      %v7018 = vrot.slane %v7016, 4
      %v7019 = vshll.u32 %v6773, 16
      %v7021 = vrot.slane %v7019, 5
      %v7022 = vor.u32 %v7018, %v7021
      %v7024 = vshrl.u32 %v6774, 16
      %v7026 = vrot.slane %v7024, 4
      %v7027 = vshll.u32 %v6774, 16
      %v7029 = vrot.slane %v7027, 5
      %v7030 = vor.u32 %v7026, %v7029
      %v7031 = vsel %vm964, %v7022, %v7030
      %v7033 = vshrl.u32 %v6775, 16
      %v7035 = vrot.slane %v7033, 4
      %v7036 = vshll.u32 %v6775, 16
      %v7038 = vrot.slane %v7036, 5
      %v7039 = vor.u32 %v7035, %v7038
      %v7041 = vshrl.u32 %v6776, 16
      %v7043 = vrot.slane %v7041, 4
      %v7044 = vshll.u32 %v6776, 16
      %v7046 = vrot.slane %v7044, 5
      %v7047 = vor.u32 %v7043, %v7046
      %v7048 = vsel %vm964, %v7039, %v7047
      %7065 = vst [vmem:[#allocation3 + $0x40] sm:$0xff] %v6793
      %7066 = vst [vmem:[#allocation3 + $0x88] sm:$0xff] %v6810
      %7067 = vst [vmem:[#allocation3 + $0xd0] sm:$0xff] %v6827
      %7068 = vst [vmem:[#allocation3 + $0x118] sm:$0xff] %v6844
      %7069 = vst [vmem:[#allocation3 + $0x160] sm:$0xff] %v6861
      %7070 = vst [vmem:[#allocation3 + $0x1a8] sm:$0xff] %v6878
      %7071 = vst [vmem:[#allocation3 + $0x1f0] sm:$0xff] %v6895
      %7072 = vst [vmem:[#allocation3 + $0x238] sm:$0xff] %v6912
      %7073 = vst [vmem:[#allocation3 + $0x280] sm:$0xff] %v6929
      %7074 = vst [vmem:[#allocation3 + $0x2c8] sm:$0xff] %v6946
      %7075 = vst [vmem:[#allocation3 + $0x310] sm:$0xff] %v6963
      %7076 = vst [vmem:[#allocation3 + $0x358] sm:$0xff] %v6980
      %7077 = vst [vmem:[#allocation3 + $0x3a0] sm:$0xff] %v6997
      %7078 = vst [vmem:[#allocation3 + $0x3e8] sm:$0xff] %v7014
      %7079 = vst [vmem:[#allocation3 + $0x430] sm:$0xff] %v7031
      %7080 = vst [vmem:[#allocation3 + $0x478] sm:$0xff] %v7048
      %v7081 = vld [vmem:[#allocation3] sm:$0xff]
      %v7082 = vld [vmem:[#allocation3 + $0x8] sm:$0xff]
      %v7083 = vld [vmem:[#allocation3 + $0x10] sm:$0xff]
      %v7084 = vld [vmem:[#allocation3 + $0x18] sm:$0xff]
      %v7085 = vld [vmem:[#allocation3 + $0x20] sm:$0xff]
      %v7086 = vld [vmem:[#allocation3 + $0x28] sm:$0xff]
      %v7087 = vld [vmem:[#allocation3 + $0x30] sm:$0xff]
      %v7088 = vld [vmem:[#allocation3 + $0x38] sm:$0xff]
      %v7089 = vld [vmem:[#allocation3 + $0x40] sm:$0xff]
      %v7090 = vld [vmem:[#allocation3 + $0x48] sm:$0xff]
      %v7091 = vld [vmem:[#allocation3 + $0x50] sm:$0xff]
      %v7092 = vld [vmem:[#allocation3 + $0x58] sm:$0xff]
      %v7093 = vld [vmem:[#allocation3 + $0x60] sm:$0xff]
      %v7094 = vld [vmem:[#allocation3 + $0x68] sm:$0xff]
      %v7095 = vld [vmem:[#allocation3 + $0x70] sm:$0xff]
      %v7096 = vld [vmem:[#allocation3 + $0x78] sm:$0xff]
      %v7097 = vld [vmem:[#allocation3 + $0x80] sm:$0xff]
      %v7098 = vld [vmem:[#allocation3 + $0x88] sm:$0xff]
      %v7099 = vld [vmem:[#allocation3 + $0x90] sm:$0xff]
      %v7100 = vld [vmem:[#allocation3 + $0x98] sm:$0xff]
      %v7101 = vld [vmem:[#allocation3 + $0xa0] sm:$0xff]
      %v7102 = vld [vmem:[#allocation3 + $0xa8] sm:$0xff]
      %v7103 = vld [vmem:[#allocation3 + $0xb0] sm:$0xff]
      %v7104 = vld [vmem:[#allocation3 + $0xb8] sm:$0xff]
      %v7105 = vld [vmem:[#allocation3 + $0xc0] sm:$0xff]
      %v7106 = vld [vmem:[#allocation3 + $0xc8] sm:$0xff]
      %v7107 = vld [vmem:[#allocation3 + $0xd0] sm:$0xff]
      %v7108 = vld [vmem:[#allocation3 + $0xd8] sm:$0xff]
      %v7109 = vld [vmem:[#allocation3 + $0xe0] sm:$0xff]
      %v7110 = vld [vmem:[#allocation3 + $0xe8] sm:$0xff]
      %v7111 = vld [vmem:[#allocation3 + $0xf0] sm:$0xff]
      %v7112 = vld [vmem:[#allocation3 + $0xf8] sm:$0xff]
      %v7113 = vld [vmem:[#allocation3 + $0x100] sm:$0xff]
      %v7114 = vld [vmem:[#allocation3 + $0x108] sm:$0xff]
      %v7115 = vld [vmem:[#allocation3 + $0x110] sm:$0xff]
      %v7116 = vld [vmem:[#allocation3 + $0x118] sm:$0xff]
      %v7117 = vld [vmem:[#allocation3 + $0x120] sm:$0xff]
      %v7118 = vld [vmem:[#allocation3 + $0x128] sm:$0xff]
      %v7119 = vld [vmem:[#allocation3 + $0x130] sm:$0xff]
      %v7120 = vld [vmem:[#allocation3 + $0x138] sm:$0xff]
      %v7121 = vld [vmem:[#allocation3 + $0x140] sm:$0xff]
      %v7122 = vld [vmem:[#allocation3 + $0x148] sm:$0xff]
      %v7123 = vld [vmem:[#allocation3 + $0x150] sm:$0xff]
      %v7124 = vld [vmem:[#allocation3 + $0x158] sm:$0xff]
      %v7125 = vld [vmem:[#allocation3 + $0x160] sm:$0xff]
      %v7126 = vld [vmem:[#allocation3 + $0x168] sm:$0xff]
      %v7127 = vld [vmem:[#allocation3 + $0x170] sm:$0xff]
      %v7128 = vld [vmem:[#allocation3 + $0x178] sm:$0xff]
      %v7129 = vld [vmem:[#allocation3 + $0x180] sm:$0xff]
      %v7130 = vld [vmem:[#allocation3 + $0x188] sm:$0xff]
      %v7131 = vld [vmem:[#allocation3 + $0x190] sm:$0xff]
      %v7132 = vld [vmem:[#allocation3 + $0x198] sm:$0xff]
      %v7133 = vld [vmem:[#allocation3 + $0x1a0] sm:$0xff]
      %v7134 = vld [vmem:[#allocation3 + $0x1a8] sm:$0xff]
      %v7135 = vld [vmem:[#allocation3 + $0x1b0] sm:$0xff]
      %v7136 = vld [vmem:[#allocation3 + $0x1b8] sm:$0xff]
      %v7137 = vld [vmem:[#allocation3 + $0x1c0] sm:$0xff]
      %v7138 = vld [vmem:[#allocation3 + $0x1c8] sm:$0xff]
      %v7139 = vld [vmem:[#allocation3 + $0x1d0] sm:$0xff]
      %v7140 = vld [vmem:[#allocation3 + $0x1d8] sm:$0xff]
      %v7141 = vld [vmem:[#allocation3 + $0x1e0] sm:$0xff]
      %v7142 = vld [vmem:[#allocation3 + $0x1e8] sm:$0xff]
      %v7143 = vld [vmem:[#allocation3 + $0x1f0] sm:$0xff]
      %v7144 = vld [vmem:[#allocation3 + $0x1f8] sm:$0xff]
      %v7145 = vld [vmem:[#allocation3 + $0x200] sm:$0xff]
      %v7146 = vld [vmem:[#allocation3 + $0x208] sm:$0xff]
      %v7147 = vld [vmem:[#allocation3 + $0x210] sm:$0xff]
      %v7148 = vld [vmem:[#allocation3 + $0x218] sm:$0xff]
      %v7149 = vld [vmem:[#allocation3 + $0x220] sm:$0xff]
      %v7150 = vld [vmem:[#allocation3 + $0x228] sm:$0xff]
      %v7151 = vld [vmem:[#allocation3 + $0x230] sm:$0xff]
      %v7152 = vld [vmem:[#allocation3 + $0x238] sm:$0xff]
      %v7153 = vld [vmem:[#allocation3 + $0x240] sm:$0xff]
      %v7154 = vld [vmem:[#allocation3 + $0x248] sm:$0xff]
      %v7155 = vld [vmem:[#allocation3 + $0x250] sm:$0xff]
      %v7156 = vld [vmem:[#allocation3 + $0x258] sm:$0xff]
      %v7157 = vld [vmem:[#allocation3 + $0x260] sm:$0xff]
      %v7158 = vld [vmem:[#allocation3 + $0x268] sm:$0xff]
      %v7159 = vld [vmem:[#allocation3 + $0x270] sm:$0xff]
      %v7160 = vld [vmem:[#allocation3 + $0x278] sm:$0xff]
      %v7161 = vld [vmem:[#allocation3 + $0x280] sm:$0xff]
      %v7162 = vld [vmem:[#allocation3 + $0x288] sm:$0xff]
      %v7163 = vld [vmem:[#allocation3 + $0x290] sm:$0xff]
      %v7164 = vld [vmem:[#allocation3 + $0x298] sm:$0xff]
      %v7165 = vld [vmem:[#allocation3 + $0x2a0] sm:$0xff]
      %v7166 = vld [vmem:[#allocation3 + $0x2a8] sm:$0xff]
      %v7167 = vld [vmem:[#allocation3 + $0x2b0] sm:$0xff]
      %v7168 = vld [vmem:[#allocation3 + $0x2b8] sm:$0xff]
      %v7169 = vld [vmem:[#allocation3 + $0x2c0] sm:$0xff]
      %v7170 = vld [vmem:[#allocation3 + $0x2c8] sm:$0xff]
      %v7171 = vld [vmem:[#allocation3 + $0x2d0] sm:$0xff]
      %v7172 = vld [vmem:[#allocation3 + $0x2d8] sm:$0xff]
      %v7173 = vld [vmem:[#allocation3 + $0x2e0] sm:$0xff]
      %v7174 = vld [vmem:[#allocation3 + $0x2e8] sm:$0xff]
      %v7175 = vld [vmem:[#allocation3 + $0x2f0] sm:$0xff]
      %v7176 = vld [vmem:[#allocation3 + $0x2f8] sm:$0xff]
      %v7177 = vld [vmem:[#allocation3 + $0x300] sm:$0xff]
      %v7178 = vld [vmem:[#allocation3 + $0x308] sm:$0xff]
      %v7179 = vld [vmem:[#allocation3 + $0x310] sm:$0xff]
      %v7180 = vld [vmem:[#allocation3 + $0x318] sm:$0xff]
      %v7181 = vld [vmem:[#allocation3 + $0x320] sm:$0xff]
      %v7182 = vld [vmem:[#allocation3 + $0x328] sm:$0xff]
      %v7183 = vld [vmem:[#allocation3 + $0x330] sm:$0xff]
      %v7184 = vld [vmem:[#allocation3 + $0x338] sm:$0xff]
      %v7185 = vld [vmem:[#allocation3 + $0x340] sm:$0xff]
      %v7186 = vld [vmem:[#allocation3 + $0x348] sm:$0xff]
      %v7187 = vld [vmem:[#allocation3 + $0x350] sm:$0xff]
      %v7188 = vld [vmem:[#allocation3 + $0x358] sm:$0xff]
      %v7189 = vld [vmem:[#allocation3 + $0x360] sm:$0xff]
      %v7190 = vld [vmem:[#allocation3 + $0x368] sm:$0xff]
      %v7191 = vld [vmem:[#allocation3 + $0x370] sm:$0xff]
      %v7192 = vld [vmem:[#allocation3 + $0x378] sm:$0xff]
      %v7193 = vld [vmem:[#allocation3 + $0x380] sm:$0xff]
      %v7194 = vld [vmem:[#allocation3 + $0x388] sm:$0xff]
      %v7195 = vld [vmem:[#allocation3 + $0x390] sm:$0xff]
      %v7196 = vld [vmem:[#allocation3 + $0x398] sm:$0xff]
      %v7197 = vld [vmem:[#allocation3 + $0x3a0] sm:$0xff]
      %v7198 = vld [vmem:[#allocation3 + $0x3a8] sm:$0xff]
      %v7199 = vld [vmem:[#allocation3 + $0x3b0] sm:$0xff]
      %v7200 = vld [vmem:[#allocation3 + $0x3b8] sm:$0xff]
      %v7201 = vld [vmem:[#allocation3 + $0x3c0] sm:$0xff]
      %v7202 = vld [vmem:[#allocation3 + $0x3c8] sm:$0xff]
      %v7203 = vld [vmem:[#allocation3 + $0x3d0] sm:$0xff]
      %v7204 = vld [vmem:[#allocation3 + $0x3d8] sm:$0xff]
      %v7205 = vld [vmem:[#allocation3 + $0x3e0] sm:$0xff]
      %v7206 = vld [vmem:[#allocation3 + $0x3e8] sm:$0xff]
      %v7207 = vld [vmem:[#allocation3 + $0x3f0] sm:$0xff]
      %v7208 = vld [vmem:[#allocation3 + $0x3f8] sm:$0xff]
      %v7209 = vld [vmem:[#allocation3 + $0x400] sm:$0xff]
      %v7210 = vld [vmem:[#allocation3 + $0x408] sm:$0xff]
      %v7211 = vld [vmem:[#allocation3 + $0x410] sm:$0xff]
      %v7212 = vld [vmem:[#allocation3 + $0x418] sm:$0xff]
      %v7213 = vld [vmem:[#allocation3 + $0x420] sm:$0xff]
      %v7214 = vld [vmem:[#allocation3 + $0x428] sm:$0xff]
      %v7215 = vld [vmem:[#allocation3 + $0x430] sm:$0xff]
      %v7216 = vld [vmem:[#allocation3 + $0x438] sm:$0xff]
      %v7217 = vld [vmem:[#allocation3 + $0x440] sm:$0xff]
      %v7218 = vld [vmem:[#allocation3 + $0x448] sm:$0xff]
      %v7219 = vld [vmem:[#allocation3 + $0x450] sm:$0xff]
      %v7220 = vld [vmem:[#allocation3 + $0x458] sm:$0xff]
      %v7221 = vld [vmem:[#allocation3 + $0x460] sm:$0xff]
      %v7222 = vld [vmem:[#allocation3 + $0x468] sm:$0xff]
      %v7223 = vld [vmem:[#allocation3 + $0x470] sm:$0xff]
      %v7224 = vld [vmem:[#allocation3 + $0x478] sm:$0xff]
      %v7225 = vld [vmem:[%s2] sm:$0xf]
      %v7226 = vld [vmem:[%s2 + $0x4] sm:$0xf]
      %v7227 = vld [vmem:[%s2 + $0x8] sm:$0xf]
      %v7228 = vld [vmem:[%s2 + $0xc] sm:$0xf]
      %v7229 = vld [vmem:[%s2 + $0x10] sm:$0xf]
      %v7230 = vld [vmem:[%s2 + $0x14] sm:$0xf]
      %v7231 = vld [vmem:[%s2 + $0x18] sm:$0xf]
      %v7232 = vld [vmem:[%s2 + $0x1c] sm:$0xf]
      %v7233 = vld [vmem:[%s2 + $0x20] sm:$0xf]
      %v7234 = vld [vmem:[%s2 + $0x24] sm:$0xf]
      %v7235 = vld [vmem:[%s2 + $0x28] sm:$0xf]
      %v7236 = vld [vmem:[%s2 + $0x2c] sm:$0xf]
      %v7237 = vld [vmem:[%s2 + $0x30] sm:$0xf]
      %v7238 = vld [vmem:[%s2 + $0x34] sm:$0xf]
      %v7239 = vld [vmem:[%s2 + $0x38] sm:$0xf]
      %v7240 = vld [vmem:[%s2 + $0x3c] sm:$0xf]
      %v7241 = vld [vmem:[%s2 + $0x40] sm:$0xf]
      %v7242 = vld [vmem:[%s2 + $0x44] sm:$0xf]
      %v7243 = vld [vmem:[%s2 + $0x48] sm:$0xf]
      %v7244 = vld [vmem:[%s2 + $0x4c] sm:$0xf]
      %v7245 = vld [vmem:[%s2 + $0x50] sm:$0xf]
      %v7246 = vld [vmem:[%s2 + $0x54] sm:$0xf]
      %v7247 = vld [vmem:[%s2 + $0x58] sm:$0xf]
      %v7248 = vld [vmem:[%s2 + $0x5c] sm:$0xf]
      %v7249 = vld [vmem:[%s2 + $0x60] sm:$0xf]
      %v7250 = vld [vmem:[%s2 + $0x64] sm:$0xf]
      %v7251 = vld [vmem:[%s2 + $0x68] sm:$0xf]
      %v7252 = vld [vmem:[%s2 + $0x6c] sm:$0xf]
      %v7253 = vld [vmem:[%s2 + $0x70] sm:$0xf]
      %v7254 = vld [vmem:[%s2 + $0x74] sm:$0xf]
      %v7255 = vld [vmem:[%s2 + $0x78] sm:$0xf]
      %v7256 = vld [vmem:[%s2 + $0x7c] sm:$0xf]
      %v7257 = vld [vmem:[%s2 + $0x80] sm:$0xf]
      %v7258 = vld [vmem:[%s2 + $0x84] sm:$0xf]
      %v7259 = vld [vmem:[%s2 + $0x88] sm:$0xf]
      %v7260 = vld [vmem:[%s2 + $0x8c] sm:$0xf]
      %v7261 = vld [vmem:[%s2 + $0x90] sm:$0xf]
      %v7262 = vld [vmem:[%s2 + $0x94] sm:$0xf]
      %v7263 = vld [vmem:[%s2 + $0x98] sm:$0xf]
      %v7264 = vld [vmem:[%s2 + $0x9c] sm:$0xf]
      %v7265 = vld [vmem:[%s2 + $0xa0] sm:$0xf]
      %v7266 = vld [vmem:[%s2 + $0xa4] sm:$0xf]
      %v7267 = vld [vmem:[%s2 + $0xa8] sm:$0xf]
      %v7268 = vld [vmem:[%s2 + $0xac] sm:$0xf]
      %v7269 = vld [vmem:[%s2 + $0xb0] sm:$0xf]
      %v7270 = vld [vmem:[%s2 + $0xb4] sm:$0xf]
      %v7271 = vld [vmem:[%s2 + $0xb8] sm:$0xf]
      %v7272 = vld [vmem:[%s2 + $0xbc] sm:$0xf]
      %v7273 = vld [vmem:[%s2 + $0xc0] sm:$0xf]
      %v7274 = vld [vmem:[%s2 + $0xc4] sm:$0xf]
      %v7275 = vld [vmem:[%s2 + $0xc8] sm:$0xf]
      %v7276 = vld [vmem:[%s2 + $0xcc] sm:$0xf]
      %v7277 = vld [vmem:[%s2 + $0xd0] sm:$0xf]
      %v7278 = vld [vmem:[%s2 + $0xd4] sm:$0xf]
      %v7279 = vld [vmem:[%s2 + $0xd8] sm:$0xf]
      %v7280 = vld [vmem:[%s2 + $0xdc] sm:$0xf]
      %v7281 = vld [vmem:[%s2 + $0xe0] sm:$0xf]
      %v7282 = vld [vmem:[%s2 + $0xe4] sm:$0xf]
      %v7283 = vld [vmem:[%s2 + $0xe8] sm:$0xf]
      %v7284 = vld [vmem:[%s2 + $0xec] sm:$0xf]
      %v7285 = vld [vmem:[%s2 + $0xf0] sm:$0xf]
      %v7286 = vld [vmem:[%s2 + $0xf4] sm:$0xf]
      %v7287 = vld [vmem:[%s2 + $0xf8] sm:$0xf]
      %v7288 = vld [vmem:[%s2 + $0xfc] sm:$0xf]
      %v7289 = vld [vmem:[%s2 + $0x100] sm:$0xf]
      %v7290 = vld [vmem:[%s2 + $0x104] sm:$0xf]
      %v7291 = vld [vmem:[%s2 + $0x108] sm:$0xf]
      %v7292 = vld [vmem:[%s2 + $0x10c] sm:$0xf]
      %v7293 = vld [vmem:[%s2 + $0x110] sm:$0xf]
      %v7294 = vld [vmem:[%s2 + $0x114] sm:$0xf]
      %v7295 = vld [vmem:[%s2 + $0x118] sm:$0xf]
      %v7296 = vld [vmem:[%s2 + $0x11c] sm:$0xf]
      %v7297 = vld [vmem:[%s2 + $0x120] sm:$0xf]
      %v7298 = vld [vmem:[%s2 + $0x124] sm:$0xf]
      %v7299 = vld [vmem:[%s2 + $0x128] sm:$0xf]
      %v7300 = vld [vmem:[%s2 + $0x12c] sm:$0xf]
      %v7301 = vld [vmem:[%s2 + $0x130] sm:$0xf]
      %v7302 = vld [vmem:[%s2 + $0x134] sm:$0xf]
      %v7303 = vld [vmem:[%s2 + $0x138] sm:$0xf]
      %v7304 = vld [vmem:[%s2 + $0x13c] sm:$0xf]
      %v7305 = vld [vmem:[%s2 + $0x140] sm:$0xf]
      %v7306 = vld [vmem:[%s2 + $0x144] sm:$0xf]
      %v7307 = vld [vmem:[%s2 + $0x148] sm:$0xf]
      %v7308 = vld [vmem:[%s2 + $0x14c] sm:$0xf]
      %v7309 = vld [vmem:[%s2 + $0x150] sm:$0xf]
      %v7310 = vld [vmem:[%s2 + $0x154] sm:$0xf]
      %v7311 = vld [vmem:[%s2 + $0x158] sm:$0xf]
      %v7312 = vld [vmem:[%s2 + $0x15c] sm:$0xf]
      %v7313 = vld [vmem:[%s2 + $0x160] sm:$0xf]
      %v7314 = vld [vmem:[%s2 + $0x164] sm:$0xf]
      %v7315 = vld [vmem:[%s2 + $0x168] sm:$0xf]
      %v7316 = vld [vmem:[%s2 + $0x16c] sm:$0xf]
      %v7317 = vld [vmem:[%s2 + $0x170] sm:$0xf]
      %v7318 = vld [vmem:[%s2 + $0x174] sm:$0xf]
      %v7319 = vld [vmem:[%s2 + $0x178] sm:$0xf]
      %v7320 = vld [vmem:[%s2 + $0x17c] sm:$0xf]
      %v7321 = vld [vmem:[%s2 + $0x180] sm:$0xf]
      %v7322 = vld [vmem:[%s2 + $0x184] sm:$0xf]
      %v7323 = vld [vmem:[%s2 + $0x188] sm:$0xf]
      %v7324 = vld [vmem:[%s2 + $0x18c] sm:$0xf]
      %v7325 = vld [vmem:[%s2 + $0x190] sm:$0xf]
      %v7326 = vld [vmem:[%s2 + $0x194] sm:$0xf]
      %v7327 = vld [vmem:[%s2 + $0x198] sm:$0xf]
      %v7328 = vld [vmem:[%s2 + $0x19c] sm:$0xf]
      %v7329 = vld [vmem:[%s2 + $0x1a0] sm:$0xf]
      %v7330 = vld [vmem:[%s2 + $0x1a4] sm:$0xf]
      %v7331 = vld [vmem:[%s2 + $0x1a8] sm:$0xf]
      %v7332 = vld [vmem:[%s2 + $0x1ac] sm:$0xf]
      %v7333 = vld [vmem:[%s2 + $0x1b0] sm:$0xf]
      %v7334 = vld [vmem:[%s2 + $0x1b4] sm:$0xf]
      %v7335 = vld [vmem:[%s2 + $0x1b8] sm:$0xf]
      %v7336 = vld [vmem:[%s2 + $0x1bc] sm:$0xf]
      %v7337 = vld [vmem:[%s2 + $0x1c0] sm:$0xf]
      %v7338 = vld [vmem:[%s2 + $0x1c4] sm:$0xf]
      %v7339 = vld [vmem:[%s2 + $0x1c8] sm:$0xf]
      %v7340 = vld [vmem:[%s2 + $0x1cc] sm:$0xf]
      %v7341 = vld [vmem:[%s2 + $0x1d0] sm:$0xf]
      %v7342 = vld [vmem:[%s2 + $0x1d4] sm:$0xf]
      %v7343 = vld [vmem:[%s2 + $0x1d8] sm:$0xf]
      %v7344 = vld [vmem:[%s2 + $0x1dc] sm:$0xf]
      %v7345 = vld [vmem:[%s2 + $0x1e0] sm:$0xf]
      %v7346 = vld [vmem:[%s2 + $0x1e4] sm:$0xf]
      %v7347 = vld [vmem:[%s2 + $0x1e8] sm:$0xf]
      %v7348 = vld [vmem:[%s2 + $0x1ec] sm:$0xf]
      %v7349 = vld [vmem:[%s2 + $0x1f0] sm:$0xf]
      %v7350 = vld [vmem:[%s2 + $0x1f4] sm:$0xf]
      %v7351 = vld [vmem:[%s2 + $0x1f8] sm:$0xf]
      %v7352 = vld [vmem:[%s2 + $0x1fc] sm:$0xf]
      %v7353 = vld [vmem:[%s2 + $0x200] sm:$0xf]
      %v7354 = vld [vmem:[%s2 + $0x204] sm:$0xf]
      %v7355 = vld [vmem:[%s2 + $0x208] sm:$0xf]
      %v7356 = vld [vmem:[%s2 + $0x20c] sm:$0xf]
      %v7357 = vld [vmem:[%s2 + $0x210] sm:$0xf]
      %v7358 = vld [vmem:[%s2 + $0x214] sm:$0xf]
      %v7359 = vld [vmem:[%s2 + $0x218] sm:$0xf]
      %v7360 = vld [vmem:[%s2 + $0x21c] sm:$0xf]
      %v7361 = vld [vmem:[%s2 + $0x220] sm:$0xf]
      %v7362 = vld [vmem:[%s2 + $0x224] sm:$0xf]
      %v7363 = vld [vmem:[%s2 + $0x228] sm:$0xf]
      %v7364 = vld [vmem:[%s2 + $0x22c] sm:$0xf]
      %v7365 = vld [vmem:[%s2 + $0x230] sm:$0xf]
      %v7366 = vld [vmem:[%s2 + $0x234] sm:$0xf]
      %v7367 = vld [vmem:[%s2 + $0x238] sm:$0xf]
      %v7368 = vld [vmem:[%s2 + $0x23c] sm:$0xf]
      %v7513 = vunpack.c.l.b16 %v7225
      %v7514 = vunpack.c.l.b16 %v7226
      %v7515 = vunpack.c.l.b16 %v7227
      %v7516 = vunpack.c.l.b16 %v7228
      %v7517 = vunpack.c.l.b16 %v7229
      %v7518 = vunpack.c.l.b16 %v7230
      %v7519 = vunpack.c.l.b16 %v7231
      %v7520 = vunpack.c.l.b16 %v7232
      %v7521 = vunpack.c.l.b16 %v7233
      %v7522 = vunpack.c.l.b16 %v7234
      %v7523 = vunpack.c.l.b16 %v7235
      %v7524 = vunpack.c.l.b16 %v7236
      %v7525 = vunpack.c.l.b16 %v7237
      %v7526 = vunpack.c.l.b16 %v7238
      %v7527 = vunpack.c.l.b16 %v7239
      %v7528 = vunpack.c.l.b16 %v7240
      %v7529 = vunpack.c.l.b16 %v7241
      %v7530 = vunpack.c.l.b16 %v7242
      %v7531 = vunpack.c.l.b16 %v7243
      %v7532 = vunpack.c.l.b16 %v7244
      %v7533 = vunpack.c.l.b16 %v7245
      %v7534 = vunpack.c.l.b16 %v7246
      %v7535 = vunpack.c.l.b16 %v7247
      %v7536 = vunpack.c.l.b16 %v7248
      %v7537 = vunpack.c.l.b16 %v7249
      %v7538 = vunpack.c.l.b16 %v7250
      %v7539 = vunpack.c.l.b16 %v7251
      %v7540 = vunpack.c.l.b16 %v7252
      %v7541 = vunpack.c.l.b16 %v7253
      %v7542 = vunpack.c.l.b16 %v7254
      %v7543 = vunpack.c.l.b16 %v7255
      %v7544 = vunpack.c.l.b16 %v7256
      %v7545 = vunpack.c.l.b16 %v7257
      %v7546 = vunpack.c.l.b16 %v7258
      %v7547 = vunpack.c.l.b16 %v7259
      %v7548 = vunpack.c.l.b16 %v7260
      %v7549 = vunpack.c.l.b16 %v7261
      %v7550 = vunpack.c.l.b16 %v7262
      %v7551 = vunpack.c.l.b16 %v7263
      %v7552 = vunpack.c.l.b16 %v7264
      %v7553 = vunpack.c.l.b16 %v7265
      %v7554 = vunpack.c.l.b16 %v7266
      %v7555 = vunpack.c.l.b16 %v7267
      %v7556 = vunpack.c.l.b16 %v7268
      %v7557 = vunpack.c.l.b16 %v7269
      %v7558 = vunpack.c.l.b16 %v7270
      %v7559 = vunpack.c.l.b16 %v7271
      %v7560 = vunpack.c.l.b16 %v7272
      %v7561 = vunpack.c.l.b16 %v7273
      %v7562 = vunpack.c.l.b16 %v7274
      %v7563 = vunpack.c.l.b16 %v7275
      %v7564 = vunpack.c.l.b16 %v7276
      %v7565 = vunpack.c.l.b16 %v7277
      %v7566 = vunpack.c.l.b16 %v7278
      %v7567 = vunpack.c.l.b16 %v7279
      %v7568 = vunpack.c.l.b16 %v7280
      %v7569 = vunpack.c.l.b16 %v7281
      %v7570 = vunpack.c.l.b16 %v7282
      %v7571 = vunpack.c.l.b16 %v7283
      %v7572 = vunpack.c.l.b16 %v7284
      %v7573 = vunpack.c.l.b16 %v7285
      %v7574 = vunpack.c.l.b16 %v7286
      %v7575 = vunpack.c.l.b16 %v7287
      %v7576 = vunpack.c.l.b16 %v7288
      %v7577 = vunpack.c.l.b16 %v7289
      %v7578 = vunpack.c.l.b16 %v7290
      %v7579 = vunpack.c.l.b16 %v7291
      %v7580 = vunpack.c.l.b16 %v7292
      %v7581 = vunpack.c.l.b16 %v7293
      %v7582 = vunpack.c.l.b16 %v7294
      %v7583 = vunpack.c.l.b16 %v7295
      %v7584 = vunpack.c.l.b16 %v7296
      %v7585 = vunpack.c.l.b16 %v7297
      %v7586 = vunpack.c.l.b16 %v7298
      %v7587 = vunpack.c.l.b16 %v7299
      %v7588 = vunpack.c.l.b16 %v7300
      %v7589 = vunpack.c.l.b16 %v7301
      %v7590 = vunpack.c.l.b16 %v7302
      %v7591 = vunpack.c.l.b16 %v7303
      %v7592 = vunpack.c.l.b16 %v7304
      %v7593 = vunpack.c.l.b16 %v7305
      %v7594 = vunpack.c.l.b16 %v7306
      %v7595 = vunpack.c.l.b16 %v7307
      %v7596 = vunpack.c.l.b16 %v7308
      %v7597 = vunpack.c.l.b16 %v7309
      %v7598 = vunpack.c.l.b16 %v7310
      %v7599 = vunpack.c.l.b16 %v7311
      %v7600 = vunpack.c.l.b16 %v7312
      %v7601 = vunpack.c.l.b16 %v7313
      %v7602 = vunpack.c.l.b16 %v7314
      %v7603 = vunpack.c.l.b16 %v7315
      %v7604 = vunpack.c.l.b16 %v7316
      %v7605 = vunpack.c.l.b16 %v7317
      %v7606 = vunpack.c.l.b16 %v7318
      %v7607 = vunpack.c.l.b16 %v7319
      %v7608 = vunpack.c.l.b16 %v7320
      %v7609 = vunpack.c.l.b16 %v7321
      %v7610 = vunpack.c.l.b16 %v7322
      %v7611 = vunpack.c.l.b16 %v7323
      %v7612 = vunpack.c.l.b16 %v7324
      %v7613 = vunpack.c.l.b16 %v7325
      %v7614 = vunpack.c.l.b16 %v7326
      %v7615 = vunpack.c.l.b16 %v7327
      %v7616 = vunpack.c.l.b16 %v7328
      %v7617 = vunpack.c.l.b16 %v7329
      %v7618 = vunpack.c.l.b16 %v7330
      %v7619 = vunpack.c.l.b16 %v7331
      %v7620 = vunpack.c.l.b16 %v7332
      %v7621 = vunpack.c.l.b16 %v7333
      %v7622 = vunpack.c.l.b16 %v7334
      %v7623 = vunpack.c.l.b16 %v7335
      %v7624 = vunpack.c.l.b16 %v7336
      %v7625 = vunpack.c.l.b16 %v7337
      %v7626 = vunpack.c.l.b16 %v7338
      %v7627 = vunpack.c.l.b16 %v7339
      %v7628 = vunpack.c.l.b16 %v7340
      %v7629 = vunpack.c.l.b16 %v7341
      %v7630 = vunpack.c.l.b16 %v7342
      %v7631 = vunpack.c.l.b16 %v7343
      %v7632 = vunpack.c.l.b16 %v7344
      %v7633 = vunpack.c.l.b16 %v7345
      %v7634 = vunpack.c.l.b16 %v7346
      %v7635 = vunpack.c.l.b16 %v7347
      %v7636 = vunpack.c.l.b16 %v7348
      %v7637 = vunpack.c.l.b16 %v7349
      %v7638 = vunpack.c.l.b16 %v7350
      %v7639 = vunpack.c.l.b16 %v7351
      %v7640 = vunpack.c.l.b16 %v7352
      %v7641 = vunpack.c.l.b16 %v7353
      %v7642 = vunpack.c.l.b16 %v7354
      %v7643 = vunpack.c.l.b16 %v7355
      %v7644 = vunpack.c.l.b16 %v7356
      %v7645 = vunpack.c.l.b16 %v7357
      %v7646 = vunpack.c.l.b16 %v7358
      %v7647 = vunpack.c.l.b16 %v7359
      %v7648 = vunpack.c.l.b16 %v7360
      %v7649 = vunpack.c.l.b16 %v7361
      %v7650 = vunpack.c.l.b16 %v7362
      %v7651 = vunpack.c.l.b16 %v7363
      %v7652 = vunpack.c.l.b16 %v7364
      %v7653 = vunpack.c.l.b16 %v7365
      %v7654 = vunpack.c.l.b16 %v7366
      %v7655 = vunpack.c.l.b16 %v7367
      %v7656 = vunpack.c.l.b16 %v7368
      %v7657 = vpack.c.b16 %v7514, %v7513
      %v7658 = vpack.c.b16 %v7516, %v7515
      %v7659 = vpack.c.b16 %v7518, %v7517
      %v7660 = vpack.c.b16 %v7520, %v7519
      %v7661 = vpack.c.b16 %v7522, %v7521
      %v7662 = vpack.c.b16 %v7524, %v7523
      %v7663 = vpack.c.b16 %v7526, %v7525
      %v7664 = vpack.c.b16 %v7528, %v7527
      %v7665 = vpack.c.b16 %v7530, %v7529
      %v7666 = vpack.c.b16 %v7532, %v7531
      %v7667 = vpack.c.b16 %v7534, %v7533
      %v7668 = vpack.c.b16 %v7536, %v7535
      %v7669 = vpack.c.b16 %v7538, %v7537
      %v7670 = vpack.c.b16 %v7540, %v7539
      %v7671 = vpack.c.b16 %v7542, %v7541
      %v7672 = vpack.c.b16 %v7544, %v7543
      %v7673 = vpack.c.b16 %v7546, %v7545
      %v7674 = vpack.c.b16 %v7548, %v7547
      %v7675 = vpack.c.b16 %v7550, %v7549
      %v7676 = vpack.c.b16 %v7552, %v7551
      %v7677 = vpack.c.b16 %v7554, %v7553
      %v7678 = vpack.c.b16 %v7556, %v7555
      %v7679 = vpack.c.b16 %v7558, %v7557
      %v7680 = vpack.c.b16 %v7560, %v7559
      %v7681 = vpack.c.b16 %v7562, %v7561
      %v7682 = vpack.c.b16 %v7564, %v7563
      %v7683 = vpack.c.b16 %v7566, %v7565
      %v7684 = vpack.c.b16 %v7568, %v7567
      %v7685 = vpack.c.b16 %v7570, %v7569
      %v7686 = vpack.c.b16 %v7572, %v7571
      %v7687 = vpack.c.b16 %v7574, %v7573
      %v7688 = vpack.c.b16 %v7576, %v7575
      %v7689 = vpack.c.b16 %v7578, %v7577
      %v7690 = vpack.c.b16 %v7580, %v7579
      %v7691 = vpack.c.b16 %v7582, %v7581
      %v7692 = vpack.c.b16 %v7584, %v7583
      %v7693 = vpack.c.b16 %v7586, %v7585
      %v7694 = vpack.c.b16 %v7588, %v7587
      %v7695 = vpack.c.b16 %v7590, %v7589
      %v7696 = vpack.c.b16 %v7592, %v7591
      %v7697 = vpack.c.b16 %v7594, %v7593
      %v7698 = vpack.c.b16 %v7596, %v7595
      %v7699 = vpack.c.b16 %v7598, %v7597
      %v7700 = vpack.c.b16 %v7600, %v7599
      %v7701 = vpack.c.b16 %v7602, %v7601
      %v7702 = vpack.c.b16 %v7604, %v7603
      %v7703 = vpack.c.b16 %v7606, %v7605
      %v7704 = vpack.c.b16 %v7608, %v7607
      %v7705 = vpack.c.b16 %v7610, %v7609
      %v7706 = vpack.c.b16 %v7612, %v7611
      %v7707 = vpack.c.b16 %v7614, %v7613
      %v7708 = vpack.c.b16 %v7616, %v7615
      %v7709 = vpack.c.b16 %v7618, %v7617
      %v7710 = vpack.c.b16 %v7620, %v7619
      %v7711 = vpack.c.b16 %v7622, %v7621
      %v7712 = vpack.c.b16 %v7624, %v7623
      %v7713 = vpack.c.b16 %v7626, %v7625
      %v7714 = vpack.c.b16 %v7628, %v7627
      %v7715 = vpack.c.b16 %v7630, %v7629
      %v7716 = vpack.c.b16 %v7632, %v7631
      %v7717 = vpack.c.b16 %v7634, %v7633
      %v7718 = vpack.c.b16 %v7636, %v7635
      %v7719 = vpack.c.b16 %v7638, %v7637
      %v7720 = vpack.c.b16 %v7640, %v7639
      %v7721 = vpack.c.b16 %v7642, %v7641
      %v7722 = vpack.c.b16 %v7644, %v7643
      %v7723 = vpack.c.b16 %v7646, %v7645
      %v7724 = vpack.c.b16 %v7648, %v7647
      %v7725 = vpack.c.b16 %v7650, %v7649
      %v7726 = vpack.c.b16 %v7652, %v7651
      %v7727 = vpack.c.b16 %v7654, %v7653
      %v7728 = vpack.c.b16 %v7656, %v7655
      %7801 = vmatprep.subr.bf16.mxu0 0
      %7802 = vmatpush1.bf16.msra.mxu0 %v7657
      %7803 = vmatprep.subr.bf16.mxu0 0
      %7804 = vmatpush1.bf16.msra.mxu0 %v7658
      %7805 = vmatprep.subr.bf16.mxu0 0
      %7806 = vmatpush1.bf16.msra.mxu0 %v7659
      %7807 = vmatprep.subr.bf16.mxu0 0
      %7808 = vmatpush1.bf16.msra.mxu0 %v7660
      %7809 = vmatprep.subr.bf16.mxu0 0
      %7810 = vmatpush1.bf16.msra.mxu0 %v7661
      %7811 = vmatprep.subr.bf16.mxu0 0
      %7812 = vmatpush1.bf16.msra.mxu0 %v7662
      %7813 = vmatprep.subr.bf16.mxu0 0
      %7814 = vmatpush1.bf16.msra.mxu0 %v7663
      %7815 = vmatprep.subr.bf16.mxu0 0
      %7816 = vmatpush1.bf16.msra.mxu0 %v7664
      %7817 = vmatprep.subr.bf16.mxu0 0
      %7818 = vmatpush1.bf16.msra.mxu0 %v7665
      %7819 = vmatprep.subr.bf16.mxu0 0
      %7820 = vmatpush1.bf16.msra.mxu0 %v7666
      %7821 = vmatprep.subr.bf16.mxu0 0
      %7822 = vmatpush1.bf16.msra.mxu0 %v7667
      %7823 = vmatprep.subr.bf16.mxu0 0
      %7824 = vmatpush1.bf16.msra.mxu0 %v7668
      %7825 = vmatprep.subr.bf16.mxu0 0
      %7826 = vmatpush1.bf16.msra.mxu0 %v7669
      %7827 = vmatprep.subr.bf16.mxu0 0
      %7828 = vmatpush1.bf16.msra.mxu0 %v7670
      %7829 = vmatprep.subr.bf16.mxu0 0
      %7830 = vmatpush1.bf16.msra.mxu0 %v7671
      %7831 = vmatprep.subr.bf16.mxu0 0
      %7832 = vmatpush1.bf16.msra.mxu0 %v7672
      %7833 = vmatprep.mubr.bf16.mxu0 %v7082
      %7834 = vmatmul.mubr.bf16.gmra.mrb[0].mxu0 %v7081
      %v7835 = vpop.f32.mrb[0].mxu0
      %v7836 = vadd.f32 0.0, %v7835
      %v7837 = vpop.f32.mrb[0].mxu0
      %v7838 = vpop.f32.mrb[0].mxu0
      %v7839 = vadd.f32 0.0, %v7838
      %v7840 = vpop.f32.mrb[0].mxu0
      %7841 = vmatprep.mubr.bf16.mxu0 %v7091
      %7842 = vmatmul.mubr.bf16.gmra.mrb[0].mxu0 %v7090
      %v7843 = vpop.f32.mrb[0].mxu0
      %v7844 = vadd.f32 0.0, %v7843
      %v7845 = vpop.f32.mrb[0].mxu0
      %v7846 = vpop.f32.mrb[0].mxu0
      %v7847 = vadd.f32 0.0, %v7846
      %v7848 = vpop.f32.mrb[0].mxu0
      %7849 = vmatprep.mubr.bf16.mxu0 %v7100
      %7850 = vmatmul.mubr.bf16.gmra.mrb[0].mxu0 %v7099
      %v7851 = vpop.f32.mrb[0].mxu0
      %v7852 = vadd.f32 0.0, %v7851
      %v7853 = vpop.f32.mrb[0].mxu0
      %v7854 = vpop.f32.mrb[0].mxu0
      %v7855 = vadd.f32 0.0, %v7854
      %v7856 = vpop.f32.mrb[0].mxu0
      %7857 = vmatprep.mubr.bf16.mxu0 %v7109
      %7858 = vmatmul.mubr.bf16.gmra.mrb[0].mxu0 %v7108
      %v7859 = vpop.f32.mrb[0].mxu0
      %v7860 = vadd.f32 0.0, %v7859
      %v7861 = vpop.f32.mrb[0].mxu0
      %v7862 = vpop.f32.mrb[0].mxu0
      %v7863 = vadd.f32 0.0, %v7862
      %v7864 = vpop.f32.mrb[0].mxu0
      %7865 = vmatprep.mubr.bf16.mxu0 %v7118
      %7866 = vmatmul.mubr.bf16.gmra.mrb[0].mxu0 %v7117
      %v7867 = vpop.f32.mrb[0].mxu0
      %v7868 = vadd.f32 0.0, %v7867
      %v7869 = vpop.f32.mrb[0].mxu0
      %v7870 = vpop.f32.mrb[0].mxu0
      %v7871 = vadd.f32 0.0, %v7870
      %v7872 = vpop.f32.mrb[0].mxu0
      %7873 = vmatprep.mubr.bf16.mxu0 %v7127
      %7874 = vmatmul.mubr.bf16.gmra.mrb[0].mxu0 %v7126
      %v7875 = vpop.f32.mrb[0].mxu0
      %v7876 = vadd.f32 0.0, %v7875
      %v7877 = vpop.f32.mrb[0].mxu0
      %v7878 = vpop.f32.mrb[0].mxu0
      %v7879 = vadd.f32 0.0, %v7878
      %v7880 = vpop.f32.mrb[0].mxu0
      %7881 = vmatprep.mubr.bf16.mxu0 %v7136
      %7882 = vmatmul.mubr.bf16.gmra.mrb[0].mxu0 %v7135
      %v7883 = vpop.f32.mrb[0].mxu0
      %v7884 = vadd.f32 0.0, %v7883
      %v7885 = vpop.f32.mrb[0].mxu0
      %v7886 = vpop.f32.mrb[0].mxu0
      %v7887 = vadd.f32 0.0, %v7886
      %v7888 = vpop.f32.mrb[0].mxu0
      %7889 = vmatprep.mubr.bf16.mxu0 %v7145
      %7890 = vmatmul.mubr.bf16.gmra.mrb[0].mxu0 %v7144
      %v7891 = vpop.f32.mrb[0].mxu0
      %v7892 = vadd.f32 0.0, %v7891
      %v7893 = vpop.f32.mrb[0].mxu0
      %v7894 = vpop.f32.mrb[0].mxu0
      %v7895 = vadd.f32 0.0, %v7894
      %v7896 = vpop.f32.mrb[0].mxu0
      %7897 = vmatprep.mubr.bf16.mxu0 %v7154
      %7898 = vmatmul.mubr.bf16.gmra.mrb[0].mxu0 %v7153
      %v7899 = vpop.f32.mrb[0].mxu0
      %v7900 = vadd.f32 0.0, %v7899
      %v7901 = vpop.f32.mrb[0].mxu0
      %v7902 = vpop.f32.mrb[0].mxu0
      %v7903 = vadd.f32 0.0, %v7902
      %v7904 = vpop.f32.mrb[0].mxu0
      %7905 = vmatprep.mubr.bf16.mxu0 %v7163
      %7906 = vmatmul.mubr.bf16.gmra.mrb[0].mxu0 %v7162
      %v7907 = vpop.f32.mrb[0].mxu0
      %v7908 = vadd.f32 0.0, %v7907
      %v7909 = vpop.f32.mrb[0].mxu0
      %v7910 = vpop.f32.mrb[0].mxu0
      %v7911 = vadd.f32 0.0, %v7910
      %v7912 = vpop.f32.mrb[0].mxu0
      %7913 = vmatprep.mubr.bf16.mxu0 %v7172
      %7914 = vmatmul.mubr.bf16.gmra.mrb[0].mxu0 %v7171
      %v7915 = vpop.f32.mrb[0].mxu0
      %v7916 = vadd.f32 0.0, %v7915
      %v7917 = vpop.f32.mrb[0].mxu0
      %v7918 = vpop.f32.mrb[0].mxu0
      %v7919 = vadd.f32 0.0, %v7918
      %v7920 = vpop.f32.mrb[0].mxu0
      %7921 = vmatprep.mubr.bf16.mxu0 %v7181
      %7922 = vmatmul.mubr.bf16.gmra.mrb[0].mxu0 %v7180
      %v7923 = vpop.f32.mrb[0].mxu0
      %v7924 = vadd.f32 0.0, %v7923
      %v7925 = vpop.f32.mrb[0].mxu0
      %v7926 = vpop.f32.mrb[0].mxu0
      %v7927 = vadd.f32 0.0, %v7926
      %v7928 = vpop.f32.mrb[0].mxu0
      %7929 = vmatprep.mubr.bf16.mxu0 %v7190
      %7930 = vmatmul.mubr.bf16.gmra.mrb[0].mxu0 %v7189
      %v7931 = vpop.f32.mrb[0].mxu0
      %v7932 = vadd.f32 0.0, %v7931
      %v7933 = vpop.f32.mrb[0].mxu0
      %v7934 = vpop.f32.mrb[0].mxu0
      %v7935 = vadd.f32 0.0, %v7934
      %v7936 = vpop.f32.mrb[0].mxu0
      %7937 = vmatprep.mubr.bf16.mxu0 %v7199
      %7938 = vmatmul.mubr.bf16.gmra.mrb[0].mxu0 %v7198
      %v7939 = vpop.f32.mrb[0].mxu0
      %v7940 = vadd.f32 0.0, %v7939
      %v7941 = vpop.f32.mrb[0].mxu0
      %v7942 = vpop.f32.mrb[0].mxu0
      %v7943 = vadd.f32 0.0, %v7942
      %v7944 = vpop.f32.mrb[0].mxu0
      %7945 = vmatprep.mubr.bf16.mxu0 %v7208
      %7946 = vmatmul.mubr.bf16.gmra.mrb[0].mxu0 %v7207
      %v7947 = vpop.f32.mrb[0].mxu0
      %v7948 = vadd.f32 0.0, %v7947
      %v7949 = vpop.f32.mrb[0].mxu0
      %v7950 = vpop.f32.mrb[0].mxu0
      %v7951 = vadd.f32 0.0, %v7950
      %v7952 = vpop.f32.mrb[0].mxu0
      %7953 = vmatprep.mubr.bf16.mxu0 %v7217
      %7954 = vmatmul.mubr.bf16.gmra.mrb[0].mxu0 %v7216
      %v7955 = vpop.f32.mrb[0].mxu0
      %v7956 = vadd.f32 0.0, %v7955
      %v7957 = vpop.f32.mrb[0].mxu0
      %v7958 = vpop.f32.mrb[0].mxu0
      %v7959 = vadd.f32 0.0, %v7958
      %v7960 = vpop.f32.mrb[0].mxu0
      %7961 = vdwg.mxu0
      %7962 = vmatprep.subr.bf16.mxu0 0
      %7963 = vmatpush1.bf16.msra.mxu0 %v7673
      %7964 = vmatprep.subr.bf16.mxu0 0
      %7965 = vmatpush1.bf16.msra.mxu0 %v7674
      %7966 = vmatprep.subr.bf16.mxu0 0
      %7967 = vmatpush1.bf16.msra.mxu0 %v7675
      %7968 = vmatprep.subr.bf16.mxu0 0
      %7969 = vmatpush1.bf16.msra.mxu0 %v7676
      %7970 = vmatprep.subr.bf16.mxu0 0
      %7971 = vmatpush1.bf16.msra.mxu0 %v7677
      %7972 = vmatprep.subr.bf16.mxu0 0
      %7973 = vmatpush1.bf16.msra.mxu0 %v7678
      %7974 = vmatprep.subr.bf16.mxu0 0
      %7975 = vmatpush1.bf16.msra.mxu0 %v7679
      %7976 = vmatprep.subr.bf16.mxu0 0
      %7977 = vmatpush1.bf16.msra.mxu0 %v7680
      %7978 = vmatprep.subr.bf16.mxu0 0
      %7979 = vmatpush1.bf16.msra.mxu0 %v7681
      %7980 = vmatprep.subr.bf16.mxu0 0
      %7981 = vmatpush1.bf16.msra.mxu0 %v7682
      %7982 = vmatprep.subr.bf16.mxu0 0
      %7983 = vmatpush1.bf16.msra.mxu0 %v7683
      %7984 = vmatprep.subr.bf16.mxu0 0
      %7985 = vmatpush1.bf16.msra.mxu0 %v7684
      %7986 = vmatprep.subr.bf16.mxu0 0
      %7987 = vmatpush1.bf16.msra.mxu0 %v7685
      %7988 = vmatprep.subr.bf16.mxu0 0
      %7989 = vmatpush1.bf16.msra.mxu0 %v7686
      %7990 = vmatprep.subr.bf16.mxu0 0
      %7991 = vmatpush1.bf16.msra.mxu0 %v7687
      %7992 = vmatprep.subr.bf16.mxu0 0
      %7993 = vmatpush1.bf16.msra.mxu0 %v7688
      %7994 = vmatprep.mubr.bf16.mxu0 %v7084
      %7995 = vmatmul.mubr.bf16.gmra.mrb[0].mxu0 %v7083
      %v7996 = vpop.f32.mrb[0].mxu0
      %v7997 = vadd.f32 %v7836, %v7996
      %v7998 = vpop.f32.mrb[0].mxu0
      %v7999 = vpop.f32.mrb[0].mxu0
      %v8000 = vadd.f32 %v7839, %v7999
      %v8001 = vpop.f32.mrb[0].mxu0
      %8002 = vmatprep.mubr.bf16.mxu0 %v7093
      %8003 = vmatmul.mubr.bf16.gmra.mrb[0].mxu0 %v7092
      %v8004 = vpop.f32.mrb[0].mxu0
      %v8005 = vadd.f32 %v7844, %v8004
      %v8006 = vpop.f32.mrb[0].mxu0
      %v8007 = vpop.f32.mrb[0].mxu0
      %v8008 = vadd.f32 %v7847, %v8007
      %v8009 = vpop.f32.mrb[0].mxu0
      %8010 = vmatprep.mubr.bf16.mxu0 %v7102
      %8011 = vmatmul.mubr.bf16.gmra.mrb[0].mxu0 %v7101
      %v8012 = vpop.f32.mrb[0].mxu0
      %v8013 = vadd.f32 %v7852, %v8012
      %v8014 = vpop.f32.mrb[0].mxu0
      %v8015 = vpop.f32.mrb[0].mxu0
      %v8016 = vadd.f32 %v7855, %v8015
      %v8017 = vpop.f32.mrb[0].mxu0
      %8018 = vmatprep.mubr.bf16.mxu0 %v7111
      %8019 = vmatmul.mubr.bf16.gmra.mrb[0].mxu0 %v7110
      %v8020 = vpop.f32.mrb[0].mxu0
      %v8021 = vadd.f32 %v7860, %v8020
      %v8022 = vpop.f32.mrb[0].mxu0
      %v8023 = vpop.f32.mrb[0].mxu0
      %v8024 = vadd.f32 %v7863, %v8023
      %v8025 = vpop.f32.mrb[0].mxu0
      %8026 = vmatprep.mubr.bf16.mxu0 %v7120
      %8027 = vmatmul.mubr.bf16.gmra.mrb[0].mxu0 %v7119
      %v8028 = vpop.f32.mrb[0].mxu0
      %v8029 = vadd.f32 %v7868, %v8028
      %v8030 = vpop.f32.mrb[0].mxu0
      %v8031 = vpop.f32.mrb[0].mxu0
      %v8032 = vadd.f32 %v7871, %v8031
      %v8033 = vpop.f32.mrb[0].mxu0
      %8034 = vmatprep.mubr.bf16.mxu0 %v7129
      %8035 = vmatmul.mubr.bf16.gmra.mrb[0].mxu0 %v7128
      %v8036 = vpop.f32.mrb[0].mxu0
      %v8037 = vadd.f32 %v7876, %v8036
      %v8038 = vpop.f32.mrb[0].mxu0
      %v8039 = vpop.f32.mrb[0].mxu0
      %v8040 = vadd.f32 %v7879, %v8039
      %v8041 = vpop.f32.mrb[0].mxu0
      %8042 = vmatprep.mubr.bf16.mxu0 %v7138
      %8043 = vmatmul.mubr.bf16.gmra.mrb[0].mxu0 %v7137
      %v8044 = vpop.f32.mrb[0].mxu0
      %v8045 = vadd.f32 %v7884, %v8044
      %v8046 = vpop.f32.mrb[0].mxu0
      %v8047 = vpop.f32.mrb[0].mxu0
      %v8048 = vadd.f32 %v7887, %v8047
      %v8049 = vpop.f32.mrb[0].mxu0
      %8050 = vmatprep.mubr.bf16.mxu0 %v7147
      %8051 = vmatmul.mubr.bf16.gmra.mrb[0].mxu0 %v7146
      %v8052 = vpop.f32.mrb[0].mxu0
      %v8053 = vadd.f32 %v7892, %v8052
      %v8054 = vpop.f32.mrb[0].mxu0
      %v8055 = vpop.f32.mrb[0].mxu0
      %v8056 = vadd.f32 %v7895, %v8055
      %v8057 = vpop.f32.mrb[0].mxu0
      %8058 = vmatprep.mubr.bf16.mxu0 %v7156
      %8059 = vmatmul.mubr.bf16.gmra.mrb[0].mxu0 %v7155
      %v8060 = vpop.f32.mrb[0].mxu0
      %v8061 = vadd.f32 %v7900, %v8060
      %v8062 = vpop.f32.mrb[0].mxu0
      %v8063 = vpop.f32.mrb[0].mxu0
      %v8064 = vadd.f32 %v7903, %v8063
      %v8065 = vpop.f32.mrb[0].mxu0
      %8066 = vmatprep.mubr.bf16.mxu0 %v7165
      %8067 = vmatmul.mubr.bf16.gmra.mrb[0].mxu0 %v7164
      %v8068 = vpop.f32.mrb[0].mxu0
      %v8069 = vadd.f32 %v7908, %v8068
      %v8070 = vpop.f32.mrb[0].mxu0
      %v8071 = vpop.f32.mrb[0].mxu0
      %v8072 = vadd.f32 %v7911, %v8071
      %v8073 = vpop.f32.mrb[0].mxu0
      %8074 = vmatprep.mubr.bf16.mxu0 %v7174
      %8075 = vmatmul.mubr.bf16.gmra.mrb[0].mxu0 %v7173
      %v8076 = vpop.f32.mrb[0].mxu0
      %v8077 = vadd.f32 %v7916, %v8076
      %v8078 = vpop.f32.mrb[0].mxu0
      %v8079 = vpop.f32.mrb[0].mxu0
      %v8080 = vadd.f32 %v7919, %v8079
      %v8081 = vpop.f32.mrb[0].mxu0
      %8082 = vmatprep.mubr.bf16.mxu0 %v7183
      %8083 = vmatmul.mubr.bf16.gmra.mrb[0].mxu0 %v7182
      %v8084 = vpop.f32.mrb[0].mxu0
      %v8085 = vadd.f32 %v7924, %v8084
      %v8086 = vpop.f32.mrb[0].mxu0
      %v8087 = vpop.f32.mrb[0].mxu0
      %v8088 = vadd.f32 %v7927, %v8087
      %v8089 = vpop.f32.mrb[0].mxu0
      %8090 = vmatprep.mubr.bf16.mxu0 %v7192
      %8091 = vmatmul.mubr.bf16.gmra.mrb[0].mxu0 %v7191
      %v8092 = vpop.f32.mrb[0].mxu0
      %v8093 = vadd.f32 %v7932, %v8092
      %v8094 = vpop.f32.mrb[0].mxu0
      %v8095 = vpop.f32.mrb[0].mxu0
      %v8096 = vadd.f32 %v7935, %v8095
      %v8097 = vpop.f32.mrb[0].mxu0
      %8098 = vmatprep.mubr.bf16.mxu0 %v7201
      %8099 = vmatmul.mubr.bf16.gmra.mrb[0].mxu0 %v7200
      %v8100 = vpop.f32.mrb[0].mxu0
      %v8101 = vadd.f32 %v7940, %v8100
      %v8102 = vpop.f32.mrb[0].mxu0
      %v8103 = vpop.f32.mrb[0].mxu0
      %v8104 = vadd.f32 %v7943, %v8103
      %v8105 = vpop.f32.mrb[0].mxu0
      %8106 = vmatprep.mubr.bf16.mxu0 %v7210
      %8107 = vmatmul.mubr.bf16.gmra.mrb[0].mxu0 %v7209
      %v8108 = vpop.f32.mrb[0].mxu0
      %v8109 = vadd.f32 %v7948, %v8108
      %v8110 = vpop.f32.mrb[0].mxu0
      %v8111 = vpop.f32.mrb[0].mxu0
      %v8112 = vadd.f32 %v7951, %v8111
      %v8113 = vpop.f32.mrb[0].mxu0
      %8114 = vmatprep.mubr.bf16.mxu0 %v7219
      %8115 = vmatmul.mubr.bf16.gmra.mrb[0].mxu0 %v7218
      %v8116 = vpop.f32.mrb[0].mxu0
      %v8117 = vadd.f32 %v7956, %v8116
      %v8118 = vpop.f32.mrb[0].mxu0
      %v8119 = vpop.f32.mrb[0].mxu0
      %v8120 = vadd.f32 %v7959, %v8119
      %v8121 = vpop.f32.mrb[0].mxu0
      %8122 = vdwg.mxu0
      %8123 = vmatprep.subr.bf16.mxu0 0
      %8124 = vmatpush1.bf16.msra.mxu0 %v7689
      %8125 = vmatprep.subr.bf16.mxu0 0
      %8126 = vmatpush1.bf16.msra.mxu0 %v7690
      %8127 = vmatprep.subr.bf16.mxu0 0
      %8128 = vmatpush1.bf16.msra.mxu0 %v7691
      %8129 = vmatprep.subr.bf16.mxu0 0
      %8130 = vmatpush1.bf16.msra.mxu0 %v7692
      %8131 = vmatprep.subr.bf16.mxu0 0
      %8132 = vmatpush1.bf16.msra.mxu0 %v7693
      %8133 = vmatprep.subr.bf16.mxu0 0
      %8134 = vmatpush1.bf16.msra.mxu0 %v7694
      %8135 = vmatprep.subr.bf16.mxu0 0
      %8136 = vmatpush1.bf16.msra.mxu0 %v7695
      %8137 = vmatprep.subr.bf16.mxu0 0
      %8138 = vmatpush1.bf16.msra.mxu0 %v7696
      %8139 = vmatprep.subr.bf16.mxu0 0
      %8140 = vmatpush1.bf16.msra.mxu0 %v7697
      %8141 = vmatprep.subr.bf16.mxu0 0
      %8142 = vmatpush1.bf16.msra.mxu0 %v7698
      %8143 = vmatprep.subr.bf16.mxu0 0
      %8144 = vmatpush1.bf16.msra.mxu0 %v7699
      %8145 = vmatprep.subr.bf16.mxu0 0
      %8146 = vmatpush1.bf16.msra.mxu0 %v7700
      %8147 = vmatprep.subr.bf16.mxu0 0
      %8148 = vmatpush1.bf16.msra.mxu0 %v7701
      %8149 = vmatprep.subr.bf16.mxu0 0
      %8150 = vmatpush1.bf16.msra.mxu0 %v7702
      %8151 = vmatprep.subr.bf16.mxu0 0
      %8152 = vmatpush1.bf16.msra.mxu0 %v7703
      %8153 = vmatprep.subr.bf16.mxu0 0
      %8154 = vmatpush1.bf16.msra.mxu0 %v7704
      %8155 = vmatprep.mubr.bf16.mxu0 %v7086
      %8156 = vmatmul.mubr.bf16.gmra.mrb[0].mxu0 %v7085
      %v8157 = vpop.f32.mrb[0].mxu0
      %v8158 = vadd.f32 %v7997, %v8157
      %v8159 = vpop.f32.mrb[0].mxu0
      %v8160 = vpop.f32.mrb[0].mxu0
      %v8161 = vadd.f32 %v8000, %v8160
      %v8162 = vpop.f32.mrb[0].mxu0
      %8163 = vmatprep.mubr.bf16.mxu0 %v7095
      %8164 = vmatmul.mubr.bf16.gmra.mrb[0].mxu0 %v7094
      %v8165 = vpop.f32.mrb[0].mxu0
      %v8166 = vadd.f32 %v8005, %v8165
      %v8167 = vpop.f32.mrb[0].mxu0
      %v8168 = vpop.f32.mrb[0].mxu0
      %v8169 = vadd.f32 %v8008, %v8168
      %v8170 = vpop.f32.mrb[0].mxu0
      %8171 = vmatprep.mubr.bf16.mxu0 %v7104
      %8172 = vmatmul.mubr.bf16.gmra.mrb[0].mxu0 %v7103
      %v8173 = vpop.f32.mrb[0].mxu0
      %v8174 = vadd.f32 %v8013, %v8173
      %v8175 = vpop.f32.mrb[0].mxu0
      %v8176 = vpop.f32.mrb[0].mxu0
      %v8177 = vadd.f32 %v8016, %v8176
      %v8178 = vpop.f32.mrb[0].mxu0
      %8179 = vmatprep.mubr.bf16.mxu0 %v7113
      %8180 = vmatmul.mubr.bf16.gmra.mrb[0].mxu0 %v7112
      %v8181 = vpop.f32.mrb[0].mxu0
      %v8182 = vadd.f32 %v8021, %v8181
      %v8183 = vpop.f32.mrb[0].mxu0
      %v8184 = vpop.f32.mrb[0].mxu0
      %v8185 = vadd.f32 %v8024, %v8184
      %v8186 = vpop.f32.mrb[0].mxu0
      %8187 = vmatprep.mubr.bf16.mxu0 %v7122
      %8188 = vmatmul.mubr.bf16.gmra.mrb[0].mxu0 %v7121
      %v8189 = vpop.f32.mrb[0].mxu0
      %v8190 = vadd.f32 %v8029, %v8189
      %v8191 = vpop.f32.mrb[0].mxu0
      %v8192 = vpop.f32.mrb[0].mxu0
      %v8193 = vadd.f32 %v8032, %v8192
      %v8194 = vpop.f32.mrb[0].mxu0
      %8195 = vmatprep.mubr.bf16.mxu0 %v7131
      %8196 = vmatmul.mubr.bf16.gmra.mrb[0].mxu0 %v7130
      %v8197 = vpop.f32.mrb[0].mxu0
      %v8198 = vadd.f32 %v8037, %v8197
      %v8199 = vpop.f32.mrb[0].mxu0
      %v8200 = vpop.f32.mrb[0].mxu0
      %v8201 = vadd.f32 %v8040, %v8200
      %v8202 = vpop.f32.mrb[0].mxu0
      %8203 = vmatprep.mubr.bf16.mxu0 %v7140
      %8204 = vmatmul.mubr.bf16.gmra.mrb[0].mxu0 %v7139
      %v8205 = vpop.f32.mrb[0].mxu0
      %v8206 = vadd.f32 %v8045, %v8205
      %v8207 = vpop.f32.mrb[0].mxu0
      %v8208 = vpop.f32.mrb[0].mxu0
      %v8209 = vadd.f32 %v8048, %v8208
      %v8210 = vpop.f32.mrb[0].mxu0
      %8211 = vmatprep.mubr.bf16.mxu0 %v7149
      %8212 = vmatmul.mubr.bf16.gmra.mrb[0].mxu0 %v7148
      %v8213 = vpop.f32.mrb[0].mxu0
      %v8214 = vadd.f32 %v8053, %v8213
      %v8215 = vpop.f32.mrb[0].mxu0
      %v8216 = vpop.f32.mrb[0].mxu0
      %v8217 = vadd.f32 %v8056, %v8216
      %v8218 = vpop.f32.mrb[0].mxu0
      %8219 = vmatprep.mubr.bf16.mxu0 %v7158
      %8220 = vmatmul.mubr.bf16.gmra.mrb[0].mxu0 %v7157
      %v8221 = vpop.f32.mrb[0].mxu0
      %v8222 = vadd.f32 %v8061, %v8221
      %v8223 = vpop.f32.mrb[0].mxu0
      %v8224 = vpop.f32.mrb[0].mxu0
      %v8225 = vadd.f32 %v8064, %v8224
      %v8226 = vpop.f32.mrb[0].mxu0
      %8227 = vmatprep.mubr.bf16.mxu0 %v7167
      %8228 = vmatmul.mubr.bf16.gmra.mrb[0].mxu0 %v7166
      %v8229 = vpop.f32.mrb[0].mxu0
      %v8230 = vadd.f32 %v8069, %v8229
      %v8231 = vpop.f32.mrb[0].mxu0
      %v8232 = vpop.f32.mrb[0].mxu0
      %v8233 = vadd.f32 %v8072, %v8232
      %v8234 = vpop.f32.mrb[0].mxu0
      %8235 = vmatprep.mubr.bf16.mxu0 %v7176
      %8236 = vmatmul.mubr.bf16.gmra.mrb[0].mxu0 %v7175
      %v8237 = vpop.f32.mrb[0].mxu0
      %v8238 = vadd.f32 %v8077, %v8237
      %v8239 = vpop.f32.mrb[0].mxu0
      %v8240 = vpop.f32.mrb[0].mxu0
      %v8241 = vadd.f32 %v8080, %v8240
      %v8242 = vpop.f32.mrb[0].mxu0
      %8243 = vmatprep.mubr.bf16.mxu0 %v7185
      %8244 = vmatmul.mubr.bf16.gmra.mrb[0].mxu0 %v7184
      %v8245 = vpop.f32.mrb[0].mxu0
      %v8246 = vadd.f32 %v8085, %v8245
      %v8247 = vpop.f32.mrb[0].mxu0
      %v8248 = vpop.f32.mrb[0].mxu0
      %v8249 = vadd.f32 %v8088, %v8248
      %v8250 = vpop.f32.mrb[0].mxu0
      %8251 = vmatprep.mubr.bf16.mxu0 %v7194
      %8252 = vmatmul.mubr.bf16.gmra.mrb[0].mxu0 %v7193
      %v8253 = vpop.f32.mrb[0].mxu0
      %v8254 = vadd.f32 %v8093, %v8253
      %v8255 = vpop.f32.mrb[0].mxu0
      %v8256 = vpop.f32.mrb[0].mxu0
      %v8257 = vadd.f32 %v8096, %v8256
      %v8258 = vpop.f32.mrb[0].mxu0
      %8259 = vmatprep.mubr.bf16.mxu0 %v7203
      %8260 = vmatmul.mubr.bf16.gmra.mrb[0].mxu0 %v7202
      %v8261 = vpop.f32.mrb[0].mxu0
      %v8262 = vadd.f32 %v8101, %v8261
      %v8263 = vpop.f32.mrb[0].mxu0
      %v8264 = vpop.f32.mrb[0].mxu0
      %v8265 = vadd.f32 %v8104, %v8264
      %v8266 = vpop.f32.mrb[0].mxu0
      %8267 = vmatprep.mubr.bf16.mxu0 %v7212
      %8268 = vmatmul.mubr.bf16.gmra.mrb[0].mxu0 %v7211
      %v8269 = vpop.f32.mrb[0].mxu0
      %v8270 = vadd.f32 %v8109, %v8269
      %v8271 = vpop.f32.mrb[0].mxu0
      %v8272 = vpop.f32.mrb[0].mxu0
      %v8273 = vadd.f32 %v8112, %v8272
      %v8274 = vpop.f32.mrb[0].mxu0
      %8275 = vmatprep.mubr.bf16.mxu0 %v7221
      %8276 = vmatmul.mubr.bf16.gmra.mrb[0].mxu0 %v7220
      %v8277 = vpop.f32.mrb[0].mxu0
      %v8278 = vadd.f32 %v8117, %v8277
      %v8279 = vpop.f32.mrb[0].mxu0
      %v8280 = vpop.f32.mrb[0].mxu0
      %v8281 = vadd.f32 %v8120, %v8280
      %v8282 = vpop.f32.mrb[0].mxu0
      %8283 = vdwg.mxu0
      %8284 = vmatprep.subr.bf16.mxu0 0
      %8285 = vmatpush1.bf16.msra.mxu0 %v7705
      %8286 = vmatprep.subr.bf16.mxu0 0
      %8287 = vmatpush1.bf16.msra.mxu0 %v7706
      %8288 = vmatprep.subr.bf16.mxu0 0
      %8289 = vmatpush1.bf16.msra.mxu0 %v7707
      %8290 = vmatprep.subr.bf16.mxu0 0
      %8291 = vmatpush1.bf16.msra.mxu0 %v7708
      %8292 = vmatprep.subr.bf16.mxu0 0
      %8293 = vmatpush1.bf16.msra.mxu0 %v7709
      %8294 = vmatprep.subr.bf16.mxu0 0
      %8295 = vmatpush1.bf16.msra.mxu0 %v7710
      %8296 = vmatprep.subr.bf16.mxu0 0
      %8297 = vmatpush1.bf16.msra.mxu0 %v7711
      %8298 = vmatprep.subr.bf16.mxu0 0
      %8299 = vmatpush1.bf16.msra.mxu0 %v7712
      %8300 = vmatprep.subr.bf16.mxu0 0
      %8301 = vmatpush1.bf16.msra.mxu0 %v7713
      %8302 = vmatprep.subr.bf16.mxu0 0
      %8303 = vmatpush1.bf16.msra.mxu0 %v7714
      %8304 = vmatprep.subr.bf16.mxu0 0
      %8305 = vmatpush1.bf16.msra.mxu0 %v7715
      %8306 = vmatprep.subr.bf16.mxu0 0
      %8307 = vmatpush1.bf16.msra.mxu0 %v7716
      %8308 = vmatprep.subr.bf16.mxu0 0
      %8309 = vmatpush1.bf16.msra.mxu0 %v7717
      %8310 = vmatprep.subr.bf16.mxu0 0
      %8311 = vmatpush1.bf16.msra.mxu0 %v7718
      %8312 = vmatprep.subr.bf16.mxu0 0
      %8313 = vmatpush1.bf16.msra.mxu0 %v7719
      %8314 = vmatprep.subr.bf16.mxu0 0
      %8315 = vmatpush1.bf16.msra.mxu0 %v7720
      %8316 = vmatprep.mubr.bf16.mxu0 %v7088
      %8317 = vmatmul.mubr.bf16.gmra.mrb[0].mxu0 %v7087
      %v8318 = vpop.f32.mrb[0].mxu0
      %v8319 = vadd.f32 %v8158, %v8318
      %v8320 = vpop.f32.mrb[0].mxu0
      %v8321 = vpop.f32.mrb[0].mxu0
      %v8322 = vadd.f32 %v8161, %v8321
      %v8323 = vpop.f32.mrb[0].mxu0
      %8324 = vmatprep.mubr.bf16.mxu0 %v7097
      %8325 = vmatmul.mubr.bf16.gmra.mrb[0].mxu0 %v7096
      %v8326 = vpop.f32.mrb[0].mxu0
      %v8327 = vadd.f32 %v8166, %v8326
      %v8328 = vpop.f32.mrb[0].mxu0
      %v8329 = vpop.f32.mrb[0].mxu0
      %v8330 = vadd.f32 %v8169, %v8329
      %v8331 = vpop.f32.mrb[0].mxu0
      %8332 = vmatprep.mubr.bf16.mxu0 %v7106
      %8333 = vmatmul.mubr.bf16.gmra.mrb[0].mxu0 %v7105
      %v8334 = vpop.f32.mrb[0].mxu0
      %v8335 = vadd.f32 %v8174, %v8334
      %v8336 = vpop.f32.mrb[0].mxu0
      %v8337 = vpop.f32.mrb[0].mxu0
      %v8338 = vadd.f32 %v8177, %v8337
      %v8339 = vpop.f32.mrb[0].mxu0
      %8340 = vmatprep.mubr.bf16.mxu0 %v7115
      %8341 = vmatmul.mubr.bf16.gmra.mrb[0].mxu0 %v7114
      %v8342 = vpop.f32.mrb[0].mxu0
      %v8343 = vadd.f32 %v8182, %v8342
      %v8344 = vpop.f32.mrb[0].mxu0
      %v8345 = vpop.f32.mrb[0].mxu0
      %v8346 = vadd.f32 %v8185, %v8345
      %v8347 = vpop.f32.mrb[0].mxu0
      %8348 = vmatprep.mubr.bf16.mxu0 %v7124
      %8349 = vmatmul.mubr.bf16.gmra.mrb[0].mxu0 %v7123
      %v8350 = vpop.f32.mrb[0].mxu0
      %v8351 = vadd.f32 %v8190, %v8350
      %v8352 = vpop.f32.mrb[0].mxu0
      %v8353 = vpop.f32.mrb[0].mxu0
      %v8354 = vadd.f32 %v8193, %v8353
      %v8355 = vpop.f32.mrb[0].mxu0
      %8356 = vmatprep.mubr.bf16.mxu0 %v7133
      %8357 = vmatmul.mubr.bf16.gmra.mrb[0].mxu0 %v7132
      %v8358 = vpop.f32.mrb[0].mxu0
      %v8359 = vadd.f32 %v8198, %v8358
      %v8360 = vpop.f32.mrb[0].mxu0
      %v8361 = vpop.f32.mrb[0].mxu0
      %v8362 = vadd.f32 %v8201, %v8361
      %v8363 = vpop.f32.mrb[0].mxu0
      %8364 = vmatprep.mubr.bf16.mxu0 %v7142
      %8365 = vmatmul.mubr.bf16.gmra.mrb[0].mxu0 %v7141
      %v8366 = vpop.f32.mrb[0].mxu0
      %v8367 = vadd.f32 %v8206, %v8366
      %v8368 = vpop.f32.mrb[0].mxu0
      %v8369 = vpop.f32.mrb[0].mxu0
      %v8370 = vadd.f32 %v8209, %v8369
      %v8371 = vpop.f32.mrb[0].mxu0
      %8372 = vmatprep.mubr.bf16.mxu0 %v7151
      %8373 = vmatmul.mubr.bf16.gmra.mrb[0].mxu0 %v7150
      %v8374 = vpop.f32.mrb[0].mxu0
      %v8375 = vadd.f32 %v8214, %v8374
      %v8376 = vpop.f32.mrb[0].mxu0
      %v8377 = vpop.f32.mrb[0].mxu0
      %v8378 = vadd.f32 %v8217, %v8377
      %v8379 = vpop.f32.mrb[0].mxu0
      %8380 = vmatprep.mubr.bf16.mxu0 %v7160
      %8381 = vmatmul.mubr.bf16.gmra.mrb[0].mxu0 %v7159
      %v8382 = vpop.f32.mrb[0].mxu0
      %v8383 = vadd.f32 %v8222, %v8382
      %v8384 = vpop.f32.mrb[0].mxu0
      %v8385 = vpop.f32.mrb[0].mxu0
      %v8386 = vadd.f32 %v8225, %v8385
      %v8387 = vpop.f32.mrb[0].mxu0
      %8388 = vmatprep.mubr.bf16.mxu0 %v7169
      %8389 = vmatmul.mubr.bf16.gmra.mrb[0].mxu0 %v7168
      %v8390 = vpop.f32.mrb[0].mxu0
      %v8391 = vadd.f32 %v8230, %v8390
      %v8392 = vpop.f32.mrb[0].mxu0
      %v8393 = vpop.f32.mrb[0].mxu0
      %v8394 = vadd.f32 %v8233, %v8393
      %v8395 = vpop.f32.mrb[0].mxu0
      %8396 = vmatprep.mubr.bf16.mxu0 %v7178
      %8397 = vmatmul.mubr.bf16.gmra.mrb[0].mxu0 %v7177
      %v8398 = vpop.f32.mrb[0].mxu0
      %v8399 = vadd.f32 %v8238, %v8398
      %v8400 = vpop.f32.mrb[0].mxu0
      %v8401 = vpop.f32.mrb[0].mxu0
      %v8402 = vadd.f32 %v8241, %v8401
      %v8403 = vpop.f32.mrb[0].mxu0
      %8404 = vmatprep.mubr.bf16.mxu0 %v7187
      %8405 = vmatmul.mubr.bf16.gmra.mrb[0].mxu0 %v7186
      %v8406 = vpop.f32.mrb[0].mxu0
      %v8407 = vadd.f32 %v8246, %v8406
      %v8408 = vpop.f32.mrb[0].mxu0
      %v8409 = vpop.f32.mrb[0].mxu0
      %v8410 = vadd.f32 %v8249, %v8409
      %v8411 = vpop.f32.mrb[0].mxu0
      %8412 = vmatprep.mubr.bf16.mxu0 %v7196
      %8413 = vmatmul.mubr.bf16.gmra.mrb[0].mxu0 %v7195
      %v8414 = vpop.f32.mrb[0].mxu0
      %v8415 = vadd.f32 %v8254, %v8414
      %v8416 = vpop.f32.mrb[0].mxu0
      %v8417 = vpop.f32.mrb[0].mxu0
      %v8418 = vadd.f32 %v8257, %v8417
      %v8419 = vpop.f32.mrb[0].mxu0
      %8420 = vmatprep.mubr.bf16.mxu0 %v7205
      %8421 = vmatmul.mubr.bf16.gmra.mrb[0].mxu0 %v7204
      %v8422 = vpop.f32.mrb[0].mxu0
      %v8423 = vadd.f32 %v8262, %v8422
      %v8424 = vpop.f32.mrb[0].mxu0
      %v8425 = vpop.f32.mrb[0].mxu0
      %v8426 = vadd.f32 %v8265, %v8425
      %v8427 = vpop.f32.mrb[0].mxu0
      %8428 = vmatprep.mubr.bf16.mxu0 %v7214
      %8429 = vmatmul.mubr.bf16.gmra.mrb[0].mxu0 %v7213
      %v8430 = vpop.f32.mrb[0].mxu0
      %v8431 = vadd.f32 %v8270, %v8430
      %v8432 = vpop.f32.mrb[0].mxu0
      %v8433 = vpop.f32.mrb[0].mxu0
      %v8434 = vadd.f32 %v8273, %v8433
      %v8435 = vpop.f32.mrb[0].mxu0
      %8436 = vmatprep.mubr.bf16.mxu0 %v7223
      %8437 = vmatmul.mubr.bf16.gmra.mrb[0].mxu0 %v7222
      %v8438 = vpop.f32.mrb[0].mxu0
      %v8439 = vadd.f32 %v8278, %v8438
      %v8440 = vpop.f32.mrb[0].mxu0
      %v8441 = vpop.f32.mrb[0].mxu0
      %v8442 = vadd.f32 %v8281, %v8441
      %v8443 = vpop.f32.mrb[0].mxu0
      %8444 = vdwg.mxu0
      %8445 = vmatprep.subr.bf16.mxu0 0
      %8446 = vmatpush1.bf16.msra.mxu0 %v7721
      %8447 = vmatprep.subr.bf16.mxu0 0
      %8448 = vmatpush1.bf16.msra.mxu0 %v7722
      %8449 = vmatprep.subr.bf16.mxu0 0
      %8450 = vmatpush1.bf16.msra.mxu0 %v7723
      %8451 = vmatprep.subr.bf16.mxu0 0
      %8452 = vmatpush1.bf16.msra.mxu0 %v7724
      %8453 = vmatprep.subr.bf16.mxu0 0
      %8454 = vmatpush1.bf16.msra.mxu0 %v7725
      %8455 = vmatprep.subr.bf16.mxu0 0
      %8456 = vmatpush1.bf16.msra.mxu0 %v7726
      %8457 = vmatprep.subr.bf16.mxu0 0
      %8458 = vmatpush1.bf16.msra.mxu0 %v7727
      %8459 = vmatprep.subr.bf16.mxu0 0
      %8460 = vmatpush1.bf16.msra.mxu0 %v7728
      %8461 = vmatprep.subr.bf16.mxu0 0
      %8462 = vmatpush1.bf16.msra.mxu0 0
      %8463 = vmatprep.subr.bf16.mxu0 0
      %8464 = vmatpush1.bf16.msra.mxu0 0
      %8465 = vmatprep.subr.bf16.mxu0 0
      %8466 = vmatpush1.bf16.msra.mxu0 0
      %8467 = vmatprep.subr.bf16.mxu0 0
      %8468 = vmatpush1.bf16.msra.mxu0 0
      %8469 = vmatprep.subr.bf16.mxu0 0
      %8470 = vmatpush1.bf16.msra.mxu0 0
      %8471 = vmatprep.subr.bf16.mxu0 0
      %8472 = vmatpush1.bf16.msra.mxu0 0
      %8473 = vmatprep.subr.bf16.mxu0 0
      %8474 = vmatpush1.bf16.msra.mxu0 0
      %8475 = vmatprep.subr.bf16.mxu0 0
      %8476 = vmatpush1.bf16.msra.mxu0 0
      %8477 = vmatprep.mubr.bf16.mxu0 0
      %8478 = vmatmul.mubr.bf16.gmra.mrb[0].mxu0 %v7089
      %v8479 = vpop.f32.mrb[0].mxu0
      %v8480 = vadd.f32 %v8319, %v8479
      %v8481 = vpop.f32.mrb[0].mxu0
      %v8482 = vpop.f32.mrb[0].mxu0
      %v8483 = vadd.f32 %v8322, %v8482
      %v8484 = vpop.f32.mrb[0].mxu0
      %8485 = vmatprep.mubr.bf16.mxu0 0
      %8486 = vmatmul.mubr.bf16.gmra.mrb[0].mxu0 %v7098
      %v8487 = vpop.f32.mrb[0].mxu0
      %v8488 = vadd.f32 %v8327, %v8487
      %v8489 = vpop.f32.mrb[0].mxu0
      %v8490 = vpop.f32.mrb[0].mxu0
      %v8491 = vadd.f32 %v8330, %v8490
      %v8492 = vpop.f32.mrb[0].mxu0
      %8493 = vmatprep.mubr.bf16.mxu0 0
      %8494 = vmatmul.mubr.bf16.gmra.mrb[0].mxu0 %v7107
      %v8495 = vpop.f32.mrb[0].mxu0
      %v8496 = vadd.f32 %v8335, %v8495
      %v8497 = vpop.f32.mrb[0].mxu0
      %v8498 = vpop.f32.mrb[0].mxu0
      %v8499 = vadd.f32 %v8338, %v8498
      %v8500 = vpop.f32.mrb[0].mxu0
      %8501 = vmatprep.mubr.bf16.mxu0 0
      %8502 = vmatmul.mubr.bf16.gmra.mrb[0].mxu0 %v7116
      %v8503 = vpop.f32.mrb[0].mxu0
      %v8504 = vadd.f32 %v8343, %v8503
      %v8505 = vpop.f32.mrb[0].mxu0
      %v8506 = vpop.f32.mrb[0].mxu0
      %v8507 = vadd.f32 %v8346, %v8506
      %v8508 = vpop.f32.mrb[0].mxu0
      %8509 = vmatprep.mubr.bf16.mxu0 0
      %8510 = vmatmul.mubr.bf16.gmra.mrb[0].mxu0 %v7125
      %v8511 = vpop.f32.mrb[0].mxu0
      %v8512 = vadd.f32 %v8351, %v8511
      %v8513 = vpop.f32.mrb[0].mxu0
      %v8514 = vpop.f32.mrb[0].mxu0
      %v8515 = vadd.f32 %v8354, %v8514
      %v8516 = vpop.f32.mrb[0].mxu0
      %8517 = vmatprep.mubr.bf16.mxu0 0
      %8518 = vmatmul.mubr.bf16.gmra.mrb[0].mxu0 %v7134
      %v8519 = vpop.f32.mrb[0].mxu0
      %v8520 = vadd.f32 %v8359, %v8519
      %v8521 = vpop.f32.mrb[0].mxu0
      %v8522 = vpop.f32.mrb[0].mxu0
      %v8523 = vadd.f32 %v8362, %v8522
      %v8524 = vpop.f32.mrb[0].mxu0
      %8525 = vmatprep.mubr.bf16.mxu0 0
      %8526 = vmatmul.mubr.bf16.gmra.mrb[0].mxu0 %v7143
      %v8527 = vpop.f32.mrb[0].mxu0
      %v8528 = vadd.f32 %v8367, %v8527
      %v8529 = vpop.f32.mrb[0].mxu0
      %v8530 = vpop.f32.mrb[0].mxu0
      %v8531 = vadd.f32 %v8370, %v8530
      %v8532 = vpop.f32.mrb[0].mxu0
      %8533 = vmatprep.mubr.bf16.mxu0 0
      %8534 = vmatmul.mubr.bf16.gmra.mrb[0].mxu0 %v7152
      %v8535 = vpop.f32.mrb[0].mxu0
      %v8536 = vadd.f32 %v8375, %v8535
      %v8537 = vpop.f32.mrb[0].mxu0
      %v8538 = vpop.f32.mrb[0].mxu0
      %v8539 = vadd.f32 %v8378, %v8538
      %v8540 = vpop.f32.mrb[0].mxu0
      %8541 = vmatprep.mubr.bf16.mxu0 0
      %8542 = vmatmul.mubr.bf16.gmra.mrb[0].mxu0 %v7161
      %v8543 = vpop.f32.mrb[0].mxu0
      %v8544 = vadd.f32 %v8383, %v8543
      %v8545 = vpop.f32.mrb[0].mxu0
      %v8546 = vpop.f32.mrb[0].mxu0
      %v8547 = vadd.f32 %v8386, %v8546
      %v8548 = vpop.f32.mrb[0].mxu0
      %8549 = vmatprep.mubr.bf16.mxu0 0
      %8550 = vmatmul.mubr.bf16.gmra.mrb[0].mxu0 %v7170
      %v8551 = vpop.f32.mrb[0].mxu0
      %v8552 = vadd.f32 %v8391, %v8551
      %v8553 = vpop.f32.mrb[0].mxu0
      %v8554 = vpop.f32.mrb[0].mxu0
      %v8555 = vadd.f32 %v8394, %v8554
      %v8556 = vpop.f32.mrb[0].mxu0
      %8557 = vmatprep.mubr.bf16.mxu0 0
      %8558 = vmatmul.mubr.bf16.gmra.mrb[0].mxu0 %v7179
      %v8559 = vpop.f32.mrb[0].mxu0
      %v8560 = vadd.f32 %v8399, %v8559
      %v8561 = vpop.f32.mrb[0].mxu0
      %v8562 = vpop.f32.mrb[0].mxu0
      %v8563 = vadd.f32 %v8402, %v8562
      %v8564 = vpop.f32.mrb[0].mxu0
      %8565 = vmatprep.mubr.bf16.mxu0 0
      %8566 = vmatmul.mubr.bf16.gmra.mrb[0].mxu0 %v7188
      %v8567 = vpop.f32.mrb[0].mxu0
      %v8568 = vadd.f32 %v8407, %v8567
      %v8569 = vpop.f32.mrb[0].mxu0
      %v8570 = vpop.f32.mrb[0].mxu0
      %v8571 = vadd.f32 %v8410, %v8570
      %v8572 = vpop.f32.mrb[0].mxu0
      %8573 = vmatprep.mubr.bf16.mxu0 0
      %8574 = vmatmul.mubr.bf16.gmra.mrb[0].mxu0 %v7197
      %v8575 = vpop.f32.mrb[0].mxu0
      %v8576 = vadd.f32 %v8415, %v8575
      %v8577 = vpop.f32.mrb[0].mxu0
      %v8578 = vpop.f32.mrb[0].mxu0
      %v8579 = vadd.f32 %v8418, %v8578
      %v8580 = vpop.f32.mrb[0].mxu0
      %8581 = vmatprep.mubr.bf16.mxu0 0
      %8582 = vmatmul.mubr.bf16.gmra.mrb[0].mxu0 %v7206
      %v8583 = vpop.f32.mrb[0].mxu0
      %v8584 = vadd.f32 %v8423, %v8583
      %v8585 = vpop.f32.mrb[0].mxu0
      %v8586 = vpop.f32.mrb[0].mxu0
      %v8587 = vadd.f32 %v8426, %v8586
      %v8588 = vpop.f32.mrb[0].mxu0
      %8589 = vmatprep.mubr.bf16.mxu0 0
      %8590 = vmatmul.mubr.bf16.gmra.mrb[0].mxu0 %v7215
      %v8591 = vpop.f32.mrb[0].mxu0
      %v8592 = vadd.f32 %v8431, %v8591
      %v8593 = vpop.f32.mrb[0].mxu0
      %v8594 = vpop.f32.mrb[0].mxu0
      %v8595 = vadd.f32 %v8434, %v8594
      %v8596 = vpop.f32.mrb[0].mxu0
      %8597 = vmatprep.mubr.bf16.mxu0 0
      %8598 = vmatmul.mubr.bf16.gmra.mrb[0].mxu0 %v7224
      %v8599 = vpop.f32.mrb[0].mxu0
      %v8600 = vadd.f32 %v8439, %v8599
      %v8601 = vpop.f32.mrb[0].mxu0
      %v8602 = vpop.f32.mrb[0].mxu0
      %v8603 = vadd.f32 %v8442, %v8602
      %v8604 = vpop.f32.mrb[0].mxu0
      %8605 = vdwg.mxu0
      %v8606 = vld [vmem:[%s5] sm:$0x1]
      %v8608 = vlaneseq
      %v8609 = vshrl.u32 %v8608, 7
      %v8610 = vsub.s32 0, %v8609
      %v8611 = vrot.slane %v8606, %v8610
      %v8613 = vmul.f32 %v8480, %v8611
      %v8614 = vmul.f32 %v8483, %v8611
      %v8615 = vmul.f32 %v8488, %v8611
      %v8616 = vmul.f32 %v8491, %v8611
      %v8617 = vmul.f32 %v8496, %v8611
      %v8618 = vmul.f32 %v8499, %v8611
      %v8619 = vmul.f32 %v8504, %v8611
      %v8620 = vmul.f32 %v8507, %v8611
      %v8621 = vmul.f32 %v8512, %v8611
      %v8622 = vmul.f32 %v8515, %v8611
      %v8623 = vmul.f32 %v8520, %v8611
      %v8624 = vmul.f32 %v8523, %v8611
      %v8625 = vmul.f32 %v8528, %v8611
      %v8626 = vmul.f32 %v8531, %v8611
      %v8627 = vmul.f32 %v8536, %v8611
      %v8628 = vmul.f32 %v8539, %v8611
      %v8629 = vmul.f32 %v8544, %v8611
      %v8630 = vmul.f32 %v8547, %v8611
      %v8631 = vmul.f32 %v8552, %v8611
      %v8632 = vmul.f32 %v8555, %v8611
      %v8633 = vmul.f32 %v8560, %v8611
      %v8634 = vmul.f32 %v8563, %v8611
      %v8635 = vmul.f32 %v8568, %v8611
      %v8636 = vmul.f32 %v8571, %v8611
      %v8637 = vmul.f32 %v8576, %v8611
      %v8638 = vmul.f32 %v8579, %v8611
      %v8639 = vmul.f32 %v8584, %v8611
      %v8640 = vmul.f32 %v8587, %v8611
      %v8641 = vmul.f32 %v8592, %v8611
      %v8642 = vmul.f32 %v8595, %v8611
      %v8643 = vmul.f32 %v8600, %v8611
      %v8644 = vmul.f32 %v8603, %v8611
      %v8645 = vld [vmem:[%s6] sm:$0x1]
      %v8647 = vlaneseq
      %v8648 = vshrl.u32 %v8647, 7
      %v8649 = vsub.s32 0, %v8648
      %v8650 = vrot.slane %v8645, %v8649
      %v8652 = vadd.f32 %v8613, %v8650
      %v8653 = vadd.f32 %v8614, %v8650
      %v8654 = vadd.f32 %v8615, %v8650
      %v8655 = vadd.f32 %v8616, %v8650
      %v8656 = vadd.f32 %v8617, %v8650
      %v8657 = vadd.f32 %v8618, %v8650
      %v8658 = vadd.f32 %v8619, %v8650
      %v8659 = vadd.f32 %v8620, %v8650
      %v8660 = vadd.f32 %v8621, %v8650
      %v8661 = vadd.f32 %v8622, %v8650
      %v8662 = vadd.f32 %v8623, %v8650
      %v8663 = vadd.f32 %v8624, %v8650
      %v8664 = vadd.f32 %v8625, %v8650
      %v8665 = vadd.f32 %v8626, %v8650
      %v8666 = vadd.f32 %v8627, %v8650
      %v8667 = vadd.f32 %v8628, %v8650
      %v8668 = vadd.f32 %v8629, %v8650
      %v8669 = vadd.f32 %v8630, %v8650
      %v8670 = vadd.f32 %v8631, %v8650
      %v8671 = vadd.f32 %v8632, %v8650
      %v8672 = vadd.f32 %v8633, %v8650
      %v8673 = vadd.f32 %v8634, %v8650
      %v8674 = vadd.f32 %v8635, %v8650
      %v8675 = vadd.f32 %v8636, %v8650
      %v8676 = vadd.f32 %v8637, %v8650
      %v8677 = vadd.f32 %v8638, %v8650
      %v8678 = vadd.f32 %v8639, %v8650
      %v8679 = vadd.f32 %v8640, %v8650
      %v8680 = vadd.f32 %v8641, %v8650
      %v8681 = vadd.f32 %v8642, %v8650
      %v8682 = vadd.f32 %v8643, %v8650
      %v8683 = vadd.f32 %v8644, %v8650
      %v8684 = vld [vmem:[%s273] sm:$0xff]
      %v8685 = vld [vmem:[%s273 + $0x8] sm:$0xff]
      %v8686 = vld [vmem:[%s273 + $0x10] sm:$0xff]
      %v8687 = vld [vmem:[%s273 + $0x18] sm:$0xff]
      %v8688 = vld [vmem:[%s273 + $0x20] sm:$0xff]
      %v8689 = vld [vmem:[%s273 + $0x28] sm:$0xff]
      %v8690 = vld [vmem:[%s273 + $0x30] sm:$0xff]
      %v8691 = vld [vmem:[%s273 + $0x38] sm:$0xff]
      %v8692 = vld [vmem:[%s273 + $0x40] sm:$0xff]
      %v8693 = vld [vmem:[%s273 + $0x48] sm:$0xff]
      %v8694 = vld [vmem:[%s273 + $0x50] sm:$0xff]
      %v8695 = vld [vmem:[%s273 + $0x58] sm:$0xff]
      %v8696 = vld [vmem:[%s273 + $0x60] sm:$0xff]
      %v8697 = vld [vmem:[%s273 + $0x68] sm:$0xff]
      %v8698 = vld [vmem:[%s273 + $0x70] sm:$0xff]
      %v8699 = vld [vmem:[%s273 + $0x78] sm:$0xff]
      %v8700 = vld [vmem:[%s273 + $0x80] sm:$0xff]
      %v8701 = vld [vmem:[%s273 + $0x88] sm:$0xff]
      %v8702 = vld [vmem:[%s273 + $0x90] sm:$0xff]
      %v8703 = vld [vmem:[%s273 + $0x98] sm:$0xff]
      %v8704 = vld [vmem:[%s273 + $0xa0] sm:$0xff]
      %v8705 = vld [vmem:[%s273 + $0xa8] sm:$0xff]
      %v8706 = vld [vmem:[%s273 + $0xb0] sm:$0xff]
      %v8707 = vld [vmem:[%s273 + $0xb8] sm:$0xff]
      %v8708 = vld [vmem:[%s273 + $0xc0] sm:$0xff]
      %v8709 = vld [vmem:[%s273 + $0xc8] sm:$0xff]
      %v8710 = vld [vmem:[%s273 + $0xd0] sm:$0xff]
      %v8711 = vld [vmem:[%s273 + $0xd8] sm:$0xff]
      %v8712 = vld [vmem:[%s273 + $0xe0] sm:$0xff]
      %v8713 = vld [vmem:[%s273 + $0xe8] sm:$0xff]
      %v8714 = vld [vmem:[%s273 + $0xf0] sm:$0xff]
      %v8715 = vld [vmem:[%s273 + $0xf8] sm:$0xff]
      %v8716 = vadd.f32 %v8652, %v8684
      %v8717 = vadd.f32 %v8653, %v8685
      %v8718 = vadd.f32 %v8654, %v8686
      %v8719 = vadd.f32 %v8655, %v8687
      %v8720 = vadd.f32 %v8656, %v8688
      %v8721 = vadd.f32 %v8657, %v8689
      %v8722 = vadd.f32 %v8658, %v8690
      %v8723 = vadd.f32 %v8659, %v8691
      %v8724 = vadd.f32 %v8660, %v8692
      %v8725 = vadd.f32 %v8661, %v8693
      %v8726 = vadd.f32 %v8662, %v8694
      %v8727 = vadd.f32 %v8663, %v8695
      %v8728 = vadd.f32 %v8664, %v8696
      %v8729 = vadd.f32 %v8665, %v8697
      %v8730 = vadd.f32 %v8666, %v8698
      %v8731 = vadd.f32 %v8667, %v8699
      %v8732 = vadd.f32 %v8668, %v8700
      %v8733 = vadd.f32 %v8669, %v8701
      %v8734 = vadd.f32 %v8670, %v8702
      %v8735 = vadd.f32 %v8671, %v8703
      %v8736 = vadd.f32 %v8672, %v8704
      %v8737 = vadd.f32 %v8673, %v8705
      %v8738 = vadd.f32 %v8674, %v8706
      %v8739 = vadd.f32 %v8675, %v8707
      %v8740 = vadd.f32 %v8676, %v8708
      %v8741 = vadd.f32 %v8677, %v8709
      %v8742 = vadd.f32 %v8678, %v8710
      %v8743 = vadd.f32 %v8679, %v8711
      %v8744 = vadd.f32 %v8680, %v8712
      %v8745 = vadd.f32 %v8681, %v8713
      %v8746 = vadd.f32 %v8682, %v8714
      %v8747 = vadd.f32 %v8683, %v8715
      %v8748 = vmax.f32 %v8716, 0.0
      %v8749 = vmax.f32 %v8717, 0.0
      %v8750 = vmax.f32 %v8718, 0.0
      %v8751 = vmax.f32 %v8719, 0.0
      %v8752 = vmax.f32 %v8720, 0.0
      %v8753 = vmax.f32 %v8721, 0.0
      %v8754 = vmax.f32 %v8722, 0.0
      %v8755 = vmax.f32 %v8723, 0.0
      %v8756 = vmax.f32 %v8724, 0.0
      %v8757 = vmax.f32 %v8725, 0.0
      %v8758 = vmax.f32 %v8726, 0.0
      %v8759 = vmax.f32 %v8727, 0.0
      %v8760 = vmax.f32 %v8728, 0.0
      %v8761 = vmax.f32 %v8729, 0.0
      %v8762 = vmax.f32 %v8730, 0.0
      %v8763 = vmax.f32 %v8731, 0.0
      %v8764 = vmax.f32 %v8732, 0.0
      %v8765 = vmax.f32 %v8733, 0.0
      %v8766 = vmax.f32 %v8734, 0.0
      %v8767 = vmax.f32 %v8735, 0.0
      %v8768 = vmax.f32 %v8736, 0.0
      %v8769 = vmax.f32 %v8737, 0.0
      %v8770 = vmax.f32 %v8738, 0.0
      %v8771 = vmax.f32 %v8739, 0.0
      %v8772 = vmax.f32 %v8740, 0.0
      %v8773 = vmax.f32 %v8741, 0.0
      %v8774 = vmax.f32 %v8742, 0.0
      %v8775 = vmax.f32 %v8743, 0.0
      %v8776 = vmax.f32 %v8744, 0.0
      %v8777 = vmax.f32 %v8745, 0.0
      %v8778 = vmax.f32 %v8746, 0.0
      %v8779 = vmax.f32 %v8747, 0.0
      %8780 = vst [vmem:[%s278] sm:$0xff] %v8748
      %8781 = vst [vmem:[%s278 + $0x8] sm:$0xff] %v8749
      %8782 = vst [vmem:[%s278 + $0x10] sm:$0xff] %v8750
      %8783 = vst [vmem:[%s278 + $0x18] sm:$0xff] %v8751
      %8784 = vst [vmem:[%s278 + $0x20] sm:$0xff] %v8752
      %8785 = vst [vmem:[%s278 + $0x28] sm:$0xff] %v8753
      %8786 = vst [vmem:[%s278 + $0x30] sm:$0xff] %v8754
      %8787 = vst [vmem:[%s278 + $0x38] sm:$0xff] %v8755
      %8788 = vst [vmem:[%s278 + $0x40] sm:$0xff] %v8756
      %8789 = vst [vmem:[%s278 + $0x48] sm:$0xff] %v8757
      %8790 = vst [vmem:[%s278 + $0x50] sm:$0xff] %v8758
      %8791 = vst [vmem:[%s278 + $0x58] sm:$0xff] %v8759
      %8792 = vst [vmem:[%s278 + $0x60] sm:$0xff] %v8760
      %8793 = vst [vmem:[%s278 + $0x68] sm:$0xff] %v8761
      %8794 = vst [vmem:[%s278 + $0x70] sm:$0xff] %v8762
      %8795 = vst [vmem:[%s278 + $0x78] sm:$0xff] %v8763
      %8796 = vst [vmem:[%s278 + $0x80] sm:$0xff] %v8764
      %8797 = vst [vmem:[%s278 + $0x88] sm:$0xff] %v8765
      %8798 = vst [vmem:[%s278 + $0x90] sm:$0xff] %v8766
      %8799 = vst [vmem:[%s278 + $0x98] sm:$0xff] %v8767
      %8800 = vst [vmem:[%s278 + $0xa0] sm:$0xff] %v8768
      %8801 = vst [vmem:[%s278 + $0xa8] sm:$0xff] %v8769
      %8802 = vst [vmem:[%s278 + $0xb0] sm:$0xff] %v8770
      %8803 = vst [vmem:[%s278 + $0xb8] sm:$0xff] %v8771
      %8804 = vst [vmem:[%s278 + $0xc0] sm:$0xff] %v8772
      %8805 = vst [vmem:[%s278 + $0xc8] sm:$0xff] %v8773
      %8806 = vst [vmem:[%s278 + $0xd0] sm:$0xff] %v8774
      %8807 = vst [vmem:[%s278 + $0xd8] sm:$0xff] %v8775
      %8808 = vst [vmem:[%s278 + $0xe0] sm:$0xff] %v8776
      %8809 = vst [vmem:[%s278 + $0xe8] sm:$0xff] %v8777
      %8810 = vst [vmem:[%s278 + $0xf0] sm:$0xff] %v8778
      %8811 = vst [vmem:[%s278 + $0xf8] sm:$0xff] %v8779
      %p8812 = scmp.lt.s32.totalorder %s18, 1
      %s8813 = scalar_select %p8812, %s18, 1
      %s8814 = smul.addr %s8813, 32
      %s8815 = smul.addr %s8814, 8
      %s8816 = scalar_lea.vmem %s7, %s8815
      // Predicated region
      $region49: #{conv_block_forward.1} parent=47 // pred_check
        %p8817 = pneg %p188
      $region50: #{conv_block_forward.1} parent=47 // pred_check_branch
        %8819 = sbr.rel (%p8817) target = $region52
      $region51: #{conv_block_forward.1} parent=47 // pred_region
        _
      $region52: #{conv_block_forward.1} parent=47 // pred_fallthru
        _
    $region48: #{conv_block_forward.1} parent=5 // pred_fallthru
      _
    %p8820 = scmp.le.s32.totalorder 2, %s13
    // Predicated region
    $region53: #{conv_block_forward.1} parent=5 // pred_check
      %p8821 = pneg %p8820
    $region54: #{conv_block_forward.1} parent=5 // pred_check_branch
      %8823 = sbr.rel (%p8821) target = $region56
    $region55: #{conv_block_forward.1} parent=5 // pred_region
      %s8824 = ssub.s32 %s13, 2
      // Predicated region
      $region57: #{conv_block_forward.1} parent=55 // pred_check
        %p8825 = pneg %p194
      $region58: #{conv_block_forward.1} parent=55 // pred_check_branch
        %8827 = sbr.rel (%p8825) target = $region60
      $region59: #{conv_block_forward.1} parent=55 // pred_region
        %p8828 = scmp.lt.s32.totalorder %s19, 1
        %s8829 = scalar_select %p8828, %s19, 1
        %s8830 = smul.addr %s8829, 32
        %s8831 = smul.addr %s8830, 8
        %s8832 = scalar_lea.vmem %s7, %s8831
      $region60: #{conv_block_forward.1} parent=55 // pred_fallthru
        _
    $region56: #{conv_block_forward.1} parent=5 // pred_fallthru
      _
  $region6: #{conv_block_forward.1} parent=0 // loop_footer
    %s17 = sadd.s32 1, %s13
  $region7: #{conv_block_forward.1} parent=0 // loop_footer_branch
    %12 = sbr.rel target = $region3
  $region8: #{conv_block_forward.1} parent=0 // loop_exit
    _

</llo_original>
